<compile_context>
chip_gen: v6e
topology: v6e:2x2x1
jax: 0.10.0
libtpu: 0.0.40
codegen_flags: <defaults>
</compile_context>

<pallas_src>
import jax
import jax.numpy as jnp
from jax.experimental import pallas as pl
from jax.experimental.pallas import tpu as pltpu


# ----------------------------------------------------------------------------
# Fused Inception-C kernel (one grid step == one NHWC image)
# ----------------------------------------------------------------------------
def _inception_c_kernel(x_ref,
                        wb1_ref, ssb1_ref,      # branch1: avgpool3x3 -> 1x1
                        wf1_ref, ssf1_ref,      # fused 1x1: [b2 | b3_1 | b4_1a]
                        w31_ref, ss31_ref,      # branch3 1x3
                        w32_ref, ss32_ref,      # branch3 3x1
                        w4b_ref, ss4b_ref,      # branch4 1x3 (mid)
                        w4c_ref, ss4c_ref,      # branch4 3x1 (mid)
                        w41_ref, ss41_ref,      # branch4 1x3 (final)
                        w42_ref, ss42_ref,      # branch4 3x1 (final)
                        o_ref):
    H, W, Cin = x_ref.shape
    HW = H * W

    def bn_relu(y2d, ss_ref):
        # folded eval-mode BatchNorm (scale/shift) + ReLU, all in f32
        return jnp.maximum(y2d * ss_ref[0:1, :] + ss_ref[1:2, :], 0.0)

    def mm(a2d, w2d):
        return jnp.dot(a2d, w2d, preferred_element_type=jnp.float32)

    def shift(a3d, axis, off):
        """out[i] = a[i + off] along `axis`, zero fill at the halo (off in {-1,+1})."""
        size = a3d.shape[axis]
        zero = jnp.zeros_like(jax.lax.slice_in_dim(a3d, 0, 1, axis=axis))
        if off == 1:
            body = jax.lax.slice_in_dim(a3d, 1, size, axis=axis)
            return jnp.concatenate([body, zero], axis=axis)
        body = jax.lax.slice_in_dim(a3d, 0, size - 1, axis=axis)
        return jnp.concatenate([zero, body], axis=axis)

    def dconv(t2d, w_ref, ss_ref, axis):
        """1x3 (axis=1) or 3x1 (axis=0) conv + BN + ReLU on a (H*W, Ci) slab.

        Each tap is a full-slab matmul (no shifted relayout of the wide input);
        only the narrow per-tap result is halo-shifted and accumulated.
        """
        co = w_ref.shape[2]
        z0 = mm(t2d, w_ref[0]).reshape(H, W, co)    # pairs with x[i-1]
        z1 = mm(t2d, w_ref[1]).reshape(H, W, co)    # pairs with x[i]
        z2 = mm(t2d, w_ref[2]).reshape(H, W, co)    # pairs with x[i+1]
        acc = z1 + shift(z0, axis, -1) + shift(z2, axis, +1)
        return bn_relu(acc.reshape(HW, co), ss_ref)

    x = x_ref[...]                                  # (H, W, Cin), f32
    x2d = x.reshape(HW, Cin)

    # --- branch1: separable 3x3 avg pool (count_include_pad) fused with 1x1 ---
    rowsum = x + shift(x, 1, -1) + shift(x, 1, +1)                 # along W
    pooled = rowsum + shift(rowsum, 0, -1) + shift(rowsum, 0, +1)  # along H
    out1 = bn_relu(mm((pooled * (1.0 / 9.0)).reshape(HW, Cin), wb1_ref[...]),
                   ssb1_ref)

    # --- fused 1x1 convs on x: [branch2 | branch3_1 | branch4_1a] -------------
    t_all = bn_relu(mm(x2d, wf1_ref[...]), ssf1_ref)
    b3n1 = w31_ref.shape[1]
    b4n1 = w4b_ref.shape[1]
    b2 = wf1_ref.shape[1] - b3n1 - b4n1
    out2 = t_all[:, :b2]
    t3 = t_all[:, b2:b2 + b3n1]
    t4 = t_all[:, b2 + b3n1:]

    # --- branch3: {1x3, 3x1} pair sharing t3 ----------------------------------
    out31 = dconv(t3, w31_ref, ss31_ref, axis=1)
    out32 = dconv(t3, w32_ref, ss32_ref, axis=0)

    # --- branch4: 1x3 -> 3x1 -> {1x3, 3x1} -------------------------------------
    t4b = dconv(t4, w4b_ref, ss4b_ref, axis=1)
    t4c = dconv(t4b, w4c_ref, ss4c_ref, axis=0)
    out41 = dconv(t4c, w41_ref, ss41_ref, axis=1)
    out42 = dconv(t4c, w42_ref, ss42_ref, axis=0)

    # --- single lane-dense store of the concatenated block output --------------
    y = jnp.concatenate([out1, out2, out31, out32, out41, out42], axis=-1)
    o_ref[...] = y.reshape(H, W, -1).astype(o_ref.dtype)


# ----------------------------------------------------------------------------
# Wrapper: NCHW in / NCHW out, weight packing, pallas_call plumbing
# ----------------------------------------------------------------------------
def _pack_ss(p):
    return jnp.stack([p["scale"], p["shift"]], axis=0)            # (2, Cout)


def _w_1x1(p):
    return p["w"][0, 0]                                           # (Cin, Cout)


def _w_dir(p):
    w = p["w"]                                                    # (kh,kw,ci,co)
    return w.reshape(w.shape[0] * w.shape[1], w.shape[2], w.shape[3])


def inception_c_forward(params, x_nchw):
    x = jnp.transpose(x_nchw, (0, 2, 3, 1))                       # NCHW -> NHWC
    N, H, W, Cin = x.shape

    wb1, ssb1 = _w_1x1(params["b1"]), _pack_ss(params["b1"])
    wf1 = jnp.concatenate(
        [_w_1x1(params["b2"]), _w_1x1(params["b3_1"]), _w_1x1(params["b4_1a"])],
        axis=-1)
    ssf1 = jnp.concatenate(
        [_pack_ss(params["b2"]), _pack_ss(params["b3_1"]),
         _pack_ss(params["b4_1a"])], axis=-1)
    w31, ss31 = _w_dir(params["b3_1x3"]), _pack_ss(params["b3_1x3"])
    w32, ss32 = _w_dir(params["b3_3x1"]), _pack_ss(params["b3_3x1"])
    w4b, ss4b = _w_dir(params["b4_1b"]), _pack_ss(params["b4_1b"])
    w4c, ss4c = _w_dir(params["b4_1c"]), _pack_ss(params["b4_1c"])
    w41, ss41 = _w_dir(params["b4_1x3"]), _pack_ss(params["b4_1x3"])
    w42, ss42 = _w_dir(params["b4_3x1"]), _pack_ss(params["b4_3x1"])

    weights = (wb1, ssb1, wf1, ssf1, w31, ss31, w32, ss32,
               w4b, ss4b, w4c, ss4c, w41, ss41, w42, ss42)

    b1 = wb1.shape[1]
    c3 = w31.shape[2]
    c4 = w41.shape[2]
    b2 = wf1.shape[1] - w31.shape[1] - w4b.shape[1]
    ctot = b1 + b2 + 2 * c3 + 2 * c4

    def _resident(shape):
        # weights/scales: same block every grid step -> DMA'd once, stays in VMEM
        return pl.BlockSpec(shape, lambda n: (0,) * len(shape))

    flops = 0
    for w in (wb1, wf1, w31, w32, w4b, w4c, w41, w42):
        k = w.shape[0] if w.ndim == 3 else 1
        flops += 2 * k * w.shape[-2] * w.shape[-1]
    flops *= N * H * W
    bytes_accessed = 4 * (x.size + N * H * W * ctot + sum(w.size for w in weights))

    out_nhwc = pl.pallas_call(
        _inception_c_kernel,
        grid=(N,),
        out_shape=jax.ShapeDtypeStruct((N, H, W, ctot), x.dtype),
        in_specs=[pl.BlockSpec((None, H, W, Cin), lambda n: (n, 0, 0, 0))]
                 + [_resident(w.shape) for w in weights],
        out_specs=pl.BlockSpec((None, H, W, ctot), lambda n: (n, 0, 0, 0)),
        compiler_params=pltpu.CompilerParams(
            dimension_semantics=("parallel",),
            vmem_limit_bytes=32 * 1024 * 1024),
        cost_estimate=pl.CostEstimate(flops=flops, transcendentals=0,
                                      bytes_accessed=bytes_accessed),
    )(x, *weights)
    return jnp.transpose(out_nhwc, (0, 3, 1, 2))                  # NHWC -> NCHW


# ----------------------------------------------------------------------------
# Deterministic parameters: Conv2d(no bias) + BatchNorm2d (eval, folded) + ReLU
# ----------------------------------------------------------------------------
def make_bn_conv(key, cin, cout, kh, kw):
    w = jax.random.normal(key, (kh, kw, cin, cout), jnp.float32)
    w = w * (1.0 / jnp.sqrt(float(cin * kh * kw)))
    gamma = 1.0 + 0.02 * jnp.arange(cout, dtype=jnp.float32)
    beta = 0.01 * jnp.arange(cout, dtype=jnp.float32)
    running_mean = 0.05 * jnp.arange(cout, dtype=jnp.float32)
    running_var = jnp.ones((cout,), jnp.float32)
    scale = gamma * jax.lax.rsqrt(running_var + 1e-5)
    shift = beta - running_mean * scale
    return dict(w=w, scale=scale, shift=shift)     # arrays only (jit-safe pytree)


def init_inception_c(key, in_channels, b1, b2, b3_n1, b3_n1x3_3x1,
                     b4_n1, b4_n1x3, b4_n3x1, b4_n1x3_3x1):
    ks = jax.random.split(key, 10)
    return dict(
        b1=make_bn_conv(ks[0], in_channels, b1, 1, 1),
        b2=make_bn_conv(ks[1], in_channels, b2, 1, 1),
        b3_1=make_bn_conv(ks[2], in_channels, b3_n1, 1, 1),
        b3_1x3=make_bn_conv(ks[3], b3_n1, b3_n1x3_3x1, 1, 3),
        b3_3x1=make_bn_conv(ks[4], b3_n1, b3_n1x3_3x1, 3, 1),
        b4_1a=make_bn_conv(ks[5], in_channels, b4_n1, 1, 1),
        b4_1b=make_bn_conv(ks[6], b4_n1, b4_n1x3, 1, 3),
        b4_1c=make_bn_conv(ks[7], b4_n1x3, b4_n3x1, 3, 1),
        b4_1x3=make_bn_conv(ks[8], b4_n3x1, b4_n1x3_3x1, 1, 3),
        b4_3x1=make_bn_conv(ks[9], b4_n3x1, b4_n1x3_3x1, 3, 1),
    )


# ----------------------------------------------------------------------------
# Pure-JAX reference (matches the PyTorch eval-mode module semantics)
# ----------------------------------------------------------------------------
def _ref_bn_conv(x_nhwc, p):
    w = p["w"]
    kh, kw = w.shape[0], w.shape[1]
    y = jax.lax.conv_general_dilated(
        x_nhwc, w, window_strides=(1, 1),
        padding=((kh // 2, kh // 2), (kw // 2, kw // 2)),
        dimension_numbers=("NHWC", "HWIO", "NHWC"),
        precision=jax.lax.Precision.HIGHEST)
    return jnp.maximum(y * p["scale"] + p["shift"], 0.0)


def _ref_avgpool3(x_nhwc):
    s = jax.lax.reduce_window(x_nhwc, 0.0, jax.lax.add, (1, 3, 3, 1),
                              (1, 1, 1, 1), ((0, 0), (1, 1), (1, 1), (0, 0)))
    return s * (1.0 / 9.0)


def inception_c_reference(params, x_nchw):
    x = jnp.transpose(x_nchw, (0, 2, 3, 1))
    out1 = _ref_bn_conv(_ref_avgpool3(x), params["b1"])
    out2 = _ref_bn_conv(x, params["b2"])
    t3 = _ref_bn_conv(x, params["b3_1"])
    out31 = _ref_bn_conv(t3, params["b3_1x3"])
    out32 = _ref_bn_conv(t3, params["b3_3x1"])
    t4 = _ref_bn_conv(x, params["b4_1a"])
    t4 = _ref_bn_conv(t4, params["b4_1b"])
    t4 = _ref_bn_conv(t4, params["b4_1c"])
    out41 = _ref_bn_conv(t4, params["b4_1x3"])
    out42 = _ref_bn_conv(t4, params["b4_3x1"])
    out = jnp.concatenate((out1, out2, out31, out32, out41, out42), axis=-1)
    return jnp.transpose(out, (0, 3, 1, 2))


if __name__ == "__main__":
    # Small, module-consistent toy shapes.
    N, C, H, W = 2, 8, 16, 16
    b1, b2 = 4, 4
    b3_n1, b3_c = 8, 4
    b4_n1, b4_n1x3, b4_n3x1, b4_c = 8, 8, 8, 4

    key = jax.random.PRNGKey(0)
    kx, kp = jax.random.split(key)
    x = jax.random.normal(kx, (N, C, H, W), jnp.float32)
    params = init_inception_c(kp, C, b1, b2, b3_n1, b3_c,
                              b4_n1, b4_n1x3, b4_n3x1, b4_c)

    out = jax.jit(inception_c_forward)(params, x)
    out = jax.block_until_ready(out)

    expected_c = b1 + b2 + 2 * b3_c + 2 * b4_c
    assert out.shape == (N, expected_c, H, W), out.shape
    assert bool(jnp.all(jnp.isfinite(out)))

    ref = inception_c_reference(params, x)
    max_err = float(jnp.max(jnp.abs(out - ref)))
    assert max_err < 5e-3, f"max abs error vs reference: {max_err}"
    print("KERNEL_OK")
</pallas_src>

<mosaic_0001>
module attributes {stable_mosaic.version = 11 : i64} {
  func.func @_inception_c_kernel(%arg0: i32, %arg1: memref<1x16x16x8xf32, #tpu.memory_space<vmem>>, %arg2: memref<8x4xf32, #tpu.memory_space<vmem>>, %arg3: memref<2x4xf32, #tpu.memory_space<vmem>>, %arg4: memref<8x20xf32, #tpu.memory_space<vmem>>, %arg5: memref<2x20xf32, #tpu.memory_space<vmem>>, %arg6: memref<3x8x4xf32, #tpu.memory_space<vmem>>, %arg7: memref<2x4xf32, #tpu.memory_space<vmem>>, %arg8: memref<3x8x4xf32, #tpu.memory_space<vmem>>, %arg9: memref<2x4xf32, #tpu.memory_space<vmem>>, %arg10: memref<3x8x8xf32, #tpu.memory_space<vmem>>, %arg11: memref<2x8xf32, #tpu.memory_space<vmem>>, %arg12: memref<3x8x8xf32, #tpu.memory_space<vmem>>, %arg13: memref<2x8xf32, #tpu.memory_space<vmem>>, %arg14: memref<3x8x4xf32, #tpu.memory_space<vmem>>, %arg15: memref<2x4xf32, #tpu.memory_space<vmem>>, %arg16: memref<3x8x4xf32, #tpu.memory_space<vmem>>, %arg17: memref<2x4xf32, #tpu.memory_space<vmem>>, %arg18: memref<1x16x16x24xf32, #tpu.memory_space<vmem>>) attributes {dimension_semantics = [#tpu.dimension_semantics<parallel>], iteration_bounds = array<i64: 2>, scalar_prefetch = 0 : i64, scratch_operands = 0 : i64, tpu.core_type = #tpu.core_type<tc>, window_params = [{transform_indices = @transform_0, window_bounds = array<i64: 1, 16, 16, 8>}, {pipeline_mode = #tpu.pipeline_mode<synchronous>, transform_indices = @transform_1, window_bounds = array<i64: 8, 4>}, {pipeline_mode = #tpu.pipeline_mode<synchronous>, transform_indices = @transform_2, window_bounds = array<i64: 2, 4>}, {pipeline_mode = #tpu.pipeline_mode<synchronous>, transform_indices = @transform_3, window_bounds = array<i64: 8, 20>}, {pipeline_mode = #tpu.pipeline_mode<synchronous>, transform_indices = @transform_4, window_bounds = array<i64: 2, 20>}, {pipeline_mode = #tpu.pipeline_mode<synchronous>, transform_indices = @transform_5, window_bounds = array<i64: 3, 8, 4>}, {pipeline_mode = #tpu.pipeline_mode<synchronous>, transform_indices = @transform_6, window_bounds = array<i64: 2, 4>}, {pipeline_mode = #tpu.pipeline_mode<synchronous>, transform_indices = @transform_7, window_bounds = array<i64: 3, 8, 4>}, {pipeline_mode = #tpu.pipeline_mode<synchronous>, transform_indices = @transform_8, window_bounds = array<i64: 2, 4>}, {pipeline_mode = #tpu.pipeline_mode<synchronous>, transform_indices = @transform_9, window_bounds = array<i64: 3, 8, 8>}, {pipeline_mode = #tpu.pipeline_mode<synchronous>, transform_indices = @transform_10, window_bounds = array<i64: 2, 8>}, {pipeline_mode = #tpu.pipeline_mode<synchronous>, transform_indices = @transform_11, window_bounds = array<i64: 3, 8, 8>}, {pipeline_mode = #tpu.pipeline_mode<synchronous>, transform_indices = @transform_12, window_bounds = array<i64: 2, 8>}, {pipeline_mode = #tpu.pipeline_mode<synchronous>, transform_indices = @transform_13, window_bounds = array<i64: 3, 8, 4>}, {pipeline_mode = #tpu.pipeline_mode<synchronous>, transform_indices = @transform_14, window_bounds = array<i64: 2, 4>}, {pipeline_mode = #tpu.pipeline_mode<synchronous>, transform_indices = @transform_15, window_bounds = array<i64: 3, 8, 4>}, {pipeline_mode = #tpu.pipeline_mode<synchronous>, transform_indices = @transform_16, window_bounds = array<i64: 2, 4>}, {transform_indices = @transform_17, window_bounds = array<i64: 1, 16, 16, 24>}]} {
    %c0 = arith.constant 0 : index
    %c0_0 = arith.constant 0 : index
    %c0_1 = arith.constant 0 : index
    %c0_2 = arith.constant 0 : index
    %0 = vector.load %arg1[%c0, %c0_0, %c0_1, %c0_2] : memref<1x16x16x8xf32, #tpu.memory_space<vmem>>, vector<1x16x16x8xf32>
    %1 = vector.shape_cast %0 : vector<1x16x16x8xf32> to vector<16x16x8xf32>
    %2 = vector.shape_cast %1 : vector<16x16x8xf32> to vector<256x8xf32>
    %cst = arith.constant 0.000000e+00 : f32
    %3 = vector.broadcast %cst : f32 to vector<16x1x8xf32>
    %4 = vector.extract_strided_slice %1 {offsets = [0, 0, 0], sizes = [16, 15, 8], strides = [1, 1, 1]} : vector<16x16x8xf32> to vector<16x15x8xf32>
    %5 = tpu.concatenate %3, %4 in 1 : vector<16x1x8xf32>, vector<16x15x8xf32> -> vector<16x16x8xf32>
    %6 = arith.addf %1, %5 : vector<16x16x8xf32>
    %cst_3 = arith.constant 0.000000e+00 : f32
    %7 = vector.broadcast %cst_3 : f32 to vector<16x1x8xf32>
    %8 = vector.extract_strided_slice %1 {offsets = [0, 1, 0], sizes = [16, 15, 8], strides = [1, 1, 1]} : vector<16x16x8xf32> to vector<16x15x8xf32>
    %9 = tpu.concatenate %8, %7 in 1 : vector<16x15x8xf32>, vector<16x1x8xf32> -> vector<16x16x8xf32>
    %10 = arith.addf %6, %9 : vector<16x16x8xf32>
    %cst_4 = arith.constant 0.000000e+00 : f32
    %11 = vector.broadcast %cst_4 : f32 to vector<1x16x8xf32>
    %12 = vector.extract_strided_slice %10 {offsets = [0, 0, 0], sizes = [15, 16, 8], strides = [1, 1, 1]} : vector<16x16x8xf32> to vector<15x16x8xf32>
    %13 = tpu.concatenate %11, %12 in 0 : vector<1x16x8xf32>, vector<15x16x8xf32> -> vector<16x16x8xf32>
    %14 = arith.addf %10, %13 : vector<16x16x8xf32>
    %cst_5 = arith.constant 0.000000e+00 : f32
    %15 = vector.broadcast %cst_5 : f32 to vector<1x16x8xf32>
    %16 = vector.extract_strided_slice %10 {offsets = [1, 0, 0], sizes = [15, 16, 8], strides = [1, 1, 1]} : vector<16x16x8xf32> to vector<15x16x8xf32>
    %17 = tpu.concatenate %16, %15 in 0 : vector<15x16x8xf32>, vector<1x16x8xf32> -> vector<16x16x8xf32>
    %18 = arith.addf %14, %17 : vector<16x16x8xf32>
    %cst_6 = arith.constant 0.111111112 : f32
    %19 = vector.broadcast %cst_6 : f32 to vector<16x16x8xf32>
    %20 = arith.mulf %18, %19 : vector<16x16x8xf32>
    %21 = vector.shape_cast %20 : vector<16x16x8xf32> to vector<256x8xf32>
    %c0_7 = arith.constant 0 : index
    %c0_8 = arith.constant 0 : index
    %22 = vector.load %arg2[%c0_7, %c0_8] : memref<8x4xf32, #tpu.memory_space<vmem>>, vector<8x4xf32>
    %cst_9 = arith.constant dense<0.000000e+00> : vector<256x4xf32>
    %23 = tpu.matmul %21, %22, %cst_9 {dimension_numbers = #tpu.dot_dimension_numbers<[1], [0], [0], [1], [0, 0, 1, 1], [], []>} : vector<256x8xf32>, vector<8x4xf32>, vector<256x4xf32> -> vector<256x4xf32>
    %c0_10 = arith.constant 0 : index
    %c0_11 = arith.constant 0 : index
    %24 = vector.load %arg3[%c0_10, %c0_11] : memref<2x4xf32, #tpu.memory_space<vmem>>, vector<1x4xf32>
    %25 = vector.broadcast %24 : vector<1x4xf32> to vector<256x4xf32>
    %26 = arith.mulf %23, %25 : vector<256x4xf32>
    %c1 = arith.constant 1 : index
    %c0_12 = arith.constant 0 : index
    %27 = vector.load %arg3[%c1, %c0_12] : memref<2x4xf32, #tpu.memory_space<vmem>>, vector<1x4xf32>
    %28 = vector.broadcast %27 : vector<1x4xf32> to vector<256x4xf32>
    %29 = arith.addf %26, %28 : vector<256x4xf32>
    %cst_13 = arith.constant 0.000000e+00 : f32
    %30 = vector.broadcast %cst_13 : f32 to vector<256x4xf32>
    %31 = arith.maximumf %29, %30 : vector<256x4xf32>
    %c0_14 = arith.constant 0 : index
    %c0_15 = arith.constant 0 : index
    %32 = vector.load %arg4[%c0_14, %c0_15] : memref<8x20xf32, #tpu.memory_space<vmem>>, vector<8x20xf32>
    %cst_16 = arith.constant dense<0.000000e+00> : vector<256x20xf32>
    %33 = tpu.matmul %2, %32, %cst_16 {dimension_numbers = #tpu.dot_dimension_numbers<[1], [0], [0], [1], [0, 0, 1, 1], [], []>} : vector<256x8xf32>, vector<8x20xf32>, vector<256x20xf32> -> vector<256x20xf32>
    %c0_17 = arith.constant 0 : index
    %c0_18 = arith.constant 0 : index
    %34 = vector.load %arg5[%c0_17, %c0_18] : memref<2x20xf32, #tpu.memory_space<vmem>>, vector<1x20xf32>
    %35 = vector.broadcast %34 : vector<1x20xf32> to vector<256x20xf32>
    %36 = arith.mulf %33, %35 : vector<256x20xf32>
    %c1_19 = arith.constant 1 : index
    %c0_20 = arith.constant 0 : index
    %37 = vector.load %arg5[%c1_19, %c0_20] : memref<2x20xf32, #tpu.memory_space<vmem>>, vector<1x20xf32>
    %38 = vector.broadcast %37 : vector<1x20xf32> to vector<256x20xf32>
    %39 = arith.addf %36, %38 : vector<256x20xf32>
    %cst_21 = arith.constant 0.000000e+00 : f32
    %40 = vector.broadcast %cst_21 : f32 to vector<256x20xf32>
    %41 = arith.maximumf %39, %40 : vector<256x20xf32>
    %42 = vector.extract_strided_slice %41 {offsets = [0, 0], sizes = [256, 4], strides = [1, 1]} : vector<256x20xf32> to vector<256x4xf32>
    %43 = vector.extract_strided_slice %41 {offsets = [0, 4], sizes = [256, 8], strides = [1, 1]} : vector<256x20xf32> to vector<256x8xf32>
    %44 = vector.extract_strided_slice %41 {offsets = [0, 12], sizes = [256, 8], strides = [1, 1]} : vector<256x20xf32> to vector<256x8xf32>
    %c0_22 = arith.constant 0 : index
    %c0_23 = arith.constant 0 : index
    %c0_24 = arith.constant 0 : index
    %45 = vector.load %arg6[%c0_22, %c0_23, %c0_24] : memref<3x8x4xf32, #tpu.memory_space<vmem>>, vector<1x8x4xf32>
    %46 = vector.shape_cast %45 : vector<1x8x4xf32> to vector<8x4xf32>
    %cst_25 = arith.constant dense<0.000000e+00> : vector<256x4xf32>
    %47 = tpu.matmul %43, %46, %cst_25 {dimension_numbers = #tpu.dot_dimension_numbers<[1], [0], [0], [1], [0, 0, 1, 1], [], []>} : vector<256x8xf32>, vector<8x4xf32>, vector<256x4xf32> -> vector<256x4xf32>
    %48 = vector.shape_cast %47 : vector<256x4xf32> to vector<16x16x4xf32>
    %c1_26 = arith.constant 1 : index
    %c0_27 = arith.constant 0 : index
    %c0_28 = arith.constant 0 : index
    %49 = vector.load %arg6[%c1_26, %c0_27, %c0_28] : memref<3x8x4xf32, #tpu.memory_space<vmem>>, vector<1x8x4xf32>
    %50 = vector.shape_cast %49 : vector<1x8x4xf32> to vector<8x4xf32>
    %cst_29 = arith.constant dense<0.000000e+00> : vector<256x4xf32>
    %51 = tpu.matmul %43, %50, %cst_29 {dimension_numbers = #tpu.dot_dimension_numbers<[1], [0], [0], [1], [0, 0, 1, 1], [], []>} : vector<256x8xf32>, vector<8x4xf32>, vector<256x4xf32> -> vector<256x4xf32>
    %52 = vector.shape_cast %51 : vector<256x4xf32> to vector<16x16x4xf32>
    %c2 = arith.constant 2 : index
    %c0_30 = arith.constant 0 : index
    %c0_31 = arith.constant 0 : index
    %53 = vector.load %arg6[%c2, %c0_30, %c0_31] : memref<3x8x4xf32, #tpu.memory_space<vmem>>, vector<1x8x4xf32>
    %54 = vector.shape_cast %53 : vector<1x8x4xf32> to vector<8x4xf32>
    %cst_32 = arith.constant dense<0.000000e+00> : vector<256x4xf32>
    %55 = tpu.matmul %43, %54, %cst_32 {dimension_numbers = #tpu.dot_dimension_numbers<[1], [0], [0], [1], [0, 0, 1, 1], [], []>} : vector<256x8xf32>, vector<8x4xf32>, vector<256x4xf32> -> vector<256x4xf32>
    %56 = vector.shape_cast %55 : vector<256x4xf32> to vector<16x16x4xf32>
    %cst_33 = arith.constant 0.000000e+00 : f32
    %57 = vector.broadcast %cst_33 : f32 to vector<16x1x4xf32>
    %58 = vector.extract_strided_slice %48 {offsets = [0, 0, 0], sizes = [16, 15, 4], strides = [1, 1, 1]} : vector<16x16x4xf32> to vector<16x15x4xf32>
    %59 = tpu.concatenate %57, %58 in 1 : vector<16x1x4xf32>, vector<16x15x4xf32> -> vector<16x16x4xf32>
    %60 = arith.addf %52, %59 : vector<16x16x4xf32>
    %cst_34 = arith.constant 0.000000e+00 : f32
    %61 = vector.broadcast %cst_34 : f32 to vector<16x1x4xf32>
    %62 = vector.extract_strided_slice %56 {offsets = [0, 1, 0], sizes = [16, 15, 4], strides = [1, 1, 1]} : vector<16x16x4xf32> to vector<16x15x4xf32>
    %63 = tpu.concatenate %62, %61 in 1 : vector<16x15x4xf32>, vector<16x1x4xf32> -> vector<16x16x4xf32>
    %64 = arith.addf %60, %63 : vector<16x16x4xf32>
    %65 = vector.shape_cast %64 : vector<16x16x4xf32> to vector<256x4xf32>
    %c0_35 = arith.constant 0 : index
    %c0_36 = arith.constant 0 : index
    %66 = vector.load %arg7[%c0_35, %c0_36] : memref<2x4xf32, #tpu.memory_space<vmem>>, vector<1x4xf32>
    %67 = vector.broadcast %66 : vector<1x4xf32> to vector<256x4xf32>
    %68 = arith.mulf %65, %67 : vector<256x4xf32>
    %c1_37 = arith.constant 1 : index
    %c0_38 = arith.constant 0 : index
    %69 = vector.load %arg7[%c1_37, %c0_38] : memref<2x4xf32, #tpu.memory_space<vmem>>, vector<1x4xf32>
    %70 = vector.broadcast %69 : vector<1x4xf32> to vector<256x4xf32>
    %71 = arith.addf %68, %70 : vector<256x4xf32>
    %cst_39 = arith.constant 0.000000e+00 : f32
    %72 = vector.broadcast %cst_39 : f32 to vector<256x4xf32>
    %73 = arith.maximumf %71, %72 : vector<256x4xf32>
    %c0_40 = arith.constant 0 : index
    %c0_41 = arith.constant 0 : index
    %c0_42 = arith.constant 0 : index
    %74 = vector.load %arg8[%c0_40, %c0_41, %c0_42] : memref<3x8x4xf32, #tpu.memory_space<vmem>>, vector<1x8x4xf32>
    %75 = vector.shape_cast %74 : vector<1x8x4xf32> to vector<8x4xf32>
    %cst_43 = arith.constant dense<0.000000e+00> : vector<256x4xf32>
    %76 = tpu.matmul %43, %75, %cst_43 {dimension_numbers = #tpu.dot_dimension_numbers<[1], [0], [0], [1], [0, 0, 1, 1], [], []>} : vector<256x8xf32>, vector<8x4xf32>, vector<256x4xf32> -> vector<256x4xf32>
    %77 = vector.shape_cast %76 : vector<256x4xf32> to vector<16x16x4xf32>
    %c1_44 = arith.constant 1 : index
    %c0_45 = arith.constant 0 : index
    %c0_46 = arith.constant 0 : index
    %78 = vector.load %arg8[%c1_44, %c0_45, %c0_46] : memref<3x8x4xf32, #tpu.memory_space<vmem>>, vector<1x8x4xf32>
    %79 = vector.shape_cast %78 : vector<1x8x4xf32> to vector<8x4xf32>
    %cst_47 = arith.constant dense<0.000000e+00> : vector<256x4xf32>
    %80 = tpu.matmul %43, %79, %cst_47 {dimension_numbers = #tpu.dot_dimension_numbers<[1], [0], [0], [1], [0, 0, 1, 1], [], []>} : vector<256x8xf32>, vector<8x4xf32>, vector<256x4xf32> -> vector<256x4xf32>
    %81 = vector.shape_cast %80 : vector<256x4xf32> to vector<16x16x4xf32>
    %c2_48 = arith.constant 2 : index
    %c0_49 = arith.constant 0 : index
    %c0_50 = arith.constant 0 : index
    %82 = vector.load %arg8[%c2_48, %c0_49, %c0_50] : memref<3x8x4xf32, #tpu.memory_space<vmem>>, vector<1x8x4xf32>
    %83 = vector.shape_cast %82 : vector<1x8x4xf32> to vector<8x4xf32>
    %cst_51 = arith.constant dense<0.000000e+00> : vector<256x4xf32>
    %84 = tpu.matmul %43, %83, %cst_51 {dimension_numbers = #tpu.dot_dimension_numbers<[1], [0], [0], [1], [0, 0, 1, 1], [], []>} : vector<256x8xf32>, vector<8x4xf32>, vector<256x4xf32> -> vector<256x4xf32>
    %85 = vector.shape_cast %84 : vector<256x4xf32> to vector<16x16x4xf32>
    %cst_52 = arith.constant 0.000000e+00 : f32
    %86 = vector.broadcast %cst_52 : f32 to vector<1x16x4xf32>
    %87 = vector.extract_strided_slice %77 {offsets = [0, 0, 0], sizes = [15, 16, 4], strides = [1, 1, 1]} : vector<16x16x4xf32> to vector<15x16x4xf32>
    %88 = tpu.concatenate %86, %87 in 0 : vector<1x16x4xf32>, vector<15x16x4xf32> -> vector<16x16x4xf32>
    %89 = arith.addf %81, %88 : vector<16x16x4xf32>
    %cst_53 = arith.constant 0.000000e+00 : f32
    %90 = vector.broadcast %cst_53 : f32 to vector<1x16x4xf32>
    %91 = vector.extract_strided_slice %85 {offsets = [1, 0, 0], sizes = [15, 16, 4], strides = [1, 1, 1]} : vector<16x16x4xf32> to vector<15x16x4xf32>
    %92 = tpu.concatenate %91, %90 in 0 : vector<15x16x4xf32>, vector<1x16x4xf32> -> vector<16x16x4xf32>
    %93 = arith.addf %89, %92 : vector<16x16x4xf32>
    %94 = vector.shape_cast %93 : vector<16x16x4xf32> to vector<256x4xf32>
    %c0_54 = arith.constant 0 : index
    %c0_55 = arith.constant 0 : index
    %95 = vector.load %arg9[%c0_54, %c0_55] : memref<2x4xf32, #tpu.memory_space<vmem>>, vector<1x4xf32>
    %96 = vector.broadcast %95 : vector<1x4xf32> to vector<256x4xf32>
    %97 = arith.mulf %94, %96 : vector<256x4xf32>
    %c1_56 = arith.constant 1 : index
    %c0_57 = arith.constant 0 : index
    %98 = vector.load %arg9[%c1_56, %c0_57] : memref<2x4xf32, #tpu.memory_space<vmem>>, vector<1x4xf32>
    %99 = vector.broadcast %98 : vector<1x4xf32> to vector<256x4xf32>
    %100 = arith.addf %97, %99 : vector<256x4xf32>
    %cst_58 = arith.constant 0.000000e+00 : f32
    %101 = vector.broadcast %cst_58 : f32 to vector<256x4xf32>
    %102 = arith.maximumf %100, %101 : vector<256x4xf32>
    %c0_59 = arith.constant 0 : index
    %c0_60 = arith.constant 0 : index
    %c0_61 = arith.constant 0 : index
    %103 = vector.load %arg10[%c0_59, %c0_60, %c0_61] : memref<3x8x8xf32, #tpu.memory_space<vmem>>, vector<1x8x8xf32>
    %104 = vector.shape_cast %103 : vector<1x8x8xf32> to vector<8x8xf32>
    %cst_62 = arith.constant dense<0.000000e+00> : vector<256x8xf32>
    %105 = tpu.matmul %44, %104, %cst_62 {dimension_numbers = #tpu.dot_dimension_numbers<[1], [0], [0], [1], [0, 0, 1, 1], [], []>} : vector<256x8xf32>, vector<8x8xf32>, vector<256x8xf32> -> vector<256x8xf32>
    %106 = vector.shape_cast %105 : vector<256x8xf32> to vector<16x16x8xf32>
    %c1_63 = arith.constant 1 : index
    %c0_64 = arith.constant 0 : index
    %c0_65 = arith.constant 0 : index
    %107 = vector.load %arg10[%c1_63, %c0_64, %c0_65] : memref<3x8x8xf32, #tpu.memory_space<vmem>>, vector<1x8x8xf32>
    %108 = vector.shape_cast %107 : vector<1x8x8xf32> to vector<8x8xf32>
    %cst_66 = arith.constant dense<0.000000e+00> : vector<256x8xf32>
    %109 = tpu.matmul %44, %108, %cst_66 {dimension_numbers = #tpu.dot_dimension_numbers<[1], [0], [0], [1], [0, 0, 1, 1], [], []>} : vector<256x8xf32>, vector<8x8xf32>, vector<256x8xf32> -> vector<256x8xf32>
    %110 = vector.shape_cast %109 : vector<256x8xf32> to vector<16x16x8xf32>
    %c2_67 = arith.constant 2 : index
    %c0_68 = arith.constant 0 : index
    %c0_69 = arith.constant 0 : index
    %111 = vector.load %arg10[%c2_67, %c0_68, %c0_69] : memref<3x8x8xf32, #tpu.memory_space<vmem>>, vector<1x8x8xf32>
    %112 = vector.shape_cast %111 : vector<1x8x8xf32> to vector<8x8xf32>
    %cst_70 = arith.constant dense<0.000000e+00> : vector<256x8xf32>
    %113 = tpu.matmul %44, %112, %cst_70 {dimension_numbers = #tpu.dot_dimension_numbers<[1], [0], [0], [1], [0, 0, 1, 1], [], []>} : vector<256x8xf32>, vector<8x8xf32>, vector<256x8xf32> -> vector<256x8xf32>
    %114 = vector.shape_cast %113 : vector<256x8xf32> to vector<16x16x8xf32>
    %cst_71 = arith.constant 0.000000e+00 : f32
    %115 = vector.broadcast %cst_71 : f32 to vector<16x1x8xf32>
    %116 = vector.extract_strided_slice %106 {offsets = [0, 0, 0], sizes = [16, 15, 8], strides = [1, 1, 1]} : vector<16x16x8xf32> to vector<16x15x8xf32>
    %117 = tpu.concatenate %115, %116 in 1 : vector<16x1x8xf32>, vector<16x15x8xf32> -> vector<16x16x8xf32>
    %118 = arith.addf %110, %117 : vector<16x16x8xf32>
    %cst_72 = arith.constant 0.000000e+00 : f32
    %119 = vector.broadcast %cst_72 : f32 to vector<16x1x8xf32>
    %120 = vector.extract_strided_slice %114 {offsets = [0, 1, 0], sizes = [16, 15, 8], strides = [1, 1, 1]} : vector<16x16x8xf32> to vector<16x15x8xf32>
    %121 = tpu.concatenate %120, %119 in 1 : vector<16x15x8xf32>, vector<16x1x8xf32> -> vector<16x16x8xf32>
    %122 = arith.addf %118, %121 : vector<16x16x8xf32>
    %123 = vector.shape_cast %122 : vector<16x16x8xf32> to vector<256x8xf32>
    %c0_73 = arith.constant 0 : index
    %c0_74 = arith.constant 0 : index
    %124 = vector.load %arg11[%c0_73, %c0_74] : memref<2x8xf32, #tpu.memory_space<vmem>>, vector<1x8xf32>
    %125 = vector.broadcast %124 : vector<1x8xf32> to vector<256x8xf32>
    %126 = arith.mulf %123, %125 : vector<256x8xf32>
    %c1_75 = arith.constant 1 : index
    %c0_76 = arith.constant 0 : index
    %127 = vector.load %arg11[%c1_75, %c0_76] : memref<2x8xf32, #tpu.memory_space<vmem>>, vector<1x8xf32>
    %128 = vector.broadcast %127 : vector<1x8xf32> to vector<256x8xf32>
    %129 = arith.addf %126, %128 : vector<256x8xf32>
    %cst_77 = arith.constant 0.000000e+00 : f32
    %130 = vector.broadcast %cst_77 : f32 to vector<256x8xf32>
    %131 = arith.maximumf %129, %130 : vector<256x8xf32>
    %c0_78 = arith.constant 0 : index
    %c0_79 = arith.constant 0 : index
    %c0_80 = arith.constant 0 : index
    %132 = vector.load %arg12[%c0_78, %c0_79, %c0_80] : memref<3x8x8xf32, #tpu.memory_space<vmem>>, vector<1x8x8xf32>
    %133 = vector.shape_cast %132 : vector<1x8x8xf32> to vector<8x8xf32>
    %cst_81 = arith.constant dense<0.000000e+00> : vector<256x8xf32>
    %134 = tpu.matmul %131, %133, %cst_81 {dimension_numbers = #tpu.dot_dimension_numbers<[1], [0], [0], [1], [0, 0, 1, 1], [], []>} : vector<256x8xf32>, vector<8x8xf32>, vector<256x8xf32> -> vector<256x8xf32>
    %135 = vector.shape_cast %134 : vector<256x8xf32> to vector<16x16x8xf32>
    %c1_82 = arith.constant 1 : index
    %c0_83 = arith.constant 0 : index
    %c0_84 = arith.constant 0 : index
    %136 = vector.load %arg12[%c1_82, %c0_83, %c0_84] : memref<3x8x8xf32, #tpu.memory_space<vmem>>, vector<1x8x8xf32>
    %137 = vector.shape_cast %136 : vector<1x8x8xf32> to vector<8x8xf32>
    %cst_85 = arith.constant dense<0.000000e+00> : vector<256x8xf32>
    %138 = tpu.matmul %131, %137, %cst_85 {dimension_numbers = #tpu.dot_dimension_numbers<[1], [0], [0], [1], [0, 0, 1, 1], [], []>} : vector<256x8xf32>, vector<8x8xf32>, vector<256x8xf32> -> vector<256x8xf32>
    %139 = vector.shape_cast %138 : vector<256x8xf32> to vector<16x16x8xf32>
    %c2_86 = arith.constant 2 : index
    %c0_87 = arith.constant 0 : index
    %c0_88 = arith.constant 0 : index
    %140 = vector.load %arg12[%c2_86, %c0_87, %c0_88] : memref<3x8x8xf32, #tpu.memory_space<vmem>>, vector<1x8x8xf32>
    %141 = vector.shape_cast %140 : vector<1x8x8xf32> to vector<8x8xf32>
    %cst_89 = arith.constant dense<0.000000e+00> : vector<256x8xf32>
    %142 = tpu.matmul %131, %141, %cst_89 {dimension_numbers = #tpu.dot_dimension_numbers<[1], [0], [0], [1], [0, 0, 1, 1], [], []>} : vector<256x8xf32>, vector<8x8xf32>, vector<256x8xf32> -> vector<256x8xf32>
    %143 = vector.shape_cast %142 : vector<256x8xf32> to vector<16x16x8xf32>
    %cst_90 = arith.constant 0.000000e+00 : f32
    %144 = vector.broadcast %cst_90 : f32 to vector<1x16x8xf32>
    %145 = vector.extract_strided_slice %135 {offsets = [0, 0, 0], sizes = [15, 16, 8], strides = [1, 1, 1]} : vector<16x16x8xf32> to vector<15x16x8xf32>
    %146 = tpu.concatenate %144, %145 in 0 : vector<1x16x8xf32>, vector<15x16x8xf32> -> vector<16x16x8xf32>
    %147 = arith.addf %139, %146 : vector<16x16x8xf32>
    %cst_91 = arith.constant 0.000000e+00 : f32
    %148 = vector.broadcast %cst_91 : f32 to vector<1x16x8xf32>
    %149 = vector.extract_strided_slice %143 {offsets = [1, 0, 0], sizes = [15, 16, 8], strides = [1, 1, 1]} : vector<16x16x8xf32> to vector<15x16x8xf32>
    %150 = tpu.concatenate %149, %148 in 0 : vector<15x16x8xf32>, vector<1x16x8xf32> -> vector<16x16x8xf32>
    %151 = arith.addf %147, %150 : vector<16x16x8xf32>
    %152 = vector.shape_cast %151 : vector<16x16x8xf32> to vector<256x8xf32>
    %c0_92 = arith.constant 0 : index
    %c0_93 = arith.constant 0 : index
    %153 = vector.load %arg13[%c0_92, %c0_93] : memref<2x8xf32, #tpu.memory_space<vmem>>, vector<1x8xf32>
    %154 = vector.broadcast %153 : vector<1x8xf32> to vector<256x8xf32>
    %155 = arith.mulf %152, %154 : vector<256x8xf32>
    %c1_94 = arith.constant 1 : index
    %c0_95 = arith.constant 0 : index
    %156 = vector.load %arg13[%c1_94, %c0_95] : memref<2x8xf32, #tpu.memory_space<vmem>>, vector<1x8xf32>
    %157 = vector.broadcast %156 : vector<1x8xf32> to vector<256x8xf32>
    %158 = arith.addf %155, %157 : vector<256x8xf32>
    %cst_96 = arith.constant 0.000000e+00 : f32
    %159 = vector.broadcast %cst_96 : f32 to vector<256x8xf32>
    %160 = arith.maximumf %158, %159 : vector<256x8xf32>
    %c0_97 = arith.constant 0 : index
    %c0_98 = arith.constant 0 : index
    %c0_99 = arith.constant 0 : index
    %161 = vector.load %arg14[%c0_97, %c0_98, %c0_99] : memref<3x8x4xf32, #tpu.memory_space<vmem>>, vector<1x8x4xf32>
    %162 = vector.shape_cast %161 : vector<1x8x4xf32> to vector<8x4xf32>
    %cst_100 = arith.constant dense<0.000000e+00> : vector<256x4xf32>
    %163 = tpu.matmul %160, %162, %cst_100 {dimension_numbers = #tpu.dot_dimension_numbers<[1], [0], [0], [1], [0, 0, 1, 1], [], []>} : vector<256x8xf32>, vector<8x4xf32>, vector<256x4xf32> -> vector<256x4xf32>
    %164 = vector.shape_cast %163 : vector<256x4xf32> to vector<16x16x4xf32>
    %c1_101 = arith.constant 1 : index
    %c0_102 = arith.constant 0 : index
    %c0_103 = arith.constant 0 : index
    %165 = vector.load %arg14[%c1_101, %c0_102, %c0_103] : memref<3x8x4xf32, #tpu.memory_space<vmem>>, vector<1x8x4xf32>
    %166 = vector.shape_cast %165 : vector<1x8x4xf32> to vector<8x4xf32>
    %cst_104 = arith.constant dense<0.000000e+00> : vector<256x4xf32>
    %167 = tpu.matmul %160, %166, %cst_104 {dimension_numbers = #tpu.dot_dimension_numbers<[1], [0], [0], [1], [0, 0, 1, 1], [], []>} : vector<256x8xf32>, vector<8x4xf32>, vector<256x4xf32> -> vector<256x4xf32>
    %168 = vector.shape_cast %167 : vector<256x4xf32> to vector<16x16x4xf32>
    %c2_105 = arith.constant 2 : index
    %c0_106 = arith.constant 0 : index
    %c0_107 = arith.constant 0 : index
    %169 = vector.load %arg14[%c2_105, %c0_106, %c0_107] : memref<3x8x4xf32, #tpu.memory_space<vmem>>, vector<1x8x4xf32>
    %170 = vector.shape_cast %169 : vector<1x8x4xf32> to vector<8x4xf32>
    %cst_108 = arith.constant dense<0.000000e+00> : vector<256x4xf32>
    %171 = tpu.matmul %160, %170, %cst_108 {dimension_numbers = #tpu.dot_dimension_numbers<[1], [0], [0], [1], [0, 0, 1, 1], [], []>} : vector<256x8xf32>, vector<8x4xf32>, vector<256x4xf32> -> vector<256x4xf32>
    %172 = vector.shape_cast %171 : vector<256x4xf32> to vector<16x16x4xf32>
    %cst_109 = arith.constant 0.000000e+00 : f32
    %173 = vector.broadcast %cst_109 : f32 to vector<16x1x4xf32>
    %174 = vector.extract_strided_slice %164 {offsets = [0, 0, 0], sizes = [16, 15, 4], strides = [1, 1, 1]} : vector<16x16x4xf32> to vector<16x15x4xf32>
    %175 = tpu.concatenate %173, %174 in 1 : vector<16x1x4xf32>, vector<16x15x4xf32> -> vector<16x16x4xf32>
    %176 = arith.addf %168, %175 : vector<16x16x4xf32>
    %cst_110 = arith.constant 0.000000e+00 : f32
    %177 = vector.broadcast %cst_110 : f32 to vector<16x1x4xf32>
    %178 = vector.extract_strided_slice %172 {offsets = [0, 1, 0], sizes = [16, 15, 4], strides = [1, 1, 1]} : vector<16x16x4xf32> to vector<16x15x4xf32>
    %179 = tpu.concatenate %178, %177 in 1 : vector<16x15x4xf32>, vector<16x1x4xf32> -> vector<16x16x4xf32>
    %180 = arith.addf %176, %179 : vector<16x16x4xf32>
    %181 = vector.shape_cast %180 : vector<16x16x4xf32> to vector<256x4xf32>
    %c0_111 = arith.constant 0 : index
    %c0_112 = arith.constant 0 : index
    %182 = vector.load %arg15[%c0_111, %c0_112] : memref<2x4xf32, #tpu.memory_space<vmem>>, vector<1x4xf32>
    %183 = vector.broadcast %182 : vector<1x4xf32> to vector<256x4xf32>
    %184 = arith.mulf %181, %183 : vector<256x4xf32>
    %c1_113 = arith.constant 1 : index
    %c0_114 = arith.constant 0 : index
    %185 = vector.load %arg15[%c1_113, %c0_114] : memref<2x4xf32, #tpu.memory_space<vmem>>, vector<1x4xf32>
    %186 = vector.broadcast %185 : vector<1x4xf32> to vector<256x4xf32>
    %187 = arith.addf %184, %186 : vector<256x4xf32>
    %cst_115 = arith.constant 0.000000e+00 : f32
    %188 = vector.broadcast %cst_115 : f32 to vector<256x4xf32>
    %189 = arith.maximumf %187, %188 : vector<256x4xf32>
    %c0_116 = arith.constant 0 : index
    %c0_117 = arith.constant 0 : index
    %c0_118 = arith.constant 0 : index
    %190 = vector.load %arg16[%c0_116, %c0_117, %c0_118] : memref<3x8x4xf32, #tpu.memory_space<vmem>>, vector<1x8x4xf32>
    %191 = vector.shape_cast %190 : vector<1x8x4xf32> to vector<8x4xf32>
    %cst_119 = arith.constant dense<0.000000e+00> : vector<256x4xf32>
    %192 = tpu.matmul %160, %191, %cst_119 {dimension_numbers = #tpu.dot_dimension_numbers<[1], [0], [0], [1], [0, 0, 1, 1], [], []>} : vector<256x8xf32>, vector<8x4xf32>, vector<256x4xf32> -> vector<256x4xf32>
    %193 = vector.shape_cast %192 : vector<256x4xf32> to vector<16x16x4xf32>
    %c1_120 = arith.constant 1 : index
    %c0_121 = arith.constant 0 : index
    %c0_122 = arith.constant 0 : index
    %194 = vector.load %arg16[%c1_120, %c0_121, %c0_122] : memref<3x8x4xf32, #tpu.memory_space<vmem>>, vector<1x8x4xf32>
    %195 = vector.shape_cast %194 : vector<1x8x4xf32> to vector<8x4xf32>
    %cst_123 = arith.constant dense<0.000000e+00> : vector<256x4xf32>
    %196 = tpu.matmul %160, %195, %cst_123 {dimension_numbers = #tpu.dot_dimension_numbers<[1], [0], [0], [1], [0, 0, 1, 1], [], []>} : vector<256x8xf32>, vector<8x4xf32>, vector<256x4xf32> -> vector<256x4xf32>
    %197 = vector.shape_cast %196 : vector<256x4xf32> to vector<16x16x4xf32>
    %c2_124 = arith.constant 2 : index
    %c0_125 = arith.constant 0 : index
    %c0_126 = arith.constant 0 : index
    %198 = vector.load %arg16[%c2_124, %c0_125, %c0_126] : memref<3x8x4xf32, #tpu.memory_space<vmem>>, vector<1x8x4xf32>
    %199 = vector.shape_cast %198 : vector<1x8x4xf32> to vector<8x4xf32>
    %cst_127 = arith.constant dense<0.000000e+00> : vector<256x4xf32>
    %200 = tpu.matmul %160, %199, %cst_127 {dimension_numbers = #tpu.dot_dimension_numbers<[1], [0], [0], [1], [0, 0, 1, 1], [], []>} : vector<256x8xf32>, vector<8x4xf32>, vector<256x4xf32> -> vector<256x4xf32>
    %201 = vector.shape_cast %200 : vector<256x4xf32> to vector<16x16x4xf32>
    %cst_128 = arith.constant 0.000000e+00 : f32
    %202 = vector.broadcast %cst_128 : f32 to vector<1x16x4xf32>
    %203 = vector.extract_strided_slice %193 {offsets = [0, 0, 0], sizes = [15, 16, 4], strides = [1, 1, 1]} : vector<16x16x4xf32> to vector<15x16x4xf32>
    %204 = tpu.concatenate %202, %203 in 0 : vector<1x16x4xf32>, vector<15x16x4xf32> -> vector<16x16x4xf32>
    %205 = arith.addf %197, %204 : vector<16x16x4xf32>
    %cst_129 = arith.constant 0.000000e+00 : f32
    %206 = vector.broadcast %cst_129 : f32 to vector<1x16x4xf32>
    %207 = vector.extract_strided_slice %201 {offsets = [1, 0, 0], sizes = [15, 16, 4], strides = [1, 1, 1]} : vector<16x16x4xf32> to vector<15x16x4xf32>
    %208 = tpu.concatenate %207, %206 in 0 : vector<15x16x4xf32>, vector<1x16x4xf32> -> vector<16x16x4xf32>
    %209 = arith.addf %205, %208 : vector<16x16x4xf32>
    %210 = vector.shape_cast %209 : vector<16x16x4xf32> to vector<256x4xf32>
    %c0_130 = arith.constant 0 : index
    %c0_131 = arith.constant 0 : index
    %211 = vector.load %arg17[%c0_130, %c0_131] : memref<2x4xf32, #tpu.memory_space<vmem>>, vector<1x4xf32>
    %212 = vector.broadcast %211 : vector<1x4xf32> to vector<256x4xf32>
    %213 = arith.mulf %210, %212 : vector<256x4xf32>
    %c1_132 = arith.constant 1 : index
    %c0_133 = arith.constant 0 : index
    %214 = vector.load %arg17[%c1_132, %c0_133] : memref<2x4xf32, #tpu.memory_space<vmem>>, vector<1x4xf32>
    %215 = vector.broadcast %214 : vector<1x4xf32> to vector<256x4xf32>
    %216 = arith.addf %213, %215 : vector<256x4xf32>
    %cst_134 = arith.constant 0.000000e+00 : f32
    %217 = vector.broadcast %cst_134 : f32 to vector<256x4xf32>
    %218 = arith.maximumf %216, %217 : vector<256x4xf32>
    %219 = tpu.concatenate %31, %42, %73, %102, %189, %218 in 1 : vector<256x4xf32>, vector<256x4xf32>, vector<256x4xf32>, vector<256x4xf32>, vector<256x4xf32>, vector<256x4xf32> -> vector<256x24xf32>
    %220 = vector.shape_cast %219 : vector<256x24xf32> to vector<16x16x24xf32>
    %c0_135 = arith.constant 0 : index
    %c0_136 = arith.constant 0 : index
    %c0_137 = arith.constant 0 : index
    %c0_138 = arith.constant 0 : index
    %221 = vector.load %arg18[%c0_135, %c0_136, %c0_137, %c0_138] : memref<1x16x16x24xf32, #tpu.memory_space<vmem>>, vector<1x16x16x24xf32>
    %222 = vector.shape_cast %221 : vector<1x16x16x24xf32> to vector<16x16x24xf32>
    %223 = vector.shape_cast %220 : vector<16x16x24xf32> to vector<1x16x16x24xf32>
    tpu.vector_store %arg18[%c0_135, %c0_136, %c0_137, %c0_138], %223 {strides = array<i32>} : memref<1x16x16x24xf32, #tpu.memory_space<vmem>>, vector<1x16x16x24xf32>,
    return
  }
  func.func @transform_0(%arg0: i32) -> (i32, i32, i32, i32) {
    %c0_i32 = arith.constant 0 : i32
    %c0_i32_0 = arith.constant 0 : i32
    %c0_i32_1 = arith.constant 0 : i32
    %c0_i32_2 = arith.constant 0 : i32
    return %arg0, %c0_i32, %c0_i32_0, %c0_i32_1 : i32, i32, i32, i32
  }
  func.func @transform_1(%arg0: i32) -> (i32, i32) {
    %c0_i32 = arith.constant 0 : i32
    %c0_i32_0 = arith.constant 0 : i32
    %c0_i32_1 = arith.constant 0 : i32
    return %c0_i32, %c0_i32_0 : i32, i32
  }
  func.func @transform_2(%arg0: i32) -> (i32, i32) {
    %c0_i32 = arith.constant 0 : i32
    %c0_i32_0 = arith.constant 0 : i32
    %c0_i32_1 = arith.constant 0 : i32
    return %c0_i32, %c0_i32_0 : i32, i32
  }
  func.func @transform_3(%arg0: i32) -> (i32, i32) {
    %c0_i32 = arith.constant 0 : i32
    %c0_i32_0 = arith.constant 0 : i32
    %c0_i32_1 = arith.constant 0 : i32
    return %c0_i32, %c0_i32_0 : i32, i32
  }
  func.func @transform_4(%arg0: i32) -> (i32, i32) {
    %c0_i32 = arith.constant 0 : i32
    %c0_i32_0 = arith.constant 0 : i32
    %c0_i32_1 = arith.constant 0 : i32
    return %c0_i32, %c0_i32_0 : i32, i32
  }
  func.func @transform_5(%arg0: i32) -> (i32, i32, i32) {
    %c0_i32 = arith.constant 0 : i32
    %c0_i32_0 = arith.constant 0 : i32
    %c0_i32_1 = arith.constant 0 : i32
    %c0_i32_2 = arith.constant 0 : i32
    return %c0_i32, %c0_i32_0, %c0_i32_1 : i32, i32, i32
  }
  func.func @transform_6(%arg0: i32) -> (i32, i32) {
    %c0_i32 = arith.constant 0 : i32
    %c0_i32_0 = arith.constant 0 : i32
    %c0_i32_1 = arith.constant 0 : i32
    return %c0_i32, %c0_i32_0 : i32, i32
  }
  func.func @transform_7(%arg0: i32) -> (i32, i32, i32) {
    %c0_i32 = arith.constant 0 : i32
    %c0_i32_0 = arith.constant 0 : i32
    %c0_i32_1 = arith.constant 0 : i32
    %c0_i32_2 = arith.constant 0 : i32
    return %c0_i32, %c0_i32_0, %c0_i32_1 : i32, i32, i32
  }
  func.func @transform_8(%arg0: i32) -> (i32, i32) {
    %c0_i32 = arith.constant 0 : i32
    %c0_i32_0 = arith.constant 0 : i32
    %c0_i32_1 = arith.constant 0 : i32
    return %c0_i32, %c0_i32_0 : i32, i32
  }
  func.func @transform_9(%arg0: i32) -> (i32, i32, i32) {
    %c0_i32 = arith.constant 0 : i32
    %c0_i32_0 = arith.constant 0 : i32
    %c0_i32_1 = arith.constant 0 : i32
    %c0_i32_2 = arith.constant 0 : i32
    return %c0_i32, %c0_i32_0, %c0_i32_1 : i32, i32, i32
  }
  func.func @transform_10(%arg0: i32) -> (i32, i32) {
    %c0_i32 = arith.constant 0 : i32
    %c0_i32_0 = arith.constant 0 : i32
    %c0_i32_1 = arith.constant 0 : i32
    return %c0_i32, %c0_i32_0 : i32, i32
  }
  func.func @transform_11(%arg0: i32) -> (i32, i32, i32) {
    %c0_i32 = arith.constant 0 : i32
    %c0_i32_0 = arith.constant 0 : i32
    %c0_i32_1 = arith.constant 0 : i32
    %c0_i32_2 = arith.constant 0 : i32
    return %c0_i32, %c0_i32_0, %c0_i32_1 : i32, i32, i32
  }
  func.func @transform_12(%arg0: i32) -> (i32, i32) {
    %c0_i32 = arith.constant 0 : i32
    %c0_i32_0 = arith.constant 0 : i32
    %c0_i32_1 = arith.constant 0 : i32
    return %c0_i32, %c0_i32_0 : i32, i32
  }
  func.func @transform_13(%arg0: i32) -> (i32, i32, i32) {
    %c0_i32 = arith.constant 0 : i32
    %c0_i32_0 = arith.constant 0 : i32
    %c0_i32_1 = arith.constant 0 : i32
    %c0_i32_2 = arith.constant 0 : i32
    return %c0_i32, %c0_i32_0, %c0_i32_1 : i32, i32, i32
  }
  func.func @transform_14(%arg0: i32) -> (i32, i32) {
    %c0_i32 = arith.constant 0 : i32
    %c0_i32_0 = arith.constant 0 : i32
    %c0_i32_1 = arith.constant 0 : i32
    return %c0_i32, %c0_i32_0 : i32, i32
  }
  func.func @transform_15(%arg0: i32) -> (i32, i32, i32) {
    %c0_i32 = arith.constant 0 : i32
    %c0_i32_0 = arith.constant 0 : i32
    %c0_i32_1 = arith.constant 0 : i32
    %c0_i32_2 = arith.constant 0 : i32
    return %c0_i32, %c0_i32_0, %c0_i32_1 : i32, i32, i32
  }
  func.func @transform_16(%arg0: i32) -> (i32, i32) {
    %c0_i32 = arith.constant 0 : i32
    %c0_i32_0 = arith.constant 0 : i32
    %c0_i32_1 = arith.constant 0 : i32
    return %c0_i32, %c0_i32_0 : i32, i32
  }
  func.func @transform_17(%arg0: i32) -> (i32, i32, i32, i32) {
    %c0_i32 = arith.constant 0 : i32
    %c0_i32_0 = arith.constant 0 : i32
    %c0_i32_1 = arith.constant 0 : i32
    %c0_i32_2 = arith.constant 0 : i32
    return %arg0, %c0_i32, %c0_i32_0, %c0_i32_1 : i32, i32, i32, i32
  }
}

</mosaic_0001>

<llo_original>
// kernel: inception_c_forward.1
$region0: #{inception_c_forward.1}
  #allocation0 [shape = 'u32[]', space=smem, size = 0x4, offset = 0x4, fixed_abs, tag = 'smem constant byte address 0x4 - core index']
  #allocation1 [shape = 'u32[144,128]{1,0:T(1,128)}', space=vmem, size = 0x12000, scoped, tag = 'internal scratch']
  %s0 = inlined_call_operand.vmem [shape: f32[2,16,16,8], index: 0, kind: input, shape index: {}]
  %s1 = inlined_call_operand.vmem [shape: f32[8,4], index: 1, kind: input, shape index: {}]
  %s2 = inlined_call_operand.vmem [shape: f32[2,4], index: 2, kind: input, shape index: {}]
  %s3 = inlined_call_operand.vmem [shape: f32[8,20], index: 3, kind: input, shape index: {}]
  %s4 = inlined_call_operand.vmem [shape: f32[2,20], index: 4, kind: input, shape index: {}]
  %s5 = inlined_call_operand.vmem [shape: f32[3,8,4], index: 5, kind: input, shape index: {}]
  %s6 = inlined_call_operand.vmem [shape: f32[2,4], index: 6, kind: input, shape index: {}]
  %s7 = inlined_call_operand.vmem [shape: f32[3,8,4], index: 7, kind: input, shape index: {}]
  %s8 = inlined_call_operand.vmem [shape: f32[2,4], index: 8, kind: input, shape index: {}]
  %s9 = inlined_call_operand.vmem [shape: f32[3,8,8], index: 9, kind: input, shape index: {}]
  %s10 = inlined_call_operand.vmem [shape: f32[2,8], index: 10, kind: input, shape index: {}]
  %s11 = inlined_call_operand.vmem [shape: f32[3,8,8], index: 11, kind: input, shape index: {}]
  %s12 = inlined_call_operand.vmem [shape: f32[2,8], index: 12, kind: input, shape index: {}]
  %s13 = inlined_call_operand.vmem [shape: f32[3,8,4], index: 13, kind: input, shape index: {}]
  %s14 = inlined_call_operand.vmem [shape: f32[2,4], index: 14, kind: input, shape index: {}]
  %s15 = inlined_call_operand.vmem [shape: f32[3,8,4], index: 15, kind: input, shape index: {}]
  %s16 = inlined_call_operand.vmem [shape: f32[2,4], index: 16, kind: input, shape index: {}]
  %s17 = inlined_call_operand.hbm [shape: f32[2,16,16,24], index: 17, kind: output, shape index: {}]
  %s18 = sld [smem:[#allocation0]]
  $region101: #{inception_c_forward.1} parent=0
    _
  %s20 = ssub.s32 1, %s18
  %s21 = scalar_select 0, %s20, %s18
  $region1: #{inception_c_forward.1} parent=0
    #allocation2 [shape = 'u8[262144]{0}', space=vmem, size = 0x40000, scoped, tag = 'output window, operand 0']
    #allocation3 [shape = 's32[2]{0}', space=sflag, size = 0x8, scoped, tag = 'scoped memory for inception_c_forward.1']
    %22 = vsyncpa [#allocation3], 0
    %s23 = scalar_lea.sflag [#allocation3], 1
    %24 = vsyncpa %s23, 0
    loop: start=0, step=1, limit=4
    $region2: #{inception_c_forward.1} parent=1 // loop_pre_header
      _
    $region3: #{inception_c_forward.1} parent=1 // loop_header
      %s26 = sphi 0, %s30
      %p27 = scmp.ge.s32.totalorder %s26, 4
      %s36 = sphi 0, %s38
      %s39 = sphi 0, %s36
      %s40 = sphi 0, %s39
      %s56 = sphi 0, %s40
      %s60 = sphi 0, %s60
      %s62 = sphi 0, %s60
      %s63 = sphi 0, %s62
      %s77 = sphi 0, %s63
      %s81 = sphi 0, %s81
      %s83 = sphi 0, %s81
      %s84 = sphi 0, %s83
      %s98 = sphi 0, %s84
      %s102 = sphi 0, %s102
      %s104 = sphi 0, %s102
      %s105 = sphi 0, %s104
      %s119 = sphi 0, %s105
      %s123 = sphi 0, %s123
      %s125 = sphi 0, %s123
      %s126 = sphi 0, %s125
      %s140 = sphi 0, %s126
      %s144 = sphi 0, %s144
      %s146 = sphi 0, %s144
      %s147 = sphi 0, %s146
      %s161 = sphi 0, %s147
      %s165 = sphi 0, %s165
      %s167 = sphi 0, %s165
      %s168 = sphi 0, %s167
      %s182 = sphi 0, %s168
      %s186 = sphi 0, %s186
      %s188 = sphi 0, %s186
      %s189 = sphi 0, %s188
      %s203 = sphi 0, %s189
      %s207 = sphi 0, %s207
      %s209 = sphi 0, %s207
      %s210 = sphi 0, %s209
      %s224 = sphi 0, %s210
      %s228 = sphi 0, %s228
      %s230 = sphi 0, %s228
      %s231 = sphi 0, %s230
      %s245 = sphi 0, %s231
      %s249 = sphi 0, %s249
      %s251 = sphi 0, %s249
      %s252 = sphi 0, %s251
      %s266 = sphi 0, %s252
      %s270 = sphi 0, %s270
      %s272 = sphi 0, %s270
      %s273 = sphi 0, %s272
      %s287 = sphi 0, %s273
      %s291 = sphi 0, %s291
      %s293 = sphi 0, %s291
      %s294 = sphi 0, %s293
      %s308 = sphi 0, %s294
      %s312 = sphi 0, %s312
      %s314 = sphi 0, %s312
      %s315 = sphi 0, %s314
      %s329 = sphi 0, %s315
      %s333 = sphi 0, %s333
      %s335 = sphi 0, %s333
      %s336 = sphi 0, %s335
      %s350 = sphi 0, %s336
      %s354 = sphi 0, %s354
      %s356 = sphi 0, %s354
      %s357 = sphi 0, %s356
      %s371 = sphi 0, %s357
      %s375 = sphi 0, %s375
      %s377 = sphi 0, %s375
      %s378 = sphi 0, %s377
      %s392 = sphi 0, %s378
      %s398 = sphi 0, %s400
      %s401 = sphi 0, %s398
      %s402 = sphi 0, %s401
      %s418 = sphi 0, %s402
    $region4: #{inception_c_forward.1} parent=1 // loop_header_branch
      %29 = sbr.rel (%p27) target = $region8
    $region5: #{inception_c_forward.1} parent=1 // loop_body
      %s31 = ssub.s32 %s26, 1
      %s32 = ssub.s32 %s26, 2
      %s33 = sadd.s32 %s26, 1
      %s34 = ssub.s32 %s26, %s33
      %p35 = scmp.eq.s32.totalorder %s34, 0
      %s37 = sadd.s32 %s36, 1
      %s38 = scalar_select %p35, %s36, %s37
      %p41 = pneg %p35
      %p42 = scmp.eq.s32.totalorder %s26, 1
      %p43 = por %p41, %p42
      %p44 = scmp.ne.s32.totalorder %s36, %s39
      %p45 = scmp.eq.s32.totalorder %s26, 0
      %p46 = por %p44, %p45
      %p47 = scmp.ne.s32.totalorder %s36, %s39
      %p48 = scmp.eq.s32.totalorder %s31, 1
      %p49 = por %p47, %p48
      %p50 = scmp.ne.s32.totalorder %s39, %s40
      %p51 = scmp.eq.s32.totalorder %s31, 0
      %p52 = por %p50, %p51
      %p53 = scmp.ne.s32.totalorder %s39, %s40
      %p54 = scmp.eq.s32.totalorder %s32, 1
      %p55 = por %p53, %p54
      %p57 = scmp.ne.s32.totalorder %s40, %s56
      %p58 = scmp.eq.s32.totalorder %s32, 0
      %p59 = por %p57, %p58
      %s61 = sadd.s32 %s60, 1
      %p64 = scmp.eq.s32.totalorder %s26, 1
      %p65 = scmp.ne.s32.totalorder %s60, %s62
      %p66 = scmp.eq.s32.totalorder %s26, 0
      %p67 = por %p65, %p66
      %p68 = scmp.ne.s32.totalorder %s60, %s62
      %p69 = scmp.eq.s32.totalorder %s31, 1
      %p70 = por %p68, %p69
      %p71 = scmp.ne.s32.totalorder %s62, %s63
      %p72 = scmp.eq.s32.totalorder %s31, 0
      %p73 = por %p71, %p72
      %p74 = scmp.ne.s32.totalorder %s62, %s63
      %p75 = scmp.eq.s32.totalorder %s32, 1
      %p76 = por %p74, %p75
      %p78 = scmp.ne.s32.totalorder %s63, %s77
      %p79 = scmp.eq.s32.totalorder %s32, 0
      %p80 = por %p78, %p79
      %s82 = sadd.s32 %s81, 1
      %p85 = scmp.eq.s32.totalorder %s26, 1
      %p86 = scmp.ne.s32.totalorder %s81, %s83
      %p87 = scmp.eq.s32.totalorder %s26, 0
      %p88 = por %p86, %p87
      %p89 = scmp.ne.s32.totalorder %s81, %s83
      %p90 = scmp.eq.s32.totalorder %s31, 1
      %p91 = por %p89, %p90
      %p92 = scmp.ne.s32.totalorder %s83, %s84
      %p93 = scmp.eq.s32.totalorder %s31, 0
      %p94 = por %p92, %p93
      %p95 = scmp.ne.s32.totalorder %s83, %s84
      %p96 = scmp.eq.s32.totalorder %s32, 1
      %p97 = por %p95, %p96
      %p99 = scmp.ne.s32.totalorder %s84, %s98
      %p100 = scmp.eq.s32.totalorder %s32, 0
      %p101 = por %p99, %p100
      %s103 = sadd.s32 %s102, 1
      %p106 = scmp.eq.s32.totalorder %s26, 1
      %p107 = scmp.ne.s32.totalorder %s102, %s104
      %p108 = scmp.eq.s32.totalorder %s26, 0
      %p109 = por %p107, %p108
      %p110 = scmp.ne.s32.totalorder %s102, %s104
      %p111 = scmp.eq.s32.totalorder %s31, 1
      %p112 = por %p110, %p111
      %p113 = scmp.ne.s32.totalorder %s104, %s105
      %p114 = scmp.eq.s32.totalorder %s31, 0
      %p115 = por %p113, %p114
      %p116 = scmp.ne.s32.totalorder %s104, %s105
      %p117 = scmp.eq.s32.totalorder %s32, 1
      %p118 = por %p116, %p117
      %p120 = scmp.ne.s32.totalorder %s105, %s119
      %p121 = scmp.eq.s32.totalorder %s32, 0
      %p122 = por %p120, %p121
      %s124 = sadd.s32 %s123, 1
      %p127 = scmp.eq.s32.totalorder %s26, 1
      %p128 = scmp.ne.s32.totalorder %s123, %s125
      %p129 = scmp.eq.s32.totalorder %s26, 0
      %p130 = por %p128, %p129
      %p131 = scmp.ne.s32.totalorder %s123, %s125
      %p132 = scmp.eq.s32.totalorder %s31, 1
      %p133 = por %p131, %p132
      %p134 = scmp.ne.s32.totalorder %s125, %s126
      %p135 = scmp.eq.s32.totalorder %s31, 0
      %p136 = por %p134, %p135
      %p137 = scmp.ne.s32.totalorder %s125, %s126
      %p138 = scmp.eq.s32.totalorder %s32, 1
      %p139 = por %p137, %p138
      %p141 = scmp.ne.s32.totalorder %s126, %s140
      %p142 = scmp.eq.s32.totalorder %s32, 0
      %p143 = por %p141, %p142
      %s145 = sadd.s32 %s144, 1
      %p148 = scmp.eq.s32.totalorder %s26, 1
      %p149 = scmp.ne.s32.totalorder %s144, %s146
      %p150 = scmp.eq.s32.totalorder %s26, 0
      %p151 = por %p149, %p150
      %p152 = scmp.ne.s32.totalorder %s144, %s146
      %p153 = scmp.eq.s32.totalorder %s31, 1
      %p154 = por %p152, %p153
      %p155 = scmp.ne.s32.totalorder %s146, %s147
      %p156 = scmp.eq.s32.totalorder %s31, 0
      %p157 = por %p155, %p156
      %p158 = scmp.ne.s32.totalorder %s146, %s147
      %p159 = scmp.eq.s32.totalorder %s32, 1
      %p160 = por %p158, %p159
      %p162 = scmp.ne.s32.totalorder %s147, %s161
      %p163 = scmp.eq.s32.totalorder %s32, 0
      %p164 = por %p162, %p163
      %s166 = sadd.s32 %s165, 1
      %p169 = scmp.eq.s32.totalorder %s26, 1
      %p170 = scmp.ne.s32.totalorder %s165, %s167
      %p171 = scmp.eq.s32.totalorder %s26, 0
      %p172 = por %p170, %p171
      %p173 = scmp.ne.s32.totalorder %s165, %s167
      %p174 = scmp.eq.s32.totalorder %s31, 1
      %p175 = por %p173, %p174
      %p176 = scmp.ne.s32.totalorder %s167, %s168
      %p177 = scmp.eq.s32.totalorder %s31, 0
      %p178 = por %p176, %p177
      %p179 = scmp.ne.s32.totalorder %s167, %s168
      %p180 = scmp.eq.s32.totalorder %s32, 1
      %p181 = por %p179, %p180
      %p183 = scmp.ne.s32.totalorder %s168, %s182
      %p184 = scmp.eq.s32.totalorder %s32, 0
      %p185 = por %p183, %p184
      %s187 = sadd.s32 %s186, 1
      %p190 = scmp.eq.s32.totalorder %s26, 1
      %p191 = scmp.ne.s32.totalorder %s186, %s188
      %p192 = scmp.eq.s32.totalorder %s26, 0
      %p193 = por %p191, %p192
      %p194 = scmp.ne.s32.totalorder %s186, %s188
      %p195 = scmp.eq.s32.totalorder %s31, 1
      %p196 = por %p194, %p195
      %p197 = scmp.ne.s32.totalorder %s188, %s189
      %p198 = scmp.eq.s32.totalorder %s31, 0
      %p199 = por %p197, %p198
      %p200 = scmp.ne.s32.totalorder %s188, %s189
      %p201 = scmp.eq.s32.totalorder %s32, 1
      %p202 = por %p200, %p201
      %p204 = scmp.ne.s32.totalorder %s189, %s203
      %p205 = scmp.eq.s32.totalorder %s32, 0
      %p206 = por %p204, %p205
      %s208 = sadd.s32 %s207, 1
      %p211 = scmp.eq.s32.totalorder %s26, 1
      %p212 = scmp.ne.s32.totalorder %s207, %s209
      %p213 = scmp.eq.s32.totalorder %s26, 0
      %p214 = por %p212, %p213
      %p215 = scmp.ne.s32.totalorder %s207, %s209
      %p216 = scmp.eq.s32.totalorder %s31, 1
      %p217 = por %p215, %p216
      %p218 = scmp.ne.s32.totalorder %s209, %s210
      %p219 = scmp.eq.s32.totalorder %s31, 0
      %p220 = por %p218, %p219
      %p221 = scmp.ne.s32.totalorder %s209, %s210
      %p222 = scmp.eq.s32.totalorder %s32, 1
      %p223 = por %p221, %p222
      %p225 = scmp.ne.s32.totalorder %s210, %s224
      %p226 = scmp.eq.s32.totalorder %s32, 0
      %p227 = por %p225, %p226
      %s229 = sadd.s32 %s228, 1
      %p232 = scmp.eq.s32.totalorder %s26, 1
      %p233 = scmp.ne.s32.totalorder %s228, %s230
      %p234 = scmp.eq.s32.totalorder %s26, 0
      %p235 = por %p233, %p234
      %p236 = scmp.ne.s32.totalorder %s228, %s230
      %p237 = scmp.eq.s32.totalorder %s31, 1
      %p238 = por %p236, %p237
      %p239 = scmp.ne.s32.totalorder %s230, %s231
      %p240 = scmp.eq.s32.totalorder %s31, 0
      %p241 = por %p239, %p240
      %p242 = scmp.ne.s32.totalorder %s230, %s231
      %p243 = scmp.eq.s32.totalorder %s32, 1
      %p244 = por %p242, %p243
      %p246 = scmp.ne.s32.totalorder %s231, %s245
      %p247 = scmp.eq.s32.totalorder %s32, 0
      %p248 = por %p246, %p247
      %s250 = sadd.s32 %s249, 1
      %p253 = scmp.eq.s32.totalorder %s26, 1
      %p254 = scmp.ne.s32.totalorder %s249, %s251
      %p255 = scmp.eq.s32.totalorder %s26, 0
      %p256 = por %p254, %p255
      %p257 = scmp.ne.s32.totalorder %s249, %s251
      %p258 = scmp.eq.s32.totalorder %s31, 1
      %p259 = por %p257, %p258
      %p260 = scmp.ne.s32.totalorder %s251, %s252
      %p261 = scmp.eq.s32.totalorder %s31, 0
      %p262 = por %p260, %p261
      %p263 = scmp.ne.s32.totalorder %s251, %s252
      %p264 = scmp.eq.s32.totalorder %s32, 1
      %p265 = por %p263, %p264
      %p267 = scmp.ne.s32.totalorder %s252, %s266
      %p268 = scmp.eq.s32.totalorder %s32, 0
      %p269 = por %p267, %p268
      %s271 = sadd.s32 %s270, 1
      %p274 = scmp.eq.s32.totalorder %s26, 1
      %p275 = scmp.ne.s32.totalorder %s270, %s272
      %p276 = scmp.eq.s32.totalorder %s26, 0
      %p277 = por %p275, %p276
      %p278 = scmp.ne.s32.totalorder %s270, %s272
      %p279 = scmp.eq.s32.totalorder %s31, 1
      %p280 = por %p278, %p279
      %p281 = scmp.ne.s32.totalorder %s272, %s273
      %p282 = scmp.eq.s32.totalorder %s31, 0
      %p283 = por %p281, %p282
      %p284 = scmp.ne.s32.totalorder %s272, %s273
      %p285 = scmp.eq.s32.totalorder %s32, 1
      %p286 = por %p284, %p285
      %p288 = scmp.ne.s32.totalorder %s273, %s287
      %p289 = scmp.eq.s32.totalorder %s32, 0
      %p290 = por %p288, %p289
      %s292 = sadd.s32 %s291, 1
      %p295 = scmp.eq.s32.totalorder %s26, 1
      %p296 = scmp.ne.s32.totalorder %s291, %s293
      %p297 = scmp.eq.s32.totalorder %s26, 0
      %p298 = por %p296, %p297
      %p299 = scmp.ne.s32.totalorder %s291, %s293
      %p300 = scmp.eq.s32.totalorder %s31, 1
      %p301 = por %p299, %p300
      %p302 = scmp.ne.s32.totalorder %s293, %s294
      %p303 = scmp.eq.s32.totalorder %s31, 0
      %p304 = por %p302, %p303
      %p305 = scmp.ne.s32.totalorder %s293, %s294
      %p306 = scmp.eq.s32.totalorder %s32, 1
      %p307 = por %p305, %p306
      %p309 = scmp.ne.s32.totalorder %s294, %s308
      %p310 = scmp.eq.s32.totalorder %s32, 0
      %p311 = por %p309, %p310
      %s313 = sadd.s32 %s312, 1
      %p316 = scmp.eq.s32.totalorder %s26, 1
      %p317 = scmp.ne.s32.totalorder %s312, %s314
      %p318 = scmp.eq.s32.totalorder %s26, 0
      %p319 = por %p317, %p318
      %p320 = scmp.ne.s32.totalorder %s312, %s314
      %p321 = scmp.eq.s32.totalorder %s31, 1
      %p322 = por %p320, %p321
      %p323 = scmp.ne.s32.totalorder %s314, %s315
      %p324 = scmp.eq.s32.totalorder %s31, 0
      %p325 = por %p323, %p324
      %p326 = scmp.ne.s32.totalorder %s314, %s315
      %p327 = scmp.eq.s32.totalorder %s32, 1
      %p328 = por %p326, %p327
      %p330 = scmp.ne.s32.totalorder %s315, %s329
      %p331 = scmp.eq.s32.totalorder %s32, 0
      %p332 = por %p330, %p331
      %s334 = sadd.s32 %s333, 1
      %p337 = scmp.eq.s32.totalorder %s26, 1
      %p338 = scmp.ne.s32.totalorder %s333, %s335
      %p339 = scmp.eq.s32.totalorder %s26, 0
      %p340 = por %p338, %p339
      %p341 = scmp.ne.s32.totalorder %s333, %s335
      %p342 = scmp.eq.s32.totalorder %s31, 1
      %p343 = por %p341, %p342
      %p344 = scmp.ne.s32.totalorder %s335, %s336
      %p345 = scmp.eq.s32.totalorder %s31, 0
      %p346 = por %p344, %p345
      %p347 = scmp.ne.s32.totalorder %s335, %s336
      %p348 = scmp.eq.s32.totalorder %s32, 1
      %p349 = por %p347, %p348
      %p351 = scmp.ne.s32.totalorder %s336, %s350
      %p352 = scmp.eq.s32.totalorder %s32, 0
      %p353 = por %p351, %p352
      %s355 = sadd.s32 %s354, 1
      %p358 = scmp.eq.s32.totalorder %s26, 1
      %p359 = scmp.ne.s32.totalorder %s354, %s356
      %p360 = scmp.eq.s32.totalorder %s26, 0
      %p361 = por %p359, %p360
      %p362 = scmp.ne.s32.totalorder %s354, %s356
      %p363 = scmp.eq.s32.totalorder %s31, 1
      %p364 = por %p362, %p363
      %p365 = scmp.ne.s32.totalorder %s356, %s357
      %p366 = scmp.eq.s32.totalorder %s31, 0
      %p367 = por %p365, %p366
      %p368 = scmp.ne.s32.totalorder %s356, %s357
      %p369 = scmp.eq.s32.totalorder %s32, 1
      %p370 = por %p368, %p369
      %p372 = scmp.ne.s32.totalorder %s357, %s371
      %p373 = scmp.eq.s32.totalorder %s32, 0
      %p374 = por %p372, %p373
      %s376 = sadd.s32 %s375, 1
      %p379 = scmp.eq.s32.totalorder %s26, 1
      %p380 = scmp.ne.s32.totalorder %s375, %s377
      %p381 = scmp.eq.s32.totalorder %s26, 0
      %p382 = por %p380, %p381
      %p383 = scmp.ne.s32.totalorder %s375, %s377
      %p384 = scmp.eq.s32.totalorder %s31, 1
      %p385 = por %p383, %p384
      %p386 = scmp.ne.s32.totalorder %s377, %s378
      %p387 = scmp.eq.s32.totalorder %s31, 0
      %p388 = por %p386, %p387
      %p389 = scmp.ne.s32.totalorder %s377, %s378
      %p390 = scmp.eq.s32.totalorder %s32, 1
      %p391 = por %p389, %p390
      %p393 = scmp.ne.s32.totalorder %s378, %s392
      %p394 = scmp.eq.s32.totalorder %s32, 0
      %p395 = por %p393, %p394
      %s396 = ssub.s32 %s26, %s33
      %p397 = scmp.eq.s32.totalorder %s396, 0
      %s399 = sadd.s32 %s398, 1
      %s400 = scalar_select %p397, %s398, %s399
      %p403 = pneg %p397
      %p404 = scmp.eq.s32.totalorder %s26, 1
      %p405 = por %p403, %p404
      %p406 = scmp.ne.s32.totalorder %s398, %s401
      %p407 = scmp.eq.s32.totalorder %s26, 0
      %p408 = por %p406, %p407
      %p409 = scmp.ne.s32.totalorder %s398, %s401
      %p410 = scmp.eq.s32.totalorder %s31, 1
      %p411 = por %p409, %p410
      %p412 = scmp.ne.s32.totalorder %s401, %s402
      %p413 = scmp.eq.s32.totalorder %s31, 0
      %p414 = por %p412, %p413
      %p415 = scmp.ne.s32.totalorder %s401, %s402
      %p416 = scmp.eq.s32.totalorder %s32, 1
      %p417 = por %p415, %p416
      %p419 = scmp.ne.s32.totalorder %s402, %s418
      %p420 = scmp.eq.s32.totalorder %s32, 0
      %p421 = por %p419, %p420
      %p422 = scmp.le.s32.totalorder 1, %s26
      %p423 = scmp.lt.s32.totalorder %s26, 3
      %p424 = pnand %p422, %p423
      %p425 = pneg %p424
      // Predicated region
      $region9: #{inception_c_forward.1} parent=5 // pred_check
        _
      $region10: #{inception_c_forward.1} parent=5 // pred_check_branch
        %427 = sbr.rel (%p424) target = $region12
      $region11: #{inception_c_forward.1} parent=5 // pred_region
        %s428 = ssub.s32 %s26, 1
        // Predicated region
        $region13: #{inception_c_forward.1} parent=11 // pred_check
          %p429 = pneg %p73
        $region14: #{inception_c_forward.1} parent=11 // pred_check_branch
          %431 = sbr.rel (%p429) target = $region16
        $region15: #{inception_c_forward.1} parent=11 // pred_region
          _
        $region16: #{inception_c_forward.1} parent=11 // pred_fallthru
          _
        // Predicated region
        $region17: #{inception_c_forward.1} parent=11 // pred_check
          %p432 = pneg %p94
        $region18: #{inception_c_forward.1} parent=11 // pred_check_branch
          %434 = sbr.rel (%p432) target = $region20
        $region19: #{inception_c_forward.1} parent=11 // pred_region
          _
        $region20: #{inception_c_forward.1} parent=11 // pred_fallthru
          _
        // Predicated region
        $region21: #{inception_c_forward.1} parent=11 // pred_check
          %p435 = pneg %p115
        $region22: #{inception_c_forward.1} parent=11 // pred_check_branch
          %437 = sbr.rel (%p435) target = $region24
        $region23: #{inception_c_forward.1} parent=11 // pred_region
          _
        $region24: #{inception_c_forward.1} parent=11 // pred_fallthru
          _
        // Predicated region
        $region25: #{inception_c_forward.1} parent=11 // pred_check
          %p438 = pneg %p136
        $region26: #{inception_c_forward.1} parent=11 // pred_check_branch
          %440 = sbr.rel (%p438) target = $region28
        $region27: #{inception_c_forward.1} parent=11 // pred_region
          _
        $region28: #{inception_c_forward.1} parent=11 // pred_fallthru
          _
        // Predicated region
        $region29: #{inception_c_forward.1} parent=11 // pred_check
          %p441 = pneg %p157
        $region30: #{inception_c_forward.1} parent=11 // pred_check_branch
          %443 = sbr.rel (%p441) target = $region32
        $region31: #{inception_c_forward.1} parent=11 // pred_region
          _
        $region32: #{inception_c_forward.1} parent=11 // pred_fallthru
          _
        // Predicated region
        $region33: #{inception_c_forward.1} parent=11 // pred_check
          %p444 = pneg %p178
        $region34: #{inception_c_forward.1} parent=11 // pred_check_branch
          %446 = sbr.rel (%p444) target = $region36
        $region35: #{inception_c_forward.1} parent=11 // pred_region
          _
        $region36: #{inception_c_forward.1} parent=11 // pred_fallthru
          _
        // Predicated region
        $region37: #{inception_c_forward.1} parent=11 // pred_check
          %p447 = pneg %p199
        $region38: #{inception_c_forward.1} parent=11 // pred_check_branch
          %449 = sbr.rel (%p447) target = $region40
        $region39: #{inception_c_forward.1} parent=11 // pred_region
          _
        $region40: #{inception_c_forward.1} parent=11 // pred_fallthru
          _
        // Predicated region
        $region41: #{inception_c_forward.1} parent=11 // pred_check
          %p450 = pneg %p220
        $region42: #{inception_c_forward.1} parent=11 // pred_check_branch
          %452 = sbr.rel (%p450) target = $region44
        $region43: #{inception_c_forward.1} parent=11 // pred_region
          _
        $region44: #{inception_c_forward.1} parent=11 // pred_fallthru
          _
        // Predicated region
        $region45: #{inception_c_forward.1} parent=11 // pred_check
          %p453 = pneg %p241
        $region46: #{inception_c_forward.1} parent=11 // pred_check_branch
          %455 = sbr.rel (%p453) target = $region48
        $region47: #{inception_c_forward.1} parent=11 // pred_region
          _
        $region48: #{inception_c_forward.1} parent=11 // pred_fallthru
          _
        // Predicated region
        $region49: #{inception_c_forward.1} parent=11 // pred_check
          %p456 = pneg %p262
        $region50: #{inception_c_forward.1} parent=11 // pred_check_branch
          %458 = sbr.rel (%p456) target = $region52
        $region51: #{inception_c_forward.1} parent=11 // pred_region
          _
        $region52: #{inception_c_forward.1} parent=11 // pred_fallthru
          _
        // Predicated region
        $region53: #{inception_c_forward.1} parent=11 // pred_check
          %p459 = pneg %p283
        $region54: #{inception_c_forward.1} parent=11 // pred_check_branch
          %461 = sbr.rel (%p459) target = $region56
        $region55: #{inception_c_forward.1} parent=11 // pred_region
          _
        $region56: #{inception_c_forward.1} parent=11 // pred_fallthru
          _
        // Predicated region
        $region57: #{inception_c_forward.1} parent=11 // pred_check
          %p462 = pneg %p304
        $region58: #{inception_c_forward.1} parent=11 // pred_check_branch
          %464 = sbr.rel (%p462) target = $region60
        $region59: #{inception_c_forward.1} parent=11 // pred_region
          _
        $region60: #{inception_c_forward.1} parent=11 // pred_fallthru
          _
        // Predicated region
        $region61: #{inception_c_forward.1} parent=11 // pred_check
          %p465 = pneg %p325
        $region62: #{inception_c_forward.1} parent=11 // pred_check_branch
          %467 = sbr.rel (%p465) target = $region64
        $region63: #{inception_c_forward.1} parent=11 // pred_region
          _
        $region64: #{inception_c_forward.1} parent=11 // pred_fallthru
          _
        // Predicated region
        $region65: #{inception_c_forward.1} parent=11 // pred_check
          %p468 = pneg %p346
        $region66: #{inception_c_forward.1} parent=11 // pred_check_branch
          %470 = sbr.rel (%p468) target = $region68
        $region67: #{inception_c_forward.1} parent=11 // pred_region
          _
        $region68: #{inception_c_forward.1} parent=11 // pred_fallthru
          _
        // Predicated region
        $region69: #{inception_c_forward.1} parent=11 // pred_check
          %p471 = pneg %p367
        $region70: #{inception_c_forward.1} parent=11 // pred_check_branch
          %473 = sbr.rel (%p471) target = $region72
        $region71: #{inception_c_forward.1} parent=11 // pred_region
          _
        $region72: #{inception_c_forward.1} parent=11 // pred_fallthru
          _
        // Predicated region
        $region73: #{inception_c_forward.1} parent=11 // pred_check
          %p474 = pneg %p388
        $region74: #{inception_c_forward.1} parent=11 // pred_check_branch
          %476 = sbr.rel (%p474) target = $region76
        $region75: #{inception_c_forward.1} parent=11 // pred_region
          _
        $region76: #{inception_c_forward.1} parent=11 // pred_fallthru
          _
      $region12: #{inception_c_forward.1} parent=5 // pred_fallthru
        _
      %p477 = scmp.lt.s32.totalorder %s26, 2
      // Predicated region
      $region77: #{inception_c_forward.1} parent=5 // pred_check
        %p478 = pneg %p477
      $region78: #{inception_c_forward.1} parent=5 // pred_check_branch
        %480 = sbr.rel (%p478) target = $region80
      $region79: #{inception_c_forward.1} parent=5 // pred_region
        // Predicated region
        $region81: #{inception_c_forward.1} parent=79 // pred_check
          %p481 = pneg %p46
        $region82: #{inception_c_forward.1} parent=79 // pred_check_branch
          %483 = sbr.rel (%p481) target = $region84
        $region83: #{inception_c_forward.1} parent=79 // pred_region
          %p484 = scmp.lt.s32.totalorder %s26, 1
          %s485 = scalar_select %p484, %s26, 1
          %s486 = smul.addr %s485, 32
          %s487 = smul.addr %s486, 8
          %s488 = scalar_lea.vmem %s0, %s487
        $region84: #{inception_c_forward.1} parent=79 // pred_fallthru
          _
      $region80: #{inception_c_forward.1} parent=5 // pred_fallthru
        _
      %p489 = scmp.le.s32.totalorder 1, %s26
      %p490 = scmp.lt.s32.totalorder %s26, 3
      %p491 = pnand %p489, %p490
      %p492 = pneg %p491
      // Predicated region
      $region85: #{inception_c_forward.1} parent=5 // pred_check
        _
      $region86: #{inception_c_forward.1} parent=5 // pred_check_branch
        %494 = sbr.rel (%p491) target = $region88
      $region87: #{inception_c_forward.1} parent=5 // pred_region
        %s495 = ssub.s32 %s26, 1
        %p496 = scmp.lt.s32.totalorder %s31, 1
        %s497 = scalar_select %p496, %s31, 1
        %s498 = smul.addr %s497, 32
        %s499 = smul.addr %s498, 8
        %s500 = scalar_lea.vmem %s0, %s499
        %p501 = pneg %p52
        %p502 = pneg %p49
        %p503 = pneg %p73
        %p504 = pneg %p70
        %p505 = pneg %p94
        %p506 = pneg %p91
        %p507 = pneg %p115
        %p508 = pneg %p112
        %p509 = pneg %p136
        %p510 = pneg %p133
        %p511 = pneg %p157
        %p512 = pneg %p154
        %p513 = pneg %p178
        %p514 = pneg %p175
        %p515 = pneg %p199
        %p516 = pneg %p196
        %p517 = pneg %p220
        %p518 = pneg %p217
        %p519 = pneg %p241
        %p520 = pneg %p238
        %p521 = pneg %p262
        %p522 = pneg %p259
        %p523 = pneg %p283
        %p524 = pneg %p280
        %p525 = pneg %p304
        %p526 = pneg %p301
        %p527 = pneg %p325
        %p528 = pneg %p322
        %p529 = pneg %p346
        %p530 = pneg %p343
        %p531 = pneg %p367
        %p532 = pneg %p364
        %p533 = pneg %p388
        %p534 = pneg %p385
        %p535 = pneg %p414
        %p536 = pneg %p411
        %s537 = sand.u32 %s401, 1
        %s538 = scalar_lea.sflag [#allocation3], %s537
        %s539 = sand.u32 %s401, 1
        %s540 = smul.addr %s539, 256
        %s541 = scalar_lea.vmem [#allocation2], %s540
        %p542 = scmp.lt.s32.totalorder %s31, 1
        %s543 = scalar_select %p542, %s31, 1
        %s544 = smul.addr %s543, 32
        %s545 = smul.addr %s544, 8
        %s546 = scalar_lea.vmem %s0, %s545
        %v547 = vld [vmem:[%s546] sm:$0xff]
        %v548 = vld [vmem:[%s546 + $0x8] sm:$0xff]
        %v549 = vld [vmem:[%s546 + $0x10] sm:$0xff]
        %v550 = vld [vmem:[%s546 + $0x18] sm:$0xff]
        %v551 = vld [vmem:[%s546 + $0x20] sm:$0xff]
        %v552 = vld [vmem:[%s546 + $0x28] sm:$0xff]
        %v553 = vld [vmem:[%s546 + $0x30] sm:$0xff]
        %v554 = vld [vmem:[%s546 + $0x38] sm:$0xff]
        %v555 = vld [vmem:[%s546 + $0x40] sm:$0xff]
        %v556 = vld [vmem:[%s546 + $0x48] sm:$0xff]
        %v557 = vld [vmem:[%s546 + $0x50] sm:$0xff]
        %v558 = vld [vmem:[%s546 + $0x58] sm:$0xff]
        %v559 = vld [vmem:[%s546 + $0x60] sm:$0xff]
        %v560 = vld [vmem:[%s546 + $0x68] sm:$0xff]
        %v561 = vld [vmem:[%s546 + $0x70] sm:$0xff]
        %v562 = vld [vmem:[%s546 + $0x78] sm:$0xff]
        %v563 = vld [vmem:[%s546 + $0x80] sm:$0xff]
        %v564 = vld [vmem:[%s546 + $0x88] sm:$0xff]
        %v565 = vld [vmem:[%s546 + $0x90] sm:$0xff]
        %v566 = vld [vmem:[%s546 + $0x98] sm:$0xff]
        %v567 = vld [vmem:[%s546 + $0xa0] sm:$0xff]
        %v568 = vld [vmem:[%s546 + $0xa8] sm:$0xff]
        %v569 = vld [vmem:[%s546 + $0xb0] sm:$0xff]
        %v570 = vld [vmem:[%s546 + $0xb8] sm:$0xff]
        %v571 = vld [vmem:[%s546 + $0xc0] sm:$0xff]
        %v572 = vld [vmem:[%s546 + $0xc8] sm:$0xff]
        %v573 = vld [vmem:[%s546 + $0xd0] sm:$0xff]
        %v574 = vld [vmem:[%s546 + $0xd8] sm:$0xff]
        %v575 = vld [vmem:[%s546 + $0xe0] sm:$0xff]
        %v576 = vld [vmem:[%s546 + $0xe8] sm:$0xff]
        %v577 = vld [vmem:[%s546 + $0xf0] sm:$0xff]
        %v578 = vld [vmem:[%s546 + $0xf8] sm:$0xff]
        %vm611 = vcmask 1040384
        %v612 = vrot.slane %v547, 7
        %v613 = vrot.slane %v548, 7
        %v614 = vsel %vm611, %v612, %v613
        %v615 = vrot.slane %v549, 7
        %v616 = vrot.slane %v550, 7
        %v617 = vsel %vm611, %v615, %v616
        %v618 = vrot.slane %v551, 7
        %v619 = vrot.slane %v552, 7
        %v620 = vsel %vm611, %v618, %v619
        %v621 = vrot.slane %v553, 7
        %v622 = vrot.slane %v554, 7
        %v623 = vsel %vm611, %v621, %v622
        %v624 = vrot.slane %v555, 7
        %v625 = vrot.slane %v556, 7
        %v626 = vsel %vm611, %v624, %v625
        %v627 = vrot.slane %v557, 7
        %v628 = vrot.slane %v558, 7
        %v629 = vsel %vm611, %v627, %v628
        %v630 = vrot.slane %v559, 7
        %v631 = vrot.slane %v560, 7
        %v632 = vsel %vm611, %v630, %v631
        %v633 = vrot.slane %v561, 7
        %v634 = vrot.slane %v562, 7
        %v635 = vsel %vm611, %v633, %v634
        %v636 = vrot.slane %v563, 7
        %v637 = vrot.slane %v564, 7
        %v638 = vsel %vm611, %v636, %v637
        %v639 = vrot.slane %v565, 7
        %v640 = vrot.slane %v566, 7
        %v641 = vsel %vm611, %v639, %v640
        %v642 = vrot.slane %v567, 7
        %v643 = vrot.slane %v568, 7
        %v644 = vsel %vm611, %v642, %v643
        %v645 = vrot.slane %v569, 7
        %v646 = vrot.slane %v570, 7
        %v647 = vsel %vm611, %v645, %v646
        %v648 = vrot.slane %v571, 7
        %v649 = vrot.slane %v572, 7
        %v650 = vsel %vm611, %v648, %v649
        %v651 = vrot.slane %v573, 7
        %v652 = vrot.slane %v574, 7
        %v653 = vsel %vm611, %v651, %v652
        %v654 = vrot.slane %v575, 7
        %v655 = vrot.slane %v576, 7
        %v656 = vsel %vm611, %v654, %v655
        %v657 = vrot.slane %v577, 7
        %v658 = vrot.slane %v578, 7
        %v659 = vsel %vm611, %v657, %v658
        %v692 = vsel %vm611, 0.0, %v612
        %v693 = vsel %vm611, 0.0, %v615
        %v694 = vsel %vm611, 0.0, %v618
        %v695 = vsel %vm611, 0.0, %v621
        %v696 = vsel %vm611, 0.0, %v624
        %v697 = vsel %vm611, 0.0, %v627
        %v698 = vsel %vm611, 0.0, %v630
        %v699 = vsel %vm611, 0.0, %v633
        %v700 = vsel %vm611, 0.0, %v636
        %v701 = vsel %vm611, 0.0, %v639
        %v702 = vsel %vm611, 0.0, %v642
        %v703 = vsel %vm611, 0.0, %v645
        %v704 = vsel %vm611, 0.0, %v648
        %v705 = vsel %vm611, 0.0, %v651
        %v706 = vsel %vm611, 0.0, %v654
        %v707 = vsel %vm611, 0.0, %v657
        %v708 = vadd.f32 %v547, %v692
        %v709 = vadd.f32 %v548, %v614
        %v710 = vadd.f32 %v549, %v693
        %v711 = vadd.f32 %v550, %v617
        %v712 = vadd.f32 %v551, %v694
        %v713 = vadd.f32 %v552, %v620
        %v714 = vadd.f32 %v553, %v695
        %v715 = vadd.f32 %v554, %v623
        %v716 = vadd.f32 %v555, %v696
        %v717 = vadd.f32 %v556, %v626
        %v718 = vadd.f32 %v557, %v697
        %v719 = vadd.f32 %v558, %v629
        %v720 = vadd.f32 %v559, %v698
        %v721 = vadd.f32 %v560, %v632
        %v722 = vadd.f32 %v561, %v699
        %v723 = vadd.f32 %v562, %v635
        %v724 = vadd.f32 %v563, %v700
        %v725 = vadd.f32 %v564, %v638
        %v726 = vadd.f32 %v565, %v701
        %v727 = vadd.f32 %v566, %v641
        %v728 = vadd.f32 %v567, %v702
        %v729 = vadd.f32 %v568, %v644
        %v730 = vadd.f32 %v569, %v703
        %v731 = vadd.f32 %v570, %v647
        %v732 = vadd.f32 %v571, %v704
        %v733 = vadd.f32 %v572, %v650
        %v734 = vadd.f32 %v573, %v705
        %v735 = vadd.f32 %v574, %v653
        %v736 = vadd.f32 %v575, %v706
        %v737 = vadd.f32 %v576, %v656
        %v738 = vadd.f32 %v577, %v707
        %v739 = vadd.f32 %v578, %v659
        %vm740 = vcmask 1046528
        %v741 = vrot.slane %v547, 1
        %v742 = vrot.slane %v548, 1
        %v743 = vsel %vm740, %v741, %v742
        %v744 = vrot.slane %v549, 1
        %v745 = vrot.slane %v550, 1
        %v746 = vsel %vm740, %v744, %v745
        %v747 = vrot.slane %v551, 1
        %v748 = vrot.slane %v552, 1
        %v749 = vsel %vm740, %v747, %v748
        %v750 = vrot.slane %v553, 1
        %v751 = vrot.slane %v554, 1
        %v752 = vsel %vm740, %v750, %v751
        %v753 = vrot.slane %v555, 1
        %v754 = vrot.slane %v556, 1
        %v755 = vsel %vm740, %v753, %v754
        %v756 = vrot.slane %v557, 1
        %v757 = vrot.slane %v558, 1
        %v758 = vsel %vm740, %v756, %v757
        %v759 = vrot.slane %v559, 1
        %v760 = vrot.slane %v560, 1
        %v761 = vsel %vm740, %v759, %v760
        %v762 = vrot.slane %v561, 1
        %v763 = vrot.slane %v562, 1
        %v764 = vsel %vm740, %v762, %v763
        %v765 = vrot.slane %v563, 1
        %v766 = vrot.slane %v564, 1
        %v767 = vsel %vm740, %v765, %v766
        %v768 = vrot.slane %v565, 1
        %v769 = vrot.slane %v566, 1
        %v770 = vsel %vm740, %v768, %v769
        %v771 = vrot.slane %v567, 1
        %v772 = vrot.slane %v568, 1
        %v773 = vsel %vm740, %v771, %v772
        %v774 = vrot.slane %v569, 1
        %v775 = vrot.slane %v570, 1
        %v776 = vsel %vm740, %v774, %v775
        %v777 = vrot.slane %v571, 1
        %v778 = vrot.slane %v572, 1
        %v779 = vsel %vm740, %v777, %v778
        %v780 = vrot.slane %v573, 1
        %v781 = vrot.slane %v574, 1
        %v782 = vsel %vm740, %v780, %v781
        %v783 = vrot.slane %v575, 1
        %v784 = vrot.slane %v576, 1
        %v785 = vsel %vm740, %v783, %v784
        %v786 = vrot.slane %v577, 1
        %v787 = vrot.slane %v578, 1
        %v788 = vsel %vm740, %v786, %v787
        %v821 = vsel %vm740, %v742, 0.0
        %v822 = vsel %vm740, %v745, 0.0
        %v823 = vsel %vm740, %v748, 0.0
        %v824 = vsel %vm740, %v751, 0.0
        %v825 = vsel %vm740, %v754, 0.0
        %v826 = vsel %vm740, %v757, 0.0
        %v827 = vsel %vm740, %v760, 0.0
        %v828 = vsel %vm740, %v763, 0.0
        %v829 = vsel %vm740, %v766, 0.0
        %v830 = vsel %vm740, %v769, 0.0
        %v831 = vsel %vm740, %v772, 0.0
        %v832 = vsel %vm740, %v775, 0.0
        %v833 = vsel %vm740, %v778, 0.0
        %v834 = vsel %vm740, %v781, 0.0
        %v835 = vsel %vm740, %v784, 0.0
        %v836 = vsel %vm740, %v787, 0.0
        %v837 = vadd.f32 %v708, %v743
        %v838 = vadd.f32 %v709, %v821
        %v839 = vadd.f32 %v710, %v746
        %v840 = vadd.f32 %v711, %v822
        %v841 = vadd.f32 %v712, %v749
        %v842 = vadd.f32 %v713, %v823
        %v843 = vadd.f32 %v714, %v752
        %v844 = vadd.f32 %v715, %v824
        %v845 = vadd.f32 %v716, %v755
        %v846 = vadd.f32 %v717, %v825
        %v847 = vadd.f32 %v718, %v758
        %v848 = vadd.f32 %v719, %v826
        %v849 = vadd.f32 %v720, %v761
        %v850 = vadd.f32 %v721, %v827
        %v851 = vadd.f32 %v722, %v764
        %v852 = vadd.f32 %v723, %v828
        %v853 = vadd.f32 %v724, %v767
        %v854 = vadd.f32 %v725, %v829
        %v855 = vadd.f32 %v726, %v770
        %v856 = vadd.f32 %v727, %v830
        %v857 = vadd.f32 %v728, %v773
        %v858 = vadd.f32 %v729, %v831
        %v859 = vadd.f32 %v730, %v776
        %v860 = vadd.f32 %v731, %v832
        %v861 = vadd.f32 %v732, %v779
        %v862 = vadd.f32 %v733, %v833
        %v863 = vadd.f32 %v734, %v782
        %v864 = vadd.f32 %v735, %v834
        %v865 = vadd.f32 %v736, %v785
        %v866 = vadd.f32 %v737, %v835
        %v867 = vadd.f32 %v738, %v788
        %v868 = vadd.f32 %v739, %v836
        %v869 = vadd.f32 %v837, 0.0
        %v870 = vadd.f32 %v838, 0.0
        %v871 = vadd.f32 %v839, %v837
        %v872 = vadd.f32 %v840, %v838
        %v873 = vadd.f32 %v841, %v839
        %v874 = vadd.f32 %v842, %v840
        %v875 = vadd.f32 %v843, %v841
        %v876 = vadd.f32 %v844, %v842
        %v877 = vadd.f32 %v845, %v843
        %v878 = vadd.f32 %v846, %v844
        %v879 = vadd.f32 %v847, %v845
        %v880 = vadd.f32 %v848, %v846
        %v881 = vadd.f32 %v849, %v847
        %v882 = vadd.f32 %v850, %v848
        %v883 = vadd.f32 %v851, %v849
        %v884 = vadd.f32 %v852, %v850
        %v885 = vadd.f32 %v853, %v851
        %v886 = vadd.f32 %v854, %v852
        %v887 = vadd.f32 %v855, %v853
        %v888 = vadd.f32 %v856, %v854
        %v889 = vadd.f32 %v857, %v855
        %v890 = vadd.f32 %v858, %v856
        %v891 = vadd.f32 %v859, %v857
        %v892 = vadd.f32 %v860, %v858
        %v893 = vadd.f32 %v861, %v859
        %v894 = vadd.f32 %v862, %v860
        %v895 = vadd.f32 %v863, %v861
        %v896 = vadd.f32 %v864, %v862
        %v897 = vadd.f32 %v865, %v863
        %v898 = vadd.f32 %v866, %v864
        %v899 = vadd.f32 %v867, %v865
        %v900 = vadd.f32 %v868, %v866
        %v901 = vadd.f32 %v869, %v839
        %v902 = vadd.f32 %v870, %v840
        %v903 = vadd.f32 %v871, %v841
        %v904 = vadd.f32 %v872, %v842
        %v905 = vadd.f32 %v873, %v843
        %v906 = vadd.f32 %v874, %v844
        %v907 = vadd.f32 %v875, %v845
        %v908 = vadd.f32 %v876, %v846
        %v909 = vadd.f32 %v877, %v847
        %v910 = vadd.f32 %v878, %v848
        %v911 = vadd.f32 %v879, %v849
        %v912 = vadd.f32 %v880, %v850
        %v913 = vadd.f32 %v881, %v851
        %v914 = vadd.f32 %v882, %v852
        %v915 = vadd.f32 %v883, %v853
        %v916 = vadd.f32 %v884, %v854
        %v917 = vadd.f32 %v885, %v855
        %v918 = vadd.f32 %v886, %v856
        %v919 = vadd.f32 %v887, %v857
        %v920 = vadd.f32 %v888, %v858
        %v921 = vadd.f32 %v889, %v859
        %v922 = vadd.f32 %v890, %v860
        %v923 = vadd.f32 %v891, %v861
        %v924 = vadd.f32 %v892, %v862
        %v925 = vadd.f32 %v893, %v863
        %v926 = vadd.f32 %v894, %v864
        %v927 = vadd.f32 %v895, %v865
        %v928 = vadd.f32 %v896, %v866
        %v929 = vadd.f32 %v897, %v867
        %v930 = vadd.f32 %v898, %v868
        %v931 = vadd.f32 %v899, 0.0
        %v932 = vadd.f32 %v900, 0.0
        %v933 = vmul.f32 %v901, 0.11111111
        %v934 = vmul.f32 %v902, 0.11111111
        %v935 = vmul.f32 %v903, 0.11111111
        %v936 = vmul.f32 %v904, 0.11111111
        %v937 = vmul.f32 %v905, 0.11111111
        %v938 = vmul.f32 %v906, 0.11111111
        %v939 = vmul.f32 %v907, 0.11111111
        %v940 = vmul.f32 %v908, 0.11111111
        %v941 = vmul.f32 %v909, 0.11111111
        %v942 = vmul.f32 %v910, 0.11111111
        %v943 = vmul.f32 %v911, 0.11111111
        %v944 = vmul.f32 %v912, 0.11111111
        %v945 = vmul.f32 %v913, 0.11111111
        %v946 = vmul.f32 %v914, 0.11111111
        %v947 = vmul.f32 %v915, 0.11111111
        %v948 = vmul.f32 %v916, 0.11111111
        %v949 = vmul.f32 %v917, 0.11111111
        %v950 = vmul.f32 %v918, 0.11111111
        %v951 = vmul.f32 %v919, 0.11111111
        %v952 = vmul.f32 %v920, 0.11111111
        %v953 = vmul.f32 %v921, 0.11111111
        %v954 = vmul.f32 %v922, 0.11111111
        %v955 = vmul.f32 %v923, 0.11111111
        %v956 = vmul.f32 %v924, 0.11111111
        %v957 = vmul.f32 %v925, 0.11111111
        %v958 = vmul.f32 %v926, 0.11111111
        %v959 = vmul.f32 %v927, 0.11111111
        %v960 = vmul.f32 %v928, 0.11111111
        %v961 = vmul.f32 %v929, 0.11111111
        %v962 = vmul.f32 %v930, 0.11111111
        %v963 = vmul.f32 %v931, 0.11111111
        %v964 = vmul.f32 %v932, 0.11111111
        %v965 = vld [vmem:[%s1] sm:$0xff]
        %vm966 = vcmask 64512
        %v968 = vsel %vm966, %v933, 0
        %v971 = vsel %vm966, %v934, 0
        %v974 = vsel %vm966, %v935, 0
        %v977 = vsel %vm966, %v936, 0
        %v980 = vsel %vm966, %v937, 0
        %v983 = vsel %vm966, %v938, 0
        %v986 = vsel %vm966, %v939, 0
        %v989 = vsel %vm966, %v940, 0
        %v992 = vsel %vm966, %v941, 0
        %v995 = vsel %vm966, %v942, 0
        %v998 = vsel %vm966, %v943, 0
        %v1001 = vsel %vm966, %v944, 0
        %v1004 = vsel %vm966, %v945, 0
        %v1007 = vsel %vm966, %v946, 0
        %v1010 = vsel %vm966, %v947, 0
        %v1013 = vsel %vm966, %v948, 0
        %v1016 = vsel %vm966, %v949, 0
        %v1019 = vsel %vm966, %v950, 0
        %v1022 = vsel %vm966, %v951, 0
        %v1025 = vsel %vm966, %v952, 0
        %v1028 = vsel %vm966, %v953, 0
        %v1031 = vsel %vm966, %v954, 0
        %v1034 = vsel %vm966, %v955, 0
        %v1037 = vsel %vm966, %v956, 0
        %v1040 = vsel %vm966, %v957, 0
        %v1043 = vsel %vm966, %v958, 0
        %v1046 = vsel %vm966, %v959, 0
        %v1049 = vsel %vm966, %v960, 0
        %v1052 = vsel %vm966, %v961, 0
        %v1055 = vsel %vm966, %v962, 0
        %v1058 = vsel %vm966, %v963, 0
        %v1061 = vsel %vm966, %v964, 0
        %1063 = vmatprep.subr.mxu0 0.0
        %1064 = vmatpush1.msra.mxu0 0.0
        %1065 = vmatprep.subr.mxu0 0.0
        %1066 = vmatpush1.msra.mxu0 0.0
        %1067 = vmatprep.subr.mxu0 0.0
        %1068 = vmatpush1.msra.mxu0 0.0
        %1069 = vmatprep.subr.mxu0 0.0
        %1070 = vmatpush1.msra.mxu0 0.0
        %1071 = vmatprep.subr.mxu0 0.0
        %1072 = vmatpush1.msra.mxu0 0.0
        %1073 = vmatprep.subr.mxu0 0.0
        %1074 = vmatpush1.msra.mxu0 0.0
        %1075 = vmatprep.subr.mxu0 0.0
        %1076 = vmatpush1.msra.mxu0 0.0
        %1077 = vmatprep.subr.mxu0 0.0
        %1078 = vmatpush1.msra.mxu0 0.0
        %1079 = vmatprep.subr.mxu0 0.0
        %1080 = vmatpush1.msra.mxu0 0.0
        %1081 = vmatprep.subr.mxu0 0.0
        %1082 = vmatpush1.msra.mxu0 0.0
        %1083 = vmatprep.subr.mxu0 0.0
        %1084 = vmatpush1.msra.mxu0 0.0
        %1085 = vmatprep.subr.mxu0 0.0
        %1086 = vmatpush1.msra.mxu0 0.0
        %1087 = vmatprep.subr.mxu0 0.0
        %1088 = vmatpush1.msra.mxu0 0.0
        %1089 = vmatprep.subr.mxu0 0.0
        %1090 = vmatpush1.msra.mxu0 0.0
        %1091 = vmatprep.subr.mxu0 0.0
        %1092 = vmatpush1.msra.mxu0 0.0
        %1093 = vmatprep.subr.mxu0 0.0
        %1094 = vmatpush1.msra.mxu0 %v965
        %1095 = vmatprep.subr.mxu0 0.0
        %1096 = vmatpush2.msra.mxu0 0.0
        %1097 = vmatprep.subr.mxu0 0.0
        %1098 = vmatpush2.msra.mxu0 0.0
        %1099 = vmatprep.subr.mxu0 0.0
        %1100 = vmatpush2.msra.mxu0 0.0
        %1101 = vmatprep.subr.mxu0 0.0
        %1102 = vmatpush2.msra.mxu0 0.0
        %1103 = vmatprep.subr.mxu0 0.0
        %1104 = vmatpush2.msra.mxu0 0.0
        %1105 = vmatprep.subr.mxu0 0.0
        %1106 = vmatpush2.msra.mxu0 0.0
        %1107 = vmatprep.subr.mxu0 0.0
        %1108 = vmatpush2.msra.mxu0 0.0
        %1109 = vmatprep.subr.mxu0 0.0
        %1110 = vmatpush2.msra.mxu0 0.0
        %1111 = vmatprep.subr.mxu0 0.0
        %1112 = vmatpush2.msra.mxu0 0.0
        %1113 = vmatprep.subr.mxu0 0.0
        %1114 = vmatpush2.msra.mxu0 0.0
        %1115 = vmatprep.subr.mxu0 0.0
        %1116 = vmatpush2.msra.mxu0 0.0
        %1117 = vmatprep.subr.mxu0 0.0
        %1118 = vmatpush2.msra.mxu0 0.0
        %1119 = vmatprep.subr.mxu0 0.0
        %1120 = vmatpush2.msra.mxu0 0.0
        %1121 = vmatprep.subr.mxu0 0.0
        %1122 = vmatpush2.msra.mxu0 0.0
        %1123 = vmatprep.subr.mxu0 0.0
        %1124 = vmatpush2.msra.mxu0 0.0
        %1125 = vmatprep.subr.mxu0 0.0
        %1126 = vmatpush2.msra.mxu0 0.0
        %1127 = vmatprep.mubr.f32.mxu0 0.0
        %1128 = vmatmul.mubr.f32.gmra.mxu0 %v968
        %v1129 = vpop.f32.mrf.mxu0
        %v1130 = vadd.f32 0.0, %v1129
        %v1131 = vpop.f32.mrf.mxu0
        %1132 = vmatprep.mubr.f32.mxu0 0.0
        %1133 = vmatmul.mubr.f32.gmra.mxu0 %v971
        %v1134 = vpop.f32.mrf.mxu0
        %v1135 = vadd.f32 0.0, %v1134
        %v1136 = vpop.f32.mrf.mxu0
        %1137 = vmatprep.mubr.f32.mxu0 0.0
        %1138 = vmatmul.mubr.f32.gmra.mxu0 %v974
        %v1139 = vpop.f32.mrf.mxu0
        %v1140 = vadd.f32 0.0, %v1139
        %v1141 = vpop.f32.mrf.mxu0
        %1142 = vmatprep.mubr.f32.mxu0 0.0
        %1143 = vmatmul.mubr.f32.gmra.mxu0 %v977
        %v1144 = vpop.f32.mrf.mxu0
        %v1145 = vadd.f32 0.0, %v1144
        %v1146 = vpop.f32.mrf.mxu0
        %1147 = vmatprep.mubr.f32.mxu0 0.0
        %1148 = vmatmul.mubr.f32.gmra.mxu0 %v980
        %v1149 = vpop.f32.mrf.mxu0
        %v1150 = vadd.f32 0.0, %v1149
        %v1151 = vpop.f32.mrf.mxu0
        %1152 = vmatprep.mubr.f32.mxu0 0.0
        %1153 = vmatmul.mubr.f32.gmra.mxu0 %v983
        %v1154 = vpop.f32.mrf.mxu0
        %v1155 = vadd.f32 0.0, %v1154
        %v1156 = vpop.f32.mrf.mxu0
        %1157 = vmatprep.mubr.f32.mxu0 0.0
        %1158 = vmatmul.mubr.f32.gmra.mxu0 %v986
        %v1159 = vpop.f32.mrf.mxu0
        %v1160 = vadd.f32 0.0, %v1159
        %v1161 = vpop.f32.mrf.mxu0
        %1162 = vmatprep.mubr.f32.mxu0 0.0
        %1163 = vmatmul.mubr.f32.gmra.mxu0 %v989
        %v1164 = vpop.f32.mrf.mxu0
        %v1165 = vadd.f32 0.0, %v1164
        %v1166 = vpop.f32.mrf.mxu0
        %1167 = vmatprep.mubr.f32.mxu0 0.0
        %1168 = vmatmul.mubr.f32.gmra.mxu0 %v992
        %v1169 = vpop.f32.mrf.mxu0
        %v1170 = vadd.f32 0.0, %v1169
        %v1171 = vpop.f32.mrf.mxu0
        %1172 = vmatprep.mubr.f32.mxu0 0.0
        %1173 = vmatmul.mubr.f32.gmra.mxu0 %v995
        %v1174 = vpop.f32.mrf.mxu0
        %v1175 = vadd.f32 0.0, %v1174
        %v1176 = vpop.f32.mrf.mxu0
        %1177 = vmatprep.mubr.f32.mxu0 0.0
        %1178 = vmatmul.mubr.f32.gmra.mxu0 %v998
        %v1179 = vpop.f32.mrf.mxu0
        %v1180 = vadd.f32 0.0, %v1179
        %v1181 = vpop.f32.mrf.mxu0
        %1182 = vmatprep.mubr.f32.mxu0 0.0
        %1183 = vmatmul.mubr.f32.gmra.mxu0 %v1001
        %v1184 = vpop.f32.mrf.mxu0
        %v1185 = vadd.f32 0.0, %v1184
        %v1186 = vpop.f32.mrf.mxu0
        %1187 = vmatprep.mubr.f32.mxu0 0.0
        %1188 = vmatmul.mubr.f32.gmra.mxu0 %v1004
        %v1189 = vpop.f32.mrf.mxu0
        %v1190 = vadd.f32 0.0, %v1189
        %v1191 = vpop.f32.mrf.mxu0
        %1192 = vmatprep.mubr.f32.mxu0 0.0
        %1193 = vmatmul.mubr.f32.gmra.mxu0 %v1007
        %v1194 = vpop.f32.mrf.mxu0
        %v1195 = vadd.f32 0.0, %v1194
        %v1196 = vpop.f32.mrf.mxu0
        %1197 = vmatprep.mubr.f32.mxu0 0.0
        %1198 = vmatmul.mubr.f32.gmra.mxu0 %v1010
        %v1199 = vpop.f32.mrf.mxu0
        %v1200 = vadd.f32 0.0, %v1199
        %v1201 = vpop.f32.mrf.mxu0
        %1202 = vmatprep.mubr.f32.mxu0 0.0
        %1203 = vmatmul.mubr.f32.gmra.mxu0 %v1013
        %v1204 = vpop.f32.mrf.mxu0
        %v1205 = vadd.f32 0.0, %v1204
        %v1206 = vpop.f32.mrf.mxu0
        %1207 = vmatprep.mubr.f32.mxu0 0.0
        %1208 = vmatmul.mubr.f32.gmra.mxu0 %v1016
        %v1209 = vpop.f32.mrf.mxu0
        %v1210 = vadd.f32 0.0, %v1209
        %v1211 = vpop.f32.mrf.mxu0
        %1212 = vmatprep.mubr.f32.mxu0 0.0
        %1213 = vmatmul.mubr.f32.gmra.mxu0 %v1019
        %v1214 = vpop.f32.mrf.mxu0
        %v1215 = vadd.f32 0.0, %v1214
        %v1216 = vpop.f32.mrf.mxu0
        %1217 = vmatprep.mubr.f32.mxu0 0.0
        %1218 = vmatmul.mubr.f32.gmra.mxu0 %v1022
        %v1219 = vpop.f32.mrf.mxu0
        %v1220 = vadd.f32 0.0, %v1219
        %v1221 = vpop.f32.mrf.mxu0
        %1222 = vmatprep.mubr.f32.mxu0 0.0
        %1223 = vmatmul.mubr.f32.gmra.mxu0 %v1025
        %v1224 = vpop.f32.mrf.mxu0
        %v1225 = vadd.f32 0.0, %v1224
        %v1226 = vpop.f32.mrf.mxu0
        %1227 = vmatprep.mubr.f32.mxu0 0.0
        %1228 = vmatmul.mubr.f32.gmra.mxu0 %v1028
        %v1229 = vpop.f32.mrf.mxu0
        %v1230 = vadd.f32 0.0, %v1229
        %v1231 = vpop.f32.mrf.mxu0
        %1232 = vmatprep.mubr.f32.mxu0 0.0
        %1233 = vmatmul.mubr.f32.gmra.mxu0 %v1031
        %v1234 = vpop.f32.mrf.mxu0
        %v1235 = vadd.f32 0.0, %v1234
        %v1236 = vpop.f32.mrf.mxu0
        %1237 = vmatprep.mubr.f32.mxu0 0.0
        %1238 = vmatmul.mubr.f32.gmra.mxu0 %v1034
        %v1239 = vpop.f32.mrf.mxu0
        %v1240 = vadd.f32 0.0, %v1239
        %v1241 = vpop.f32.mrf.mxu0
        %1242 = vmatprep.mubr.f32.mxu0 0.0
        %1243 = vmatmul.mubr.f32.gmra.mxu0 %v1037
        %v1244 = vpop.f32.mrf.mxu0
        %v1245 = vadd.f32 0.0, %v1244
        %v1246 = vpop.f32.mrf.mxu0
        %1247 = vmatprep.mubr.f32.mxu0 0.0
        %1248 = vmatmul.mubr.f32.gmra.mxu0 %v1040
        %v1249 = vpop.f32.mrf.mxu0
        %v1250 = vadd.f32 0.0, %v1249
        %v1251 = vpop.f32.mrf.mxu0
        %1252 = vmatprep.mubr.f32.mxu0 0.0
        %1253 = vmatmul.mubr.f32.gmra.mxu0 %v1043
        %v1254 = vpop.f32.mrf.mxu0
        %v1255 = vadd.f32 0.0, %v1254
        %v1256 = vpop.f32.mrf.mxu0
        %1257 = vmatprep.mubr.f32.mxu0 0.0
        %1258 = vmatmul.mubr.f32.gmra.mxu0 %v1046
        %v1259 = vpop.f32.mrf.mxu0
        %v1260 = vadd.f32 0.0, %v1259
        %v1261 = vpop.f32.mrf.mxu0
        %1262 = vmatprep.mubr.f32.mxu0 0.0
        %1263 = vmatmul.mubr.f32.gmra.mxu0 %v1049
        %v1264 = vpop.f32.mrf.mxu0
        %v1265 = vadd.f32 0.0, %v1264
        %v1266 = vpop.f32.mrf.mxu0
        %1267 = vmatprep.mubr.f32.mxu0 0.0
        %1268 = vmatmul.mubr.f32.gmra.mxu0 %v1052
        %v1269 = vpop.f32.mrf.mxu0
        %v1270 = vadd.f32 0.0, %v1269
        %v1271 = vpop.f32.mrf.mxu0
        %1272 = vmatprep.mubr.f32.mxu0 0.0
        %1273 = vmatmul.mubr.f32.gmra.mxu0 %v1055
        %v1274 = vpop.f32.mrf.mxu0
        %v1275 = vadd.f32 0.0, %v1274
        %v1276 = vpop.f32.mrf.mxu0
        %1277 = vmatprep.mubr.f32.mxu0 0.0
        %1278 = vmatmul.mubr.f32.gmra.mxu0 %v1058
        %v1279 = vpop.f32.mrf.mxu0
        %v1280 = vadd.f32 0.0, %v1279
        %v1281 = vpop.f32.mrf.mxu0
        %1282 = vmatprep.mubr.f32.mxu0 0.0
        %1283 = vmatmul.mubr.f32.gmra.mxu0 %v1061
        %v1284 = vpop.f32.mrf.mxu0
        %v1285 = vadd.f32 0.0, %v1284
        %v1286 = vpop.f32.mrf.mxu0
        %1287 = vdwg.mxu0
        %v1288 = vld [vmem:[%s2] sm:$0x1]
        %v1289 = vlaneseq
        %v1290 = vshrl.u32 %v1289, 7
        %v1291 = vsub.s32 0, %v1290
        %v1292 = vrot.slane %v1288, %v1291
        %v1293 = vmul.f32 %v1130, %v1292
        %v1294 = vmul.f32 %v1135, %v1292
        %v1295 = vmul.f32 %v1140, %v1292
        %v1296 = vmul.f32 %v1145, %v1292
        %v1297 = vmul.f32 %v1150, %v1292
        %v1298 = vmul.f32 %v1155, %v1292
        %v1299 = vmul.f32 %v1160, %v1292
        %v1300 = vmul.f32 %v1165, %v1292
        %v1301 = vmul.f32 %v1170, %v1292
        %v1302 = vmul.f32 %v1175, %v1292
        %v1303 = vmul.f32 %v1180, %v1292
        %v1304 = vmul.f32 %v1185, %v1292
        %v1305 = vmul.f32 %v1190, %v1292
        %v1306 = vmul.f32 %v1195, %v1292
        %v1307 = vmul.f32 %v1200, %v1292
        %v1308 = vmul.f32 %v1205, %v1292
        %v1309 = vmul.f32 %v1210, %v1292
        %v1310 = vmul.f32 %v1215, %v1292
        %v1311 = vmul.f32 %v1220, %v1292
        %v1312 = vmul.f32 %v1225, %v1292
        %v1313 = vmul.f32 %v1230, %v1292
        %v1314 = vmul.f32 %v1235, %v1292
        %v1315 = vmul.f32 %v1240, %v1292
        %v1316 = vmul.f32 %v1245, %v1292
        %v1317 = vmul.f32 %v1250, %v1292
        %v1318 = vmul.f32 %v1255, %v1292
        %v1319 = vmul.f32 %v1260, %v1292
        %v1320 = vmul.f32 %v1265, %v1292
        %v1321 = vmul.f32 %v1270, %v1292
        %v1322 = vmul.f32 %v1275, %v1292
        %v1323 = vmul.f32 %v1280, %v1292
        %v1324 = vmul.f32 %v1285, %v1292
        %v1325 = vld [vmem:[%s2 + $0x1] sm:$0x1]
        %v1326 = vlaneseq
        %v1327 = vshrl.u32 %v1326, 7
        %v1328 = vsub.s32 0, %v1327
        %v1329 = vrot.slane %v1325, %v1328
        %v1330 = vadd.f32 %v1293, %v1329
        %v1331 = vadd.f32 %v1294, %v1329
        %v1332 = vadd.f32 %v1295, %v1329
        %v1333 = vadd.f32 %v1296, %v1329
        %v1334 = vadd.f32 %v1297, %v1329
        %v1335 = vadd.f32 %v1298, %v1329
        %v1336 = vadd.f32 %v1299, %v1329
        %v1337 = vadd.f32 %v1300, %v1329
        %v1338 = vadd.f32 %v1301, %v1329
        %v1339 = vadd.f32 %v1302, %v1329
        %v1340 = vadd.f32 %v1303, %v1329
        %v1341 = vadd.f32 %v1304, %v1329
        %v1342 = vadd.f32 %v1305, %v1329
        %v1343 = vadd.f32 %v1306, %v1329
        %v1344 = vadd.f32 %v1307, %v1329
        %v1345 = vadd.f32 %v1308, %v1329
        %v1346 = vadd.f32 %v1309, %v1329
        %v1347 = vadd.f32 %v1310, %v1329
        %v1348 = vadd.f32 %v1311, %v1329
        %v1349 = vadd.f32 %v1312, %v1329
        %v1350 = vadd.f32 %v1313, %v1329
        %v1351 = vadd.f32 %v1314, %v1329
        %v1352 = vadd.f32 %v1315, %v1329
        %v1353 = vadd.f32 %v1316, %v1329
        %v1354 = vadd.f32 %v1317, %v1329
        %v1355 = vadd.f32 %v1318, %v1329
        %v1356 = vadd.f32 %v1319, %v1329
        %v1357 = vadd.f32 %v1320, %v1329
        %v1358 = vadd.f32 %v1321, %v1329
        %v1359 = vadd.f32 %v1322, %v1329
        %v1360 = vadd.f32 %v1323, %v1329
        %v1361 = vadd.f32 %v1324, %v1329
        %v1362 = vmax.f32 %v1330, 0.0
        %v1363 = vmax.f32 %v1331, 0.0
        %v1364 = vmax.f32 %v1332, 0.0
        %v1365 = vmax.f32 %v1333, 0.0
        %v1366 = vmax.f32 %v1334, 0.0
        %v1367 = vmax.f32 %v1335, 0.0
        %v1368 = vmax.f32 %v1336, 0.0
        %v1369 = vmax.f32 %v1337, 0.0
        %v1370 = vmax.f32 %v1338, 0.0
        %v1371 = vmax.f32 %v1339, 0.0
        %v1372 = vmax.f32 %v1340, 0.0
        %v1373 = vmax.f32 %v1341, 0.0
        %v1374 = vmax.f32 %v1342, 0.0
        %v1375 = vmax.f32 %v1343, 0.0
        %v1376 = vmax.f32 %v1344, 0.0
        %v1377 = vmax.f32 %v1345, 0.0
        %v1378 = vmax.f32 %v1346, 0.0
        %v1379 = vmax.f32 %v1347, 0.0
        %v1380 = vmax.f32 %v1348, 0.0
        %v1381 = vmax.f32 %v1349, 0.0
        %v1382 = vmax.f32 %v1350, 0.0
        %v1383 = vmax.f32 %v1351, 0.0
        %v1384 = vmax.f32 %v1352, 0.0
        %v1385 = vmax.f32 %v1353, 0.0
        %v1386 = vmax.f32 %v1354, 0.0
        %v1387 = vmax.f32 %v1355, 0.0
        %v1388 = vmax.f32 %v1356, 0.0
        %v1389 = vmax.f32 %v1357, 0.0
        %v1390 = vmax.f32 %v1358, 0.0
        %v1391 = vmax.f32 %v1359, 0.0
        %v1392 = vmax.f32 %v1360, 0.0
        %v1393 = vmax.f32 %v1361, 0.0
        %v1394 = vld [vmem:[%s3] sm:$0xff]
        %v1395 = vsel %vm966, %v547, 0
        %v1397 = vsel %vm966, %v548, 0
        %v1399 = vsel %vm966, %v549, 0
        %v1401 = vsel %vm966, %v550, 0
        %v1403 = vsel %vm966, %v551, 0
        %v1405 = vsel %vm966, %v552, 0
        %v1407 = vsel %vm966, %v553, 0
        %v1409 = vsel %vm966, %v554, 0
        %v1411 = vsel %vm966, %v555, 0
        %v1413 = vsel %vm966, %v556, 0
        %v1415 = vsel %vm966, %v557, 0
        %v1417 = vsel %vm966, %v558, 0
        %v1419 = vsel %vm966, %v559, 0
        %v1421 = vsel %vm966, %v560, 0
        %v1423 = vsel %vm966, %v561, 0
        %v1425 = vsel %vm966, %v562, 0
        %v1427 = vsel %vm966, %v563, 0
        %v1429 = vsel %vm966, %v564, 0
        %v1431 = vsel %vm966, %v565, 0
        %v1433 = vsel %vm966, %v566, 0
        %v1435 = vsel %vm966, %v567, 0
        %v1437 = vsel %vm966, %v568, 0
        %v1439 = vsel %vm966, %v569, 0
        %v1441 = vsel %vm966, %v570, 0
        %v1443 = vsel %vm966, %v571, 0
        %v1445 = vsel %vm966, %v572, 0
        %v1447 = vsel %vm966, %v573, 0
        %v1449 = vsel %vm966, %v574, 0
        %v1451 = vsel %vm966, %v575, 0
        %v1453 = vsel %vm966, %v576, 0
        %v1455 = vsel %vm966, %v577, 0
        %v1457 = vsel %vm966, %v578, 0
        %1459 = vmatprep.subr.mxu0 0.0
        %1460 = vmatpush1.msra.mxu0 0.0
        %1461 = vmatprep.subr.mxu0 0.0
        %1462 = vmatpush1.msra.mxu0 0.0
        %1463 = vmatprep.subr.mxu0 0.0
        %1464 = vmatpush1.msra.mxu0 0.0
        %1465 = vmatprep.subr.mxu0 0.0
        %1466 = vmatpush1.msra.mxu0 0.0
        %1467 = vmatprep.subr.mxu0 0.0
        %1468 = vmatpush1.msra.mxu0 0.0
        %1469 = vmatprep.subr.mxu0 0.0
        %1470 = vmatpush1.msra.mxu0 0.0
        %1471 = vmatprep.subr.mxu0 0.0
        %1472 = vmatpush1.msra.mxu0 0.0
        %1473 = vmatprep.subr.mxu0 0.0
        %1474 = vmatpush1.msra.mxu0 0.0
        %1475 = vmatprep.subr.mxu0 0.0
        %1476 = vmatpush1.msra.mxu0 0.0
        %1477 = vmatprep.subr.mxu0 0.0
        %1478 = vmatpush1.msra.mxu0 0.0
        %1479 = vmatprep.subr.mxu0 0.0
        %1480 = vmatpush1.msra.mxu0 0.0
        %1481 = vmatprep.subr.mxu0 0.0
        %1482 = vmatpush1.msra.mxu0 0.0
        %1483 = vmatprep.subr.mxu0 0.0
        %1484 = vmatpush1.msra.mxu0 0.0
        %1485 = vmatprep.subr.mxu0 0.0
        %1486 = vmatpush1.msra.mxu0 0.0
        %1487 = vmatprep.subr.mxu0 0.0
        %1488 = vmatpush1.msra.mxu0 0.0
        %1489 = vmatprep.subr.mxu0 0.0
        %1490 = vmatpush1.msra.mxu0 %v1394
        %1491 = vmatprep.subr.mxu0 0.0
        %1492 = vmatpush2.msra.mxu0 0.0
        %1493 = vmatprep.subr.mxu0 0.0
        %1494 = vmatpush2.msra.mxu0 0.0
        %1495 = vmatprep.subr.mxu0 0.0
        %1496 = vmatpush2.msra.mxu0 0.0
        %1497 = vmatprep.subr.mxu0 0.0
        %1498 = vmatpush2.msra.mxu0 0.0
        %1499 = vmatprep.subr.mxu0 0.0
        %1500 = vmatpush2.msra.mxu0 0.0
        %1501 = vmatprep.subr.mxu0 0.0
        %1502 = vmatpush2.msra.mxu0 0.0
        %1503 = vmatprep.subr.mxu0 0.0
        %1504 = vmatpush2.msra.mxu0 0.0
        %1505 = vmatprep.subr.mxu0 0.0
        %1506 = vmatpush2.msra.mxu0 0.0
        %1507 = vmatprep.subr.mxu0 0.0
        %1508 = vmatpush2.msra.mxu0 0.0
        %1509 = vmatprep.subr.mxu0 0.0
        %1510 = vmatpush2.msra.mxu0 0.0
        %1511 = vmatprep.subr.mxu0 0.0
        %1512 = vmatpush2.msra.mxu0 0.0
        %1513 = vmatprep.subr.mxu0 0.0
        %1514 = vmatpush2.msra.mxu0 0.0
        %1515 = vmatprep.subr.mxu0 0.0
        %1516 = vmatpush2.msra.mxu0 0.0
        %1517 = vmatprep.subr.mxu0 0.0
        %1518 = vmatpush2.msra.mxu0 0.0
        %1519 = vmatprep.subr.mxu0 0.0
        %1520 = vmatpush2.msra.mxu0 0.0
        %1521 = vmatprep.subr.mxu0 0.0
        %1522 = vmatpush2.msra.mxu0 0.0
        %1523 = vmatprep.mubr.f32.mxu0 0.0
        %1524 = vmatmul.mubr.f32.gmra.mxu0 %v1395
        %v1525 = vpop.f32.mrf.mxu0
        %v1526 = vadd.f32 0.0, %v1525
        %v1527 = vpop.f32.mrf.mxu0
        %1528 = vmatprep.mubr.f32.mxu0 0.0
        %1529 = vmatmul.mubr.f32.gmra.mxu0 %v1397
        %v1530 = vpop.f32.mrf.mxu0
        %v1531 = vadd.f32 0.0, %v1530
        %v1532 = vpop.f32.mrf.mxu0
        %1533 = vmatprep.mubr.f32.mxu0 0.0
        %1534 = vmatmul.mubr.f32.gmra.mxu0 %v1399
        %v1535 = vpop.f32.mrf.mxu0
        %v1536 = vadd.f32 0.0, %v1535
        %v1537 = vpop.f32.mrf.mxu0
        %1538 = vmatprep.mubr.f32.mxu0 0.0
        %1539 = vmatmul.mubr.f32.gmra.mxu0 %v1401
        %v1540 = vpop.f32.mrf.mxu0
        %v1541 = vadd.f32 0.0, %v1540
        %v1542 = vpop.f32.mrf.mxu0
        %1543 = vmatprep.mubr.f32.mxu0 0.0
        %1544 = vmatmul.mubr.f32.gmra.mxu0 %v1403
        %v1545 = vpop.f32.mrf.mxu0
        %v1546 = vadd.f32 0.0, %v1545
        %v1547 = vpop.f32.mrf.mxu0
        %1548 = vmatprep.mubr.f32.mxu0 0.0
        %1549 = vmatmul.mubr.f32.gmra.mxu0 %v1405
        %v1550 = vpop.f32.mrf.mxu0
        %v1551 = vadd.f32 0.0, %v1550
        %v1552 = vpop.f32.mrf.mxu0
        %1553 = vmatprep.mubr.f32.mxu0 0.0
        %1554 = vmatmul.mubr.f32.gmra.mxu0 %v1407
        %v1555 = vpop.f32.mrf.mxu0
        %v1556 = vadd.f32 0.0, %v1555
        %v1557 = vpop.f32.mrf.mxu0
        %1558 = vmatprep.mubr.f32.mxu0 0.0
        %1559 = vmatmul.mubr.f32.gmra.mxu0 %v1409
        %v1560 = vpop.f32.mrf.mxu0
        %v1561 = vadd.f32 0.0, %v1560
        %v1562 = vpop.f32.mrf.mxu0
        %1563 = vmatprep.mubr.f32.mxu0 0.0
        %1564 = vmatmul.mubr.f32.gmra.mxu0 %v1411
        %v1565 = vpop.f32.mrf.mxu0
        %v1566 = vadd.f32 0.0, %v1565
        %v1567 = vpop.f32.mrf.mxu0
        %1568 = vmatprep.mubr.f32.mxu0 0.0
        %1569 = vmatmul.mubr.f32.gmra.mxu0 %v1413
        %v1570 = vpop.f32.mrf.mxu0
        %v1571 = vadd.f32 0.0, %v1570
        %v1572 = vpop.f32.mrf.mxu0
        %1573 = vmatprep.mubr.f32.mxu0 0.0
        %1574 = vmatmul.mubr.f32.gmra.mxu0 %v1415
        %v1575 = vpop.f32.mrf.mxu0
        %v1576 = vadd.f32 0.0, %v1575
        %v1577 = vpop.f32.mrf.mxu0
        %1578 = vmatprep.mubr.f32.mxu0 0.0
        %1579 = vmatmul.mubr.f32.gmra.mxu0 %v1417
        %v1580 = vpop.f32.mrf.mxu0
        %v1581 = vadd.f32 0.0, %v1580
        %v1582 = vpop.f32.mrf.mxu0
        %1583 = vmatprep.mubr.f32.mxu0 0.0
        %1584 = vmatmul.mubr.f32.gmra.mxu0 %v1419
        %v1585 = vpop.f32.mrf.mxu0
        %v1586 = vadd.f32 0.0, %v1585
        %v1587 = vpop.f32.mrf.mxu0
        %1588 = vmatprep.mubr.f32.mxu0 0.0
        %1589 = vmatmul.mubr.f32.gmra.mxu0 %v1421
        %v1590 = vpop.f32.mrf.mxu0
        %v1591 = vadd.f32 0.0, %v1590
        %v1592 = vpop.f32.mrf.mxu0
        %1593 = vmatprep.mubr.f32.mxu0 0.0
        %1594 = vmatmul.mubr.f32.gmra.mxu0 %v1423
        %v1595 = vpop.f32.mrf.mxu0
        %v1596 = vadd.f32 0.0, %v1595
        %v1597 = vpop.f32.mrf.mxu0
        %1598 = vmatprep.mubr.f32.mxu0 0.0
        %1599 = vmatmul.mubr.f32.gmra.mxu0 %v1425
        %v1600 = vpop.f32.mrf.mxu0
        %v1601 = vadd.f32 0.0, %v1600
        %v1602 = vpop.f32.mrf.mxu0
        %1603 = vmatprep.mubr.f32.mxu0 0.0
        %1604 = vmatmul.mubr.f32.gmra.mxu0 %v1427
        %v1605 = vpop.f32.mrf.mxu0
        %v1606 = vadd.f32 0.0, %v1605
        %v1607 = vpop.f32.mrf.mxu0
        %1608 = vmatprep.mubr.f32.mxu0 0.0
        %1609 = vmatmul.mubr.f32.gmra.mxu0 %v1429
        %v1610 = vpop.f32.mrf.mxu0
        %v1611 = vadd.f32 0.0, %v1610
        %v1612 = vpop.f32.mrf.mxu0
        %1613 = vmatprep.mubr.f32.mxu0 0.0
        %1614 = vmatmul.mubr.f32.gmra.mxu0 %v1431
        %v1615 = vpop.f32.mrf.mxu0
        %v1616 = vadd.f32 0.0, %v1615
        %v1617 = vpop.f32.mrf.mxu0
        %1618 = vmatprep.mubr.f32.mxu0 0.0
        %1619 = vmatmul.mubr.f32.gmra.mxu0 %v1433
        %v1620 = vpop.f32.mrf.mxu0
        %v1621 = vadd.f32 0.0, %v1620
        %v1622 = vpop.f32.mrf.mxu0
        %1623 = vmatprep.mubr.f32.mxu0 0.0
        %1624 = vmatmul.mubr.f32.gmra.mxu0 %v1435
        %v1625 = vpop.f32.mrf.mxu0
        %v1626 = vadd.f32 0.0, %v1625
        %v1627 = vpop.f32.mrf.mxu0
        %1628 = vmatprep.mubr.f32.mxu0 0.0
        %1629 = vmatmul.mubr.f32.gmra.mxu0 %v1437
        %v1630 = vpop.f32.mrf.mxu0
        %v1631 = vadd.f32 0.0, %v1630
        %v1632 = vpop.f32.mrf.mxu0
        %1633 = vmatprep.mubr.f32.mxu0 0.0
        %1634 = vmatmul.mubr.f32.gmra.mxu0 %v1439
        %v1635 = vpop.f32.mrf.mxu0
        %v1636 = vadd.f32 0.0, %v1635
        %v1637 = vpop.f32.mrf.mxu0
        %1638 = vmatprep.mubr.f32.mxu0 0.0
        %1639 = vmatmul.mubr.f32.gmra.mxu0 %v1441
        %v1640 = vpop.f32.mrf.mxu0
        %v1641 = vadd.f32 0.0, %v1640
        %v1642 = vpop.f32.mrf.mxu0
        %1643 = vmatprep.mubr.f32.mxu0 0.0
        %1644 = vmatmul.mubr.f32.gmra.mxu0 %v1443
        %v1645 = vpop.f32.mrf.mxu0
        %v1646 = vadd.f32 0.0, %v1645
        %v1647 = vpop.f32.mrf.mxu0
        %1648 = vmatprep.mubr.f32.mxu0 0.0
        %1649 = vmatmul.mubr.f32.gmra.mxu0 %v1445
        %v1650 = vpop.f32.mrf.mxu0
        %v1651 = vadd.f32 0.0, %v1650
        %v1652 = vpop.f32.mrf.mxu0
        %1653 = vmatprep.mubr.f32.mxu0 0.0
        %1654 = vmatmul.mubr.f32.gmra.mxu0 %v1447
        %v1655 = vpop.f32.mrf.mxu0
        %v1656 = vadd.f32 0.0, %v1655
        %v1657 = vpop.f32.mrf.mxu0
        %1658 = vmatprep.mubr.f32.mxu0 0.0
        %1659 = vmatmul.mubr.f32.gmra.mxu0 %v1449
        %v1660 = vpop.f32.mrf.mxu0
        %v1661 = vadd.f32 0.0, %v1660
        %v1662 = vpop.f32.mrf.mxu0
        %1663 = vmatprep.mubr.f32.mxu0 0.0
        %1664 = vmatmul.mubr.f32.gmra.mxu0 %v1451
        %v1665 = vpop.f32.mrf.mxu0
        %v1666 = vadd.f32 0.0, %v1665
        %v1667 = vpop.f32.mrf.mxu0
        %1668 = vmatprep.mubr.f32.mxu0 0.0
        %1669 = vmatmul.mubr.f32.gmra.mxu0 %v1453
        %v1670 = vpop.f32.mrf.mxu0
        %v1671 = vadd.f32 0.0, %v1670
        %v1672 = vpop.f32.mrf.mxu0
        %1673 = vmatprep.mubr.f32.mxu0 0.0
        %1674 = vmatmul.mubr.f32.gmra.mxu0 %v1455
        %v1675 = vpop.f32.mrf.mxu0
        %v1676 = vadd.f32 0.0, %v1675
        %v1677 = vpop.f32.mrf.mxu0
        %1678 = vmatprep.mubr.f32.mxu0 0.0
        %1679 = vmatmul.mubr.f32.gmra.mxu0 %v1457
        %v1680 = vpop.f32.mrf.mxu0
        %v1681 = vadd.f32 0.0, %v1680
        %v1682 = vpop.f32.mrf.mxu0
        %1683 = vdwg.mxu0
        %v1684 = vld [vmem:[%s4] sm:$0x1]
        %v1685 = vlaneseq
        %v1686 = vshrl.u32 %v1685, 7
        %v1687 = vsub.s32 0, %v1686
        %v1688 = vrot.slane %v1684, %v1687
        %v1689 = vmul.f32 %v1526, %v1688
        %v1690 = vmul.f32 %v1531, %v1688
        %v1691 = vmul.f32 %v1536, %v1688
        %v1692 = vmul.f32 %v1541, %v1688
        %v1693 = vmul.f32 %v1546, %v1688
        %v1694 = vmul.f32 %v1551, %v1688
        %v1695 = vmul.f32 %v1556, %v1688
        %v1696 = vmul.f32 %v1561, %v1688
        %v1697 = vmul.f32 %v1566, %v1688
        %v1698 = vmul.f32 %v1571, %v1688
        %v1699 = vmul.f32 %v1576, %v1688
        %v1700 = vmul.f32 %v1581, %v1688
        %v1701 = vmul.f32 %v1586, %v1688
        %v1702 = vmul.f32 %v1591, %v1688
        %v1703 = vmul.f32 %v1596, %v1688
        %v1704 = vmul.f32 %v1601, %v1688
        %v1705 = vmul.f32 %v1606, %v1688
        %v1706 = vmul.f32 %v1611, %v1688
        %v1707 = vmul.f32 %v1616, %v1688
        %v1708 = vmul.f32 %v1621, %v1688
        %v1709 = vmul.f32 %v1626, %v1688
        %v1710 = vmul.f32 %v1631, %v1688
        %v1711 = vmul.f32 %v1636, %v1688
        %v1712 = vmul.f32 %v1641, %v1688
        %v1713 = vmul.f32 %v1646, %v1688
        %v1714 = vmul.f32 %v1651, %v1688
        %v1715 = vmul.f32 %v1656, %v1688
        %v1716 = vmul.f32 %v1661, %v1688
        %v1717 = vmul.f32 %v1666, %v1688
        %v1718 = vmul.f32 %v1671, %v1688
        %v1719 = vmul.f32 %v1676, %v1688
        %v1720 = vmul.f32 %v1681, %v1688
        %v1721 = vld [vmem:[%s4 + $0x1] sm:$0x1]
        %v1722 = vlaneseq
        %v1723 = vshrl.u32 %v1722, 7
        %v1724 = vsub.s32 0, %v1723
        %v1725 = vrot.slane %v1721, %v1724
        %v1726 = vadd.f32 %v1689, %v1725
        %v1727 = vadd.f32 %v1690, %v1725
        %v1728 = vadd.f32 %v1691, %v1725
        %v1729 = vadd.f32 %v1692, %v1725
        %v1730 = vadd.f32 %v1693, %v1725
        %v1731 = vadd.f32 %v1694, %v1725
        %v1732 = vadd.f32 %v1695, %v1725
        %v1733 = vadd.f32 %v1696, %v1725
        %v1734 = vadd.f32 %v1697, %v1725
        %v1735 = vadd.f32 %v1698, %v1725
        %v1736 = vadd.f32 %v1699, %v1725
        %v1737 = vadd.f32 %v1700, %v1725
        %v1738 = vadd.f32 %v1701, %v1725
        %v1739 = vadd.f32 %v1702, %v1725
        %v1740 = vadd.f32 %v1703, %v1725
        %v1741 = vadd.f32 %v1704, %v1725
        %v1742 = vadd.f32 %v1705, %v1725
        %v1743 = vadd.f32 %v1706, %v1725
        %v1744 = vadd.f32 %v1707, %v1725
        %v1745 = vadd.f32 %v1708, %v1725
        %v1746 = vadd.f32 %v1709, %v1725
        %v1747 = vadd.f32 %v1710, %v1725
        %v1748 = vadd.f32 %v1711, %v1725
        %v1749 = vadd.f32 %v1712, %v1725
        %v1750 = vadd.f32 %v1713, %v1725
        %v1751 = vadd.f32 %v1714, %v1725
        %v1752 = vadd.f32 %v1715, %v1725
        %v1753 = vadd.f32 %v1716, %v1725
        %v1754 = vadd.f32 %v1717, %v1725
        %v1755 = vadd.f32 %v1718, %v1725
        %v1756 = vadd.f32 %v1719, %v1725
        %v1757 = vadd.f32 %v1720, %v1725
        %v1758 = vmax.f32 %v1726, 0.0
        %v1759 = vmax.f32 %v1727, 0.0
        %v1760 = vmax.f32 %v1728, 0.0
        %v1761 = vmax.f32 %v1729, 0.0
        %v1762 = vmax.f32 %v1730, 0.0
        %v1763 = vmax.f32 %v1731, 0.0
        %v1764 = vmax.f32 %v1732, 0.0
        %v1765 = vmax.f32 %v1733, 0.0
        %v1766 = vmax.f32 %v1734, 0.0
        %v1767 = vmax.f32 %v1735, 0.0
        %v1768 = vmax.f32 %v1736, 0.0
        %v1769 = vmax.f32 %v1737, 0.0
        %v1770 = vmax.f32 %v1738, 0.0
        %v1771 = vmax.f32 %v1739, 0.0
        %v1772 = vmax.f32 %v1740, 0.0
        %v1773 = vmax.f32 %v1741, 0.0
        %v1774 = vmax.f32 %v1742, 0.0
        %v1775 = vmax.f32 %v1743, 0.0
        %v1776 = vmax.f32 %v1744, 0.0
        %v1777 = vmax.f32 %v1745, 0.0
        %v1778 = vmax.f32 %v1746, 0.0
        %v1779 = vmax.f32 %v1747, 0.0
        %v1780 = vmax.f32 %v1748, 0.0
        %v1781 = vmax.f32 %v1749, 0.0
        %v1782 = vmax.f32 %v1750, 0.0
        %v1783 = vmax.f32 %v1751, 0.0
        %v1784 = vmax.f32 %v1752, 0.0
        %v1785 = vmax.f32 %v1753, 0.0
        %v1786 = vmax.f32 %v1754, 0.0
        %v1787 = vmax.f32 %v1755, 0.0
        %v1788 = vmax.f32 %v1756, 0.0
        %v1789 = vmax.f32 %v1757, 0.0
        %v1790 = vld [vmem:[%s5] sm:$0xff]
        %1823 = vrot.lane.b32.xlu0 %v1758, 124
        %v1824 = vpop.permute.xlu0 %1823
        %1825 = vrot.lane.b32.xlu0 %v1759, 124
        %v1826 = vpop.permute.xlu0 %1825
        %1827 = vrot.lane.b32.xlu0 %v1760, 124
        %v1828 = vpop.permute.xlu0 %1827
        %1829 = vrot.lane.b32.xlu0 %v1761, 124
        %v1830 = vpop.permute.xlu0 %1829
        %1831 = vrot.lane.b32.xlu0 %v1762, 124
        %v1832 = vpop.permute.xlu0 %1831
        %1833 = vrot.lane.b32.xlu0 %v1763, 124
        %v1834 = vpop.permute.xlu0 %1833
        %1835 = vrot.lane.b32.xlu0 %v1764, 124
        %v1836 = vpop.permute.xlu0 %1835
        %1837 = vrot.lane.b32.xlu0 %v1765, 124
        %v1838 = vpop.permute.xlu0 %1837
        %1839 = vrot.lane.b32.xlu0 %v1766, 124
        %v1840 = vpop.permute.xlu0 %1839
        %1841 = vrot.lane.b32.xlu0 %v1767, 124
        %v1842 = vpop.permute.xlu0 %1841
        %1843 = vrot.lane.b32.xlu0 %v1768, 124
        %v1844 = vpop.permute.xlu0 %1843
        %1845 = vrot.lane.b32.xlu0 %v1769, 124
        %v1846 = vpop.permute.xlu0 %1845
        %1847 = vrot.lane.b32.xlu0 %v1770, 124
        %v1848 = vpop.permute.xlu0 %1847
        %1849 = vrot.lane.b32.xlu0 %v1771, 124
        %v1850 = vpop.permute.xlu0 %1849
        %1851 = vrot.lane.b32.xlu0 %v1772, 124
        %v1852 = vpop.permute.xlu0 %1851
        %1853 = vrot.lane.b32.xlu0 %v1773, 124
        %v1854 = vpop.permute.xlu0 %1853
        %1855 = vrot.lane.b32.xlu0 %v1774, 124
        %v1856 = vpop.permute.xlu0 %1855
        %1857 = vrot.lane.b32.xlu0 %v1775, 124
        %v1858 = vpop.permute.xlu0 %1857
        %1859 = vrot.lane.b32.xlu0 %v1776, 124
        %v1860 = vpop.permute.xlu0 %1859
        %1861 = vrot.lane.b32.xlu0 %v1777, 124
        %v1862 = vpop.permute.xlu0 %1861
        %1863 = vrot.lane.b32.xlu0 %v1778, 124
        %v1864 = vpop.permute.xlu0 %1863
        %1865 = vrot.lane.b32.xlu0 %v1779, 124
        %v1866 = vpop.permute.xlu0 %1865
        %1867 = vrot.lane.b32.xlu0 %v1780, 124
        %v1868 = vpop.permute.xlu0 %1867
        %1869 = vrot.lane.b32.xlu0 %v1781, 124
        %v1870 = vpop.permute.xlu0 %1869
        %1871 = vrot.lane.b32.xlu0 %v1782, 124
        %v1872 = vpop.permute.xlu0 %1871
        %1873 = vrot.lane.b32.xlu0 %v1783, 124
        %v1874 = vpop.permute.xlu0 %1873
        %1875 = vrot.lane.b32.xlu0 %v1784, 124
        %v1876 = vpop.permute.xlu0 %1875
        %1877 = vrot.lane.b32.xlu0 %v1785, 124
        %v1878 = vpop.permute.xlu0 %1877
        %1879 = vrot.lane.b32.xlu0 %v1786, 124
        %v1880 = vpop.permute.xlu0 %1879
        %1881 = vrot.lane.b32.xlu0 %v1787, 124
        %v1882 = vpop.permute.xlu0 %1881
        %1883 = vrot.lane.b32.xlu0 %v1788, 124
        %v1884 = vpop.permute.xlu0 %1883
        %1885 = vrot.lane.b32.xlu0 %v1789, 124
        %v1886 = vpop.permute.xlu0 %1885
        %v1887 = vsel %vm966, %v1824, 0
        %v1889 = vsel %vm966, %v1826, 0
        %v1891 = vsel %vm966, %v1828, 0
        %v1893 = vsel %vm966, %v1830, 0
        %v1895 = vsel %vm966, %v1832, 0
        %v1897 = vsel %vm966, %v1834, 0
        %v1899 = vsel %vm966, %v1836, 0
        %v1901 = vsel %vm966, %v1838, 0
        %v1903 = vsel %vm966, %v1840, 0
        %v1905 = vsel %vm966, %v1842, 0
        %v1907 = vsel %vm966, %v1844, 0
        %v1909 = vsel %vm966, %v1846, 0
        %v1911 = vsel %vm966, %v1848, 0
        %v1913 = vsel %vm966, %v1850, 0
        %v1915 = vsel %vm966, %v1852, 0
        %v1917 = vsel %vm966, %v1854, 0
        %v1919 = vsel %vm966, %v1856, 0
        %v1921 = vsel %vm966, %v1858, 0
        %v1923 = vsel %vm966, %v1860, 0
        %v1925 = vsel %vm966, %v1862, 0
        %v1927 = vsel %vm966, %v1864, 0
        %v1929 = vsel %vm966, %v1866, 0
        %v1931 = vsel %vm966, %v1868, 0
        %v1933 = vsel %vm966, %v1870, 0
        %v1935 = vsel %vm966, %v1872, 0
        %v1937 = vsel %vm966, %v1874, 0
        %v1939 = vsel %vm966, %v1876, 0
        %v1941 = vsel %vm966, %v1878, 0
        %v1943 = vsel %vm966, %v1880, 0
        %v1945 = vsel %vm966, %v1882, 0
        %v1947 = vsel %vm966, %v1884, 0
        %v1949 = vsel %vm966, %v1886, 0
        %1951 = vmatprep.subr.mxu0 0.0
        %1952 = vmatpush1.msra.mxu0 0.0
        %1953 = vmatprep.subr.mxu0 0.0
        %1954 = vmatpush1.msra.mxu0 0.0
        %1955 = vmatprep.subr.mxu0 0.0
        %1956 = vmatpush1.msra.mxu0 0.0
        %1957 = vmatprep.subr.mxu0 0.0
        %1958 = vmatpush1.msra.mxu0 0.0
        %1959 = vmatprep.subr.mxu0 0.0
        %1960 = vmatpush1.msra.mxu0 0.0
        %1961 = vmatprep.subr.mxu0 0.0
        %1962 = vmatpush1.msra.mxu0 0.0
        %1963 = vmatprep.subr.mxu0 0.0
        %1964 = vmatpush1.msra.mxu0 0.0
        %1965 = vmatprep.subr.mxu0 0.0
        %1966 = vmatpush1.msra.mxu0 0.0
        %1967 = vmatprep.subr.mxu0 0.0
        %1968 = vmatpush1.msra.mxu0 0.0
        %1969 = vmatprep.subr.mxu0 0.0
        %1970 = vmatpush1.msra.mxu0 0.0
        %1971 = vmatprep.subr.mxu0 0.0
        %1972 = vmatpush1.msra.mxu0 0.0
        %1973 = vmatprep.subr.mxu0 0.0
        %1974 = vmatpush1.msra.mxu0 0.0
        %1975 = vmatprep.subr.mxu0 0.0
        %1976 = vmatpush1.msra.mxu0 0.0
        %1977 = vmatprep.subr.mxu0 0.0
        %1978 = vmatpush1.msra.mxu0 0.0
        %1979 = vmatprep.subr.mxu0 0.0
        %1980 = vmatpush1.msra.mxu0 0.0
        %1981 = vmatprep.subr.mxu0 0.0
        %1982 = vmatpush1.msra.mxu0 %v1790
        %1983 = vmatprep.subr.mxu0 0.0
        %1984 = vmatpush2.msra.mxu0 0.0
        %1985 = vmatprep.subr.mxu0 0.0
        %1986 = vmatpush2.msra.mxu0 0.0
        %1987 = vmatprep.subr.mxu0 0.0
        %1988 = vmatpush2.msra.mxu0 0.0
        %1989 = vmatprep.subr.mxu0 0.0
        %1990 = vmatpush2.msra.mxu0 0.0
        %1991 = vmatprep.subr.mxu0 0.0
        %1992 = vmatpush2.msra.mxu0 0.0
        %1993 = vmatprep.subr.mxu0 0.0
        %1994 = vmatpush2.msra.mxu0 0.0
        %1995 = vmatprep.subr.mxu0 0.0
        %1996 = vmatpush2.msra.mxu0 0.0
        %1997 = vmatprep.subr.mxu0 0.0
        %1998 = vmatpush2.msra.mxu0 0.0
        %1999 = vmatprep.subr.mxu0 0.0
        %2000 = vmatpush2.msra.mxu0 0.0
        %2001 = vmatprep.subr.mxu0 0.0
        %2002 = vmatpush2.msra.mxu0 0.0
        %2003 = vmatprep.subr.mxu0 0.0
        %2004 = vmatpush2.msra.mxu0 0.0
        %2005 = vmatprep.subr.mxu0 0.0
        %2006 = vmatpush2.msra.mxu0 0.0
        %2007 = vmatprep.subr.mxu0 0.0
        %2008 = vmatpush2.msra.mxu0 0.0
        %2009 = vmatprep.subr.mxu0 0.0
        %2010 = vmatpush2.msra.mxu0 0.0
        %2011 = vmatprep.subr.mxu0 0.0
        %2012 = vmatpush2.msra.mxu0 0.0
        %2013 = vmatprep.subr.mxu0 0.0
        %2014 = vmatpush2.msra.mxu0 0.0
        %2015 = vmatprep.mubr.f32.mxu0 0.0
        %2016 = vmatmul.mubr.f32.gmra.mxu0 %v1887
        %v2017 = vpop.f32.mrf.mxu0
        %v2018 = vadd.f32 0.0, %v2017
        %v2019 = vpop.f32.mrf.mxu0
        %2020 = vmatprep.mubr.f32.mxu0 0.0
        %2021 = vmatmul.mubr.f32.gmra.mxu0 %v1889
        %v2022 = vpop.f32.mrf.mxu0
        %v2023 = vadd.f32 0.0, %v2022
        %v2024 = vpop.f32.mrf.mxu0
        %2025 = vmatprep.mubr.f32.mxu0 0.0
        %2026 = vmatmul.mubr.f32.gmra.mxu0 %v1891
        %v2027 = vpop.f32.mrf.mxu0
        %v2028 = vadd.f32 0.0, %v2027
        %v2029 = vpop.f32.mrf.mxu0
        %2030 = vmatprep.mubr.f32.mxu0 0.0
        %2031 = vmatmul.mubr.f32.gmra.mxu0 %v1893
        %v2032 = vpop.f32.mrf.mxu0
        %v2033 = vadd.f32 0.0, %v2032
        %v2034 = vpop.f32.mrf.mxu0
        %2035 = vmatprep.mubr.f32.mxu0 0.0
        %2036 = vmatmul.mubr.f32.gmra.mxu0 %v1895
        %v2037 = vpop.f32.mrf.mxu0
        %v2038 = vadd.f32 0.0, %v2037
        %v2039 = vpop.f32.mrf.mxu0
        %2040 = vmatprep.mubr.f32.mxu0 0.0
        %2041 = vmatmul.mubr.f32.gmra.mxu0 %v1897
        %v2042 = vpop.f32.mrf.mxu0
        %v2043 = vadd.f32 0.0, %v2042
        %v2044 = vpop.f32.mrf.mxu0
        %2045 = vmatprep.mubr.f32.mxu0 0.0
        %2046 = vmatmul.mubr.f32.gmra.mxu0 %v1899
        %v2047 = vpop.f32.mrf.mxu0
        %v2048 = vadd.f32 0.0, %v2047
        %v2049 = vpop.f32.mrf.mxu0
        %2050 = vmatprep.mubr.f32.mxu0 0.0
        %2051 = vmatmul.mubr.f32.gmra.mxu0 %v1901
        %v2052 = vpop.f32.mrf.mxu0
        %v2053 = vadd.f32 0.0, %v2052
        %v2054 = vpop.f32.mrf.mxu0
        %2055 = vmatprep.mubr.f32.mxu0 0.0
        %2056 = vmatmul.mubr.f32.gmra.mxu0 %v1903
        %v2057 = vpop.f32.mrf.mxu0
        %v2058 = vadd.f32 0.0, %v2057
        %v2059 = vpop.f32.mrf.mxu0
        %2060 = vmatprep.mubr.f32.mxu0 0.0
        %2061 = vmatmul.mubr.f32.gmra.mxu0 %v1905
        %v2062 = vpop.f32.mrf.mxu0
        %v2063 = vadd.f32 0.0, %v2062
        %v2064 = vpop.f32.mrf.mxu0
        %2065 = vmatprep.mubr.f32.mxu0 0.0
        %2066 = vmatmul.mubr.f32.gmra.mxu0 %v1907
        %v2067 = vpop.f32.mrf.mxu0
        %v2068 = vadd.f32 0.0, %v2067
        %v2069 = vpop.f32.mrf.mxu0
        %2070 = vmatprep.mubr.f32.mxu0 0.0
        %2071 = vmatmul.mubr.f32.gmra.mxu0 %v1909
        %v2072 = vpop.f32.mrf.mxu0
        %v2073 = vadd.f32 0.0, %v2072
        %v2074 = vpop.f32.mrf.mxu0
        %2075 = vmatprep.mubr.f32.mxu0 0.0
        %2076 = vmatmul.mubr.f32.gmra.mxu0 %v1911
        %v2077 = vpop.f32.mrf.mxu0
        %v2078 = vadd.f32 0.0, %v2077
        %v2079 = vpop.f32.mrf.mxu0
        %2080 = vmatprep.mubr.f32.mxu0 0.0
        %2081 = vmatmul.mubr.f32.gmra.mxu0 %v1913
        %v2082 = vpop.f32.mrf.mxu0
        %v2083 = vadd.f32 0.0, %v2082
        %v2084 = vpop.f32.mrf.mxu0
        %2085 = vmatprep.mubr.f32.mxu0 0.0
        %2086 = vmatmul.mubr.f32.gmra.mxu0 %v1915
        %v2087 = vpop.f32.mrf.mxu0
        %v2088 = vadd.f32 0.0, %v2087
        %v2089 = vpop.f32.mrf.mxu0
        %2090 = vmatprep.mubr.f32.mxu0 0.0
        %2091 = vmatmul.mubr.f32.gmra.mxu0 %v1917
        %v2092 = vpop.f32.mrf.mxu0
        %v2093 = vadd.f32 0.0, %v2092
        %v2094 = vpop.f32.mrf.mxu0
        %2095 = vmatprep.mubr.f32.mxu0 0.0
        %2096 = vmatmul.mubr.f32.gmra.mxu0 %v1919
        %v2097 = vpop.f32.mrf.mxu0
        %v2098 = vadd.f32 0.0, %v2097
        %v2099 = vpop.f32.mrf.mxu0
        %2100 = vmatprep.mubr.f32.mxu0 0.0
        %2101 = vmatmul.mubr.f32.gmra.mxu0 %v1921
        %v2102 = vpop.f32.mrf.mxu0
        %v2103 = vadd.f32 0.0, %v2102
        %v2104 = vpop.f32.mrf.mxu0
        %2105 = vmatprep.mubr.f32.mxu0 0.0
        %2106 = vmatmul.mubr.f32.gmra.mxu0 %v1923
        %v2107 = vpop.f32.mrf.mxu0
        %v2108 = vadd.f32 0.0, %v2107
        %v2109 = vpop.f32.mrf.mxu0
        %2110 = vmatprep.mubr.f32.mxu0 0.0
        %2111 = vmatmul.mubr.f32.gmra.mxu0 %v1925
        %v2112 = vpop.f32.mrf.mxu0
        %v2113 = vadd.f32 0.0, %v2112
        %v2114 = vpop.f32.mrf.mxu0
        %2115 = vmatprep.mubr.f32.mxu0 0.0
        %2116 = vmatmul.mubr.f32.gmra.mxu0 %v1927
        %v2117 = vpop.f32.mrf.mxu0
        %v2118 = vadd.f32 0.0, %v2117
        %v2119 = vpop.f32.mrf.mxu0
        %2120 = vmatprep.mubr.f32.mxu0 0.0
        %2121 = vmatmul.mubr.f32.gmra.mxu0 %v1929
        %v2122 = vpop.f32.mrf.mxu0
        %v2123 = vadd.f32 0.0, %v2122
        %v2124 = vpop.f32.mrf.mxu0
        %2125 = vmatprep.mubr.f32.mxu0 0.0
        %2126 = vmatmul.mubr.f32.gmra.mxu0 %v1931
        %v2127 = vpop.f32.mrf.mxu0
        %v2128 = vadd.f32 0.0, %v2127
        %v2129 = vpop.f32.mrf.mxu0
        %2130 = vmatprep.mubr.f32.mxu0 0.0
        %2131 = vmatmul.mubr.f32.gmra.mxu0 %v1933
        %v2132 = vpop.f32.mrf.mxu0
        %v2133 = vadd.f32 0.0, %v2132
        %v2134 = vpop.f32.mrf.mxu0
        %2135 = vmatprep.mubr.f32.mxu0 0.0
        %2136 = vmatmul.mubr.f32.gmra.mxu0 %v1935
        %v2137 = vpop.f32.mrf.mxu0
        %v2138 = vadd.f32 0.0, %v2137
        %v2139 = vpop.f32.mrf.mxu0
        %2140 = vmatprep.mubr.f32.mxu0 0.0
        %2141 = vmatmul.mubr.f32.gmra.mxu0 %v1937
        %v2142 = vpop.f32.mrf.mxu0
        %v2143 = vadd.f32 0.0, %v2142
        %v2144 = vpop.f32.mrf.mxu0
        %2145 = vmatprep.mubr.f32.mxu0 0.0
        %2146 = vmatmul.mubr.f32.gmra.mxu0 %v1939
        %v2147 = vpop.f32.mrf.mxu0
        %v2148 = vadd.f32 0.0, %v2147
        %v2149 = vpop.f32.mrf.mxu0
        %2150 = vmatprep.mubr.f32.mxu0 0.0
        %2151 = vmatmul.mubr.f32.gmra.mxu0 %v1941
        %v2152 = vpop.f32.mrf.mxu0
        %v2153 = vadd.f32 0.0, %v2152
        %v2154 = vpop.f32.mrf.mxu0
        %2155 = vmatprep.mubr.f32.mxu0 0.0
        %2156 = vmatmul.mubr.f32.gmra.mxu0 %v1943
        %v2157 = vpop.f32.mrf.mxu0
        %v2158 = vadd.f32 0.0, %v2157
        %v2159 = vpop.f32.mrf.mxu0
        %2160 = vmatprep.mubr.f32.mxu0 0.0
        %2161 = vmatmul.mubr.f32.gmra.mxu0 %v1945
        %v2162 = vpop.f32.mrf.mxu0
        %v2163 = vadd.f32 0.0, %v2162
        %v2164 = vpop.f32.mrf.mxu0
        %2165 = vmatprep.mubr.f32.mxu0 0.0
        %2166 = vmatmul.mubr.f32.gmra.mxu0 %v1947
        %v2167 = vpop.f32.mrf.mxu0
        %v2168 = vadd.f32 0.0, %v2167
        %v2169 = vpop.f32.mrf.mxu0
        %2170 = vmatprep.mubr.f32.mxu0 0.0
        %2171 = vmatmul.mubr.f32.gmra.mxu0 %v1949
        %v2172 = vpop.f32.mrf.mxu0
        %v2173 = vadd.f32 0.0, %v2172
        %v2174 = vpop.f32.mrf.mxu0
        %2175 = vdwg.mxu0
        %s2176 = scalar_lea.vmem %s5, 8
        %v2177 = vld [vmem:[%s2176] sm:$0xff]
        %2178 = vmatprep.subr.mxu0 0.0
        %2179 = vmatpush1.msra.mxu0 0.0
        %2180 = vmatprep.subr.mxu0 0.0
        %2181 = vmatpush1.msra.mxu0 0.0
        %2182 = vmatprep.subr.mxu0 0.0
        %2183 = vmatpush1.msra.mxu0 0.0
        %2184 = vmatprep.subr.mxu0 0.0
        %2185 = vmatpush1.msra.mxu0 0.0
        %2186 = vmatprep.subr.mxu0 0.0
        %2187 = vmatpush1.msra.mxu0 0.0
        %2188 = vmatprep.subr.mxu0 0.0
        %2189 = vmatpush1.msra.mxu0 0.0
        %2190 = vmatprep.subr.mxu0 0.0
        %2191 = vmatpush1.msra.mxu0 0.0
        %2192 = vmatprep.subr.mxu0 0.0
        %2193 = vmatpush1.msra.mxu0 0.0
        %2194 = vmatprep.subr.mxu0 0.0
        %2195 = vmatpush1.msra.mxu0 0.0
        %2196 = vmatprep.subr.mxu0 0.0
        %2197 = vmatpush1.msra.mxu0 0.0
        %2198 = vmatprep.subr.mxu0 0.0
        %2199 = vmatpush1.msra.mxu0 0.0
        %2200 = vmatprep.subr.mxu0 0.0
        %2201 = vmatpush1.msra.mxu0 0.0
        %2202 = vmatprep.subr.mxu0 0.0
        %2203 = vmatpush1.msra.mxu0 0.0
        %2204 = vmatprep.subr.mxu0 0.0
        %2205 = vmatpush1.msra.mxu0 0.0
        %2206 = vmatprep.subr.mxu0 0.0
        %2207 = vmatpush1.msra.mxu0 0.0
        %2208 = vmatprep.subr.mxu0 0.0
        %2209 = vmatpush1.msra.mxu0 %v2177
        %2210 = vmatprep.subr.mxu0 0.0
        %2211 = vmatpush2.msra.mxu0 0.0
        %2212 = vmatprep.subr.mxu0 0.0
        %2213 = vmatpush2.msra.mxu0 0.0
        %2214 = vmatprep.subr.mxu0 0.0
        %2215 = vmatpush2.msra.mxu0 0.0
        %2216 = vmatprep.subr.mxu0 0.0
        %2217 = vmatpush2.msra.mxu0 0.0
        %2218 = vmatprep.subr.mxu0 0.0
        %2219 = vmatpush2.msra.mxu0 0.0
        %2220 = vmatprep.subr.mxu0 0.0
        %2221 = vmatpush2.msra.mxu0 0.0
        %2222 = vmatprep.subr.mxu0 0.0
        %2223 = vmatpush2.msra.mxu0 0.0
        %2224 = vmatprep.subr.mxu0 0.0
        %2225 = vmatpush2.msra.mxu0 0.0
        %2226 = vmatprep.subr.mxu0 0.0
        %2227 = vmatpush2.msra.mxu0 0.0
        %2228 = vmatprep.subr.mxu0 0.0
        %2229 = vmatpush2.msra.mxu0 0.0
        %2230 = vmatprep.subr.mxu0 0.0
        %2231 = vmatpush2.msra.mxu0 0.0
        %2232 = vmatprep.subr.mxu0 0.0
        %2233 = vmatpush2.msra.mxu0 0.0
        %2234 = vmatprep.subr.mxu0 0.0
        %2235 = vmatpush2.msra.mxu0 0.0
        %2236 = vmatprep.subr.mxu0 0.0
        %2237 = vmatpush2.msra.mxu0 0.0
        %2238 = vmatprep.subr.mxu0 0.0
        %2239 = vmatpush2.msra.mxu0 0.0
        %2240 = vmatprep.subr.mxu0 0.0
        %2241 = vmatpush2.msra.mxu0 0.0
        %2242 = vmatprep.mubr.f32.mxu0 0.0
        %2243 = vmatmul.mubr.f32.gmra.mxu0 %v1887
        %v2244 = vpop.f32.mrf.mxu0
        %v2245 = vadd.f32 0.0, %v2244
        %v2246 = vpop.f32.mrf.mxu0
        %2247 = vmatprep.mubr.f32.mxu0 0.0
        %2248 = vmatmul.mubr.f32.gmra.mxu0 %v1889
        %v2249 = vpop.f32.mrf.mxu0
        %v2250 = vadd.f32 0.0, %v2249
        %v2251 = vpop.f32.mrf.mxu0
        %2252 = vmatprep.mubr.f32.mxu0 0.0
        %2253 = vmatmul.mubr.f32.gmra.mxu0 %v1891
        %v2254 = vpop.f32.mrf.mxu0
        %v2255 = vadd.f32 0.0, %v2254
        %v2256 = vpop.f32.mrf.mxu0
        %2257 = vmatprep.mubr.f32.mxu0 0.0
        %2258 = vmatmul.mubr.f32.gmra.mxu0 %v1893
        %v2259 = vpop.f32.mrf.mxu0
        %v2260 = vadd.f32 0.0, %v2259
        %v2261 = vpop.f32.mrf.mxu0
        %2262 = vmatprep.mubr.f32.mxu0 0.0
        %2263 = vmatmul.mubr.f32.gmra.mxu0 %v1895
        %v2264 = vpop.f32.mrf.mxu0
        %v2265 = vadd.f32 0.0, %v2264
        %v2266 = vpop.f32.mrf.mxu0
        %2267 = vmatprep.mubr.f32.mxu0 0.0
        %2268 = vmatmul.mubr.f32.gmra.mxu0 %v1897
        %v2269 = vpop.f32.mrf.mxu0
        %v2270 = vadd.f32 0.0, %v2269
        %v2271 = vpop.f32.mrf.mxu0
        %2272 = vmatprep.mubr.f32.mxu0 0.0
        %2273 = vmatmul.mubr.f32.gmra.mxu0 %v1899
        %v2274 = vpop.f32.mrf.mxu0
        %v2275 = vadd.f32 0.0, %v2274
        %v2276 = vpop.f32.mrf.mxu0
        %2277 = vmatprep.mubr.f32.mxu0 0.0
        %2278 = vmatmul.mubr.f32.gmra.mxu0 %v1901
        %v2279 = vpop.f32.mrf.mxu0
        %v2280 = vadd.f32 0.0, %v2279
        %v2281 = vpop.f32.mrf.mxu0
        %2282 = vmatprep.mubr.f32.mxu0 0.0
        %2283 = vmatmul.mubr.f32.gmra.mxu0 %v1903
        %v2284 = vpop.f32.mrf.mxu0
        %v2285 = vadd.f32 0.0, %v2284
        %v2286 = vpop.f32.mrf.mxu0
        %2287 = vmatprep.mubr.f32.mxu0 0.0
        %2288 = vmatmul.mubr.f32.gmra.mxu0 %v1905
        %v2289 = vpop.f32.mrf.mxu0
        %v2290 = vadd.f32 0.0, %v2289
        %v2291 = vpop.f32.mrf.mxu0
        %2292 = vmatprep.mubr.f32.mxu0 0.0
        %2293 = vmatmul.mubr.f32.gmra.mxu0 %v1907
        %v2294 = vpop.f32.mrf.mxu0
        %v2295 = vadd.f32 0.0, %v2294
        %v2296 = vpop.f32.mrf.mxu0
        %2297 = vmatprep.mubr.f32.mxu0 0.0
        %2298 = vmatmul.mubr.f32.gmra.mxu0 %v1909
        %v2299 = vpop.f32.mrf.mxu0
        %v2300 = vadd.f32 0.0, %v2299
        %v2301 = vpop.f32.mrf.mxu0
        %2302 = vmatprep.mubr.f32.mxu0 0.0
        %2303 = vmatmul.mubr.f32.gmra.mxu0 %v1911
        %v2304 = vpop.f32.mrf.mxu0
        %v2305 = vadd.f32 0.0, %v2304
        %v2306 = vpop.f32.mrf.mxu0
        %2307 = vmatprep.mubr.f32.mxu0 0.0
        %2308 = vmatmul.mubr.f32.gmra.mxu0 %v1913
        %v2309 = vpop.f32.mrf.mxu0
        %v2310 = vadd.f32 0.0, %v2309
        %v2311 = vpop.f32.mrf.mxu0
        %2312 = vmatprep.mubr.f32.mxu0 0.0
        %2313 = vmatmul.mubr.f32.gmra.mxu0 %v1915
        %v2314 = vpop.f32.mrf.mxu0
        %v2315 = vadd.f32 0.0, %v2314
        %v2316 = vpop.f32.mrf.mxu0
        %2317 = vmatprep.mubr.f32.mxu0 0.0
        %2318 = vmatmul.mubr.f32.gmra.mxu0 %v1917
        %v2319 = vpop.f32.mrf.mxu0
        %v2320 = vadd.f32 0.0, %v2319
        %v2321 = vpop.f32.mrf.mxu0
        %2322 = vmatprep.mubr.f32.mxu0 0.0
        %2323 = vmatmul.mubr.f32.gmra.mxu0 %v1919
        %v2324 = vpop.f32.mrf.mxu0
        %v2325 = vadd.f32 0.0, %v2324
        %v2326 = vpop.f32.mrf.mxu0
        %2327 = vmatprep.mubr.f32.mxu0 0.0
        %2328 = vmatmul.mubr.f32.gmra.mxu0 %v1921
        %v2329 = vpop.f32.mrf.mxu0
        %v2330 = vadd.f32 0.0, %v2329
        %v2331 = vpop.f32.mrf.mxu0
        %2332 = vmatprep.mubr.f32.mxu0 0.0
        %2333 = vmatmul.mubr.f32.gmra.mxu0 %v1923
        %v2334 = vpop.f32.mrf.mxu0
        %v2335 = vadd.f32 0.0, %v2334
        %v2336 = vpop.f32.mrf.mxu0
        %2337 = vmatprep.mubr.f32.mxu0 0.0
        %2338 = vmatmul.mubr.f32.gmra.mxu0 %v1925
        %v2339 = vpop.f32.mrf.mxu0
        %v2340 = vadd.f32 0.0, %v2339
        %v2341 = vpop.f32.mrf.mxu0
        %2342 = vmatprep.mubr.f32.mxu0 0.0
        %2343 = vmatmul.mubr.f32.gmra.mxu0 %v1927
        %v2344 = vpop.f32.mrf.mxu0
        %v2345 = vadd.f32 0.0, %v2344
        %v2346 = vpop.f32.mrf.mxu0
        %2347 = vmatprep.mubr.f32.mxu0 0.0
        %2348 = vmatmul.mubr.f32.gmra.mxu0 %v1929
        %v2349 = vpop.f32.mrf.mxu0
        %v2350 = vadd.f32 0.0, %v2349
        %v2351 = vpop.f32.mrf.mxu0
        %2352 = vmatprep.mubr.f32.mxu0 0.0
        %2353 = vmatmul.mubr.f32.gmra.mxu0 %v1931
        %v2354 = vpop.f32.mrf.mxu0
        %v2355 = vadd.f32 0.0, %v2354
        %v2356 = vpop.f32.mrf.mxu0
        %2357 = vmatprep.mubr.f32.mxu0 0.0
        %2358 = vmatmul.mubr.f32.gmra.mxu0 %v1933
        %v2359 = vpop.f32.mrf.mxu0
        %v2360 = vadd.f32 0.0, %v2359
        %v2361 = vpop.f32.mrf.mxu0
        %2362 = vmatprep.mubr.f32.mxu0 0.0
        %2363 = vmatmul.mubr.f32.gmra.mxu0 %v1935
        %v2364 = vpop.f32.mrf.mxu0
        %v2365 = vadd.f32 0.0, %v2364
        %v2366 = vpop.f32.mrf.mxu0
        %2367 = vmatprep.mubr.f32.mxu0 0.0
        %2368 = vmatmul.mubr.f32.gmra.mxu0 %v1937
        %v2369 = vpop.f32.mrf.mxu0
        %v2370 = vadd.f32 0.0, %v2369
        %v2371 = vpop.f32.mrf.mxu0
        %2372 = vmatprep.mubr.f32.mxu0 0.0
        %2373 = vmatmul.mubr.f32.gmra.mxu0 %v1939
        %v2374 = vpop.f32.mrf.mxu0
        %v2375 = vadd.f32 0.0, %v2374
        %v2376 = vpop.f32.mrf.mxu0
        %2377 = vmatprep.mubr.f32.mxu0 0.0
        %2378 = vmatmul.mubr.f32.gmra.mxu0 %v1941
        %v2379 = vpop.f32.mrf.mxu0
        %v2380 = vadd.f32 0.0, %v2379
        %v2381 = vpop.f32.mrf.mxu0
        %2382 = vmatprep.mubr.f32.mxu0 0.0
        %2383 = vmatmul.mubr.f32.gmra.mxu0 %v1943
        %v2384 = vpop.f32.mrf.mxu0
        %v2385 = vadd.f32 0.0, %v2384
        %v2386 = vpop.f32.mrf.mxu0
        %2387 = vmatprep.mubr.f32.mxu0 0.0
        %2388 = vmatmul.mubr.f32.gmra.mxu0 %v1945
        %v2389 = vpop.f32.mrf.mxu0
        %v2390 = vadd.f32 0.0, %v2389
        %v2391 = vpop.f32.mrf.mxu0
        %2392 = vmatprep.mubr.f32.mxu0 0.0
        %2393 = vmatmul.mubr.f32.gmra.mxu0 %v1947
        %v2394 = vpop.f32.mrf.mxu0
        %v2395 = vadd.f32 0.0, %v2394
        %v2396 = vpop.f32.mrf.mxu0
        %2397 = vmatprep.mubr.f32.mxu0 0.0
        %2398 = vmatmul.mubr.f32.gmra.mxu0 %v1949
        %v2399 = vpop.f32.mrf.mxu0
        %v2400 = vadd.f32 0.0, %v2399
        %v2401 = vpop.f32.mrf.mxu0
        %2402 = vdwg.mxu0
        %s2403 = scalar_lea.vmem %s5, 16
        %v2404 = vld [vmem:[%s2403] sm:$0xff]
        %2405 = vmatprep.subr.mxu0 0.0
        %2406 = vmatpush1.msra.mxu0 0.0
        %2407 = vmatprep.subr.mxu0 0.0
        %2408 = vmatpush1.msra.mxu0 0.0
        %2409 = vmatprep.subr.mxu0 0.0
        %2410 = vmatpush1.msra.mxu0 0.0
        %2411 = vmatprep.subr.mxu0 0.0
        %2412 = vmatpush1.msra.mxu0 0.0
        %2413 = vmatprep.subr.mxu0 0.0
        %2414 = vmatpush1.msra.mxu0 0.0
        %2415 = vmatprep.subr.mxu0 0.0
        %2416 = vmatpush1.msra.mxu0 0.0
        %2417 = vmatprep.subr.mxu0 0.0
        %2418 = vmatpush1.msra.mxu0 0.0
        %2419 = vmatprep.subr.mxu0 0.0
        %2420 = vmatpush1.msra.mxu0 0.0
        %2421 = vmatprep.subr.mxu0 0.0
        %2422 = vmatpush1.msra.mxu0 0.0
        %2423 = vmatprep.subr.mxu0 0.0
        %2424 = vmatpush1.msra.mxu0 0.0
        %2425 = vmatprep.subr.mxu0 0.0
        %2426 = vmatpush1.msra.mxu0 0.0
        %2427 = vmatprep.subr.mxu0 0.0
        %2428 = vmatpush1.msra.mxu0 0.0
        %2429 = vmatprep.subr.mxu0 0.0
        %2430 = vmatpush1.msra.mxu0 0.0
        %2431 = vmatprep.subr.mxu0 0.0
        %2432 = vmatpush1.msra.mxu0 0.0
        %2433 = vmatprep.subr.mxu0 0.0
        %2434 = vmatpush1.msra.mxu0 0.0
        %2435 = vmatprep.subr.mxu0 0.0
        %2436 = vmatpush1.msra.mxu0 %v2404
        %2437 = vmatprep.subr.mxu0 0.0
        %2438 = vmatpush2.msra.mxu0 0.0
        %2439 = vmatprep.subr.mxu0 0.0
        %2440 = vmatpush2.msra.mxu0 0.0
        %2441 = vmatprep.subr.mxu0 0.0
        %2442 = vmatpush2.msra.mxu0 0.0
        %2443 = vmatprep.subr.mxu0 0.0
        %2444 = vmatpush2.msra.mxu0 0.0
        %2445 = vmatprep.subr.mxu0 0.0
        %2446 = vmatpush2.msra.mxu0 0.0
        %2447 = vmatprep.subr.mxu0 0.0
        %2448 = vmatpush2.msra.mxu0 0.0
        %2449 = vmatprep.subr.mxu0 0.0
        %2450 = vmatpush2.msra.mxu0 0.0
        %2451 = vmatprep.subr.mxu0 0.0
        %2452 = vmatpush2.msra.mxu0 0.0
        %2453 = vmatprep.subr.mxu0 0.0
        %2454 = vmatpush2.msra.mxu0 0.0
        %2455 = vmatprep.subr.mxu0 0.0
        %2456 = vmatpush2.msra.mxu0 0.0
        %2457 = vmatprep.subr.mxu0 0.0
        %2458 = vmatpush2.msra.mxu0 0.0
        %2459 = vmatprep.subr.mxu0 0.0
        %2460 = vmatpush2.msra.mxu0 0.0
        %2461 = vmatprep.subr.mxu0 0.0
        %2462 = vmatpush2.msra.mxu0 0.0
        %2463 = vmatprep.subr.mxu0 0.0
        %2464 = vmatpush2.msra.mxu0 0.0
        %2465 = vmatprep.subr.mxu0 0.0
        %2466 = vmatpush2.msra.mxu0 0.0
        %2467 = vmatprep.subr.mxu0 0.0
        %2468 = vmatpush2.msra.mxu0 0.0
        %2469 = vmatprep.mubr.f32.mxu0 0.0
        %2470 = vmatmul.mubr.f32.gmra.mxu0 %v1887
        %v2471 = vpop.f32.mrf.mxu0
        %v2472 = vadd.f32 0.0, %v2471
        %v2473 = vpop.f32.mrf.mxu0
        %2474 = vmatprep.mubr.f32.mxu0 0.0
        %2475 = vmatmul.mubr.f32.gmra.mxu0 %v1889
        %v2476 = vpop.f32.mrf.mxu0
        %v2477 = vadd.f32 0.0, %v2476
        %v2478 = vpop.f32.mrf.mxu0
        %2479 = vmatprep.mubr.f32.mxu0 0.0
        %2480 = vmatmul.mubr.f32.gmra.mxu0 %v1891
        %v2481 = vpop.f32.mrf.mxu0
        %v2482 = vadd.f32 0.0, %v2481
        %v2483 = vpop.f32.mrf.mxu0
        %2484 = vmatprep.mubr.f32.mxu0 0.0
        %2485 = vmatmul.mubr.f32.gmra.mxu0 %v1893
        %v2486 = vpop.f32.mrf.mxu0
        %v2487 = vadd.f32 0.0, %v2486
        %v2488 = vpop.f32.mrf.mxu0
        %2489 = vmatprep.mubr.f32.mxu0 0.0
        %2490 = vmatmul.mubr.f32.gmra.mxu0 %v1895
        %v2491 = vpop.f32.mrf.mxu0
        %v2492 = vadd.f32 0.0, %v2491
        %v2493 = vpop.f32.mrf.mxu0
        %2494 = vmatprep.mubr.f32.mxu0 0.0
        %2495 = vmatmul.mubr.f32.gmra.mxu0 %v1897
        %v2496 = vpop.f32.mrf.mxu0
        %v2497 = vadd.f32 0.0, %v2496
        %v2498 = vpop.f32.mrf.mxu0
        %2499 = vmatprep.mubr.f32.mxu0 0.0
        %2500 = vmatmul.mubr.f32.gmra.mxu0 %v1899
        %v2501 = vpop.f32.mrf.mxu0
        %v2502 = vadd.f32 0.0, %v2501
        %v2503 = vpop.f32.mrf.mxu0
        %2504 = vmatprep.mubr.f32.mxu0 0.0
        %2505 = vmatmul.mubr.f32.gmra.mxu0 %v1901
        %v2506 = vpop.f32.mrf.mxu0
        %v2507 = vadd.f32 0.0, %v2506
        %v2508 = vpop.f32.mrf.mxu0
        %2509 = vmatprep.mubr.f32.mxu0 0.0
        %2510 = vmatmul.mubr.f32.gmra.mxu0 %v1903
        %v2511 = vpop.f32.mrf.mxu0
        %v2512 = vadd.f32 0.0, %v2511
        %v2513 = vpop.f32.mrf.mxu0
        %2514 = vmatprep.mubr.f32.mxu0 0.0
        %2515 = vmatmul.mubr.f32.gmra.mxu0 %v1905
        %v2516 = vpop.f32.mrf.mxu0
        %v2517 = vadd.f32 0.0, %v2516
        %v2518 = vpop.f32.mrf.mxu0
        %2519 = vmatprep.mubr.f32.mxu0 0.0
        %2520 = vmatmul.mubr.f32.gmra.mxu0 %v1907
        %v2521 = vpop.f32.mrf.mxu0
        %v2522 = vadd.f32 0.0, %v2521
        %v2523 = vpop.f32.mrf.mxu0
        %2524 = vmatprep.mubr.f32.mxu0 0.0
        %2525 = vmatmul.mubr.f32.gmra.mxu0 %v1909
        %v2526 = vpop.f32.mrf.mxu0
        %v2527 = vadd.f32 0.0, %v2526
        %v2528 = vpop.f32.mrf.mxu0
        %2529 = vmatprep.mubr.f32.mxu0 0.0
        %2530 = vmatmul.mubr.f32.gmra.mxu0 %v1911
        %v2531 = vpop.f32.mrf.mxu0
        %v2532 = vadd.f32 0.0, %v2531
        %v2533 = vpop.f32.mrf.mxu0
        %2534 = vmatprep.mubr.f32.mxu0 0.0
        %2535 = vmatmul.mubr.f32.gmra.mxu0 %v1913
        %v2536 = vpop.f32.mrf.mxu0
        %v2537 = vadd.f32 0.0, %v2536
        %v2538 = vpop.f32.mrf.mxu0
        %2539 = vmatprep.mubr.f32.mxu0 0.0
        %2540 = vmatmul.mubr.f32.gmra.mxu0 %v1915
        %v2541 = vpop.f32.mrf.mxu0
        %v2542 = vadd.f32 0.0, %v2541
        %v2543 = vpop.f32.mrf.mxu0
        %2544 = vmatprep.mubr.f32.mxu0 0.0
        %2545 = vmatmul.mubr.f32.gmra.mxu0 %v1917
        %v2546 = vpop.f32.mrf.mxu0
        %v2547 = vadd.f32 0.0, %v2546
        %v2548 = vpop.f32.mrf.mxu0
        %2549 = vmatprep.mubr.f32.mxu0 0.0
        %2550 = vmatmul.mubr.f32.gmra.mxu0 %v1919
        %v2551 = vpop.f32.mrf.mxu0
        %v2552 = vadd.f32 0.0, %v2551
        %v2553 = vpop.f32.mrf.mxu0
        %2554 = vmatprep.mubr.f32.mxu0 0.0
        %2555 = vmatmul.mubr.f32.gmra.mxu0 %v1921
        %v2556 = vpop.f32.mrf.mxu0
        %v2557 = vadd.f32 0.0, %v2556
        %v2558 = vpop.f32.mrf.mxu0
        %2559 = vmatprep.mubr.f32.mxu0 0.0
        %2560 = vmatmul.mubr.f32.gmra.mxu0 %v1923
        %v2561 = vpop.f32.mrf.mxu0
        %v2562 = vadd.f32 0.0, %v2561
        %v2563 = vpop.f32.mrf.mxu0
        %2564 = vmatprep.mubr.f32.mxu0 0.0
        %2565 = vmatmul.mubr.f32.gmra.mxu0 %v1925
        %v2566 = vpop.f32.mrf.mxu0
        %v2567 = vadd.f32 0.0, %v2566
        %v2568 = vpop.f32.mrf.mxu0
        %2569 = vmatprep.mubr.f32.mxu0 0.0
        %2570 = vmatmul.mubr.f32.gmra.mxu0 %v1927
        %v2571 = vpop.f32.mrf.mxu0
        %v2572 = vadd.f32 0.0, %v2571
        %v2573 = vpop.f32.mrf.mxu0
        %2574 = vmatprep.mubr.f32.mxu0 0.0
        %2575 = vmatmul.mubr.f32.gmra.mxu0 %v1929
        %v2576 = vpop.f32.mrf.mxu0
        %v2577 = vadd.f32 0.0, %v2576
        %v2578 = vpop.f32.mrf.mxu0
        %2579 = vmatprep.mubr.f32.mxu0 0.0
        %2580 = vmatmul.mubr.f32.gmra.mxu0 %v1931
        %v2581 = vpop.f32.mrf.mxu0
        %v2582 = vadd.f32 0.0, %v2581
        %v2583 = vpop.f32.mrf.mxu0
        %2584 = vmatprep.mubr.f32.mxu0 0.0
        %2585 = vmatmul.mubr.f32.gmra.mxu0 %v1933
        %v2586 = vpop.f32.mrf.mxu0
        %v2587 = vadd.f32 0.0, %v2586
        %v2588 = vpop.f32.mrf.mxu0
        %2589 = vmatprep.mubr.f32.mxu0 0.0
        %2590 = vmatmul.mubr.f32.gmra.mxu0 %v1935
        %v2591 = vpop.f32.mrf.mxu0
        %v2592 = vadd.f32 0.0, %v2591
        %v2593 = vpop.f32.mrf.mxu0
        %2594 = vmatprep.mubr.f32.mxu0 0.0
        %2595 = vmatmul.mubr.f32.gmra.mxu0 %v1937
        %v2596 = vpop.f32.mrf.mxu0
        %v2597 = vadd.f32 0.0, %v2596
        %v2598 = vpop.f32.mrf.mxu0
        %2599 = vmatprep.mubr.f32.mxu0 0.0
        %2600 = vmatmul.mubr.f32.gmra.mxu0 %v1939
        %v2601 = vpop.f32.mrf.mxu0
        %v2602 = vadd.f32 0.0, %v2601
        %v2603 = vpop.f32.mrf.mxu0
        %2604 = vmatprep.mubr.f32.mxu0 0.0
        %2605 = vmatmul.mubr.f32.gmra.mxu0 %v1941
        %v2606 = vpop.f32.mrf.mxu0
        %v2607 = vadd.f32 0.0, %v2606
        %v2608 = vpop.f32.mrf.mxu0
        %2609 = vmatprep.mubr.f32.mxu0 0.0
        %2610 = vmatmul.mubr.f32.gmra.mxu0 %v1943
        %v2611 = vpop.f32.mrf.mxu0
        %v2612 = vadd.f32 0.0, %v2611
        %v2613 = vpop.f32.mrf.mxu0
        %2614 = vmatprep.mubr.f32.mxu0 0.0
        %2615 = vmatmul.mubr.f32.gmra.mxu0 %v1945
        %v2616 = vpop.f32.mrf.mxu0
        %v2617 = vadd.f32 0.0, %v2616
        %v2618 = vpop.f32.mrf.mxu0
        %2619 = vmatprep.mubr.f32.mxu0 0.0
        %2620 = vmatmul.mubr.f32.gmra.mxu0 %v1947
        %v2621 = vpop.f32.mrf.mxu0
        %v2622 = vadd.f32 0.0, %v2621
        %v2623 = vpop.f32.mrf.mxu0
        %2624 = vmatprep.mubr.f32.mxu0 0.0
        %2625 = vmatmul.mubr.f32.gmra.mxu0 %v1949
        %v2626 = vpop.f32.mrf.mxu0
        %v2627 = vadd.f32 0.0, %v2626
        %v2628 = vpop.f32.mrf.mxu0
        %2629 = vdwg.mxu0
        %v2662 = vrot.slane %v2018, 7
        %v2663 = vrot.slane %v2023, 7
        %v2664 = vsel %vm611, %v2662, %v2663
        %v2665 = vrot.slane %v2028, 7
        %v2666 = vrot.slane %v2033, 7
        %v2667 = vsel %vm611, %v2665, %v2666
        %v2668 = vrot.slane %v2038, 7
        %v2669 = vrot.slane %v2043, 7
        %v2670 = vsel %vm611, %v2668, %v2669
        %v2671 = vrot.slane %v2048, 7
        %v2672 = vrot.slane %v2053, 7
        %v2673 = vsel %vm611, %v2671, %v2672
        %v2674 = vrot.slane %v2058, 7
        %v2675 = vrot.slane %v2063, 7
        %v2676 = vsel %vm611, %v2674, %v2675
        %v2677 = vrot.slane %v2068, 7
        %v2678 = vrot.slane %v2073, 7
        %v2679 = vsel %vm611, %v2677, %v2678
        %v2680 = vrot.slane %v2078, 7
        %v2681 = vrot.slane %v2083, 7
        %v2682 = vsel %vm611, %v2680, %v2681
        %v2683 = vrot.slane %v2088, 7
        %v2684 = vrot.slane %v2093, 7
        %v2685 = vsel %vm611, %v2683, %v2684
        %v2686 = vrot.slane %v2098, 7
        %v2687 = vrot.slane %v2103, 7
        %v2688 = vsel %vm611, %v2686, %v2687
        %v2689 = vrot.slane %v2108, 7
        %v2690 = vrot.slane %v2113, 7
        %v2691 = vsel %vm611, %v2689, %v2690
        %v2692 = vrot.slane %v2118, 7
        %v2693 = vrot.slane %v2123, 7
        %v2694 = vsel %vm611, %v2692, %v2693
        %v2695 = vrot.slane %v2128, 7
        %v2696 = vrot.slane %v2133, 7
        %v2697 = vsel %vm611, %v2695, %v2696
        %v2698 = vrot.slane %v2138, 7
        %v2699 = vrot.slane %v2143, 7
        %v2700 = vsel %vm611, %v2698, %v2699
        %v2701 = vrot.slane %v2148, 7
        %v2702 = vrot.slane %v2153, 7
        %v2703 = vsel %vm611, %v2701, %v2702
        %v2704 = vrot.slane %v2158, 7
        %v2705 = vrot.slane %v2163, 7
        %v2706 = vsel %vm611, %v2704, %v2705
        %v2707 = vrot.slane %v2168, 7
        %v2708 = vrot.slane %v2173, 7
        %v2709 = vsel %vm611, %v2707, %v2708
        %v2742 = vsel %vm611, 0.0, %v2662
        %v2743 = vsel %vm611, 0.0, %v2665
        %v2744 = vsel %vm611, 0.0, %v2668
        %v2745 = vsel %vm611, 0.0, %v2671
        %v2746 = vsel %vm611, 0.0, %v2674
        %v2747 = vsel %vm611, 0.0, %v2677
        %v2748 = vsel %vm611, 0.0, %v2680
        %v2749 = vsel %vm611, 0.0, %v2683
        %v2750 = vsel %vm611, 0.0, %v2686
        %v2751 = vsel %vm611, 0.0, %v2689
        %v2752 = vsel %vm611, 0.0, %v2692
        %v2753 = vsel %vm611, 0.0, %v2695
        %v2754 = vsel %vm611, 0.0, %v2698
        %v2755 = vsel %vm611, 0.0, %v2701
        %v2756 = vsel %vm611, 0.0, %v2704
        %v2757 = vsel %vm611, 0.0, %v2707
        %v2758 = vadd.f32 %v2245, %v2742
        %v2759 = vadd.f32 %v2250, %v2664
        %v2760 = vadd.f32 %v2255, %v2743
        %v2761 = vadd.f32 %v2260, %v2667
        %v2762 = vadd.f32 %v2265, %v2744
        %v2763 = vadd.f32 %v2270, %v2670
        %v2764 = vadd.f32 %v2275, %v2745
        %v2765 = vadd.f32 %v2280, %v2673
        %v2766 = vadd.f32 %v2285, %v2746
        %v2767 = vadd.f32 %v2290, %v2676
        %v2768 = vadd.f32 %v2295, %v2747
        %v2769 = vadd.f32 %v2300, %v2679
        %v2770 = vadd.f32 %v2305, %v2748
        %v2771 = vadd.f32 %v2310, %v2682
        %v2772 = vadd.f32 %v2315, %v2749
        %v2773 = vadd.f32 %v2320, %v2685
        %v2774 = vadd.f32 %v2325, %v2750
        %v2775 = vadd.f32 %v2330, %v2688
        %v2776 = vadd.f32 %v2335, %v2751
        %v2777 = vadd.f32 %v2340, %v2691
        %v2778 = vadd.f32 %v2345, %v2752
        %v2779 = vadd.f32 %v2350, %v2694
        %v2780 = vadd.f32 %v2355, %v2753
        %v2781 = vadd.f32 %v2360, %v2697
        %v2782 = vadd.f32 %v2365, %v2754
        %v2783 = vadd.f32 %v2370, %v2700
        %v2784 = vadd.f32 %v2375, %v2755
        %v2785 = vadd.f32 %v2380, %v2703
        %v2786 = vadd.f32 %v2385, %v2756
        %v2787 = vadd.f32 %v2390, %v2706
        %v2788 = vadd.f32 %v2395, %v2757
        %v2789 = vadd.f32 %v2400, %v2709
        %v2822 = vrot.slane %v2472, 1
        %v2823 = vrot.slane %v2477, 1
        %v2824 = vsel %vm740, %v2822, %v2823
        %v2825 = vrot.slane %v2482, 1
        %v2826 = vrot.slane %v2487, 1
        %v2827 = vsel %vm740, %v2825, %v2826
        %v2828 = vrot.slane %v2492, 1
        %v2829 = vrot.slane %v2497, 1
        %v2830 = vsel %vm740, %v2828, %v2829
        %v2831 = vrot.slane %v2502, 1
        %v2832 = vrot.slane %v2507, 1
        %v2833 = vsel %vm740, %v2831, %v2832
        %v2834 = vrot.slane %v2512, 1
        %v2835 = vrot.slane %v2517, 1
        %v2836 = vsel %vm740, %v2834, %v2835
        %v2837 = vrot.slane %v2522, 1
        %v2838 = vrot.slane %v2527, 1
        %v2839 = vsel %vm740, %v2837, %v2838
        %v2840 = vrot.slane %v2532, 1
        %v2841 = vrot.slane %v2537, 1
        %v2842 = vsel %vm740, %v2840, %v2841
        %v2843 = vrot.slane %v2542, 1
        %v2844 = vrot.slane %v2547, 1
        %v2845 = vsel %vm740, %v2843, %v2844
        %v2846 = vrot.slane %v2552, 1
        %v2847 = vrot.slane %v2557, 1
        %v2848 = vsel %vm740, %v2846, %v2847
        %v2849 = vrot.slane %v2562, 1
        %v2850 = vrot.slane %v2567, 1
        %v2851 = vsel %vm740, %v2849, %v2850
        %v2852 = vrot.slane %v2572, 1
        %v2853 = vrot.slane %v2577, 1
        %v2854 = vsel %vm740, %v2852, %v2853
        %v2855 = vrot.slane %v2582, 1
        %v2856 = vrot.slane %v2587, 1
        %v2857 = vsel %vm740, %v2855, %v2856
        %v2858 = vrot.slane %v2592, 1
        %v2859 = vrot.slane %v2597, 1
        %v2860 = vsel %vm740, %v2858, %v2859
        %v2861 = vrot.slane %v2602, 1
        %v2862 = vrot.slane %v2607, 1
        %v2863 = vsel %vm740, %v2861, %v2862
        %v2864 = vrot.slane %v2612, 1
        %v2865 = vrot.slane %v2617, 1
        %v2866 = vsel %vm740, %v2864, %v2865
        %v2867 = vrot.slane %v2622, 1
        %v2868 = vrot.slane %v2627, 1
        %v2869 = vsel %vm740, %v2867, %v2868
        %v2902 = vsel %vm740, %v2823, 0.0
        %v2903 = vsel %vm740, %v2826, 0.0
        %v2904 = vsel %vm740, %v2829, 0.0
        %v2905 = vsel %vm740, %v2832, 0.0
        %v2906 = vsel %vm740, %v2835, 0.0
        %v2907 = vsel %vm740, %v2838, 0.0
        %v2908 = vsel %vm740, %v2841, 0.0
        %v2909 = vsel %vm740, %v2844, 0.0
        %v2910 = vsel %vm740, %v2847, 0.0
        %v2911 = vsel %vm740, %v2850, 0.0
        %v2912 = vsel %vm740, %v2853, 0.0
        %v2913 = vsel %vm740, %v2856, 0.0
        %v2914 = vsel %vm740, %v2859, 0.0
        %v2915 = vsel %vm740, %v2862, 0.0
        %v2916 = vsel %vm740, %v2865, 0.0
        %v2917 = vsel %vm740, %v2868, 0.0
        %v2918 = vadd.f32 %v2758, %v2824
        %v2919 = vadd.f32 %v2759, %v2902
        %v2920 = vadd.f32 %v2760, %v2827
        %v2921 = vadd.f32 %v2761, %v2903
        %v2922 = vadd.f32 %v2762, %v2830
        %v2923 = vadd.f32 %v2763, %v2904
        %v2924 = vadd.f32 %v2764, %v2833
        %v2925 = vadd.f32 %v2765, %v2905
        %v2926 = vadd.f32 %v2766, %v2836
        %v2927 = vadd.f32 %v2767, %v2906
        %v2928 = vadd.f32 %v2768, %v2839
        %v2929 = vadd.f32 %v2769, %v2907
        %v2930 = vadd.f32 %v2770, %v2842
        %v2931 = vadd.f32 %v2771, %v2908
        %v2932 = vadd.f32 %v2772, %v2845
        %v2933 = vadd.f32 %v2773, %v2909
        %v2934 = vadd.f32 %v2774, %v2848
        %v2935 = vadd.f32 %v2775, %v2910
        %v2936 = vadd.f32 %v2776, %v2851
        %v2937 = vadd.f32 %v2777, %v2911
        %v2938 = vadd.f32 %v2778, %v2854
        %v2939 = vadd.f32 %v2779, %v2912
        %v2940 = vadd.f32 %v2780, %v2857
        %v2941 = vadd.f32 %v2781, %v2913
        %v2942 = vadd.f32 %v2782, %v2860
        %v2943 = vadd.f32 %v2783, %v2914
        %v2944 = vadd.f32 %v2784, %v2863
        %v2945 = vadd.f32 %v2785, %v2915
        %v2946 = vadd.f32 %v2786, %v2866
        %v2947 = vadd.f32 %v2787, %v2916
        %v2948 = vadd.f32 %v2788, %v2869
        %v2949 = vadd.f32 %v2789, %v2917
        %v2950 = vld [vmem:[%s6] sm:$0x1]
        %v2951 = vlaneseq
        %v2952 = vshrl.u32 %v2951, 7
        %v2953 = vsub.s32 0, %v2952
        %v2954 = vrot.slane %v2950, %v2953
        %v2955 = vmul.f32 %v2918, %v2954
        %v2956 = vmul.f32 %v2919, %v2954
        %v2957 = vmul.f32 %v2920, %v2954
        %v2958 = vmul.f32 %v2921, %v2954
        %v2959 = vmul.f32 %v2922, %v2954
        %v2960 = vmul.f32 %v2923, %v2954
        %v2961 = vmul.f32 %v2924, %v2954
        %v2962 = vmul.f32 %v2925, %v2954
        %v2963 = vmul.f32 %v2926, %v2954
        %v2964 = vmul.f32 %v2927, %v2954
        %v2965 = vmul.f32 %v2928, %v2954
        %v2966 = vmul.f32 %v2929, %v2954
        %v2967 = vmul.f32 %v2930, %v2954
        %v2968 = vmul.f32 %v2931, %v2954
        %v2969 = vmul.f32 %v2932, %v2954
        %v2970 = vmul.f32 %v2933, %v2954
        %v2971 = vmul.f32 %v2934, %v2954
        %v2972 = vmul.f32 %v2935, %v2954
        %v2973 = vmul.f32 %v2936, %v2954
        %v2974 = vmul.f32 %v2937, %v2954
        %v2975 = vmul.f32 %v2938, %v2954
        %v2976 = vmul.f32 %v2939, %v2954
        %v2977 = vmul.f32 %v2940, %v2954
        %v2978 = vmul.f32 %v2941, %v2954
        %v2979 = vmul.f32 %v2942, %v2954
        %v2980 = vmul.f32 %v2943, %v2954
        %v2981 = vmul.f32 %v2944, %v2954
        %v2982 = vmul.f32 %v2945, %v2954
        %v2983 = vmul.f32 %v2946, %v2954
        %v2984 = vmul.f32 %v2947, %v2954
        %v2985 = vmul.f32 %v2948, %v2954
        %v2986 = vmul.f32 %v2949, %v2954
        %v2987 = vld [vmem:[%s6 + $0x1] sm:$0x1]
        %v2988 = vlaneseq
        %v2989 = vshrl.u32 %v2988, 7
        %v2990 = vsub.s32 0, %v2989
        %v2991 = vrot.slane %v2987, %v2990
        %v2992 = vadd.f32 %v2955, %v2991
        %v2993 = vadd.f32 %v2956, %v2991
        %v2994 = vadd.f32 %v2957, %v2991
        %v2995 = vadd.f32 %v2958, %v2991
        %v2996 = vadd.f32 %v2959, %v2991
        %v2997 = vadd.f32 %v2960, %v2991
        %v2998 = vadd.f32 %v2961, %v2991
        %v2999 = vadd.f32 %v2962, %v2991
        %v3000 = vadd.f32 %v2963, %v2991
        %v3001 = vadd.f32 %v2964, %v2991
        %v3002 = vadd.f32 %v2965, %v2991
        %v3003 = vadd.f32 %v2966, %v2991
        %v3004 = vadd.f32 %v2967, %v2991
        %v3005 = vadd.f32 %v2968, %v2991
        %v3006 = vadd.f32 %v2969, %v2991
        %v3007 = vadd.f32 %v2970, %v2991
        %v3008 = vadd.f32 %v2971, %v2991
        %v3009 = vadd.f32 %v2972, %v2991
        %v3010 = vadd.f32 %v2973, %v2991
        %v3011 = vadd.f32 %v2974, %v2991
        %v3012 = vadd.f32 %v2975, %v2991
        %v3013 = vadd.f32 %v2976, %v2991
        %v3014 = vadd.f32 %v2977, %v2991
        %v3015 = vadd.f32 %v2978, %v2991
        %v3016 = vadd.f32 %v2979, %v2991
        %v3017 = vadd.f32 %v2980, %v2991
        %v3018 = vadd.f32 %v2981, %v2991
        %v3019 = vadd.f32 %v2982, %v2991
        %v3020 = vadd.f32 %v2983, %v2991
        %v3021 = vadd.f32 %v2984, %v2991
        %v3022 = vadd.f32 %v2985, %v2991
        %v3023 = vadd.f32 %v2986, %v2991
        %v3024 = vmax.f32 %v2992, 0.0
        %v3025 = vmax.f32 %v2993, 0.0
        %v3026 = vmax.f32 %v2994, 0.0
        %v3027 = vmax.f32 %v2995, 0.0
        %v3028 = vmax.f32 %v2996, 0.0
        %v3029 = vmax.f32 %v2997, 0.0
        %v3030 = vmax.f32 %v2998, 0.0
        %v3031 = vmax.f32 %v2999, 0.0
        %v3032 = vmax.f32 %v3000, 0.0
        %v3033 = vmax.f32 %v3001, 0.0
        %v3034 = vmax.f32 %v3002, 0.0
        %v3035 = vmax.f32 %v3003, 0.0
        %v3036 = vmax.f32 %v3004, 0.0
        %v3037 = vmax.f32 %v3005, 0.0
        %v3038 = vmax.f32 %v3006, 0.0
        %v3039 = vmax.f32 %v3007, 0.0
        %v3040 = vmax.f32 %v3008, 0.0
        %v3041 = vmax.f32 %v3009, 0.0
        %v3042 = vmax.f32 %v3010, 0.0
        %v3043 = vmax.f32 %v3011, 0.0
        %v3044 = vmax.f32 %v3012, 0.0
        %v3045 = vmax.f32 %v3013, 0.0
        %v3046 = vmax.f32 %v3014, 0.0
        %v3047 = vmax.f32 %v3015, 0.0
        %v3048 = vmax.f32 %v3016, 0.0
        %v3049 = vmax.f32 %v3017, 0.0
        %v3050 = vmax.f32 %v3018, 0.0
        %v3051 = vmax.f32 %v3019, 0.0
        %v3052 = vmax.f32 %v3020, 0.0
        %v3053 = vmax.f32 %v3021, 0.0
        %v3054 = vmax.f32 %v3022, 0.0
        %v3055 = vmax.f32 %v3023, 0.0
        %v3056 = vld [vmem:[%s7] sm:$0xff]
        %3057 = vmatprep.subr.mxu0 0.0
        %3058 = vmatpush1.msra.mxu0 0.0
        %3059 = vmatprep.subr.mxu0 0.0
        %3060 = vmatpush1.msra.mxu0 0.0
        %3061 = vmatprep.subr.mxu0 0.0
        %3062 = vmatpush1.msra.mxu0 0.0
        %3063 = vmatprep.subr.mxu0 0.0
        %3064 = vmatpush1.msra.mxu0 0.0
        %3065 = vmatprep.subr.mxu0 0.0
        %3066 = vmatpush1.msra.mxu0 0.0
        %3067 = vmatprep.subr.mxu0 0.0
        %3068 = vmatpush1.msra.mxu0 0.0
        %3069 = vmatprep.subr.mxu0 0.0
        %3070 = vmatpush1.msra.mxu0 0.0
        %3071 = vmatprep.subr.mxu0 0.0
        %3072 = vmatpush1.msra.mxu0 0.0
        %3073 = vmatprep.subr.mxu0 0.0
        %3074 = vmatpush1.msra.mxu0 0.0
        %3075 = vmatprep.subr.mxu0 0.0
        %3076 = vmatpush1.msra.mxu0 0.0
        %3077 = vmatprep.subr.mxu0 0.0
        %3078 = vmatpush1.msra.mxu0 0.0
        %3079 = vmatprep.subr.mxu0 0.0
        %3080 = vmatpush1.msra.mxu0 0.0
        %3081 = vmatprep.subr.mxu0 0.0
        %3082 = vmatpush1.msra.mxu0 0.0
        %3083 = vmatprep.subr.mxu0 0.0
        %3084 = vmatpush1.msra.mxu0 0.0
        %3085 = vmatprep.subr.mxu0 0.0
        %3086 = vmatpush1.msra.mxu0 0.0
        %3087 = vmatprep.subr.mxu0 0.0
        %3088 = vmatpush1.msra.mxu0 %v3056
        %3089 = vmatprep.subr.mxu0 0.0
        %3090 = vmatpush2.msra.mxu0 0.0
        %3091 = vmatprep.subr.mxu0 0.0
        %3092 = vmatpush2.msra.mxu0 0.0
        %3093 = vmatprep.subr.mxu0 0.0
        %3094 = vmatpush2.msra.mxu0 0.0
        %3095 = vmatprep.subr.mxu0 0.0
        %3096 = vmatpush2.msra.mxu0 0.0
        %3097 = vmatprep.subr.mxu0 0.0
        %3098 = vmatpush2.msra.mxu0 0.0
        %3099 = vmatprep.subr.mxu0 0.0
        %3100 = vmatpush2.msra.mxu0 0.0
        %3101 = vmatprep.subr.mxu0 0.0
        %3102 = vmatpush2.msra.mxu0 0.0
        %3103 = vmatprep.subr.mxu0 0.0
        %3104 = vmatpush2.msra.mxu0 0.0
        %3105 = vmatprep.subr.mxu0 0.0
        %3106 = vmatpush2.msra.mxu0 0.0
        %3107 = vmatprep.subr.mxu0 0.0
        %3108 = vmatpush2.msra.mxu0 0.0
        %3109 = vmatprep.subr.mxu0 0.0
        %3110 = vmatpush2.msra.mxu0 0.0
        %3111 = vmatprep.subr.mxu0 0.0
        %3112 = vmatpush2.msra.mxu0 0.0
        %3113 = vmatprep.subr.mxu0 0.0
        %3114 = vmatpush2.msra.mxu0 0.0
        %3115 = vmatprep.subr.mxu0 0.0
        %3116 = vmatpush2.msra.mxu0 0.0
        %3117 = vmatprep.subr.mxu0 0.0
        %3118 = vmatpush2.msra.mxu0 0.0
        %3119 = vmatprep.subr.mxu0 0.0
        %3120 = vmatpush2.msra.mxu0 0.0
        %3121 = vmatprep.mubr.f32.mxu0 0.0
        %3122 = vmatmul.mubr.f32.gmra.mxu0 %v1887
        %v3123 = vpop.f32.mrf.mxu0
        %v3124 = vadd.f32 0.0, %v3123
        %v3125 = vpop.f32.mrf.mxu0
        %3126 = vmatprep.mubr.f32.mxu0 0.0
        %3127 = vmatmul.mubr.f32.gmra.mxu0 %v1889
        %v3128 = vpop.f32.mrf.mxu0
        %v3129 = vadd.f32 0.0, %v3128
        %v3130 = vpop.f32.mrf.mxu0
        %3131 = vmatprep.mubr.f32.mxu0 0.0
        %3132 = vmatmul.mubr.f32.gmra.mxu0 %v1891
        %v3133 = vpop.f32.mrf.mxu0
        %v3134 = vadd.f32 0.0, %v3133
        %v3135 = vpop.f32.mrf.mxu0
        %3136 = vmatprep.mubr.f32.mxu0 0.0
        %3137 = vmatmul.mubr.f32.gmra.mxu0 %v1893
        %v3138 = vpop.f32.mrf.mxu0
        %v3139 = vadd.f32 0.0, %v3138
        %v3140 = vpop.f32.mrf.mxu0
        %3141 = vmatprep.mubr.f32.mxu0 0.0
        %3142 = vmatmul.mubr.f32.gmra.mxu0 %v1895
        %v3143 = vpop.f32.mrf.mxu0
        %v3144 = vadd.f32 0.0, %v3143
        %v3145 = vpop.f32.mrf.mxu0
        %3146 = vmatprep.mubr.f32.mxu0 0.0
        %3147 = vmatmul.mubr.f32.gmra.mxu0 %v1897
        %v3148 = vpop.f32.mrf.mxu0
        %v3149 = vadd.f32 0.0, %v3148
        %v3150 = vpop.f32.mrf.mxu0
        %3151 = vmatprep.mubr.f32.mxu0 0.0
        %3152 = vmatmul.mubr.f32.gmra.mxu0 %v1899
        %v3153 = vpop.f32.mrf.mxu0
        %v3154 = vadd.f32 0.0, %v3153
        %v3155 = vpop.f32.mrf.mxu0
        %3156 = vmatprep.mubr.f32.mxu0 0.0
        %3157 = vmatmul.mubr.f32.gmra.mxu0 %v1901
        %v3158 = vpop.f32.mrf.mxu0
        %v3159 = vadd.f32 0.0, %v3158
        %v3160 = vpop.f32.mrf.mxu0
        %3161 = vmatprep.mubr.f32.mxu0 0.0
        %3162 = vmatmul.mubr.f32.gmra.mxu0 %v1903
        %v3163 = vpop.f32.mrf.mxu0
        %v3164 = vadd.f32 0.0, %v3163
        %v3165 = vpop.f32.mrf.mxu0
        %3166 = vmatprep.mubr.f32.mxu0 0.0
        %3167 = vmatmul.mubr.f32.gmra.mxu0 %v1905
        %v3168 = vpop.f32.mrf.mxu0
        %v3169 = vadd.f32 0.0, %v3168
        %v3170 = vpop.f32.mrf.mxu0
        %3171 = vmatprep.mubr.f32.mxu0 0.0
        %3172 = vmatmul.mubr.f32.gmra.mxu0 %v1907
        %v3173 = vpop.f32.mrf.mxu0
        %v3174 = vadd.f32 0.0, %v3173
        %v3175 = vpop.f32.mrf.mxu0
        %3176 = vmatprep.mubr.f32.mxu0 0.0
        %3177 = vmatmul.mubr.f32.gmra.mxu0 %v1909
        %v3178 = vpop.f32.mrf.mxu0
        %v3179 = vadd.f32 0.0, %v3178
        %v3180 = vpop.f32.mrf.mxu0
        %3181 = vmatprep.mubr.f32.mxu0 0.0
        %3182 = vmatmul.mubr.f32.gmra.mxu0 %v1911
        %v3183 = vpop.f32.mrf.mxu0
        %v3184 = vadd.f32 0.0, %v3183
        %v3185 = vpop.f32.mrf.mxu0
        %3186 = vmatprep.mubr.f32.mxu0 0.0
        %3187 = vmatmul.mubr.f32.gmra.mxu0 %v1913
        %v3188 = vpop.f32.mrf.mxu0
        %v3189 = vadd.f32 0.0, %v3188
        %v3190 = vpop.f32.mrf.mxu0
        %3191 = vmatprep.mubr.f32.mxu0 0.0
        %3192 = vmatmul.mubr.f32.gmra.mxu0 %v1915
        %v3193 = vpop.f32.mrf.mxu0
        %v3194 = vadd.f32 0.0, %v3193
        %v3195 = vpop.f32.mrf.mxu0
        %3196 = vmatprep.mubr.f32.mxu0 0.0
        %3197 = vmatmul.mubr.f32.gmra.mxu0 %v1917
        %v3198 = vpop.f32.mrf.mxu0
        %v3199 = vadd.f32 0.0, %v3198
        %v3200 = vpop.f32.mrf.mxu0
        %3201 = vmatprep.mubr.f32.mxu0 0.0
        %3202 = vmatmul.mubr.f32.gmra.mxu0 %v1919
        %v3203 = vpop.f32.mrf.mxu0
        %v3204 = vadd.f32 0.0, %v3203
        %v3205 = vpop.f32.mrf.mxu0
        %3206 = vmatprep.mubr.f32.mxu0 0.0
        %3207 = vmatmul.mubr.f32.gmra.mxu0 %v1921
        %v3208 = vpop.f32.mrf.mxu0
        %v3209 = vadd.f32 0.0, %v3208
        %v3210 = vpop.f32.mrf.mxu0
        %3211 = vmatprep.mubr.f32.mxu0 0.0
        %3212 = vmatmul.mubr.f32.gmra.mxu0 %v1923
        %v3213 = vpop.f32.mrf.mxu0
        %v3214 = vadd.f32 0.0, %v3213
        %v3215 = vpop.f32.mrf.mxu0
        %3216 = vmatprep.mubr.f32.mxu0 0.0
        %3217 = vmatmul.mubr.f32.gmra.mxu0 %v1925
        %v3218 = vpop.f32.mrf.mxu0
        %v3219 = vadd.f32 0.0, %v3218
        %v3220 = vpop.f32.mrf.mxu0
        %3221 = vmatprep.mubr.f32.mxu0 0.0
        %3222 = vmatmul.mubr.f32.gmra.mxu0 %v1927
        %v3223 = vpop.f32.mrf.mxu0
        %v3224 = vadd.f32 0.0, %v3223
        %v3225 = vpop.f32.mrf.mxu0
        %3226 = vmatprep.mubr.f32.mxu0 0.0
        %3227 = vmatmul.mubr.f32.gmra.mxu0 %v1929
        %v3228 = vpop.f32.mrf.mxu0
        %v3229 = vadd.f32 0.0, %v3228
        %v3230 = vpop.f32.mrf.mxu0
        %3231 = vmatprep.mubr.f32.mxu0 0.0
        %3232 = vmatmul.mubr.f32.gmra.mxu0 %v1931
        %v3233 = vpop.f32.mrf.mxu0
        %v3234 = vadd.f32 0.0, %v3233
        %v3235 = vpop.f32.mrf.mxu0
        %3236 = vmatprep.mubr.f32.mxu0 0.0
        %3237 = vmatmul.mubr.f32.gmra.mxu0 %v1933
        %v3238 = vpop.f32.mrf.mxu0
        %v3239 = vadd.f32 0.0, %v3238
        %v3240 = vpop.f32.mrf.mxu0
        %3241 = vmatprep.mubr.f32.mxu0 0.0
        %3242 = vmatmul.mubr.f32.gmra.mxu0 %v1935
        %v3243 = vpop.f32.mrf.mxu0
        %v3244 = vadd.f32 0.0, %v3243
        %v3245 = vpop.f32.mrf.mxu0
        %3246 = vmatprep.mubr.f32.mxu0 0.0
        %3247 = vmatmul.mubr.f32.gmra.mxu0 %v1937
        %v3248 = vpop.f32.mrf.mxu0
        %v3249 = vadd.f32 0.0, %v3248
        %v3250 = vpop.f32.mrf.mxu0
        %3251 = vmatprep.mubr.f32.mxu0 0.0
        %3252 = vmatmul.mubr.f32.gmra.mxu0 %v1939
        %v3253 = vpop.f32.mrf.mxu0
        %v3254 = vadd.f32 0.0, %v3253
        %v3255 = vpop.f32.mrf.mxu0
        %3256 = vmatprep.mubr.f32.mxu0 0.0
        %3257 = vmatmul.mubr.f32.gmra.mxu0 %v1941
        %v3258 = vpop.f32.mrf.mxu0
        %v3259 = vadd.f32 0.0, %v3258
        %v3260 = vpop.f32.mrf.mxu0
        %3261 = vmatprep.mubr.f32.mxu0 0.0
        %3262 = vmatmul.mubr.f32.gmra.mxu0 %v1943
        %v3263 = vpop.f32.mrf.mxu0
        %v3264 = vadd.f32 0.0, %v3263
        %v3265 = vpop.f32.mrf.mxu0
        %3266 = vmatprep.mubr.f32.mxu0 0.0
        %3267 = vmatmul.mubr.f32.gmra.mxu0 %v1945
        %v3268 = vpop.f32.mrf.mxu0
        %v3269 = vadd.f32 0.0, %v3268
        %v3270 = vpop.f32.mrf.mxu0
        %3271 = vmatprep.mubr.f32.mxu0 0.0
        %3272 = vmatmul.mubr.f32.gmra.mxu0 %v1947
        %v3273 = vpop.f32.mrf.mxu0
        %v3274 = vpop.f32.mrf.mxu0
        %3275 = vmatprep.mubr.f32.mxu0 0.0
        %3276 = vmatmul.mubr.f32.gmra.mxu0 %v1949
        %v3277 = vpop.f32.mrf.mxu0
        %v3278 = vpop.f32.mrf.mxu0
        %3279 = vdwg.mxu0
        %s3280 = scalar_lea.vmem %s7, 8
        %v3281 = vld [vmem:[%s3280] sm:$0xff]
        %3282 = vmatprep.subr.mxu0 0.0
        %3283 = vmatpush1.msra.mxu0 0.0
        %3284 = vmatprep.subr.mxu0 0.0
        %3285 = vmatpush1.msra.mxu0 0.0
        %3286 = vmatprep.subr.mxu0 0.0
        %3287 = vmatpush1.msra.mxu0 0.0
        %3288 = vmatprep.subr.mxu0 0.0
        %3289 = vmatpush1.msra.mxu0 0.0
        %3290 = vmatprep.subr.mxu0 0.0
        %3291 = vmatpush1.msra.mxu0 0.0
        %3292 = vmatprep.subr.mxu0 0.0
        %3293 = vmatpush1.msra.mxu0 0.0
        %3294 = vmatprep.subr.mxu0 0.0
        %3295 = vmatpush1.msra.mxu0 0.0
        %3296 = vmatprep.subr.mxu0 0.0
        %3297 = vmatpush1.msra.mxu0 0.0
        %3298 = vmatprep.subr.mxu0 0.0
        %3299 = vmatpush1.msra.mxu0 0.0
        %3300 = vmatprep.subr.mxu0 0.0
        %3301 = vmatpush1.msra.mxu0 0.0
        %3302 = vmatprep.subr.mxu0 0.0
        %3303 = vmatpush1.msra.mxu0 0.0
        %3304 = vmatprep.subr.mxu0 0.0
        %3305 = vmatpush1.msra.mxu0 0.0
        %3306 = vmatprep.subr.mxu0 0.0
        %3307 = vmatpush1.msra.mxu0 0.0
        %3308 = vmatprep.subr.mxu0 0.0
        %3309 = vmatpush1.msra.mxu0 0.0
        %3310 = vmatprep.subr.mxu0 0.0
        %3311 = vmatpush1.msra.mxu0 0.0
        %3312 = vmatprep.subr.mxu0 0.0
        %3313 = vmatpush1.msra.mxu0 %v3281
        %3314 = vmatprep.subr.mxu0 0.0
        %3315 = vmatpush2.msra.mxu0 0.0
        %3316 = vmatprep.subr.mxu0 0.0
        %3317 = vmatpush2.msra.mxu0 0.0
        %3318 = vmatprep.subr.mxu0 0.0
        %3319 = vmatpush2.msra.mxu0 0.0
        %3320 = vmatprep.subr.mxu0 0.0
        %3321 = vmatpush2.msra.mxu0 0.0
        %3322 = vmatprep.subr.mxu0 0.0
        %3323 = vmatpush2.msra.mxu0 0.0
        %3324 = vmatprep.subr.mxu0 0.0
        %3325 = vmatpush2.msra.mxu0 0.0
        %3326 = vmatprep.subr.mxu0 0.0
        %3327 = vmatpush2.msra.mxu0 0.0
        %3328 = vmatprep.subr.mxu0 0.0
        %3329 = vmatpush2.msra.mxu0 0.0
        %3330 = vmatprep.subr.mxu0 0.0
        %3331 = vmatpush2.msra.mxu0 0.0
        %3332 = vmatprep.subr.mxu0 0.0
        %3333 = vmatpush2.msra.mxu0 0.0
        %3334 = vmatprep.subr.mxu0 0.0
        %3335 = vmatpush2.msra.mxu0 0.0
        %3336 = vmatprep.subr.mxu0 0.0
        %3337 = vmatpush2.msra.mxu0 0.0
        %3338 = vmatprep.subr.mxu0 0.0
        %3339 = vmatpush2.msra.mxu0 0.0
        %3340 = vmatprep.subr.mxu0 0.0
        %3341 = vmatpush2.msra.mxu0 0.0
        %3342 = vmatprep.subr.mxu0 0.0
        %3343 = vmatpush2.msra.mxu0 0.0
        %3344 = vmatprep.subr.mxu0 0.0
        %3345 = vmatpush2.msra.mxu0 0.0
        %3346 = vmatprep.mubr.f32.mxu0 0.0
        %3347 = vmatmul.mubr.f32.gmra.mxu0 %v1887
        %v3348 = vpop.f32.mrf.mxu0
        %v3349 = vadd.f32 0.0, %v3348
        %v3350 = vpop.f32.mrf.mxu0
        %3351 = vmatprep.mubr.f32.mxu0 0.0
        %3352 = vmatmul.mubr.f32.gmra.mxu0 %v1889
        %v3353 = vpop.f32.mrf.mxu0
        %v3354 = vadd.f32 0.0, %v3353
        %v3355 = vpop.f32.mrf.mxu0
        %3356 = vmatprep.mubr.f32.mxu0 0.0
        %3357 = vmatmul.mubr.f32.gmra.mxu0 %v1891
        %v3358 = vpop.f32.mrf.mxu0
        %v3359 = vadd.f32 0.0, %v3358
        %v3360 = vpop.f32.mrf.mxu0
        %3361 = vmatprep.mubr.f32.mxu0 0.0
        %3362 = vmatmul.mubr.f32.gmra.mxu0 %v1893
        %v3363 = vpop.f32.mrf.mxu0
        %v3364 = vadd.f32 0.0, %v3363
        %v3365 = vpop.f32.mrf.mxu0
        %3366 = vmatprep.mubr.f32.mxu0 0.0
        %3367 = vmatmul.mubr.f32.gmra.mxu0 %v1895
        %v3368 = vpop.f32.mrf.mxu0
        %v3369 = vadd.f32 0.0, %v3368
        %v3370 = vpop.f32.mrf.mxu0
        %3371 = vmatprep.mubr.f32.mxu0 0.0
        %3372 = vmatmul.mubr.f32.gmra.mxu0 %v1897
        %v3373 = vpop.f32.mrf.mxu0
        %v3374 = vadd.f32 0.0, %v3373
        %v3375 = vpop.f32.mrf.mxu0
        %3376 = vmatprep.mubr.f32.mxu0 0.0
        %3377 = vmatmul.mubr.f32.gmra.mxu0 %v1899
        %v3378 = vpop.f32.mrf.mxu0
        %v3379 = vadd.f32 0.0, %v3378
        %v3380 = vpop.f32.mrf.mxu0
        %3381 = vmatprep.mubr.f32.mxu0 0.0
        %3382 = vmatmul.mubr.f32.gmra.mxu0 %v1901
        %v3383 = vpop.f32.mrf.mxu0
        %v3384 = vadd.f32 0.0, %v3383
        %v3385 = vpop.f32.mrf.mxu0
        %3386 = vmatprep.mubr.f32.mxu0 0.0
        %3387 = vmatmul.mubr.f32.gmra.mxu0 %v1903
        %v3388 = vpop.f32.mrf.mxu0
        %v3389 = vadd.f32 0.0, %v3388
        %v3390 = vpop.f32.mrf.mxu0
        %3391 = vmatprep.mubr.f32.mxu0 0.0
        %3392 = vmatmul.mubr.f32.gmra.mxu0 %v1905
        %v3393 = vpop.f32.mrf.mxu0
        %v3394 = vadd.f32 0.0, %v3393
        %v3395 = vpop.f32.mrf.mxu0
        %3396 = vmatprep.mubr.f32.mxu0 0.0
        %3397 = vmatmul.mubr.f32.gmra.mxu0 %v1907
        %v3398 = vpop.f32.mrf.mxu0
        %v3399 = vadd.f32 0.0, %v3398
        %v3400 = vpop.f32.mrf.mxu0
        %3401 = vmatprep.mubr.f32.mxu0 0.0
        %3402 = vmatmul.mubr.f32.gmra.mxu0 %v1909
        %v3403 = vpop.f32.mrf.mxu0
        %v3404 = vadd.f32 0.0, %v3403
        %v3405 = vpop.f32.mrf.mxu0
        %3406 = vmatprep.mubr.f32.mxu0 0.0
        %3407 = vmatmul.mubr.f32.gmra.mxu0 %v1911
        %v3408 = vpop.f32.mrf.mxu0
        %v3409 = vadd.f32 0.0, %v3408
        %v3410 = vpop.f32.mrf.mxu0
        %3411 = vmatprep.mubr.f32.mxu0 0.0
        %3412 = vmatmul.mubr.f32.gmra.mxu0 %v1913
        %v3413 = vpop.f32.mrf.mxu0
        %v3414 = vadd.f32 0.0, %v3413
        %v3415 = vpop.f32.mrf.mxu0
        %3416 = vmatprep.mubr.f32.mxu0 0.0
        %3417 = vmatmul.mubr.f32.gmra.mxu0 %v1915
        %v3418 = vpop.f32.mrf.mxu0
        %v3419 = vadd.f32 0.0, %v3418
        %v3420 = vpop.f32.mrf.mxu0
        %3421 = vmatprep.mubr.f32.mxu0 0.0
        %3422 = vmatmul.mubr.f32.gmra.mxu0 %v1917
        %v3423 = vpop.f32.mrf.mxu0
        %v3424 = vadd.f32 0.0, %v3423
        %v3425 = vpop.f32.mrf.mxu0
        %3426 = vmatprep.mubr.f32.mxu0 0.0
        %3427 = vmatmul.mubr.f32.gmra.mxu0 %v1919
        %v3428 = vpop.f32.mrf.mxu0
        %v3429 = vadd.f32 0.0, %v3428
        %v3430 = vpop.f32.mrf.mxu0
        %3431 = vmatprep.mubr.f32.mxu0 0.0
        %3432 = vmatmul.mubr.f32.gmra.mxu0 %v1921
        %v3433 = vpop.f32.mrf.mxu0
        %v3434 = vadd.f32 0.0, %v3433
        %v3435 = vpop.f32.mrf.mxu0
        %3436 = vmatprep.mubr.f32.mxu0 0.0
        %3437 = vmatmul.mubr.f32.gmra.mxu0 %v1923
        %v3438 = vpop.f32.mrf.mxu0
        %v3439 = vadd.f32 0.0, %v3438
        %v3440 = vpop.f32.mrf.mxu0
        %3441 = vmatprep.mubr.f32.mxu0 0.0
        %3442 = vmatmul.mubr.f32.gmra.mxu0 %v1925
        %v3443 = vpop.f32.mrf.mxu0
        %v3444 = vadd.f32 0.0, %v3443
        %v3445 = vpop.f32.mrf.mxu0
        %3446 = vmatprep.mubr.f32.mxu0 0.0
        %3447 = vmatmul.mubr.f32.gmra.mxu0 %v1927
        %v3448 = vpop.f32.mrf.mxu0
        %v3449 = vadd.f32 0.0, %v3448
        %v3450 = vpop.f32.mrf.mxu0
        %3451 = vmatprep.mubr.f32.mxu0 0.0
        %3452 = vmatmul.mubr.f32.gmra.mxu0 %v1929
        %v3453 = vpop.f32.mrf.mxu0
        %v3454 = vadd.f32 0.0, %v3453
        %v3455 = vpop.f32.mrf.mxu0
        %3456 = vmatprep.mubr.f32.mxu0 0.0
        %3457 = vmatmul.mubr.f32.gmra.mxu0 %v1931
        %v3458 = vpop.f32.mrf.mxu0
        %v3459 = vadd.f32 0.0, %v3458
        %v3460 = vpop.f32.mrf.mxu0
        %3461 = vmatprep.mubr.f32.mxu0 0.0
        %3462 = vmatmul.mubr.f32.gmra.mxu0 %v1933
        %v3463 = vpop.f32.mrf.mxu0
        %v3464 = vadd.f32 0.0, %v3463
        %v3465 = vpop.f32.mrf.mxu0
        %3466 = vmatprep.mubr.f32.mxu0 0.0
        %3467 = vmatmul.mubr.f32.gmra.mxu0 %v1935
        %v3468 = vpop.f32.mrf.mxu0
        %v3469 = vadd.f32 0.0, %v3468
        %v3470 = vpop.f32.mrf.mxu0
        %3471 = vmatprep.mubr.f32.mxu0 0.0
        %3472 = vmatmul.mubr.f32.gmra.mxu0 %v1937
        %v3473 = vpop.f32.mrf.mxu0
        %v3474 = vadd.f32 0.0, %v3473
        %v3475 = vpop.f32.mrf.mxu0
        %3476 = vmatprep.mubr.f32.mxu0 0.0
        %3477 = vmatmul.mubr.f32.gmra.mxu0 %v1939
        %v3478 = vpop.f32.mrf.mxu0
        %v3479 = vadd.f32 0.0, %v3478
        %v3480 = vpop.f32.mrf.mxu0
        %3481 = vmatprep.mubr.f32.mxu0 0.0
        %3482 = vmatmul.mubr.f32.gmra.mxu0 %v1941
        %v3483 = vpop.f32.mrf.mxu0
        %v3484 = vadd.f32 0.0, %v3483
        %v3485 = vpop.f32.mrf.mxu0
        %3486 = vmatprep.mubr.f32.mxu0 0.0
        %3487 = vmatmul.mubr.f32.gmra.mxu0 %v1943
        %v3488 = vpop.f32.mrf.mxu0
        %v3489 = vadd.f32 0.0, %v3488
        %v3490 = vpop.f32.mrf.mxu0
        %3491 = vmatprep.mubr.f32.mxu0 0.0
        %3492 = vmatmul.mubr.f32.gmra.mxu0 %v1945
        %v3493 = vpop.f32.mrf.mxu0
        %v3494 = vadd.f32 0.0, %v3493
        %v3495 = vpop.f32.mrf.mxu0
        %3496 = vmatprep.mubr.f32.mxu0 0.0
        %3497 = vmatmul.mubr.f32.gmra.mxu0 %v1947
        %v3498 = vpop.f32.mrf.mxu0
        %v3499 = vadd.f32 0.0, %v3498
        %v3500 = vpop.f32.mrf.mxu0
        %3501 = vmatprep.mubr.f32.mxu0 0.0
        %3502 = vmatmul.mubr.f32.gmra.mxu0 %v1949
        %v3503 = vpop.f32.mrf.mxu0
        %v3504 = vadd.f32 0.0, %v3503
        %v3505 = vpop.f32.mrf.mxu0
        %3506 = vdwg.mxu0
        %s3507 = scalar_lea.vmem %s7, 16
        %v3508 = vld [vmem:[%s3507] sm:$0xff]
        %3509 = vmatprep.subr.mxu0 0.0
        %3510 = vmatpush1.msra.mxu0 0.0
        %3511 = vmatprep.subr.mxu0 0.0
        %3512 = vmatpush1.msra.mxu0 0.0
        %3513 = vmatprep.subr.mxu0 0.0
        %3514 = vmatpush1.msra.mxu0 0.0
        %3515 = vmatprep.subr.mxu0 0.0
        %3516 = vmatpush1.msra.mxu0 0.0
        %3517 = vmatprep.subr.mxu0 0.0
        %3518 = vmatpush1.msra.mxu0 0.0
        %3519 = vmatprep.subr.mxu0 0.0
        %3520 = vmatpush1.msra.mxu0 0.0
        %3521 = vmatprep.subr.mxu0 0.0
        %3522 = vmatpush1.msra.mxu0 0.0
        %3523 = vmatprep.subr.mxu0 0.0
        %3524 = vmatpush1.msra.mxu0 0.0
        %3525 = vmatprep.subr.mxu0 0.0
        %3526 = vmatpush1.msra.mxu0 0.0
        %3527 = vmatprep.subr.mxu0 0.0
        %3528 = vmatpush1.msra.mxu0 0.0
        %3529 = vmatprep.subr.mxu0 0.0
        %3530 = vmatpush1.msra.mxu0 0.0
        %3531 = vmatprep.subr.mxu0 0.0
        %3532 = vmatpush1.msra.mxu0 0.0
        %3533 = vmatprep.subr.mxu0 0.0
        %3534 = vmatpush1.msra.mxu0 0.0
        %3535 = vmatprep.subr.mxu0 0.0
        %3536 = vmatpush1.msra.mxu0 0.0
        %3537 = vmatprep.subr.mxu0 0.0
        %3538 = vmatpush1.msra.mxu0 0.0
        %3539 = vmatprep.subr.mxu0 0.0
        %3540 = vmatpush1.msra.mxu0 %v3508
        %3541 = vmatprep.subr.mxu0 0.0
        %3542 = vmatpush2.msra.mxu0 0.0
        %3543 = vmatprep.subr.mxu0 0.0
        %3544 = vmatpush2.msra.mxu0 0.0
        %3545 = vmatprep.subr.mxu0 0.0
        %3546 = vmatpush2.msra.mxu0 0.0
        %3547 = vmatprep.subr.mxu0 0.0
        %3548 = vmatpush2.msra.mxu0 0.0
        %3549 = vmatprep.subr.mxu0 0.0
        %3550 = vmatpush2.msra.mxu0 0.0
        %3551 = vmatprep.subr.mxu0 0.0
        %3552 = vmatpush2.msra.mxu0 0.0
        %3553 = vmatprep.subr.mxu0 0.0
        %3554 = vmatpush2.msra.mxu0 0.0
        %3555 = vmatprep.subr.mxu0 0.0
        %3556 = vmatpush2.msra.mxu0 0.0
        %3557 = vmatprep.subr.mxu0 0.0
        %3558 = vmatpush2.msra.mxu0 0.0
        %3559 = vmatprep.subr.mxu0 0.0
        %3560 = vmatpush2.msra.mxu0 0.0
        %3561 = vmatprep.subr.mxu0 0.0
        %3562 = vmatpush2.msra.mxu0 0.0
        %3563 = vmatprep.subr.mxu0 0.0
        %3564 = vmatpush2.msra.mxu0 0.0
        %3565 = vmatprep.subr.mxu0 0.0
        %3566 = vmatpush2.msra.mxu0 0.0
        %3567 = vmatprep.subr.mxu0 0.0
        %3568 = vmatpush2.msra.mxu0 0.0
        %3569 = vmatprep.subr.mxu0 0.0
        %3570 = vmatpush2.msra.mxu0 0.0
        %3571 = vmatprep.subr.mxu0 0.0
        %3572 = vmatpush2.msra.mxu0 0.0
        %3573 = vmatprep.mubr.f32.mxu0 0.0
        %3574 = vmatmul.mubr.f32.gmra.mxu0 %v1887
        %v3575 = vpop.f32.mrf.mxu0
        %v3576 = vpop.f32.mrf.mxu0
        %3577 = vmatprep.mubr.f32.mxu0 0.0
        %3578 = vmatmul.mubr.f32.gmra.mxu0 %v1889
        %v3579 = vpop.f32.mrf.mxu0
        %v3580 = vpop.f32.mrf.mxu0
        %3581 = vmatprep.mubr.f32.mxu0 0.0
        %3582 = vmatmul.mubr.f32.gmra.mxu0 %v1891
        %v3583 = vpop.f32.mrf.mxu0
        %v3584 = vadd.f32 0.0, %v3583
        %v3585 = vpop.f32.mrf.mxu0
        %3586 = vmatprep.mubr.f32.mxu0 0.0
        %3587 = vmatmul.mubr.f32.gmra.mxu0 %v1893
        %v3588 = vpop.f32.mrf.mxu0
        %v3589 = vadd.f32 0.0, %v3588
        %v3590 = vpop.f32.mrf.mxu0
        %3591 = vmatprep.mubr.f32.mxu0 0.0
        %3592 = vmatmul.mubr.f32.gmra.mxu0 %v1895
        %v3593 = vpop.f32.mrf.mxu0
        %v3594 = vadd.f32 0.0, %v3593
        %v3595 = vpop.f32.mrf.mxu0
        %3596 = vmatprep.mubr.f32.mxu0 0.0
        %3597 = vmatmul.mubr.f32.gmra.mxu0 %v1897
        %v3598 = vpop.f32.mrf.mxu0
        %v3599 = vadd.f32 0.0, %v3598
        %v3600 = vpop.f32.mrf.mxu0
        %3601 = vmatprep.mubr.f32.mxu0 0.0
        %3602 = vmatmul.mubr.f32.gmra.mxu0 %v1899
        %v3603 = vpop.f32.mrf.mxu0
        %v3604 = vadd.f32 0.0, %v3603
        %v3605 = vpop.f32.mrf.mxu0
        %3606 = vmatprep.mubr.f32.mxu0 0.0
        %3607 = vmatmul.mubr.f32.gmra.mxu0 %v1901
        %v3608 = vpop.f32.mrf.mxu0
        %v3609 = vadd.f32 0.0, %v3608
        %v3610 = vpop.f32.mrf.mxu0
        %3611 = vmatprep.mubr.f32.mxu0 0.0
        %3612 = vmatmul.mubr.f32.gmra.mxu0 %v1903
        %v3613 = vpop.f32.mrf.mxu0
        %v3614 = vadd.f32 0.0, %v3613
        %v3615 = vpop.f32.mrf.mxu0
        %3616 = vmatprep.mubr.f32.mxu0 0.0
        %3617 = vmatmul.mubr.f32.gmra.mxu0 %v1905
        %v3618 = vpop.f32.mrf.mxu0
        %v3619 = vadd.f32 0.0, %v3618
        %v3620 = vpop.f32.mrf.mxu0
        %3621 = vmatprep.mubr.f32.mxu0 0.0
        %3622 = vmatmul.mubr.f32.gmra.mxu0 %v1907
        %v3623 = vpop.f32.mrf.mxu0
        %v3624 = vadd.f32 0.0, %v3623
        %v3625 = vpop.f32.mrf.mxu0
        %3626 = vmatprep.mubr.f32.mxu0 0.0
        %3627 = vmatmul.mubr.f32.gmra.mxu0 %v1909
        %v3628 = vpop.f32.mrf.mxu0
        %v3629 = vadd.f32 0.0, %v3628
        %v3630 = vpop.f32.mrf.mxu0
        %3631 = vmatprep.mubr.f32.mxu0 0.0
        %3632 = vmatmul.mubr.f32.gmra.mxu0 %v1911
        %v3633 = vpop.f32.mrf.mxu0
        %v3634 = vadd.f32 0.0, %v3633
        %v3635 = vpop.f32.mrf.mxu0
        %3636 = vmatprep.mubr.f32.mxu0 0.0
        %3637 = vmatmul.mubr.f32.gmra.mxu0 %v1913
        %v3638 = vpop.f32.mrf.mxu0
        %v3639 = vadd.f32 0.0, %v3638
        %v3640 = vpop.f32.mrf.mxu0
        %3641 = vmatprep.mubr.f32.mxu0 0.0
        %3642 = vmatmul.mubr.f32.gmra.mxu0 %v1915
        %v3643 = vpop.f32.mrf.mxu0
        %v3644 = vadd.f32 0.0, %v3643
        %v3645 = vpop.f32.mrf.mxu0
        %3646 = vmatprep.mubr.f32.mxu0 0.0
        %3647 = vmatmul.mubr.f32.gmra.mxu0 %v1917
        %v3648 = vpop.f32.mrf.mxu0
        %v3649 = vadd.f32 0.0, %v3648
        %v3650 = vpop.f32.mrf.mxu0
        %3651 = vmatprep.mubr.f32.mxu0 0.0
        %3652 = vmatmul.mubr.f32.gmra.mxu0 %v1919
        %v3653 = vpop.f32.mrf.mxu0
        %v3654 = vadd.f32 0.0, %v3653
        %v3655 = vpop.f32.mrf.mxu0
        %3656 = vmatprep.mubr.f32.mxu0 0.0
        %3657 = vmatmul.mubr.f32.gmra.mxu0 %v1921
        %v3658 = vpop.f32.mrf.mxu0
        %v3659 = vadd.f32 0.0, %v3658
        %v3660 = vpop.f32.mrf.mxu0
        %3661 = vmatprep.mubr.f32.mxu0 0.0
        %3662 = vmatmul.mubr.f32.gmra.mxu0 %v1923
        %v3663 = vpop.f32.mrf.mxu0
        %v3664 = vadd.f32 0.0, %v3663
        %v3665 = vpop.f32.mrf.mxu0
        %3666 = vmatprep.mubr.f32.mxu0 0.0
        %3667 = vmatmul.mubr.f32.gmra.mxu0 %v1925
        %v3668 = vpop.f32.mrf.mxu0
        %v3669 = vadd.f32 0.0, %v3668
        %v3670 = vpop.f32.mrf.mxu0
        %3671 = vmatprep.mubr.f32.mxu0 0.0
        %3672 = vmatmul.mubr.f32.gmra.mxu0 %v1927
        %v3673 = vpop.f32.mrf.mxu0
        %v3674 = vadd.f32 0.0, %v3673
        %v3675 = vpop.f32.mrf.mxu0
        %3676 = vmatprep.mubr.f32.mxu0 0.0
        %3677 = vmatmul.mubr.f32.gmra.mxu0 %v1929
        %v3678 = vpop.f32.mrf.mxu0
        %v3679 = vadd.f32 0.0, %v3678
        %v3680 = vpop.f32.mrf.mxu0
        %3681 = vmatprep.mubr.f32.mxu0 0.0
        %3682 = vmatmul.mubr.f32.gmra.mxu0 %v1931
        %v3683 = vpop.f32.mrf.mxu0
        %v3684 = vadd.f32 0.0, %v3683
        %v3685 = vpop.f32.mrf.mxu0
        %3686 = vmatprep.mubr.f32.mxu0 0.0
        %3687 = vmatmul.mubr.f32.gmra.mxu0 %v1933
        %v3688 = vpop.f32.mrf.mxu0
        %v3689 = vadd.f32 0.0, %v3688
        %v3690 = vpop.f32.mrf.mxu0
        %3691 = vmatprep.mubr.f32.mxu0 0.0
        %3692 = vmatmul.mubr.f32.gmra.mxu0 %v1935
        %v3693 = vpop.f32.mrf.mxu0
        %v3694 = vadd.f32 0.0, %v3693
        %v3695 = vpop.f32.mrf.mxu0
        %3696 = vmatprep.mubr.f32.mxu0 0.0
        %3697 = vmatmul.mubr.f32.gmra.mxu0 %v1937
        %v3698 = vpop.f32.mrf.mxu0
        %v3699 = vadd.f32 0.0, %v3698
        %v3700 = vpop.f32.mrf.mxu0
        %3701 = vmatprep.mubr.f32.mxu0 0.0
        %3702 = vmatmul.mubr.f32.gmra.mxu0 %v1939
        %v3703 = vpop.f32.mrf.mxu0
        %v3704 = vadd.f32 0.0, %v3703
        %v3705 = vpop.f32.mrf.mxu0
        %3706 = vmatprep.mubr.f32.mxu0 0.0
        %3707 = vmatmul.mubr.f32.gmra.mxu0 %v1941
        %v3708 = vpop.f32.mrf.mxu0
        %v3709 = vadd.f32 0.0, %v3708
        %v3710 = vpop.f32.mrf.mxu0
        %3711 = vmatprep.mubr.f32.mxu0 0.0
        %3712 = vmatmul.mubr.f32.gmra.mxu0 %v1943
        %v3713 = vpop.f32.mrf.mxu0
        %v3714 = vadd.f32 0.0, %v3713
        %v3715 = vpop.f32.mrf.mxu0
        %3716 = vmatprep.mubr.f32.mxu0 0.0
        %3717 = vmatmul.mubr.f32.gmra.mxu0 %v1945
        %v3718 = vpop.f32.mrf.mxu0
        %v3719 = vadd.f32 0.0, %v3718
        %v3720 = vpop.f32.mrf.mxu0
        %3721 = vmatprep.mubr.f32.mxu0 0.0
        %3722 = vmatmul.mubr.f32.gmra.mxu0 %v1947
        %v3723 = vpop.f32.mrf.mxu0
        %v3724 = vadd.f32 0.0, %v3723
        %v3725 = vpop.f32.mrf.mxu0
        %3726 = vmatprep.mubr.f32.mxu0 0.0
        %3727 = vmatmul.mubr.f32.gmra.mxu0 %v1949
        %v3728 = vpop.f32.mrf.mxu0
        %v3729 = vadd.f32 0.0, %v3728
        %v3730 = vpop.f32.mrf.mxu0
        %3731 = vdwg.mxu0
        %v3732 = vadd.f32 %v3349, 0.0
        %v3733 = vadd.f32 %v3354, 0.0
        %v3734 = vadd.f32 %v3359, %v3124
        %v3735 = vadd.f32 %v3364, %v3129
        %v3736 = vadd.f32 %v3369, %v3134
        %v3737 = vadd.f32 %v3374, %v3139
        %v3738 = vadd.f32 %v3379, %v3144
        %v3739 = vadd.f32 %v3384, %v3149
        %v3740 = vadd.f32 %v3389, %v3154
        %v3741 = vadd.f32 %v3394, %v3159
        %v3742 = vadd.f32 %v3399, %v3164
        %v3743 = vadd.f32 %v3404, %v3169
        %v3744 = vadd.f32 %v3409, %v3174
        %v3745 = vadd.f32 %v3414, %v3179
        %v3746 = vadd.f32 %v3419, %v3184
        %v3747 = vadd.f32 %v3424, %v3189
        %v3748 = vadd.f32 %v3429, %v3194
        %v3749 = vadd.f32 %v3434, %v3199
        %v3750 = vadd.f32 %v3439, %v3204
        %v3751 = vadd.f32 %v3444, %v3209
        %v3752 = vadd.f32 %v3449, %v3214
        %v3753 = vadd.f32 %v3454, %v3219
        %v3754 = vadd.f32 %v3459, %v3224
        %v3755 = vadd.f32 %v3464, %v3229
        %v3756 = vadd.f32 %v3469, %v3234
        %v3757 = vadd.f32 %v3474, %v3239
        %v3758 = vadd.f32 %v3479, %v3244
        %v3759 = vadd.f32 %v3484, %v3249
        %v3760 = vadd.f32 %v3489, %v3254
        %v3761 = vadd.f32 %v3494, %v3259
        %v3762 = vadd.f32 %v3499, %v3264
        %v3763 = vadd.f32 %v3504, %v3269
        %v3764 = vadd.f32 %v3732, %v3584
        %v3765 = vadd.f32 %v3733, %v3589
        %v3766 = vadd.f32 %v3734, %v3594
        %v3767 = vadd.f32 %v3735, %v3599
        %v3768 = vadd.f32 %v3736, %v3604
        %v3769 = vadd.f32 %v3737, %v3609
        %v3770 = vadd.f32 %v3738, %v3614
        %v3771 = vadd.f32 %v3739, %v3619
        %v3772 = vadd.f32 %v3740, %v3624
        %v3773 = vadd.f32 %v3741, %v3629
        %v3774 = vadd.f32 %v3742, %v3634
        %v3775 = vadd.f32 %v3743, %v3639
        %v3776 = vadd.f32 %v3744, %v3644
        %v3777 = vadd.f32 %v3745, %v3649
        %v3778 = vadd.f32 %v3746, %v3654
        %v3779 = vadd.f32 %v3747, %v3659
        %v3780 = vadd.f32 %v3748, %v3664
        %v3781 = vadd.f32 %v3749, %v3669
        %v3782 = vadd.f32 %v3750, %v3674
        %v3783 = vadd.f32 %v3751, %v3679
        %v3784 = vadd.f32 %v3752, %v3684
        %v3785 = vadd.f32 %v3753, %v3689
        %v3786 = vadd.f32 %v3754, %v3694
        %v3787 = vadd.f32 %v3755, %v3699
        %v3788 = vadd.f32 %v3756, %v3704
        %v3789 = vadd.f32 %v3757, %v3709
        %v3790 = vadd.f32 %v3758, %v3714
        %v3791 = vadd.f32 %v3759, %v3719
        %v3792 = vadd.f32 %v3760, %v3724
        %v3793 = vadd.f32 %v3761, %v3729
        %v3794 = vadd.f32 %v3762, 0.0
        %v3795 = vadd.f32 %v3763, 0.0
        %v3796 = vld [vmem:[%s8] sm:$0x1]
        %v3797 = vlaneseq
        %v3798 = vshrl.u32 %v3797, 7
        %v3799 = vsub.s32 0, %v3798
        %v3800 = vrot.slane %v3796, %v3799
        %v3801 = vmul.f32 %v3764, %v3800
        %v3802 = vmul.f32 %v3765, %v3800
        %v3803 = vmul.f32 %v3766, %v3800
        %v3804 = vmul.f32 %v3767, %v3800
        %v3805 = vmul.f32 %v3768, %v3800
        %v3806 = vmul.f32 %v3769, %v3800
        %v3807 = vmul.f32 %v3770, %v3800
        %v3808 = vmul.f32 %v3771, %v3800
        %v3809 = vmul.f32 %v3772, %v3800
        %v3810 = vmul.f32 %v3773, %v3800
        %v3811 = vmul.f32 %v3774, %v3800
        %v3812 = vmul.f32 %v3775, %v3800
        %v3813 = vmul.f32 %v3776, %v3800
        %v3814 = vmul.f32 %v3777, %v3800
        %v3815 = vmul.f32 %v3778, %v3800
        %v3816 = vmul.f32 %v3779, %v3800
        %v3817 = vmul.f32 %v3780, %v3800
        %v3818 = vmul.f32 %v3781, %v3800
        %v3819 = vmul.f32 %v3782, %v3800
        %v3820 = vmul.f32 %v3783, %v3800
        %v3821 = vmul.f32 %v3784, %v3800
        %v3822 = vmul.f32 %v3785, %v3800
        %v3823 = vmul.f32 %v3786, %v3800
        %v3824 = vmul.f32 %v3787, %v3800
        %v3825 = vmul.f32 %v3788, %v3800
        %v3826 = vmul.f32 %v3789, %v3800
        %v3827 = vmul.f32 %v3790, %v3800
        %v3828 = vmul.f32 %v3791, %v3800
        %v3829 = vmul.f32 %v3792, %v3800
        %v3830 = vmul.f32 %v3793, %v3800
        %v3831 = vmul.f32 %v3794, %v3800
        %v3832 = vmul.f32 %v3795, %v3800
        %v3833 = vld [vmem:[%s8 + $0x1] sm:$0x1]
        %v3834 = vlaneseq
        %v3835 = vshrl.u32 %v3834, 7
        %v3836 = vsub.s32 0, %v3835
        %v3837 = vrot.slane %v3833, %v3836
        %v3838 = vadd.f32 %v3801, %v3837
        %v3839 = vadd.f32 %v3802, %v3837
        %v3840 = vadd.f32 %v3803, %v3837
        %v3841 = vadd.f32 %v3804, %v3837
        %v3842 = vadd.f32 %v3805, %v3837
        %v3843 = vadd.f32 %v3806, %v3837
        %v3844 = vadd.f32 %v3807, %v3837
        %v3845 = vadd.f32 %v3808, %v3837
        %v3846 = vadd.f32 %v3809, %v3837
        %v3847 = vadd.f32 %v3810, %v3837
        %v3848 = vadd.f32 %v3811, %v3837
        %v3849 = vadd.f32 %v3812, %v3837
        %v3850 = vadd.f32 %v3813, %v3837
        %v3851 = vadd.f32 %v3814, %v3837
        %v3852 = vadd.f32 %v3815, %v3837
        %v3853 = vadd.f32 %v3816, %v3837
        %v3854 = vadd.f32 %v3817, %v3837
        %v3855 = vadd.f32 %v3818, %v3837
        %v3856 = vadd.f32 %v3819, %v3837
        %v3857 = vadd.f32 %v3820, %v3837
        %v3858 = vadd.f32 %v3821, %v3837
        %v3859 = vadd.f32 %v3822, %v3837
        %v3860 = vadd.f32 %v3823, %v3837
        %v3861 = vadd.f32 %v3824, %v3837
        %v3862 = vadd.f32 %v3825, %v3837
        %v3863 = vadd.f32 %v3826, %v3837
        %v3864 = vadd.f32 %v3827, %v3837
        %v3865 = vadd.f32 %v3828, %v3837
        %v3866 = vadd.f32 %v3829, %v3837
        %v3867 = vadd.f32 %v3830, %v3837
        %v3868 = vadd.f32 %v3831, %v3837
        %v3869 = vadd.f32 %v3832, %v3837
        %v3870 = vmax.f32 %v3838, 0.0
        %v3871 = vmax.f32 %v3839, 0.0
        %v3872 = vmax.f32 %v3840, 0.0
        %v3873 = vmax.f32 %v3841, 0.0
        %v3874 = vmax.f32 %v3842, 0.0
        %v3875 = vmax.f32 %v3843, 0.0
        %v3876 = vmax.f32 %v3844, 0.0
        %v3877 = vmax.f32 %v3845, 0.0
        %v3878 = vmax.f32 %v3846, 0.0
        %v3879 = vmax.f32 %v3847, 0.0
        %v3880 = vmax.f32 %v3848, 0.0
        %v3881 = vmax.f32 %v3849, 0.0
        %v3882 = vmax.f32 %v3850, 0.0
        %v3883 = vmax.f32 %v3851, 0.0
        %v3884 = vmax.f32 %v3852, 0.0
        %v3885 = vmax.f32 %v3853, 0.0
        %v3886 = vmax.f32 %v3854, 0.0
        %v3887 = vmax.f32 %v3855, 0.0
        %v3888 = vmax.f32 %v3856, 0.0
        %v3889 = vmax.f32 %v3857, 0.0
        %v3890 = vmax.f32 %v3858, 0.0
        %v3891 = vmax.f32 %v3859, 0.0
        %v3892 = vmax.f32 %v3860, 0.0
        %v3893 = vmax.f32 %v3861, 0.0
        %v3894 = vmax.f32 %v3862, 0.0
        %v3895 = vmax.f32 %v3863, 0.0
        %v3896 = vmax.f32 %v3864, 0.0
        %v3897 = vmax.f32 %v3865, 0.0
        %v3898 = vmax.f32 %v3866, 0.0
        %v3899 = vmax.f32 %v3867, 0.0
        %v3900 = vmax.f32 %v3868, 0.0
        %v3901 = vmax.f32 %v3869, 0.0
        %v3902 = vld [vmem:[%s9] sm:$0xff]
        %3903 = vrot.lane.b32.xlu0 %v1758, 116
        %v3904 = vpop.permute.xlu0 %3903
        %3905 = vrot.lane.b32.xlu0 %v1759, 116
        %v3906 = vpop.permute.xlu0 %3905
        %3907 = vrot.lane.b32.xlu0 %v1760, 116
        %v3908 = vpop.permute.xlu0 %3907
        %3909 = vrot.lane.b32.xlu0 %v1761, 116
        %v3910 = vpop.permute.xlu0 %3909
        %3911 = vrot.lane.b32.xlu0 %v1762, 116
        %v3912 = vpop.permute.xlu0 %3911
        %3913 = vrot.lane.b32.xlu0 %v1763, 116
        %v3914 = vpop.permute.xlu0 %3913
        %3915 = vrot.lane.b32.xlu0 %v1764, 116
        %v3916 = vpop.permute.xlu0 %3915
        %3917 = vrot.lane.b32.xlu0 %v1765, 116
        %v3918 = vpop.permute.xlu0 %3917
        %3919 = vrot.lane.b32.xlu0 %v1766, 116
        %v3920 = vpop.permute.xlu0 %3919
        %3921 = vrot.lane.b32.xlu0 %v1767, 116
        %v3922 = vpop.permute.xlu0 %3921
        %3923 = vrot.lane.b32.xlu0 %v1768, 116
        %v3924 = vpop.permute.xlu0 %3923
        %3925 = vrot.lane.b32.xlu0 %v1769, 116
        %v3926 = vpop.permute.xlu0 %3925
        %3927 = vrot.lane.b32.xlu0 %v1770, 116
        %v3928 = vpop.permute.xlu0 %3927
        %3929 = vrot.lane.b32.xlu0 %v1771, 116
        %v3930 = vpop.permute.xlu0 %3929
        %3931 = vrot.lane.b32.xlu0 %v1772, 116
        %v3932 = vpop.permute.xlu0 %3931
        %3933 = vrot.lane.b32.xlu0 %v1773, 116
        %v3934 = vpop.permute.xlu0 %3933
        %3935 = vrot.lane.b32.xlu0 %v1774, 116
        %v3936 = vpop.permute.xlu0 %3935
        %3937 = vrot.lane.b32.xlu0 %v1775, 116
        %v3938 = vpop.permute.xlu0 %3937
        %3939 = vrot.lane.b32.xlu0 %v1776, 116
        %v3940 = vpop.permute.xlu0 %3939
        %3941 = vrot.lane.b32.xlu0 %v1777, 116
        %v3942 = vpop.permute.xlu0 %3941
        %3943 = vrot.lane.b32.xlu0 %v1778, 116
        %v3944 = vpop.permute.xlu0 %3943
        %3945 = vrot.lane.b32.xlu0 %v1779, 116
        %v3946 = vpop.permute.xlu0 %3945
        %3947 = vrot.lane.b32.xlu0 %v1780, 116
        %v3948 = vpop.permute.xlu0 %3947
        %3949 = vrot.lane.b32.xlu0 %v1781, 116
        %v3950 = vpop.permute.xlu0 %3949
        %3951 = vrot.lane.b32.xlu0 %v1782, 116
        %v3952 = vpop.permute.xlu0 %3951
        %3953 = vrot.lane.b32.xlu0 %v1783, 116
        %v3954 = vpop.permute.xlu0 %3953
        %3955 = vrot.lane.b32.xlu0 %v1784, 116
        %v3956 = vpop.permute.xlu0 %3955
        %3957 = vrot.lane.b32.xlu0 %v1785, 116
        %v3958 = vpop.permute.xlu0 %3957
        %3959 = vrot.lane.b32.xlu0 %v1786, 116
        %v3960 = vpop.permute.xlu0 %3959
        %3961 = vrot.lane.b32.xlu0 %v1787, 116
        %v3962 = vpop.permute.xlu0 %3961
        %3963 = vrot.lane.b32.xlu0 %v1788, 116
        %v3964 = vpop.permute.xlu0 %3963
        %3965 = vrot.lane.b32.xlu0 %v1789, 116
        %v3966 = vpop.permute.xlu0 %3965
        %v3967 = vsel %vm966, %v3904, 0
        %v3969 = vsel %vm966, %v3906, 0
        %v3971 = vsel %vm966, %v3908, 0
        %v3973 = vsel %vm966, %v3910, 0
        %v3975 = vsel %vm966, %v3912, 0
        %v3977 = vsel %vm966, %v3914, 0
        %v3979 = vsel %vm966, %v3916, 0
        %v3981 = vsel %vm966, %v3918, 0
        %v3983 = vsel %vm966, %v3920, 0
        %v3985 = vsel %vm966, %v3922, 0
        %v3987 = vsel %vm966, %v3924, 0
        %v3989 = vsel %vm966, %v3926, 0
        %v3991 = vsel %vm966, %v3928, 0
        %v3993 = vsel %vm966, %v3930, 0
        %v3995 = vsel %vm966, %v3932, 0
        %v3997 = vsel %vm966, %v3934, 0
        %v3999 = vsel %vm966, %v3936, 0
        %v4001 = vsel %vm966, %v3938, 0
        %v4003 = vsel %vm966, %v3940, 0
        %v4005 = vsel %vm966, %v3942, 0
        %v4007 = vsel %vm966, %v3944, 0
        %v4009 = vsel %vm966, %v3946, 0
        %v4011 = vsel %vm966, %v3948, 0
        %v4013 = vsel %vm966, %v3950, 0
        %v4015 = vsel %vm966, %v3952, 0
        %v4017 = vsel %vm966, %v3954, 0
        %v4019 = vsel %vm966, %v3956, 0
        %v4021 = vsel %vm966, %v3958, 0
        %v4023 = vsel %vm966, %v3960, 0
        %v4025 = vsel %vm966, %v3962, 0
        %v4027 = vsel %vm966, %v3964, 0
        %v4029 = vsel %vm966, %v3966, 0
        %4031 = vmatprep.subr.mxu0 0.0
        %4032 = vmatpush1.msra.mxu0 0.0
        %4033 = vmatprep.subr.mxu0 0.0
        %4034 = vmatpush1.msra.mxu0 0.0
        %4035 = vmatprep.subr.mxu0 0.0
        %4036 = vmatpush1.msra.mxu0 0.0
        %4037 = vmatprep.subr.mxu0 0.0
        %4038 = vmatpush1.msra.mxu0 0.0
        %4039 = vmatprep.subr.mxu0 0.0
        %4040 = vmatpush1.msra.mxu0 0.0
        %4041 = vmatprep.subr.mxu0 0.0
        %4042 = vmatpush1.msra.mxu0 0.0
        %4043 = vmatprep.subr.mxu0 0.0
        %4044 = vmatpush1.msra.mxu0 0.0
        %4045 = vmatprep.subr.mxu0 0.0
        %4046 = vmatpush1.msra.mxu0 0.0
        %4047 = vmatprep.subr.mxu0 0.0
        %4048 = vmatpush1.msra.mxu0 0.0
        %4049 = vmatprep.subr.mxu0 0.0
        %4050 = vmatpush1.msra.mxu0 0.0
        %4051 = vmatprep.subr.mxu0 0.0
        %4052 = vmatpush1.msra.mxu0 0.0
        %4053 = vmatprep.subr.mxu0 0.0
        %4054 = vmatpush1.msra.mxu0 0.0
        %4055 = vmatprep.subr.mxu0 0.0
        %4056 = vmatpush1.msra.mxu0 0.0
        %4057 = vmatprep.subr.mxu0 0.0
        %4058 = vmatpush1.msra.mxu0 0.0
        %4059 = vmatprep.subr.mxu0 0.0
        %4060 = vmatpush1.msra.mxu0 0.0
        %4061 = vmatprep.subr.mxu0 0.0
        %4062 = vmatpush1.msra.mxu0 %v3902
        %4063 = vmatprep.subr.mxu0 0.0
        %4064 = vmatpush2.msra.mxu0 0.0
        %4065 = vmatprep.subr.mxu0 0.0
        %4066 = vmatpush2.msra.mxu0 0.0
        %4067 = vmatprep.subr.mxu0 0.0
        %4068 = vmatpush2.msra.mxu0 0.0
        %4069 = vmatprep.subr.mxu0 0.0
        %4070 = vmatpush2.msra.mxu0 0.0
        %4071 = vmatprep.subr.mxu0 0.0
        %4072 = vmatpush2.msra.mxu0 0.0
        %4073 = vmatprep.subr.mxu0 0.0
        %4074 = vmatpush2.msra.mxu0 0.0
        %4075 = vmatprep.subr.mxu0 0.0
        %4076 = vmatpush2.msra.mxu0 0.0
        %4077 = vmatprep.subr.mxu0 0.0
        %4078 = vmatpush2.msra.mxu0 0.0
        %4079 = vmatprep.subr.mxu0 0.0
        %4080 = vmatpush2.msra.mxu0 0.0
        %4081 = vmatprep.subr.mxu0 0.0
        %4082 = vmatpush2.msra.mxu0 0.0
        %4083 = vmatprep.subr.mxu0 0.0
        %4084 = vmatpush2.msra.mxu0 0.0
        %4085 = vmatprep.subr.mxu0 0.0
        %4086 = vmatpush2.msra.mxu0 0.0
        %4087 = vmatprep.subr.mxu0 0.0
        %4088 = vmatpush2.msra.mxu0 0.0
        %4089 = vmatprep.subr.mxu0 0.0
        %4090 = vmatpush2.msra.mxu0 0.0
        %4091 = vmatprep.subr.mxu0 0.0
        %4092 = vmatpush2.msra.mxu0 0.0
        %4093 = vmatprep.subr.mxu0 0.0
        %4094 = vmatpush2.msra.mxu0 0.0
        %4095 = vmatprep.mubr.f32.mxu0 0.0
        %4096 = vmatmul.mubr.f32.gmra.mxu0 %v3967
        %v4097 = vpop.f32.mrf.mxu0
        %v4098 = vadd.f32 0.0, %v4097
        %v4099 = vpop.f32.mrf.mxu0
        %4100 = vmatprep.mubr.f32.mxu0 0.0
        %4101 = vmatmul.mubr.f32.gmra.mxu0 %v3969
        %v4102 = vpop.f32.mrf.mxu0
        %v4103 = vadd.f32 0.0, %v4102
        %v4104 = vpop.f32.mrf.mxu0
        %4105 = vmatprep.mubr.f32.mxu0 0.0
        %4106 = vmatmul.mubr.f32.gmra.mxu0 %v3971
        %v4107 = vpop.f32.mrf.mxu0
        %v4108 = vadd.f32 0.0, %v4107
        %v4109 = vpop.f32.mrf.mxu0
        %4110 = vmatprep.mubr.f32.mxu0 0.0
        %4111 = vmatmul.mubr.f32.gmra.mxu0 %v3973
        %v4112 = vpop.f32.mrf.mxu0
        %v4113 = vadd.f32 0.0, %v4112
        %v4114 = vpop.f32.mrf.mxu0
        %4115 = vmatprep.mubr.f32.mxu0 0.0
        %4116 = vmatmul.mubr.f32.gmra.mxu0 %v3975
        %v4117 = vpop.f32.mrf.mxu0
        %v4118 = vadd.f32 0.0, %v4117
        %v4119 = vpop.f32.mrf.mxu0
        %4120 = vmatprep.mubr.f32.mxu0 0.0
        %4121 = vmatmul.mubr.f32.gmra.mxu0 %v3977
        %v4122 = vpop.f32.mrf.mxu0
        %v4123 = vadd.f32 0.0, %v4122
        %v4124 = vpop.f32.mrf.mxu0
        %4125 = vmatprep.mubr.f32.mxu0 0.0
        %4126 = vmatmul.mubr.f32.gmra.mxu0 %v3979
        %v4127 = vpop.f32.mrf.mxu0
        %v4128 = vadd.f32 0.0, %v4127
        %v4129 = vpop.f32.mrf.mxu0
        %4130 = vmatprep.mubr.f32.mxu0 0.0
        %4131 = vmatmul.mubr.f32.gmra.mxu0 %v3981
        %v4132 = vpop.f32.mrf.mxu0
        %v4133 = vadd.f32 0.0, %v4132
        %v4134 = vpop.f32.mrf.mxu0
        %4135 = vmatprep.mubr.f32.mxu0 0.0
        %4136 = vmatmul.mubr.f32.gmra.mxu0 %v3983
        %v4137 = vpop.f32.mrf.mxu0
        %v4138 = vadd.f32 0.0, %v4137
        %v4139 = vpop.f32.mrf.mxu0
        %4140 = vmatprep.mubr.f32.mxu0 0.0
        %4141 = vmatmul.mubr.f32.gmra.mxu0 %v3985
        %v4142 = vpop.f32.mrf.mxu0
        %v4143 = vadd.f32 0.0, %v4142
        %v4144 = vpop.f32.mrf.mxu0
        %4145 = vmatprep.mubr.f32.mxu0 0.0
        %4146 = vmatmul.mubr.f32.gmra.mxu0 %v3987
        %v4147 = vpop.f32.mrf.mxu0
        %v4148 = vadd.f32 0.0, %v4147
        %v4149 = vpop.f32.mrf.mxu0
        %4150 = vmatprep.mubr.f32.mxu0 0.0
        %4151 = vmatmul.mubr.f32.gmra.mxu0 %v3989
        %v4152 = vpop.f32.mrf.mxu0
        %v4153 = vadd.f32 0.0, %v4152
        %v4154 = vpop.f32.mrf.mxu0
        %4155 = vmatprep.mubr.f32.mxu0 0.0
        %4156 = vmatmul.mubr.f32.gmra.mxu0 %v3991
        %v4157 = vpop.f32.mrf.mxu0
        %v4158 = vadd.f32 0.0, %v4157
        %v4159 = vpop.f32.mrf.mxu0
        %4160 = vmatprep.mubr.f32.mxu0 0.0
        %4161 = vmatmul.mubr.f32.gmra.mxu0 %v3993
        %v4162 = vpop.f32.mrf.mxu0
        %v4163 = vadd.f32 0.0, %v4162
        %v4164 = vpop.f32.mrf.mxu0
        %4165 = vmatprep.mubr.f32.mxu0 0.0
        %4166 = vmatmul.mubr.f32.gmra.mxu0 %v3995
        %v4167 = vpop.f32.mrf.mxu0
        %v4168 = vadd.f32 0.0, %v4167
        %v4169 = vpop.f32.mrf.mxu0
        %4170 = vmatprep.mubr.f32.mxu0 0.0
        %4171 = vmatmul.mubr.f32.gmra.mxu0 %v3997
        %v4172 = vpop.f32.mrf.mxu0
        %v4173 = vadd.f32 0.0, %v4172
        %v4174 = vpop.f32.mrf.mxu0
        %4175 = vmatprep.mubr.f32.mxu0 0.0
        %4176 = vmatmul.mubr.f32.gmra.mxu0 %v3999
        %v4177 = vpop.f32.mrf.mxu0
        %v4178 = vadd.f32 0.0, %v4177
        %v4179 = vpop.f32.mrf.mxu0
        %4180 = vmatprep.mubr.f32.mxu0 0.0
        %4181 = vmatmul.mubr.f32.gmra.mxu0 %v4001
        %v4182 = vpop.f32.mrf.mxu0
        %v4183 = vadd.f32 0.0, %v4182
        %v4184 = vpop.f32.mrf.mxu0
        %4185 = vmatprep.mubr.f32.mxu0 0.0
        %4186 = vmatmul.mubr.f32.gmra.mxu0 %v4003
        %v4187 = vpop.f32.mrf.mxu0
        %v4188 = vadd.f32 0.0, %v4187
        %v4189 = vpop.f32.mrf.mxu0
        %4190 = vmatprep.mubr.f32.mxu0 0.0
        %4191 = vmatmul.mubr.f32.gmra.mxu0 %v4005
        %v4192 = vpop.f32.mrf.mxu0
        %v4193 = vadd.f32 0.0, %v4192
        %v4194 = vpop.f32.mrf.mxu0
        %4195 = vmatprep.mubr.f32.mxu0 0.0
        %4196 = vmatmul.mubr.f32.gmra.mxu0 %v4007
        %v4197 = vpop.f32.mrf.mxu0
        %v4198 = vadd.f32 0.0, %v4197
        %v4199 = vpop.f32.mrf.mxu0
        %4200 = vmatprep.mubr.f32.mxu0 0.0
        %4201 = vmatmul.mubr.f32.gmra.mxu0 %v4009
        %v4202 = vpop.f32.mrf.mxu0
        %v4203 = vadd.f32 0.0, %v4202
        %v4204 = vpop.f32.mrf.mxu0
        %4205 = vmatprep.mubr.f32.mxu0 0.0
        %4206 = vmatmul.mubr.f32.gmra.mxu0 %v4011
        %v4207 = vpop.f32.mrf.mxu0
        %v4208 = vadd.f32 0.0, %v4207
        %v4209 = vpop.f32.mrf.mxu0
        %4210 = vmatprep.mubr.f32.mxu0 0.0
        %4211 = vmatmul.mubr.f32.gmra.mxu0 %v4013
        %v4212 = vpop.f32.mrf.mxu0
        %v4213 = vadd.f32 0.0, %v4212
        %v4214 = vpop.f32.mrf.mxu0
        %4215 = vmatprep.mubr.f32.mxu0 0.0
        %4216 = vmatmul.mubr.f32.gmra.mxu0 %v4015
        %v4217 = vpop.f32.mrf.mxu0
        %v4218 = vadd.f32 0.0, %v4217
        %v4219 = vpop.f32.mrf.mxu0
        %4220 = vmatprep.mubr.f32.mxu0 0.0
        %4221 = vmatmul.mubr.f32.gmra.mxu0 %v4017
        %v4222 = vpop.f32.mrf.mxu0
        %v4223 = vadd.f32 0.0, %v4222
        %v4224 = vpop.f32.mrf.mxu0
        %4225 = vmatprep.mubr.f32.mxu0 0.0
        %4226 = vmatmul.mubr.f32.gmra.mxu0 %v4019
        %v4227 = vpop.f32.mrf.mxu0
        %v4228 = vadd.f32 0.0, %v4227
        %v4229 = vpop.f32.mrf.mxu0
        %4230 = vmatprep.mubr.f32.mxu0 0.0
        %4231 = vmatmul.mubr.f32.gmra.mxu0 %v4021
        %v4232 = vpop.f32.mrf.mxu0
        %v4233 = vadd.f32 0.0, %v4232
        %v4234 = vpop.f32.mrf.mxu0
        %4235 = vmatprep.mubr.f32.mxu0 0.0
        %4236 = vmatmul.mubr.f32.gmra.mxu0 %v4023
        %v4237 = vpop.f32.mrf.mxu0
        %v4238 = vadd.f32 0.0, %v4237
        %v4239 = vpop.f32.mrf.mxu0
        %4240 = vmatprep.mubr.f32.mxu0 0.0
        %4241 = vmatmul.mubr.f32.gmra.mxu0 %v4025
        %v4242 = vpop.f32.mrf.mxu0
        %v4243 = vadd.f32 0.0, %v4242
        %v4244 = vpop.f32.mrf.mxu0
        %4245 = vmatprep.mubr.f32.mxu0 0.0
        %4246 = vmatmul.mubr.f32.gmra.mxu0 %v4027
        %v4247 = vpop.f32.mrf.mxu0
        %v4248 = vadd.f32 0.0, %v4247
        %v4249 = vpop.f32.mrf.mxu0
        %4250 = vmatprep.mubr.f32.mxu0 0.0
        %4251 = vmatmul.mubr.f32.gmra.mxu0 %v4029
        %v4252 = vpop.f32.mrf.mxu0
        %v4253 = vadd.f32 0.0, %v4252
        %v4254 = vpop.f32.mrf.mxu0
        %4255 = vdwg.mxu0
        %s4256 = scalar_lea.vmem %s9, 8
        %v4257 = vld [vmem:[%s4256] sm:$0xff]
        %4258 = vmatprep.subr.mxu0 0.0
        %4259 = vmatpush1.msra.mxu0 0.0
        %4260 = vmatprep.subr.mxu0 0.0
        %4261 = vmatpush1.msra.mxu0 0.0
        %4262 = vmatprep.subr.mxu0 0.0
        %4263 = vmatpush1.msra.mxu0 0.0
        %4264 = vmatprep.subr.mxu0 0.0
        %4265 = vmatpush1.msra.mxu0 0.0
        %4266 = vmatprep.subr.mxu0 0.0
        %4267 = vmatpush1.msra.mxu0 0.0
        %4268 = vmatprep.subr.mxu0 0.0
        %4269 = vmatpush1.msra.mxu0 0.0
        %4270 = vmatprep.subr.mxu0 0.0
        %4271 = vmatpush1.msra.mxu0 0.0
        %4272 = vmatprep.subr.mxu0 0.0
        %4273 = vmatpush1.msra.mxu0 0.0
        %4274 = vmatprep.subr.mxu0 0.0
        %4275 = vmatpush1.msra.mxu0 0.0
        %4276 = vmatprep.subr.mxu0 0.0
        %4277 = vmatpush1.msra.mxu0 0.0
        %4278 = vmatprep.subr.mxu0 0.0
        %4279 = vmatpush1.msra.mxu0 0.0
        %4280 = vmatprep.subr.mxu0 0.0
        %4281 = vmatpush1.msra.mxu0 0.0
        %4282 = vmatprep.subr.mxu0 0.0
        %4283 = vmatpush1.msra.mxu0 0.0
        %4284 = vmatprep.subr.mxu0 0.0
        %4285 = vmatpush1.msra.mxu0 0.0
        %4286 = vmatprep.subr.mxu0 0.0
        %4287 = vmatpush1.msra.mxu0 0.0
        %4288 = vmatprep.subr.mxu0 0.0
        %4289 = vmatpush1.msra.mxu0 %v4257
        %4290 = vmatprep.subr.mxu0 0.0
        %4291 = vmatpush2.msra.mxu0 0.0
        %4292 = vmatprep.subr.mxu0 0.0
        %4293 = vmatpush2.msra.mxu0 0.0
        %4294 = vmatprep.subr.mxu0 0.0
        %4295 = vmatpush2.msra.mxu0 0.0
        %4296 = vmatprep.subr.mxu0 0.0
        %4297 = vmatpush2.msra.mxu0 0.0
        %4298 = vmatprep.subr.mxu0 0.0
        %4299 = vmatpush2.msra.mxu0 0.0
        %4300 = vmatprep.subr.mxu0 0.0
        %4301 = vmatpush2.msra.mxu0 0.0
        %4302 = vmatprep.subr.mxu0 0.0
        %4303 = vmatpush2.msra.mxu0 0.0
        %4304 = vmatprep.subr.mxu0 0.0
        %4305 = vmatpush2.msra.mxu0 0.0
        %4306 = vmatprep.subr.mxu0 0.0
        %4307 = vmatpush2.msra.mxu0 0.0
        %4308 = vmatprep.subr.mxu0 0.0
        %4309 = vmatpush2.msra.mxu0 0.0
        %4310 = vmatprep.subr.mxu0 0.0
        %4311 = vmatpush2.msra.mxu0 0.0
        %4312 = vmatprep.subr.mxu0 0.0
        %4313 = vmatpush2.msra.mxu0 0.0
        %4314 = vmatprep.subr.mxu0 0.0
        %4315 = vmatpush2.msra.mxu0 0.0
        %4316 = vmatprep.subr.mxu0 0.0
        %4317 = vmatpush2.msra.mxu0 0.0
        %4318 = vmatprep.subr.mxu0 0.0
        %4319 = vmatpush2.msra.mxu0 0.0
        %4320 = vmatprep.subr.mxu0 0.0
        %4321 = vmatpush2.msra.mxu0 0.0
        %4322 = vmatprep.mubr.f32.mxu0 0.0
        %4323 = vmatmul.mubr.f32.gmra.mxu0 %v3967
        %v4324 = vpop.f32.mrf.mxu0
        %v4325 = vadd.f32 0.0, %v4324
        %v4326 = vpop.f32.mrf.mxu0
        %4327 = vmatprep.mubr.f32.mxu0 0.0
        %4328 = vmatmul.mubr.f32.gmra.mxu0 %v3969
        %v4329 = vpop.f32.mrf.mxu0
        %v4330 = vadd.f32 0.0, %v4329
        %v4331 = vpop.f32.mrf.mxu0
        %4332 = vmatprep.mubr.f32.mxu0 0.0
        %4333 = vmatmul.mubr.f32.gmra.mxu0 %v3971
        %v4334 = vpop.f32.mrf.mxu0
        %v4335 = vadd.f32 0.0, %v4334
        %v4336 = vpop.f32.mrf.mxu0
        %4337 = vmatprep.mubr.f32.mxu0 0.0
        %4338 = vmatmul.mubr.f32.gmra.mxu0 %v3973
        %v4339 = vpop.f32.mrf.mxu0
        %v4340 = vadd.f32 0.0, %v4339
        %v4341 = vpop.f32.mrf.mxu0
        %4342 = vmatprep.mubr.f32.mxu0 0.0
        %4343 = vmatmul.mubr.f32.gmra.mxu0 %v3975
        %v4344 = vpop.f32.mrf.mxu0
        %v4345 = vadd.f32 0.0, %v4344
        %v4346 = vpop.f32.mrf.mxu0
        %4347 = vmatprep.mubr.f32.mxu0 0.0
        %4348 = vmatmul.mubr.f32.gmra.mxu0 %v3977
        %v4349 = vpop.f32.mrf.mxu0
        %v4350 = vadd.f32 0.0, %v4349
        %v4351 = vpop.f32.mrf.mxu0
        %4352 = vmatprep.mubr.f32.mxu0 0.0
        %4353 = vmatmul.mubr.f32.gmra.mxu0 %v3979
        %v4354 = vpop.f32.mrf.mxu0
        %v4355 = vadd.f32 0.0, %v4354
        %v4356 = vpop.f32.mrf.mxu0
        %4357 = vmatprep.mubr.f32.mxu0 0.0
        %4358 = vmatmul.mubr.f32.gmra.mxu0 %v3981
        %v4359 = vpop.f32.mrf.mxu0
        %v4360 = vadd.f32 0.0, %v4359
        %v4361 = vpop.f32.mrf.mxu0
        %4362 = vmatprep.mubr.f32.mxu0 0.0
        %4363 = vmatmul.mubr.f32.gmra.mxu0 %v3983
        %v4364 = vpop.f32.mrf.mxu0
        %v4365 = vadd.f32 0.0, %v4364
        %v4366 = vpop.f32.mrf.mxu0
        %4367 = vmatprep.mubr.f32.mxu0 0.0
        %4368 = vmatmul.mubr.f32.gmra.mxu0 %v3985
        %v4369 = vpop.f32.mrf.mxu0
        %v4370 = vadd.f32 0.0, %v4369
        %v4371 = vpop.f32.mrf.mxu0
        %4372 = vmatprep.mubr.f32.mxu0 0.0
        %4373 = vmatmul.mubr.f32.gmra.mxu0 %v3987
        %v4374 = vpop.f32.mrf.mxu0
        %v4375 = vadd.f32 0.0, %v4374
        %v4376 = vpop.f32.mrf.mxu0
        %4377 = vmatprep.mubr.f32.mxu0 0.0
        %4378 = vmatmul.mubr.f32.gmra.mxu0 %v3989
        %v4379 = vpop.f32.mrf.mxu0
        %v4380 = vadd.f32 0.0, %v4379
        %v4381 = vpop.f32.mrf.mxu0
        %4382 = vmatprep.mubr.f32.mxu0 0.0
        %4383 = vmatmul.mubr.f32.gmra.mxu0 %v3991
        %v4384 = vpop.f32.mrf.mxu0
        %v4385 = vadd.f32 0.0, %v4384
        %v4386 = vpop.f32.mrf.mxu0
        %4387 = vmatprep.mubr.f32.mxu0 0.0
        %4388 = vmatmul.mubr.f32.gmra.mxu0 %v3993
        %v4389 = vpop.f32.mrf.mxu0
        %v4390 = vadd.f32 0.0, %v4389
        %v4391 = vpop.f32.mrf.mxu0
        %4392 = vmatprep.mubr.f32.mxu0 0.0
        %4393 = vmatmul.mubr.f32.gmra.mxu0 %v3995
        %v4394 = vpop.f32.mrf.mxu0
        %v4395 = vadd.f32 0.0, %v4394
        %v4396 = vpop.f32.mrf.mxu0
        %4397 = vmatprep.mubr.f32.mxu0 0.0
        %4398 = vmatmul.mubr.f32.gmra.mxu0 %v3997
        %v4399 = vpop.f32.mrf.mxu0
        %v4400 = vadd.f32 0.0, %v4399
        %v4401 = vpop.f32.mrf.mxu0
        %4402 = vmatprep.mubr.f32.mxu0 0.0
        %4403 = vmatmul.mubr.f32.gmra.mxu0 %v3999
        %v4404 = vpop.f32.mrf.mxu0
        %v4405 = vadd.f32 0.0, %v4404
        %v4406 = vpop.f32.mrf.mxu0
        %4407 = vmatprep.mubr.f32.mxu0 0.0
        %4408 = vmatmul.mubr.f32.gmra.mxu0 %v4001
        %v4409 = vpop.f32.mrf.mxu0
        %v4410 = vadd.f32 0.0, %v4409
        %v4411 = vpop.f32.mrf.mxu0
        %4412 = vmatprep.mubr.f32.mxu0 0.0
        %4413 = vmatmul.mubr.f32.gmra.mxu0 %v4003
        %v4414 = vpop.f32.mrf.mxu0
        %v4415 = vadd.f32 0.0, %v4414
        %v4416 = vpop.f32.mrf.mxu0
        %4417 = vmatprep.mubr.f32.mxu0 0.0
        %4418 = vmatmul.mubr.f32.gmra.mxu0 %v4005
        %v4419 = vpop.f32.mrf.mxu0
        %v4420 = vadd.f32 0.0, %v4419
        %v4421 = vpop.f32.mrf.mxu0
        %4422 = vmatprep.mubr.f32.mxu0 0.0
        %4423 = vmatmul.mubr.f32.gmra.mxu0 %v4007
        %v4424 = vpop.f32.mrf.mxu0
        %v4425 = vadd.f32 0.0, %v4424
        %v4426 = vpop.f32.mrf.mxu0
        %4427 = vmatprep.mubr.f32.mxu0 0.0
        %4428 = vmatmul.mubr.f32.gmra.mxu0 %v4009
        %v4429 = vpop.f32.mrf.mxu0
        %v4430 = vadd.f32 0.0, %v4429
        %v4431 = vpop.f32.mrf.mxu0
        %4432 = vmatprep.mubr.f32.mxu0 0.0
        %4433 = vmatmul.mubr.f32.gmra.mxu0 %v4011
        %v4434 = vpop.f32.mrf.mxu0
        %v4435 = vadd.f32 0.0, %v4434
        %v4436 = vpop.f32.mrf.mxu0
        %4437 = vmatprep.mubr.f32.mxu0 0.0
        %4438 = vmatmul.mubr.f32.gmra.mxu0 %v4013
        %v4439 = vpop.f32.mrf.mxu0
        %v4440 = vadd.f32 0.0, %v4439
        %v4441 = vpop.f32.mrf.mxu0
        %4442 = vmatprep.mubr.f32.mxu0 0.0
        %4443 = vmatmul.mubr.f32.gmra.mxu0 %v4015
        %v4444 = vpop.f32.mrf.mxu0
        %v4445 = vadd.f32 0.0, %v4444
        %v4446 = vpop.f32.mrf.mxu0
        %4447 = vmatprep.mubr.f32.mxu0 0.0
        %4448 = vmatmul.mubr.f32.gmra.mxu0 %v4017
        %v4449 = vpop.f32.mrf.mxu0
        %v4450 = vadd.f32 0.0, %v4449
        %v4451 = vpop.f32.mrf.mxu0
        %4452 = vmatprep.mubr.f32.mxu0 0.0
        %4453 = vmatmul.mubr.f32.gmra.mxu0 %v4019
        %v4454 = vpop.f32.mrf.mxu0
        %v4455 = vadd.f32 0.0, %v4454
        %v4456 = vpop.f32.mrf.mxu0
        %4457 = vmatprep.mubr.f32.mxu0 0.0
        %4458 = vmatmul.mubr.f32.gmra.mxu0 %v4021
        %v4459 = vpop.f32.mrf.mxu0
        %v4460 = vadd.f32 0.0, %v4459
        %v4461 = vpop.f32.mrf.mxu0
        %4462 = vmatprep.mubr.f32.mxu0 0.0
        %4463 = vmatmul.mubr.f32.gmra.mxu0 %v4023
        %v4464 = vpop.f32.mrf.mxu0
        %v4465 = vadd.f32 0.0, %v4464
        %v4466 = vpop.f32.mrf.mxu0
        %4467 = vmatprep.mubr.f32.mxu0 0.0
        %4468 = vmatmul.mubr.f32.gmra.mxu0 %v4025
        %v4469 = vpop.f32.mrf.mxu0
        %v4470 = vadd.f32 0.0, %v4469
        %v4471 = vpop.f32.mrf.mxu0
        %4472 = vmatprep.mubr.f32.mxu0 0.0
        %4473 = vmatmul.mubr.f32.gmra.mxu0 %v4027
        %v4474 = vpop.f32.mrf.mxu0
        %v4475 = vadd.f32 0.0, %v4474
        %v4476 = vpop.f32.mrf.mxu0
        %4477 = vmatprep.mubr.f32.mxu0 0.0
        %4478 = vmatmul.mubr.f32.gmra.mxu0 %v4029
        %v4479 = vpop.f32.mrf.mxu0
        %v4480 = vadd.f32 0.0, %v4479
        %v4481 = vpop.f32.mrf.mxu0
        %4482 = vdwg.mxu0
        %s4483 = scalar_lea.vmem %s9, 16
        %v4484 = vld [vmem:[%s4483] sm:$0xff]
        %4485 = vmatprep.subr.mxu0 0.0
        %4486 = vmatpush1.msra.mxu0 0.0
        %4487 = vmatprep.subr.mxu0 0.0
        %4488 = vmatpush1.msra.mxu0 0.0
        %4489 = vmatprep.subr.mxu0 0.0
        %4490 = vmatpush1.msra.mxu0 0.0
        %4491 = vmatprep.subr.mxu0 0.0
        %4492 = vmatpush1.msra.mxu0 0.0
        %4493 = vmatprep.subr.mxu0 0.0
        %4494 = vmatpush1.msra.mxu0 0.0
        %4495 = vmatprep.subr.mxu0 0.0
        %4496 = vmatpush1.msra.mxu0 0.0
        %4497 = vmatprep.subr.mxu0 0.0
        %4498 = vmatpush1.msra.mxu0 0.0
        %4499 = vmatprep.subr.mxu0 0.0
        %4500 = vmatpush1.msra.mxu0 0.0
        %4501 = vmatprep.subr.mxu0 0.0
        %4502 = vmatpush1.msra.mxu0 0.0
        %4503 = vmatprep.subr.mxu0 0.0
        %4504 = vmatpush1.msra.mxu0 0.0
        %4505 = vmatprep.subr.mxu0 0.0
        %4506 = vmatpush1.msra.mxu0 0.0
        %4507 = vmatprep.subr.mxu0 0.0
        %4508 = vmatpush1.msra.mxu0 0.0
        %4509 = vmatprep.subr.mxu0 0.0
        %4510 = vmatpush1.msra.mxu0 0.0
        %4511 = vmatprep.subr.mxu0 0.0
        %4512 = vmatpush1.msra.mxu0 0.0
        %4513 = vmatprep.subr.mxu0 0.0
        %4514 = vmatpush1.msra.mxu0 0.0
        %4515 = vmatprep.subr.mxu0 0.0
        %4516 = vmatpush1.msra.mxu0 %v4484
        %4517 = vmatprep.subr.mxu0 0.0
        %4518 = vmatpush2.msra.mxu0 0.0
        %4519 = vmatprep.subr.mxu0 0.0
        %4520 = vmatpush2.msra.mxu0 0.0
        %4521 = vmatprep.subr.mxu0 0.0
        %4522 = vmatpush2.msra.mxu0 0.0
        %4523 = vmatprep.subr.mxu0 0.0
        %4524 = vmatpush2.msra.mxu0 0.0
        %4525 = vmatprep.subr.mxu0 0.0
        %4526 = vmatpush2.msra.mxu0 0.0
        %4527 = vmatprep.subr.mxu0 0.0
        %4528 = vmatpush2.msra.mxu0 0.0
        %4529 = vmatprep.subr.mxu0 0.0
        %4530 = vmatpush2.msra.mxu0 0.0
        %4531 = vmatprep.subr.mxu0 0.0
        %4532 = vmatpush2.msra.mxu0 0.0
        %4533 = vmatprep.subr.mxu0 0.0
        %4534 = vmatpush2.msra.mxu0 0.0
        %4535 = vmatprep.subr.mxu0 0.0
        %4536 = vmatpush2.msra.mxu0 0.0
        %4537 = vmatprep.subr.mxu0 0.0
        %4538 = vmatpush2.msra.mxu0 0.0
        %4539 = vmatprep.subr.mxu0 0.0
        %4540 = vmatpush2.msra.mxu0 0.0
        %4541 = vmatprep.subr.mxu0 0.0
        %4542 = vmatpush2.msra.mxu0 0.0
        %4543 = vmatprep.subr.mxu0 0.0
        %4544 = vmatpush2.msra.mxu0 0.0
        %4545 = vmatprep.subr.mxu0 0.0
        %4546 = vmatpush2.msra.mxu0 0.0
        %4547 = vmatprep.subr.mxu0 0.0
        %4548 = vmatpush2.msra.mxu0 0.0
        %4549 = vmatprep.mubr.f32.mxu0 0.0
        %4550 = vmatmul.mubr.f32.gmra.mxu0 %v3967
        %v4551 = vpop.f32.mrf.mxu0
        %v4552 = vadd.f32 0.0, %v4551
        %v4553 = vpop.f32.mrf.mxu0
        %4554 = vmatprep.mubr.f32.mxu0 0.0
        %4555 = vmatmul.mubr.f32.gmra.mxu0 %v3969
        %v4556 = vpop.f32.mrf.mxu0
        %v4557 = vadd.f32 0.0, %v4556
        %v4558 = vpop.f32.mrf.mxu0
        %4559 = vmatprep.mubr.f32.mxu0 0.0
        %4560 = vmatmul.mubr.f32.gmra.mxu0 %v3971
        %v4561 = vpop.f32.mrf.mxu0
        %v4562 = vadd.f32 0.0, %v4561
        %v4563 = vpop.f32.mrf.mxu0
        %4564 = vmatprep.mubr.f32.mxu0 0.0
        %4565 = vmatmul.mubr.f32.gmra.mxu0 %v3973
        %v4566 = vpop.f32.mrf.mxu0
        %v4567 = vadd.f32 0.0, %v4566
        %v4568 = vpop.f32.mrf.mxu0
        %4569 = vmatprep.mubr.f32.mxu0 0.0
        %4570 = vmatmul.mubr.f32.gmra.mxu0 %v3975
        %v4571 = vpop.f32.mrf.mxu0
        %v4572 = vadd.f32 0.0, %v4571
        %v4573 = vpop.f32.mrf.mxu0
        %4574 = vmatprep.mubr.f32.mxu0 0.0
        %4575 = vmatmul.mubr.f32.gmra.mxu0 %v3977
        %v4576 = vpop.f32.mrf.mxu0
        %v4577 = vadd.f32 0.0, %v4576
        %v4578 = vpop.f32.mrf.mxu0
        %4579 = vmatprep.mubr.f32.mxu0 0.0
        %4580 = vmatmul.mubr.f32.gmra.mxu0 %v3979
        %v4581 = vpop.f32.mrf.mxu0
        %v4582 = vadd.f32 0.0, %v4581
        %v4583 = vpop.f32.mrf.mxu0
        %4584 = vmatprep.mubr.f32.mxu0 0.0
        %4585 = vmatmul.mubr.f32.gmra.mxu0 %v3981
        %v4586 = vpop.f32.mrf.mxu0
        %v4587 = vadd.f32 0.0, %v4586
        %v4588 = vpop.f32.mrf.mxu0
        %4589 = vmatprep.mubr.f32.mxu0 0.0
        %4590 = vmatmul.mubr.f32.gmra.mxu0 %v3983
        %v4591 = vpop.f32.mrf.mxu0
        %v4592 = vadd.f32 0.0, %v4591
        %v4593 = vpop.f32.mrf.mxu0
        %4594 = vmatprep.mubr.f32.mxu0 0.0
        %4595 = vmatmul.mubr.f32.gmra.mxu0 %v3985
        %v4596 = vpop.f32.mrf.mxu0
        %v4597 = vadd.f32 0.0, %v4596
        %v4598 = vpop.f32.mrf.mxu0
        %4599 = vmatprep.mubr.f32.mxu0 0.0
        %4600 = vmatmul.mubr.f32.gmra.mxu0 %v3987
        %v4601 = vpop.f32.mrf.mxu0
        %v4602 = vadd.f32 0.0, %v4601
        %v4603 = vpop.f32.mrf.mxu0
        %4604 = vmatprep.mubr.f32.mxu0 0.0
        %4605 = vmatmul.mubr.f32.gmra.mxu0 %v3989
        %v4606 = vpop.f32.mrf.mxu0
        %v4607 = vadd.f32 0.0, %v4606
        %v4608 = vpop.f32.mrf.mxu0
        %4609 = vmatprep.mubr.f32.mxu0 0.0
        %4610 = vmatmul.mubr.f32.gmra.mxu0 %v3991
        %v4611 = vpop.f32.mrf.mxu0
        %v4612 = vadd.f32 0.0, %v4611
        %v4613 = vpop.f32.mrf.mxu0
        %4614 = vmatprep.mubr.f32.mxu0 0.0
        %4615 = vmatmul.mubr.f32.gmra.mxu0 %v3993
        %v4616 = vpop.f32.mrf.mxu0
        %v4617 = vadd.f32 0.0, %v4616
        %v4618 = vpop.f32.mrf.mxu0
        %4619 = vmatprep.mubr.f32.mxu0 0.0
        %4620 = vmatmul.mubr.f32.gmra.mxu0 %v3995
        %v4621 = vpop.f32.mrf.mxu0
        %v4622 = vadd.f32 0.0, %v4621
        %v4623 = vpop.f32.mrf.mxu0
        %4624 = vmatprep.mubr.f32.mxu0 0.0
        %4625 = vmatmul.mubr.f32.gmra.mxu0 %v3997
        %v4626 = vpop.f32.mrf.mxu0
        %v4627 = vadd.f32 0.0, %v4626
        %v4628 = vpop.f32.mrf.mxu0
        %4629 = vmatprep.mubr.f32.mxu0 0.0
        %4630 = vmatmul.mubr.f32.gmra.mxu0 %v3999
        %v4631 = vpop.f32.mrf.mxu0
        %v4632 = vadd.f32 0.0, %v4631
        %v4633 = vpop.f32.mrf.mxu0
        %4634 = vmatprep.mubr.f32.mxu0 0.0
        %4635 = vmatmul.mubr.f32.gmra.mxu0 %v4001
        %v4636 = vpop.f32.mrf.mxu0
        %v4637 = vadd.f32 0.0, %v4636
        %v4638 = vpop.f32.mrf.mxu0
        %4639 = vmatprep.mubr.f32.mxu0 0.0
        %4640 = vmatmul.mubr.f32.gmra.mxu0 %v4003
        %v4641 = vpop.f32.mrf.mxu0
        %v4642 = vadd.f32 0.0, %v4641
        %v4643 = vpop.f32.mrf.mxu0
        %4644 = vmatprep.mubr.f32.mxu0 0.0
        %4645 = vmatmul.mubr.f32.gmra.mxu0 %v4005
        %v4646 = vpop.f32.mrf.mxu0
        %v4647 = vadd.f32 0.0, %v4646
        %v4648 = vpop.f32.mrf.mxu0
        %4649 = vmatprep.mubr.f32.mxu0 0.0
        %4650 = vmatmul.mubr.f32.gmra.mxu0 %v4007
        %v4651 = vpop.f32.mrf.mxu0
        %v4652 = vadd.f32 0.0, %v4651
        %v4653 = vpop.f32.mrf.mxu0
        %4654 = vmatprep.mubr.f32.mxu0 0.0
        %4655 = vmatmul.mubr.f32.gmra.mxu0 %v4009
        %v4656 = vpop.f32.mrf.mxu0
        %v4657 = vadd.f32 0.0, %v4656
        %v4658 = vpop.f32.mrf.mxu0
        %4659 = vmatprep.mubr.f32.mxu0 0.0
        %4660 = vmatmul.mubr.f32.gmra.mxu0 %v4011
        %v4661 = vpop.f32.mrf.mxu0
        %v4662 = vadd.f32 0.0, %v4661
        %v4663 = vpop.f32.mrf.mxu0
        %4664 = vmatprep.mubr.f32.mxu0 0.0
        %4665 = vmatmul.mubr.f32.gmra.mxu0 %v4013
        %v4666 = vpop.f32.mrf.mxu0
        %v4667 = vadd.f32 0.0, %v4666
        %v4668 = vpop.f32.mrf.mxu0
        %4669 = vmatprep.mubr.f32.mxu0 0.0
        %4670 = vmatmul.mubr.f32.gmra.mxu0 %v4015
        %v4671 = vpop.f32.mrf.mxu0
        %v4672 = vadd.f32 0.0, %v4671
        %v4673 = vpop.f32.mrf.mxu0
        %4674 = vmatprep.mubr.f32.mxu0 0.0
        %4675 = vmatmul.mubr.f32.gmra.mxu0 %v4017
        %v4676 = vpop.f32.mrf.mxu0
        %v4677 = vadd.f32 0.0, %v4676
        %v4678 = vpop.f32.mrf.mxu0
        %4679 = vmatprep.mubr.f32.mxu0 0.0
        %4680 = vmatmul.mubr.f32.gmra.mxu0 %v4019
        %v4681 = vpop.f32.mrf.mxu0
        %v4682 = vadd.f32 0.0, %v4681
        %v4683 = vpop.f32.mrf.mxu0
        %4684 = vmatprep.mubr.f32.mxu0 0.0
        %4685 = vmatmul.mubr.f32.gmra.mxu0 %v4021
        %v4686 = vpop.f32.mrf.mxu0
        %v4687 = vadd.f32 0.0, %v4686
        %v4688 = vpop.f32.mrf.mxu0
        %4689 = vmatprep.mubr.f32.mxu0 0.0
        %4690 = vmatmul.mubr.f32.gmra.mxu0 %v4023
        %v4691 = vpop.f32.mrf.mxu0
        %v4692 = vadd.f32 0.0, %v4691
        %v4693 = vpop.f32.mrf.mxu0
        %4694 = vmatprep.mubr.f32.mxu0 0.0
        %4695 = vmatmul.mubr.f32.gmra.mxu0 %v4025
        %v4696 = vpop.f32.mrf.mxu0
        %v4697 = vadd.f32 0.0, %v4696
        %v4698 = vpop.f32.mrf.mxu0
        %4699 = vmatprep.mubr.f32.mxu0 0.0
        %4700 = vmatmul.mubr.f32.gmra.mxu0 %v4027
        %v4701 = vpop.f32.mrf.mxu0
        %v4702 = vadd.f32 0.0, %v4701
        %v4703 = vpop.f32.mrf.mxu0
        %4704 = vmatprep.mubr.f32.mxu0 0.0
        %4705 = vmatmul.mubr.f32.gmra.mxu0 %v4029
        %v4706 = vpop.f32.mrf.mxu0
        %v4707 = vadd.f32 0.0, %v4706
        %v4708 = vpop.f32.mrf.mxu0
        %4709 = vdwg.mxu0
        %v4742 = vrot.slane %v4098, 7
        %v4743 = vrot.slane %v4103, 7
        %v4744 = vsel %vm611, %v4742, %v4743
        %v4745 = vrot.slane %v4108, 7
        %v4746 = vrot.slane %v4113, 7
        %v4747 = vsel %vm611, %v4745, %v4746
        %v4748 = vrot.slane %v4118, 7
        %v4749 = vrot.slane %v4123, 7
        %v4750 = vsel %vm611, %v4748, %v4749
        %v4751 = vrot.slane %v4128, 7
        %v4752 = vrot.slane %v4133, 7
        %v4753 = vsel %vm611, %v4751, %v4752
        %v4754 = vrot.slane %v4138, 7
        %v4755 = vrot.slane %v4143, 7
        %v4756 = vsel %vm611, %v4754, %v4755
        %v4757 = vrot.slane %v4148, 7
        %v4758 = vrot.slane %v4153, 7
        %v4759 = vsel %vm611, %v4757, %v4758
        %v4760 = vrot.slane %v4158, 7
        %v4761 = vrot.slane %v4163, 7
        %v4762 = vsel %vm611, %v4760, %v4761
        %v4763 = vrot.slane %v4168, 7
        %v4764 = vrot.slane %v4173, 7
        %v4765 = vsel %vm611, %v4763, %v4764
        %v4766 = vrot.slane %v4178, 7
        %v4767 = vrot.slane %v4183, 7
        %v4768 = vsel %vm611, %v4766, %v4767
        %v4769 = vrot.slane %v4188, 7
        %v4770 = vrot.slane %v4193, 7
        %v4771 = vsel %vm611, %v4769, %v4770
        %v4772 = vrot.slane %v4198, 7
        %v4773 = vrot.slane %v4203, 7
        %v4774 = vsel %vm611, %v4772, %v4773
        %v4775 = vrot.slane %v4208, 7
        %v4776 = vrot.slane %v4213, 7
        %v4777 = vsel %vm611, %v4775, %v4776
        %v4778 = vrot.slane %v4218, 7
        %v4779 = vrot.slane %v4223, 7
        %v4780 = vsel %vm611, %v4778, %v4779
        %v4781 = vrot.slane %v4228, 7
        %v4782 = vrot.slane %v4233, 7
        %v4783 = vsel %vm611, %v4781, %v4782
        %v4784 = vrot.slane %v4238, 7
        %v4785 = vrot.slane %v4243, 7
        %v4786 = vsel %vm611, %v4784, %v4785
        %v4787 = vrot.slane %v4248, 7
        %v4788 = vrot.slane %v4253, 7
        %v4789 = vsel %vm611, %v4787, %v4788
        %v4822 = vsel %vm611, 0.0, %v4742
        %v4823 = vsel %vm611, 0.0, %v4745
        %v4824 = vsel %vm611, 0.0, %v4748
        %v4825 = vsel %vm611, 0.0, %v4751
        %v4826 = vsel %vm611, 0.0, %v4754
        %v4827 = vsel %vm611, 0.0, %v4757
        %v4828 = vsel %vm611, 0.0, %v4760
        %v4829 = vsel %vm611, 0.0, %v4763
        %v4830 = vsel %vm611, 0.0, %v4766
        %v4831 = vsel %vm611, 0.0, %v4769
        %v4832 = vsel %vm611, 0.0, %v4772
        %v4833 = vsel %vm611, 0.0, %v4775
        %v4834 = vsel %vm611, 0.0, %v4778
        %v4835 = vsel %vm611, 0.0, %v4781
        %v4836 = vsel %vm611, 0.0, %v4784
        %v4837 = vsel %vm611, 0.0, %v4787
        %v4838 = vadd.f32 %v4325, %v4822
        %v4839 = vadd.f32 %v4330, %v4744
        %v4840 = vadd.f32 %v4335, %v4823
        %v4841 = vadd.f32 %v4340, %v4747
        %v4842 = vadd.f32 %v4345, %v4824
        %v4843 = vadd.f32 %v4350, %v4750
        %v4844 = vadd.f32 %v4355, %v4825
        %v4845 = vadd.f32 %v4360, %v4753
        %v4846 = vadd.f32 %v4365, %v4826
        %v4847 = vadd.f32 %v4370, %v4756
        %v4848 = vadd.f32 %v4375, %v4827
        %v4849 = vadd.f32 %v4380, %v4759
        %v4850 = vadd.f32 %v4385, %v4828
        %v4851 = vadd.f32 %v4390, %v4762
        %v4852 = vadd.f32 %v4395, %v4829
        %v4853 = vadd.f32 %v4400, %v4765
        %v4854 = vadd.f32 %v4405, %v4830
        %v4855 = vadd.f32 %v4410, %v4768
        %v4856 = vadd.f32 %v4415, %v4831
        %v4857 = vadd.f32 %v4420, %v4771
        %v4858 = vadd.f32 %v4425, %v4832
        %v4859 = vadd.f32 %v4430, %v4774
        %v4860 = vadd.f32 %v4435, %v4833
        %v4861 = vadd.f32 %v4440, %v4777
        %v4862 = vadd.f32 %v4445, %v4834
        %v4863 = vadd.f32 %v4450, %v4780
        %v4864 = vadd.f32 %v4455, %v4835
        %v4865 = vadd.f32 %v4460, %v4783
        %v4866 = vadd.f32 %v4465, %v4836
        %v4867 = vadd.f32 %v4470, %v4786
        %v4868 = vadd.f32 %v4475, %v4837
        %v4869 = vadd.f32 %v4480, %v4789
        %v4902 = vrot.slane %v4552, 1
        %v4903 = vrot.slane %v4557, 1
        %v4904 = vsel %vm740, %v4902, %v4903
        %v4905 = vrot.slane %v4562, 1
        %v4906 = vrot.slane %v4567, 1
        %v4907 = vsel %vm740, %v4905, %v4906
        %v4908 = vrot.slane %v4572, 1
        %v4909 = vrot.slane %v4577, 1
        %v4910 = vsel %vm740, %v4908, %v4909
        %v4911 = vrot.slane %v4582, 1
        %v4912 = vrot.slane %v4587, 1
        %v4913 = vsel %vm740, %v4911, %v4912
        %v4914 = vrot.slane %v4592, 1
        %v4915 = vrot.slane %v4597, 1
        %v4916 = vsel %vm740, %v4914, %v4915
        %v4917 = vrot.slane %v4602, 1
        %v4918 = vrot.slane %v4607, 1
        %v4919 = vsel %vm740, %v4917, %v4918
        %v4920 = vrot.slane %v4612, 1
        %v4921 = vrot.slane %v4617, 1
        %v4922 = vsel %vm740, %v4920, %v4921
        %v4923 = vrot.slane %v4622, 1
        %v4924 = vrot.slane %v4627, 1
        %v4925 = vsel %vm740, %v4923, %v4924
        %v4926 = vrot.slane %v4632, 1
        %v4927 = vrot.slane %v4637, 1
        %v4928 = vsel %vm740, %v4926, %v4927
        %v4929 = vrot.slane %v4642, 1
        %v4930 = vrot.slane %v4647, 1
        %v4931 = vsel %vm740, %v4929, %v4930
        %v4932 = vrot.slane %v4652, 1
        %v4933 = vrot.slane %v4657, 1
        %v4934 = vsel %vm740, %v4932, %v4933
        %v4935 = vrot.slane %v4662, 1
        %v4936 = vrot.slane %v4667, 1
        %v4937 = vsel %vm740, %v4935, %v4936
        %v4938 = vrot.slane %v4672, 1
        %v4939 = vrot.slane %v4677, 1
        %v4940 = vsel %vm740, %v4938, %v4939
        %v4941 = vrot.slane %v4682, 1
        %v4942 = vrot.slane %v4687, 1
        %v4943 = vsel %vm740, %v4941, %v4942
        %v4944 = vrot.slane %v4692, 1
        %v4945 = vrot.slane %v4697, 1
        %v4946 = vsel %vm740, %v4944, %v4945
        %v4947 = vrot.slane %v4702, 1
        %v4948 = vrot.slane %v4707, 1
        %v4949 = vsel %vm740, %v4947, %v4948
        %v4982 = vsel %vm740, %v4903, 0.0
        %v4983 = vsel %vm740, %v4906, 0.0
        %v4984 = vsel %vm740, %v4909, 0.0
        %v4985 = vsel %vm740, %v4912, 0.0
        %v4986 = vsel %vm740, %v4915, 0.0
        %v4987 = vsel %vm740, %v4918, 0.0
        %v4988 = vsel %vm740, %v4921, 0.0
        %v4989 = vsel %vm740, %v4924, 0.0
        %v4990 = vsel %vm740, %v4927, 0.0
        %v4991 = vsel %vm740, %v4930, 0.0
        %v4992 = vsel %vm740, %v4933, 0.0
        %v4993 = vsel %vm740, %v4936, 0.0
        %v4994 = vsel %vm740, %v4939, 0.0
        %v4995 = vsel %vm740, %v4942, 0.0
        %v4996 = vsel %vm740, %v4945, 0.0
        %v4997 = vsel %vm740, %v4948, 0.0
        %v4998 = vadd.f32 %v4838, %v4904
        %v4999 = vadd.f32 %v4839, %v4982
        %v5000 = vadd.f32 %v4840, %v4907
        %v5001 = vadd.f32 %v4841, %v4983
        %v5002 = vadd.f32 %v4842, %v4910
        %v5003 = vadd.f32 %v4843, %v4984
        %v5004 = vadd.f32 %v4844, %v4913
        %v5005 = vadd.f32 %v4845, %v4985
        %v5006 = vadd.f32 %v4846, %v4916
        %v5007 = vadd.f32 %v4847, %v4986
        %v5008 = vadd.f32 %v4848, %v4919
        %v5009 = vadd.f32 %v4849, %v4987
        %v5010 = vadd.f32 %v4850, %v4922
        %v5011 = vadd.f32 %v4851, %v4988
        %v5012 = vadd.f32 %v4852, %v4925
        %v5013 = vadd.f32 %v4853, %v4989
        %v5014 = vadd.f32 %v4854, %v4928
        %v5015 = vadd.f32 %v4855, %v4990
        %v5016 = vadd.f32 %v4856, %v4931
        %v5017 = vadd.f32 %v4857, %v4991
        %v5018 = vadd.f32 %v4858, %v4934
        %v5019 = vadd.f32 %v4859, %v4992
        %v5020 = vadd.f32 %v4860, %v4937
        %v5021 = vadd.f32 %v4861, %v4993
        %v5022 = vadd.f32 %v4862, %v4940
        %v5023 = vadd.f32 %v4863, %v4994
        %v5024 = vadd.f32 %v4864, %v4943
        %v5025 = vadd.f32 %v4865, %v4995
        %v5026 = vadd.f32 %v4866, %v4946
        %v5027 = vadd.f32 %v4867, %v4996
        %v5028 = vadd.f32 %v4868, %v4949
        %v5029 = vadd.f32 %v4869, %v4997
        %v5030 = vld [vmem:[%s10] sm:$0x1]
        %v5031 = vlaneseq
        %v5032 = vshrl.u32 %v5031, 7
        %v5033 = vsub.s32 0, %v5032
        %v5034 = vrot.slane %v5030, %v5033
        %v5035 = vmul.f32 %v4998, %v5034
        %v5036 = vmul.f32 %v4999, %v5034
        %v5037 = vmul.f32 %v5000, %v5034
        %v5038 = vmul.f32 %v5001, %v5034
        %v5039 = vmul.f32 %v5002, %v5034
        %v5040 = vmul.f32 %v5003, %v5034
        %v5041 = vmul.f32 %v5004, %v5034
        %v5042 = vmul.f32 %v5005, %v5034
        %v5043 = vmul.f32 %v5006, %v5034
        %v5044 = vmul.f32 %v5007, %v5034
        %v5045 = vmul.f32 %v5008, %v5034
        %v5046 = vmul.f32 %v5009, %v5034
        %v5047 = vmul.f32 %v5010, %v5034
        %v5048 = vmul.f32 %v5011, %v5034
        %v5049 = vmul.f32 %v5012, %v5034
        %v5050 = vmul.f32 %v5013, %v5034
        %v5051 = vmul.f32 %v5014, %v5034
        %v5052 = vmul.f32 %v5015, %v5034
        %v5053 = vmul.f32 %v5016, %v5034
        %v5054 = vmul.f32 %v5017, %v5034
        %v5055 = vmul.f32 %v5018, %v5034
        %v5056 = vmul.f32 %v5019, %v5034
        %v5057 = vmul.f32 %v5020, %v5034
        %v5058 = vmul.f32 %v5021, %v5034
        %v5059 = vmul.f32 %v5022, %v5034
        %v5060 = vmul.f32 %v5023, %v5034
        %v5061 = vmul.f32 %v5024, %v5034
        %v5062 = vmul.f32 %v5025, %v5034
        %v5063 = vmul.f32 %v5026, %v5034
        %v5064 = vmul.f32 %v5027, %v5034
        %v5065 = vmul.f32 %v5028, %v5034
        %v5066 = vmul.f32 %v5029, %v5034
        %v5067 = vld [vmem:[%s10 + $0x1] sm:$0x1]
        %v5068 = vlaneseq
        %v5069 = vshrl.u32 %v5068, 7
        %v5070 = vsub.s32 0, %v5069
        %v5071 = vrot.slane %v5067, %v5070
        %v5072 = vadd.f32 %v5035, %v5071
        %v5073 = vadd.f32 %v5036, %v5071
        %v5074 = vadd.f32 %v5037, %v5071
        %v5075 = vadd.f32 %v5038, %v5071
        %v5076 = vadd.f32 %v5039, %v5071
        %v5077 = vadd.f32 %v5040, %v5071
        %v5078 = vadd.f32 %v5041, %v5071
        %v5079 = vadd.f32 %v5042, %v5071
        %v5080 = vadd.f32 %v5043, %v5071
        %v5081 = vadd.f32 %v5044, %v5071
        %v5082 = vadd.f32 %v5045, %v5071
        %v5083 = vadd.f32 %v5046, %v5071
        %v5084 = vadd.f32 %v5047, %v5071
        %v5085 = vadd.f32 %v5048, %v5071
        %v5086 = vadd.f32 %v5049, %v5071
        %v5087 = vadd.f32 %v5050, %v5071
        %v5088 = vadd.f32 %v5051, %v5071
        %v5089 = vadd.f32 %v5052, %v5071
        %v5090 = vadd.f32 %v5053, %v5071
        %v5091 = vadd.f32 %v5054, %v5071
        %v5092 = vadd.f32 %v5055, %v5071
        %v5093 = vadd.f32 %v5056, %v5071
        %v5094 = vadd.f32 %v5057, %v5071
        %v5095 = vadd.f32 %v5058, %v5071
        %v5096 = vadd.f32 %v5059, %v5071
        %v5097 = vadd.f32 %v5060, %v5071
        %v5098 = vadd.f32 %v5061, %v5071
        %v5099 = vadd.f32 %v5062, %v5071
        %v5100 = vadd.f32 %v5063, %v5071
        %v5101 = vadd.f32 %v5064, %v5071
        %v5102 = vadd.f32 %v5065, %v5071
        %v5103 = vadd.f32 %v5066, %v5071
        %v5104 = vmax.f32 %v5072, 0.0
        %v5105 = vmax.f32 %v5073, 0.0
        %v5106 = vmax.f32 %v5074, 0.0
        %v5107 = vmax.f32 %v5075, 0.0
        %v5108 = vmax.f32 %v5076, 0.0
        %v5109 = vmax.f32 %v5077, 0.0
        %v5110 = vmax.f32 %v5078, 0.0
        %v5111 = vmax.f32 %v5079, 0.0
        %v5112 = vmax.f32 %v5080, 0.0
        %v5113 = vmax.f32 %v5081, 0.0
        %v5114 = vmax.f32 %v5082, 0.0
        %v5115 = vmax.f32 %v5083, 0.0
        %v5116 = vmax.f32 %v5084, 0.0
        %v5117 = vmax.f32 %v5085, 0.0
        %v5118 = vmax.f32 %v5086, 0.0
        %v5119 = vmax.f32 %v5087, 0.0
        %v5120 = vmax.f32 %v5088, 0.0
        %v5121 = vmax.f32 %v5089, 0.0
        %v5122 = vmax.f32 %v5090, 0.0
        %v5123 = vmax.f32 %v5091, 0.0
        %v5124 = vmax.f32 %v5092, 0.0
        %v5125 = vmax.f32 %v5093, 0.0
        %v5126 = vmax.f32 %v5094, 0.0
        %v5127 = vmax.f32 %v5095, 0.0
        %v5128 = vmax.f32 %v5096, 0.0
        %v5129 = vmax.f32 %v5097, 0.0
        %v5130 = vmax.f32 %v5098, 0.0
        %v5131 = vmax.f32 %v5099, 0.0
        %v5132 = vmax.f32 %v5100, 0.0
        %v5133 = vmax.f32 %v5101, 0.0
        %v5134 = vmax.f32 %v5102, 0.0
        %v5135 = vmax.f32 %v5103, 0.0
        %v5136 = vld [vmem:[%s11] sm:$0xff]
        %v5138 = vsel %vm966, %v5104, 0
        %v5141 = vsel %vm966, %v5105, 0
        %v5144 = vsel %vm966, %v5106, 0
        %v5147 = vsel %vm966, %v5107, 0
        %v5150 = vsel %vm966, %v5108, 0
        %v5153 = vsel %vm966, %v5109, 0
        %v5156 = vsel %vm966, %v5110, 0
        %v5159 = vsel %vm966, %v5111, 0
        %v5162 = vsel %vm966, %v5112, 0
        %v5165 = vsel %vm966, %v5113, 0
        %v5168 = vsel %vm966, %v5114, 0
        %v5171 = vsel %vm966, %v5115, 0
        %v5174 = vsel %vm966, %v5116, 0
        %v5177 = vsel %vm966, %v5117, 0
        %v5180 = vsel %vm966, %v5118, 0
        %v5183 = vsel %vm966, %v5119, 0
        %v5186 = vsel %vm966, %v5120, 0
        %v5189 = vsel %vm966, %v5121, 0
        %v5192 = vsel %vm966, %v5122, 0
        %v5195 = vsel %vm966, %v5123, 0
        %v5198 = vsel %vm966, %v5124, 0
        %v5201 = vsel %vm966, %v5125, 0
        %v5204 = vsel %vm966, %v5126, 0
        %v5207 = vsel %vm966, %v5127, 0
        %v5210 = vsel %vm966, %v5128, 0
        %v5213 = vsel %vm966, %v5129, 0
        %v5216 = vsel %vm966, %v5130, 0
        %v5219 = vsel %vm966, %v5131, 0
        %v5222 = vsel %vm966, %v5132, 0
        %v5225 = vsel %vm966, %v5133, 0
        %v5228 = vsel %vm966, %v5134, 0
        %v5231 = vsel %vm966, %v5135, 0
        %5233 = vmatprep.subr.mxu0 0.0
        %5234 = vmatpush1.msra.mxu0 0.0
        %5235 = vmatprep.subr.mxu0 0.0
        %5236 = vmatpush1.msra.mxu0 0.0
        %5237 = vmatprep.subr.mxu0 0.0
        %5238 = vmatpush1.msra.mxu0 0.0
        %5239 = vmatprep.subr.mxu0 0.0
        %5240 = vmatpush1.msra.mxu0 0.0
        %5241 = vmatprep.subr.mxu0 0.0
        %5242 = vmatpush1.msra.mxu0 0.0
        %5243 = vmatprep.subr.mxu0 0.0
        %5244 = vmatpush1.msra.mxu0 0.0
        %5245 = vmatprep.subr.mxu0 0.0
        %5246 = vmatpush1.msra.mxu0 0.0
        %5247 = vmatprep.subr.mxu0 0.0
        %5248 = vmatpush1.msra.mxu0 0.0
        %5249 = vmatprep.subr.mxu0 0.0
        %5250 = vmatpush1.msra.mxu0 0.0
        %5251 = vmatprep.subr.mxu0 0.0
        %5252 = vmatpush1.msra.mxu0 0.0
        %5253 = vmatprep.subr.mxu0 0.0
        %5254 = vmatpush1.msra.mxu0 0.0
        %5255 = vmatprep.subr.mxu0 0.0
        %5256 = vmatpush1.msra.mxu0 0.0
        %5257 = vmatprep.subr.mxu0 0.0
        %5258 = vmatpush1.msra.mxu0 0.0
        %5259 = vmatprep.subr.mxu0 0.0
        %5260 = vmatpush1.msra.mxu0 0.0
        %5261 = vmatprep.subr.mxu0 0.0
        %5262 = vmatpush1.msra.mxu0 0.0
        %5263 = vmatprep.subr.mxu0 0.0
        %5264 = vmatpush1.msra.mxu0 %v5136
        %5265 = vmatprep.subr.mxu0 0.0
        %5266 = vmatpush2.msra.mxu0 0.0
        %5267 = vmatprep.subr.mxu0 0.0
        %5268 = vmatpush2.msra.mxu0 0.0
        %5269 = vmatprep.subr.mxu0 0.0
        %5270 = vmatpush2.msra.mxu0 0.0
        %5271 = vmatprep.subr.mxu0 0.0
        %5272 = vmatpush2.msra.mxu0 0.0
        %5273 = vmatprep.subr.mxu0 0.0
        %5274 = vmatpush2.msra.mxu0 0.0
        %5275 = vmatprep.subr.mxu0 0.0
        %5276 = vmatpush2.msra.mxu0 0.0
        %5277 = vmatprep.subr.mxu0 0.0
        %5278 = vmatpush2.msra.mxu0 0.0
        %5279 = vmatprep.subr.mxu0 0.0
        %5280 = vmatpush2.msra.mxu0 0.0
        %5281 = vmatprep.subr.mxu0 0.0
        %5282 = vmatpush2.msra.mxu0 0.0
        %5283 = vmatprep.subr.mxu0 0.0
        %5284 = vmatpush2.msra.mxu0 0.0
        %5285 = vmatprep.subr.mxu0 0.0
        %5286 = vmatpush2.msra.mxu0 0.0
        %5287 = vmatprep.subr.mxu0 0.0
        %5288 = vmatpush2.msra.mxu0 0.0
        %5289 = vmatprep.subr.mxu0 0.0
        %5290 = vmatpush2.msra.mxu0 0.0
        %5291 = vmatprep.subr.mxu0 0.0
        %5292 = vmatpush2.msra.mxu0 0.0
        %5293 = vmatprep.subr.mxu0 0.0
        %5294 = vmatpush2.msra.mxu0 0.0
        %5295 = vmatprep.subr.mxu0 0.0
        %5296 = vmatpush2.msra.mxu0 0.0
        %5297 = vmatprep.mubr.f32.mxu0 0.0
        %5298 = vmatmul.mubr.f32.gmra.mxu0 %v5138
        %v5299 = vpop.f32.mrf.mxu0
        %v5300 = vadd.f32 0.0, %v5299
        %v5301 = vpop.f32.mrf.mxu0
        %5302 = vmatprep.mubr.f32.mxu0 0.0
        %5303 = vmatmul.mubr.f32.gmra.mxu0 %v5141
        %v5304 = vpop.f32.mrf.mxu0
        %v5305 = vadd.f32 0.0, %v5304
        %v5306 = vpop.f32.mrf.mxu0
        %5307 = vmatprep.mubr.f32.mxu0 0.0
        %5308 = vmatmul.mubr.f32.gmra.mxu0 %v5144
        %v5309 = vpop.f32.mrf.mxu0
        %v5310 = vadd.f32 0.0, %v5309
        %v5311 = vpop.f32.mrf.mxu0
        %5312 = vmatprep.mubr.f32.mxu0 0.0
        %5313 = vmatmul.mubr.f32.gmra.mxu0 %v5147
        %v5314 = vpop.f32.mrf.mxu0
        %v5315 = vadd.f32 0.0, %v5314
        %v5316 = vpop.f32.mrf.mxu0
        %5317 = vmatprep.mubr.f32.mxu0 0.0
        %5318 = vmatmul.mubr.f32.gmra.mxu0 %v5150
        %v5319 = vpop.f32.mrf.mxu0
        %v5320 = vadd.f32 0.0, %v5319
        %v5321 = vpop.f32.mrf.mxu0
        %5322 = vmatprep.mubr.f32.mxu0 0.0
        %5323 = vmatmul.mubr.f32.gmra.mxu0 %v5153
        %v5324 = vpop.f32.mrf.mxu0
        %v5325 = vadd.f32 0.0, %v5324
        %v5326 = vpop.f32.mrf.mxu0
        %5327 = vmatprep.mubr.f32.mxu0 0.0
        %5328 = vmatmul.mubr.f32.gmra.mxu0 %v5156
        %v5329 = vpop.f32.mrf.mxu0
        %v5330 = vadd.f32 0.0, %v5329
        %v5331 = vpop.f32.mrf.mxu0
        %5332 = vmatprep.mubr.f32.mxu0 0.0
        %5333 = vmatmul.mubr.f32.gmra.mxu0 %v5159
        %v5334 = vpop.f32.mrf.mxu0
        %v5335 = vadd.f32 0.0, %v5334
        %v5336 = vpop.f32.mrf.mxu0
        %5337 = vmatprep.mubr.f32.mxu0 0.0
        %5338 = vmatmul.mubr.f32.gmra.mxu0 %v5162
        %v5339 = vpop.f32.mrf.mxu0
        %v5340 = vadd.f32 0.0, %v5339
        %v5341 = vpop.f32.mrf.mxu0
        %5342 = vmatprep.mubr.f32.mxu0 0.0
        %5343 = vmatmul.mubr.f32.gmra.mxu0 %v5165
        %v5344 = vpop.f32.mrf.mxu0
        %v5345 = vadd.f32 0.0, %v5344
        %v5346 = vpop.f32.mrf.mxu0
        %5347 = vmatprep.mubr.f32.mxu0 0.0
        %5348 = vmatmul.mubr.f32.gmra.mxu0 %v5168
        %v5349 = vpop.f32.mrf.mxu0
        %v5350 = vadd.f32 0.0, %v5349
        %v5351 = vpop.f32.mrf.mxu0
        %5352 = vmatprep.mubr.f32.mxu0 0.0
        %5353 = vmatmul.mubr.f32.gmra.mxu0 %v5171
        %v5354 = vpop.f32.mrf.mxu0
        %v5355 = vadd.f32 0.0, %v5354
        %v5356 = vpop.f32.mrf.mxu0
        %5357 = vmatprep.mubr.f32.mxu0 0.0
        %5358 = vmatmul.mubr.f32.gmra.mxu0 %v5174
        %v5359 = vpop.f32.mrf.mxu0
        %v5360 = vadd.f32 0.0, %v5359
        %v5361 = vpop.f32.mrf.mxu0
        %5362 = vmatprep.mubr.f32.mxu0 0.0
        %5363 = vmatmul.mubr.f32.gmra.mxu0 %v5177
        %v5364 = vpop.f32.mrf.mxu0
        %v5365 = vadd.f32 0.0, %v5364
        %v5366 = vpop.f32.mrf.mxu0
        %5367 = vmatprep.mubr.f32.mxu0 0.0
        %5368 = vmatmul.mubr.f32.gmra.mxu0 %v5180
        %v5369 = vpop.f32.mrf.mxu0
        %v5370 = vadd.f32 0.0, %v5369
        %v5371 = vpop.f32.mrf.mxu0
        %5372 = vmatprep.mubr.f32.mxu0 0.0
        %5373 = vmatmul.mubr.f32.gmra.mxu0 %v5183
        %v5374 = vpop.f32.mrf.mxu0
        %v5375 = vadd.f32 0.0, %v5374
        %v5376 = vpop.f32.mrf.mxu0
        %5377 = vmatprep.mubr.f32.mxu0 0.0
        %5378 = vmatmul.mubr.f32.gmra.mxu0 %v5186
        %v5379 = vpop.f32.mrf.mxu0
        %v5380 = vadd.f32 0.0, %v5379
        %v5381 = vpop.f32.mrf.mxu0
        %5382 = vmatprep.mubr.f32.mxu0 0.0
        %5383 = vmatmul.mubr.f32.gmra.mxu0 %v5189
        %v5384 = vpop.f32.mrf.mxu0
        %v5385 = vadd.f32 0.0, %v5384
        %v5386 = vpop.f32.mrf.mxu0
        %5387 = vmatprep.mubr.f32.mxu0 0.0
        %5388 = vmatmul.mubr.f32.gmra.mxu0 %v5192
        %v5389 = vpop.f32.mrf.mxu0
        %v5390 = vadd.f32 0.0, %v5389
        %v5391 = vpop.f32.mrf.mxu0
        %5392 = vmatprep.mubr.f32.mxu0 0.0
        %5393 = vmatmul.mubr.f32.gmra.mxu0 %v5195
        %v5394 = vpop.f32.mrf.mxu0
        %v5395 = vadd.f32 0.0, %v5394
        %v5396 = vpop.f32.mrf.mxu0
        %5397 = vmatprep.mubr.f32.mxu0 0.0
        %5398 = vmatmul.mubr.f32.gmra.mxu0 %v5198
        %v5399 = vpop.f32.mrf.mxu0
        %v5400 = vadd.f32 0.0, %v5399
        %v5401 = vpop.f32.mrf.mxu0
        %5402 = vmatprep.mubr.f32.mxu0 0.0
        %5403 = vmatmul.mubr.f32.gmra.mxu0 %v5201
        %v5404 = vpop.f32.mrf.mxu0
        %v5405 = vadd.f32 0.0, %v5404
        %v5406 = vpop.f32.mrf.mxu0
        %5407 = vmatprep.mubr.f32.mxu0 0.0
        %5408 = vmatmul.mubr.f32.gmra.mxu0 %v5204
        %v5409 = vpop.f32.mrf.mxu0
        %v5410 = vadd.f32 0.0, %v5409
        %v5411 = vpop.f32.mrf.mxu0
        %5412 = vmatprep.mubr.f32.mxu0 0.0
        %5413 = vmatmul.mubr.f32.gmra.mxu0 %v5207
        %v5414 = vpop.f32.mrf.mxu0
        %v5415 = vadd.f32 0.0, %v5414
        %v5416 = vpop.f32.mrf.mxu0
        %5417 = vmatprep.mubr.f32.mxu0 0.0
        %5418 = vmatmul.mubr.f32.gmra.mxu0 %v5210
        %v5419 = vpop.f32.mrf.mxu0
        %v5420 = vadd.f32 0.0, %v5419
        %v5421 = vpop.f32.mrf.mxu0
        %5422 = vmatprep.mubr.f32.mxu0 0.0
        %5423 = vmatmul.mubr.f32.gmra.mxu0 %v5213
        %v5424 = vpop.f32.mrf.mxu0
        %v5425 = vadd.f32 0.0, %v5424
        %v5426 = vpop.f32.mrf.mxu0
        %5427 = vmatprep.mubr.f32.mxu0 0.0
        %5428 = vmatmul.mubr.f32.gmra.mxu0 %v5216
        %v5429 = vpop.f32.mrf.mxu0
        %v5430 = vadd.f32 0.0, %v5429
        %v5431 = vpop.f32.mrf.mxu0
        %5432 = vmatprep.mubr.f32.mxu0 0.0
        %5433 = vmatmul.mubr.f32.gmra.mxu0 %v5219
        %v5434 = vpop.f32.mrf.mxu0
        %v5435 = vadd.f32 0.0, %v5434
        %v5436 = vpop.f32.mrf.mxu0
        %5437 = vmatprep.mubr.f32.mxu0 0.0
        %5438 = vmatmul.mubr.f32.gmra.mxu0 %v5222
        %v5439 = vpop.f32.mrf.mxu0
        %v5440 = vadd.f32 0.0, %v5439
        %v5441 = vpop.f32.mrf.mxu0
        %5442 = vmatprep.mubr.f32.mxu0 0.0
        %5443 = vmatmul.mubr.f32.gmra.mxu0 %v5225
        %v5444 = vpop.f32.mrf.mxu0
        %v5445 = vadd.f32 0.0, %v5444
        %v5446 = vpop.f32.mrf.mxu0
        %5447 = vmatprep.mubr.f32.mxu0 0.0
        %5448 = vmatmul.mubr.f32.gmra.mxu0 %v5228
        %v5449 = vpop.f32.mrf.mxu0
        %v5450 = vpop.f32.mrf.mxu0
        %5451 = vmatprep.mubr.f32.mxu0 0.0
        %5452 = vmatmul.mubr.f32.gmra.mxu0 %v5231
        %v5453 = vpop.f32.mrf.mxu0
        %v5454 = vpop.f32.mrf.mxu0
        %5455 = vdwg.mxu0
        %s5456 = scalar_lea.vmem %s11, 8
        %v5457 = vld [vmem:[%s5456] sm:$0xff]
        %5458 = vmatprep.subr.mxu0 0.0
        %5459 = vmatpush1.msra.mxu0 0.0
        %5460 = vmatprep.subr.mxu0 0.0
        %5461 = vmatpush1.msra.mxu0 0.0
        %5462 = vmatprep.subr.mxu0 0.0
        %5463 = vmatpush1.msra.mxu0 0.0
        %5464 = vmatprep.subr.mxu0 0.0
        %5465 = vmatpush1.msra.mxu0 0.0
        %5466 = vmatprep.subr.mxu0 0.0
        %5467 = vmatpush1.msra.mxu0 0.0
        %5468 = vmatprep.subr.mxu0 0.0
        %5469 = vmatpush1.msra.mxu0 0.0
        %5470 = vmatprep.subr.mxu0 0.0
        %5471 = vmatpush1.msra.mxu0 0.0
        %5472 = vmatprep.subr.mxu0 0.0
        %5473 = vmatpush1.msra.mxu0 0.0
        %5474 = vmatprep.subr.mxu0 0.0
        %5475 = vmatpush1.msra.mxu0 0.0
        %5476 = vmatprep.subr.mxu0 0.0
        %5477 = vmatpush1.msra.mxu0 0.0
        %5478 = vmatprep.subr.mxu0 0.0
        %5479 = vmatpush1.msra.mxu0 0.0
        %5480 = vmatprep.subr.mxu0 0.0
        %5481 = vmatpush1.msra.mxu0 0.0
        %5482 = vmatprep.subr.mxu0 0.0
        %5483 = vmatpush1.msra.mxu0 0.0
        %5484 = vmatprep.subr.mxu0 0.0
        %5485 = vmatpush1.msra.mxu0 0.0
        %5486 = vmatprep.subr.mxu0 0.0
        %5487 = vmatpush1.msra.mxu0 0.0
        %5488 = vmatprep.subr.mxu0 0.0
        %5489 = vmatpush1.msra.mxu0 %v5457
        %5490 = vmatprep.subr.mxu0 0.0
        %5491 = vmatpush2.msra.mxu0 0.0
        %5492 = vmatprep.subr.mxu0 0.0
        %5493 = vmatpush2.msra.mxu0 0.0
        %5494 = vmatprep.subr.mxu0 0.0
        %5495 = vmatpush2.msra.mxu0 0.0
        %5496 = vmatprep.subr.mxu0 0.0
        %5497 = vmatpush2.msra.mxu0 0.0
        %5498 = vmatprep.subr.mxu0 0.0
        %5499 = vmatpush2.msra.mxu0 0.0
        %5500 = vmatprep.subr.mxu0 0.0
        %5501 = vmatpush2.msra.mxu0 0.0
        %5502 = vmatprep.subr.mxu0 0.0
        %5503 = vmatpush2.msra.mxu0 0.0
        %5504 = vmatprep.subr.mxu0 0.0
        %5505 = vmatpush2.msra.mxu0 0.0
        %5506 = vmatprep.subr.mxu0 0.0
        %5507 = vmatpush2.msra.mxu0 0.0
        %5508 = vmatprep.subr.mxu0 0.0
        %5509 = vmatpush2.msra.mxu0 0.0
        %5510 = vmatprep.subr.mxu0 0.0
        %5511 = vmatpush2.msra.mxu0 0.0
        %5512 = vmatprep.subr.mxu0 0.0
        %5513 = vmatpush2.msra.mxu0 0.0
        %5514 = vmatprep.subr.mxu0 0.0
        %5515 = vmatpush2.msra.mxu0 0.0
        %5516 = vmatprep.subr.mxu0 0.0
        %5517 = vmatpush2.msra.mxu0 0.0
        %5518 = vmatprep.subr.mxu0 0.0
        %5519 = vmatpush2.msra.mxu0 0.0
        %5520 = vmatprep.subr.mxu0 0.0
        %5521 = vmatpush2.msra.mxu0 0.0
        %5522 = vmatprep.mubr.f32.mxu0 0.0
        %5523 = vmatmul.mubr.f32.gmra.mxu0 %v5138
        %v5524 = vpop.f32.mrf.mxu0
        %v5525 = vadd.f32 0.0, %v5524
        %v5526 = vpop.f32.mrf.mxu0
        %5527 = vmatprep.mubr.f32.mxu0 0.0
        %5528 = vmatmul.mubr.f32.gmra.mxu0 %v5141
        %v5529 = vpop.f32.mrf.mxu0
        %v5530 = vadd.f32 0.0, %v5529
        %v5531 = vpop.f32.mrf.mxu0
        %5532 = vmatprep.mubr.f32.mxu0 0.0
        %5533 = vmatmul.mubr.f32.gmra.mxu0 %v5144
        %v5534 = vpop.f32.mrf.mxu0
        %v5535 = vadd.f32 0.0, %v5534
        %v5536 = vpop.f32.mrf.mxu0
        %5537 = vmatprep.mubr.f32.mxu0 0.0
        %5538 = vmatmul.mubr.f32.gmra.mxu0 %v5147
        %v5539 = vpop.f32.mrf.mxu0
        %v5540 = vadd.f32 0.0, %v5539
        %v5541 = vpop.f32.mrf.mxu0
        %5542 = vmatprep.mubr.f32.mxu0 0.0
        %5543 = vmatmul.mubr.f32.gmra.mxu0 %v5150
        %v5544 = vpop.f32.mrf.mxu0
        %v5545 = vadd.f32 0.0, %v5544
        %v5546 = vpop.f32.mrf.mxu0
        %5547 = vmatprep.mubr.f32.mxu0 0.0
        %5548 = vmatmul.mubr.f32.gmra.mxu0 %v5153
        %v5549 = vpop.f32.mrf.mxu0
        %v5550 = vadd.f32 0.0, %v5549
        %v5551 = vpop.f32.mrf.mxu0
        %5552 = vmatprep.mubr.f32.mxu0 0.0
        %5553 = vmatmul.mubr.f32.gmra.mxu0 %v5156
        %v5554 = vpop.f32.mrf.mxu0
        %v5555 = vadd.f32 0.0, %v5554
        %v5556 = vpop.f32.mrf.mxu0
        %5557 = vmatprep.mubr.f32.mxu0 0.0
        %5558 = vmatmul.mubr.f32.gmra.mxu0 %v5159
        %v5559 = vpop.f32.mrf.mxu0
        %v5560 = vadd.f32 0.0, %v5559
        %v5561 = vpop.f32.mrf.mxu0
        %5562 = vmatprep.mubr.f32.mxu0 0.0
        %5563 = vmatmul.mubr.f32.gmra.mxu0 %v5162
        %v5564 = vpop.f32.mrf.mxu0
        %v5565 = vadd.f32 0.0, %v5564
        %v5566 = vpop.f32.mrf.mxu0
        %5567 = vmatprep.mubr.f32.mxu0 0.0
        %5568 = vmatmul.mubr.f32.gmra.mxu0 %v5165
        %v5569 = vpop.f32.mrf.mxu0
        %v5570 = vadd.f32 0.0, %v5569
        %v5571 = vpop.f32.mrf.mxu0
        %5572 = vmatprep.mubr.f32.mxu0 0.0
        %5573 = vmatmul.mubr.f32.gmra.mxu0 %v5168
        %v5574 = vpop.f32.mrf.mxu0
        %v5575 = vadd.f32 0.0, %v5574
        %v5576 = vpop.f32.mrf.mxu0
        %5577 = vmatprep.mubr.f32.mxu0 0.0
        %5578 = vmatmul.mubr.f32.gmra.mxu0 %v5171
        %v5579 = vpop.f32.mrf.mxu0
        %v5580 = vadd.f32 0.0, %v5579
        %v5581 = vpop.f32.mrf.mxu0
        %5582 = vmatprep.mubr.f32.mxu0 0.0
        %5583 = vmatmul.mubr.f32.gmra.mxu0 %v5174
        %v5584 = vpop.f32.mrf.mxu0
        %v5585 = vadd.f32 0.0, %v5584
        %v5586 = vpop.f32.mrf.mxu0
        %5587 = vmatprep.mubr.f32.mxu0 0.0
        %5588 = vmatmul.mubr.f32.gmra.mxu0 %v5177
        %v5589 = vpop.f32.mrf.mxu0
        %v5590 = vadd.f32 0.0, %v5589
        %v5591 = vpop.f32.mrf.mxu0
        %5592 = vmatprep.mubr.f32.mxu0 0.0
        %5593 = vmatmul.mubr.f32.gmra.mxu0 %v5180
        %v5594 = vpop.f32.mrf.mxu0
        %v5595 = vadd.f32 0.0, %v5594
        %v5596 = vpop.f32.mrf.mxu0
        %5597 = vmatprep.mubr.f32.mxu0 0.0
        %5598 = vmatmul.mubr.f32.gmra.mxu0 %v5183
        %v5599 = vpop.f32.mrf.mxu0
        %v5600 = vadd.f32 0.0, %v5599
        %v5601 = vpop.f32.mrf.mxu0
        %5602 = vmatprep.mubr.f32.mxu0 0.0
        %5603 = vmatmul.mubr.f32.gmra.mxu0 %v5186
        %v5604 = vpop.f32.mrf.mxu0
        %v5605 = vadd.f32 0.0, %v5604
        %v5606 = vpop.f32.mrf.mxu0
        %5607 = vmatprep.mubr.f32.mxu0 0.0
        %5608 = vmatmul.mubr.f32.gmra.mxu0 %v5189
        %v5609 = vpop.f32.mrf.mxu0
        %v5610 = vadd.f32 0.0, %v5609
        %v5611 = vpop.f32.mrf.mxu0
        %5612 = vmatprep.mubr.f32.mxu0 0.0
        %5613 = vmatmul.mubr.f32.gmra.mxu0 %v5192
        %v5614 = vpop.f32.mrf.mxu0
        %v5615 = vadd.f32 0.0, %v5614
        %v5616 = vpop.f32.mrf.mxu0
        %5617 = vmatprep.mubr.f32.mxu0 0.0
        %5618 = vmatmul.mubr.f32.gmra.mxu0 %v5195
        %v5619 = vpop.f32.mrf.mxu0
        %v5620 = vadd.f32 0.0, %v5619
        %v5621 = vpop.f32.mrf.mxu0
        %5622 = vmatprep.mubr.f32.mxu0 0.0
        %5623 = vmatmul.mubr.f32.gmra.mxu0 %v5198
        %v5624 = vpop.f32.mrf.mxu0
        %v5625 = vadd.f32 0.0, %v5624
        %v5626 = vpop.f32.mrf.mxu0
        %5627 = vmatprep.mubr.f32.mxu0 0.0
        %5628 = vmatmul.mubr.f32.gmra.mxu0 %v5201
        %v5629 = vpop.f32.mrf.mxu0
        %v5630 = vadd.f32 0.0, %v5629
        %v5631 = vpop.f32.mrf.mxu0
        %5632 = vmatprep.mubr.f32.mxu0 0.0
        %5633 = vmatmul.mubr.f32.gmra.mxu0 %v5204
        %v5634 = vpop.f32.mrf.mxu0
        %v5635 = vadd.f32 0.0, %v5634
        %v5636 = vpop.f32.mrf.mxu0
        %5637 = vmatprep.mubr.f32.mxu0 0.0
        %5638 = vmatmul.mubr.f32.gmra.mxu0 %v5207
        %v5639 = vpop.f32.mrf.mxu0
        %v5640 = vadd.f32 0.0, %v5639
        %v5641 = vpop.f32.mrf.mxu0
        %5642 = vmatprep.mubr.f32.mxu0 0.0
        %5643 = vmatmul.mubr.f32.gmra.mxu0 %v5210
        %v5644 = vpop.f32.mrf.mxu0
        %v5645 = vadd.f32 0.0, %v5644
        %v5646 = vpop.f32.mrf.mxu0
        %5647 = vmatprep.mubr.f32.mxu0 0.0
        %5648 = vmatmul.mubr.f32.gmra.mxu0 %v5213
        %v5649 = vpop.f32.mrf.mxu0
        %v5650 = vadd.f32 0.0, %v5649
        %v5651 = vpop.f32.mrf.mxu0
        %5652 = vmatprep.mubr.f32.mxu0 0.0
        %5653 = vmatmul.mubr.f32.gmra.mxu0 %v5216
        %v5654 = vpop.f32.mrf.mxu0
        %v5655 = vadd.f32 0.0, %v5654
        %v5656 = vpop.f32.mrf.mxu0
        %5657 = vmatprep.mubr.f32.mxu0 0.0
        %5658 = vmatmul.mubr.f32.gmra.mxu0 %v5219
        %v5659 = vpop.f32.mrf.mxu0
        %v5660 = vadd.f32 0.0, %v5659
        %v5661 = vpop.f32.mrf.mxu0
        %5662 = vmatprep.mubr.f32.mxu0 0.0
        %5663 = vmatmul.mubr.f32.gmra.mxu0 %v5222
        %v5664 = vpop.f32.mrf.mxu0
        %v5665 = vadd.f32 0.0, %v5664
        %v5666 = vpop.f32.mrf.mxu0
        %5667 = vmatprep.mubr.f32.mxu0 0.0
        %5668 = vmatmul.mubr.f32.gmra.mxu0 %v5225
        %v5669 = vpop.f32.mrf.mxu0
        %v5670 = vadd.f32 0.0, %v5669
        %v5671 = vpop.f32.mrf.mxu0
        %5672 = vmatprep.mubr.f32.mxu0 0.0
        %5673 = vmatmul.mubr.f32.gmra.mxu0 %v5228
        %v5674 = vpop.f32.mrf.mxu0
        %v5675 = vadd.f32 0.0, %v5674
        %v5676 = vpop.f32.mrf.mxu0
        %5677 = vmatprep.mubr.f32.mxu0 0.0
        %5678 = vmatmul.mubr.f32.gmra.mxu0 %v5231
        %v5679 = vpop.f32.mrf.mxu0
        %v5680 = vadd.f32 0.0, %v5679
        %v5681 = vpop.f32.mrf.mxu0
        %5682 = vdwg.mxu0
        %s5683 = scalar_lea.vmem %s11, 16
        %v5684 = vld [vmem:[%s5683] sm:$0xff]
        %5685 = vmatprep.subr.mxu0 0.0
        %5686 = vmatpush1.msra.mxu0 0.0
        %5687 = vmatprep.subr.mxu0 0.0
        %5688 = vmatpush1.msra.mxu0 0.0
        %5689 = vmatprep.subr.mxu0 0.0
        %5690 = vmatpush1.msra.mxu0 0.0
        %5691 = vmatprep.subr.mxu0 0.0
        %5692 = vmatpush1.msra.mxu0 0.0
        %5693 = vmatprep.subr.mxu0 0.0
        %5694 = vmatpush1.msra.mxu0 0.0
        %5695 = vmatprep.subr.mxu0 0.0
        %5696 = vmatpush1.msra.mxu0 0.0
        %5697 = vmatprep.subr.mxu0 0.0
        %5698 = vmatpush1.msra.mxu0 0.0
        %5699 = vmatprep.subr.mxu0 0.0
        %5700 = vmatpush1.msra.mxu0 0.0
        %5701 = vmatprep.subr.mxu0 0.0
        %5702 = vmatpush1.msra.mxu0 0.0
        %5703 = vmatprep.subr.mxu0 0.0
        %5704 = vmatpush1.msra.mxu0 0.0
        %5705 = vmatprep.subr.mxu0 0.0
        %5706 = vmatpush1.msra.mxu0 0.0
        %5707 = vmatprep.subr.mxu0 0.0
        %5708 = vmatpush1.msra.mxu0 0.0
        %5709 = vmatprep.subr.mxu0 0.0
        %5710 = vmatpush1.msra.mxu0 0.0
        %5711 = vmatprep.subr.mxu0 0.0
        %5712 = vmatpush1.msra.mxu0 0.0
        %5713 = vmatprep.subr.mxu0 0.0
        %5714 = vmatpush1.msra.mxu0 0.0
        %5715 = vmatprep.subr.mxu0 0.0
        %5716 = vmatpush1.msra.mxu0 %v5684
        %5717 = vmatprep.subr.mxu0 0.0
        %5718 = vmatpush2.msra.mxu0 0.0
        %5719 = vmatprep.subr.mxu0 0.0
        %5720 = vmatpush2.msra.mxu0 0.0
        %5721 = vmatprep.subr.mxu0 0.0
        %5722 = vmatpush2.msra.mxu0 0.0
        %5723 = vmatprep.subr.mxu0 0.0
        %5724 = vmatpush2.msra.mxu0 0.0
        %5725 = vmatprep.subr.mxu0 0.0
        %5726 = vmatpush2.msra.mxu0 0.0
        %5727 = vmatprep.subr.mxu0 0.0
        %5728 = vmatpush2.msra.mxu0 0.0
        %5729 = vmatprep.subr.mxu0 0.0
        %5730 = vmatpush2.msra.mxu0 0.0
        %5731 = vmatprep.subr.mxu0 0.0
        %5732 = vmatpush2.msra.mxu0 0.0
        %5733 = vmatprep.subr.mxu0 0.0
        %5734 = vmatpush2.msra.mxu0 0.0
        %5735 = vmatprep.subr.mxu0 0.0
        %5736 = vmatpush2.msra.mxu0 0.0
        %5737 = vmatprep.subr.mxu0 0.0
        %5738 = vmatpush2.msra.mxu0 0.0
        %5739 = vmatprep.subr.mxu0 0.0
        %5740 = vmatpush2.msra.mxu0 0.0
        %5741 = vmatprep.subr.mxu0 0.0
        %5742 = vmatpush2.msra.mxu0 0.0
        %5743 = vmatprep.subr.mxu0 0.0
        %5744 = vmatpush2.msra.mxu0 0.0
        %5745 = vmatprep.subr.mxu0 0.0
        %5746 = vmatpush2.msra.mxu0 0.0
        %5747 = vmatprep.subr.mxu0 0.0
        %5748 = vmatpush2.msra.mxu0 0.0
        %5749 = vmatprep.mubr.f32.mxu0 0.0
        %5750 = vmatmul.mubr.f32.gmra.mxu0 %v5138
        %v5751 = vpop.f32.mrf.mxu0
        %v5752 = vpop.f32.mrf.mxu0
        %5753 = vmatprep.mubr.f32.mxu0 0.0
        %5754 = vmatmul.mubr.f32.gmra.mxu0 %v5141
        %v5755 = vpop.f32.mrf.mxu0
        %v5756 = vpop.f32.mrf.mxu0
        %5757 = vmatprep.mubr.f32.mxu0 0.0
        %5758 = vmatmul.mubr.f32.gmra.mxu0 %v5144
        %v5759 = vpop.f32.mrf.mxu0
        %v5760 = vadd.f32 0.0, %v5759
        %v5761 = vpop.f32.mrf.mxu0
        %5762 = vmatprep.mubr.f32.mxu0 0.0
        %5763 = vmatmul.mubr.f32.gmra.mxu0 %v5147
        %v5764 = vpop.f32.mrf.mxu0
        %v5765 = vadd.f32 0.0, %v5764
        %v5766 = vpop.f32.mrf.mxu0
        %5767 = vmatprep.mubr.f32.mxu0 0.0
        %5768 = vmatmul.mubr.f32.gmra.mxu0 %v5150
        %v5769 = vpop.f32.mrf.mxu0
        %v5770 = vadd.f32 0.0, %v5769
        %v5771 = vpop.f32.mrf.mxu0
        %5772 = vmatprep.mubr.f32.mxu0 0.0
        %5773 = vmatmul.mubr.f32.gmra.mxu0 %v5153
        %v5774 = vpop.f32.mrf.mxu0
        %v5775 = vadd.f32 0.0, %v5774
        %v5776 = vpop.f32.mrf.mxu0
        %5777 = vmatprep.mubr.f32.mxu0 0.0
        %5778 = vmatmul.mubr.f32.gmra.mxu0 %v5156
        %v5779 = vpop.f32.mrf.mxu0
        %v5780 = vadd.f32 0.0, %v5779
        %v5781 = vpop.f32.mrf.mxu0
        %5782 = vmatprep.mubr.f32.mxu0 0.0
        %5783 = vmatmul.mubr.f32.gmra.mxu0 %v5159
        %v5784 = vpop.f32.mrf.mxu0
        %v5785 = vadd.f32 0.0, %v5784
        %v5786 = vpop.f32.mrf.mxu0
        %5787 = vmatprep.mubr.f32.mxu0 0.0
        %5788 = vmatmul.mubr.f32.gmra.mxu0 %v5162
        %v5789 = vpop.f32.mrf.mxu0
        %v5790 = vadd.f32 0.0, %v5789
        %v5791 = vpop.f32.mrf.mxu0
        %5792 = vmatprep.mubr.f32.mxu0 0.0
        %5793 = vmatmul.mubr.f32.gmra.mxu0 %v5165
        %v5794 = vpop.f32.mrf.mxu0
        %v5795 = vadd.f32 0.0, %v5794
        %v5796 = vpop.f32.mrf.mxu0
        %5797 = vmatprep.mubr.f32.mxu0 0.0
        %5798 = vmatmul.mubr.f32.gmra.mxu0 %v5168
        %v5799 = vpop.f32.mrf.mxu0
        %v5800 = vadd.f32 0.0, %v5799
        %v5801 = vpop.f32.mrf.mxu0
        %5802 = vmatprep.mubr.f32.mxu0 0.0
        %5803 = vmatmul.mubr.f32.gmra.mxu0 %v5171
        %v5804 = vpop.f32.mrf.mxu0
        %v5805 = vadd.f32 0.0, %v5804
        %v5806 = vpop.f32.mrf.mxu0
        %5807 = vmatprep.mubr.f32.mxu0 0.0
        %5808 = vmatmul.mubr.f32.gmra.mxu0 %v5174
        %v5809 = vpop.f32.mrf.mxu0
        %v5810 = vadd.f32 0.0, %v5809
        %v5811 = vpop.f32.mrf.mxu0
        %5812 = vmatprep.mubr.f32.mxu0 0.0
        %5813 = vmatmul.mubr.f32.gmra.mxu0 %v5177
        %v5814 = vpop.f32.mrf.mxu0
        %v5815 = vadd.f32 0.0, %v5814
        %v5816 = vpop.f32.mrf.mxu0
        %5817 = vmatprep.mubr.f32.mxu0 0.0
        %5818 = vmatmul.mubr.f32.gmra.mxu0 %v5180
        %v5819 = vpop.f32.mrf.mxu0
        %v5820 = vadd.f32 0.0, %v5819
        %v5821 = vpop.f32.mrf.mxu0
        %5822 = vmatprep.mubr.f32.mxu0 0.0
        %5823 = vmatmul.mubr.f32.gmra.mxu0 %v5183
        %v5824 = vpop.f32.mrf.mxu0
        %v5825 = vadd.f32 0.0, %v5824
        %v5826 = vpop.f32.mrf.mxu0
        %5827 = vmatprep.mubr.f32.mxu0 0.0
        %5828 = vmatmul.mubr.f32.gmra.mxu0 %v5186
        %v5829 = vpop.f32.mrf.mxu0
        %v5830 = vadd.f32 0.0, %v5829
        %v5831 = vpop.f32.mrf.mxu0
        %5832 = vmatprep.mubr.f32.mxu0 0.0
        %5833 = vmatmul.mubr.f32.gmra.mxu0 %v5189
        %v5834 = vpop.f32.mrf.mxu0
        %v5835 = vadd.f32 0.0, %v5834
        %v5836 = vpop.f32.mrf.mxu0
        %5837 = vmatprep.mubr.f32.mxu0 0.0
        %5838 = vmatmul.mubr.f32.gmra.mxu0 %v5192
        %v5839 = vpop.f32.mrf.mxu0
        %v5840 = vadd.f32 0.0, %v5839
        %v5841 = vpop.f32.mrf.mxu0
        %5842 = vmatprep.mubr.f32.mxu0 0.0
        %5843 = vmatmul.mubr.f32.gmra.mxu0 %v5195
        %v5844 = vpop.f32.mrf.mxu0
        %v5845 = vadd.f32 0.0, %v5844
        %v5846 = vpop.f32.mrf.mxu0
        %5847 = vmatprep.mubr.f32.mxu0 0.0
        %5848 = vmatmul.mubr.f32.gmra.mxu0 %v5198
        %v5849 = vpop.f32.mrf.mxu0
        %v5850 = vadd.f32 0.0, %v5849
        %v5851 = vpop.f32.mrf.mxu0
        %5852 = vmatprep.mubr.f32.mxu0 0.0
        %5853 = vmatmul.mubr.f32.gmra.mxu0 %v5201
        %v5854 = vpop.f32.mrf.mxu0
        %v5855 = vadd.f32 0.0, %v5854
        %v5856 = vpop.f32.mrf.mxu0
        %5857 = vmatprep.mubr.f32.mxu0 0.0
        %5858 = vmatmul.mubr.f32.gmra.mxu0 %v5204
        %v5859 = vpop.f32.mrf.mxu0
        %v5860 = vadd.f32 0.0, %v5859
        %v5861 = vpop.f32.mrf.mxu0
        %5862 = vmatprep.mubr.f32.mxu0 0.0
        %5863 = vmatmul.mubr.f32.gmra.mxu0 %v5207
        %v5864 = vpop.f32.mrf.mxu0
        %v5865 = vadd.f32 0.0, %v5864
        %v5866 = vpop.f32.mrf.mxu0
        %5867 = vmatprep.mubr.f32.mxu0 0.0
        %5868 = vmatmul.mubr.f32.gmra.mxu0 %v5210
        %v5869 = vpop.f32.mrf.mxu0
        %v5870 = vadd.f32 0.0, %v5869
        %v5871 = vpop.f32.mrf.mxu0
        %5872 = vmatprep.mubr.f32.mxu0 0.0
        %5873 = vmatmul.mubr.f32.gmra.mxu0 %v5213
        %v5874 = vpop.f32.mrf.mxu0
        %v5875 = vadd.f32 0.0, %v5874
        %v5876 = vpop.f32.mrf.mxu0
        %5877 = vmatprep.mubr.f32.mxu0 0.0
        %5878 = vmatmul.mubr.f32.gmra.mxu0 %v5216
        %v5879 = vpop.f32.mrf.mxu0
        %v5880 = vadd.f32 0.0, %v5879
        %v5881 = vpop.f32.mrf.mxu0
        %5882 = vmatprep.mubr.f32.mxu0 0.0
        %5883 = vmatmul.mubr.f32.gmra.mxu0 %v5219
        %v5884 = vpop.f32.mrf.mxu0
        %v5885 = vadd.f32 0.0, %v5884
        %v5886 = vpop.f32.mrf.mxu0
        %5887 = vmatprep.mubr.f32.mxu0 0.0
        %5888 = vmatmul.mubr.f32.gmra.mxu0 %v5222
        %v5889 = vpop.f32.mrf.mxu0
        %v5890 = vadd.f32 0.0, %v5889
        %v5891 = vpop.f32.mrf.mxu0
        %5892 = vmatprep.mubr.f32.mxu0 0.0
        %5893 = vmatmul.mubr.f32.gmra.mxu0 %v5225
        %v5894 = vpop.f32.mrf.mxu0
        %v5895 = vadd.f32 0.0, %v5894
        %v5896 = vpop.f32.mrf.mxu0
        %5897 = vmatprep.mubr.f32.mxu0 0.0
        %5898 = vmatmul.mubr.f32.gmra.mxu0 %v5228
        %v5899 = vpop.f32.mrf.mxu0
        %v5900 = vadd.f32 0.0, %v5899
        %v5901 = vpop.f32.mrf.mxu0
        %5902 = vmatprep.mubr.f32.mxu0 0.0
        %5903 = vmatmul.mubr.f32.gmra.mxu0 %v5231
        %v5904 = vpop.f32.mrf.mxu0
        %v5905 = vadd.f32 0.0, %v5904
        %v5906 = vpop.f32.mrf.mxu0
        %5907 = vdwg.mxu0
        %v5908 = vadd.f32 %v5525, 0.0
        %v5909 = vadd.f32 %v5530, 0.0
        %v5910 = vadd.f32 %v5535, %v5300
        %v5911 = vadd.f32 %v5540, %v5305
        %v5912 = vadd.f32 %v5545, %v5310
        %v5913 = vadd.f32 %v5550, %v5315
        %v5914 = vadd.f32 %v5555, %v5320
        %v5915 = vadd.f32 %v5560, %v5325
        %v5916 = vadd.f32 %v5565, %v5330
        %v5917 = vadd.f32 %v5570, %v5335
        %v5918 = vadd.f32 %v5575, %v5340
        %v5919 = vadd.f32 %v5580, %v5345
        %v5920 = vadd.f32 %v5585, %v5350
        %v5921 = vadd.f32 %v5590, %v5355
        %v5922 = vadd.f32 %v5595, %v5360
        %v5923 = vadd.f32 %v5600, %v5365
        %v5924 = vadd.f32 %v5605, %v5370
        %v5925 = vadd.f32 %v5610, %v5375
        %v5926 = vadd.f32 %v5615, %v5380
        %v5927 = vadd.f32 %v5620, %v5385
        %v5928 = vadd.f32 %v5625, %v5390
        %v5929 = vadd.f32 %v5630, %v5395
        %v5930 = vadd.f32 %v5635, %v5400
        %v5931 = vadd.f32 %v5640, %v5405
        %v5932 = vadd.f32 %v5645, %v5410
        %v5933 = vadd.f32 %v5650, %v5415
        %v5934 = vadd.f32 %v5655, %v5420
        %v5935 = vadd.f32 %v5660, %v5425
        %v5936 = vadd.f32 %v5665, %v5430
        %v5937 = vadd.f32 %v5670, %v5435
        %v5938 = vadd.f32 %v5675, %v5440
        %v5939 = vadd.f32 %v5680, %v5445
        %v5940 = vadd.f32 %v5908, %v5760
        %v5941 = vadd.f32 %v5909, %v5765
        %v5942 = vadd.f32 %v5910, %v5770
        %v5943 = vadd.f32 %v5911, %v5775
        %v5944 = vadd.f32 %v5912, %v5780
        %v5945 = vadd.f32 %v5913, %v5785
        %v5946 = vadd.f32 %v5914, %v5790
        %v5947 = vadd.f32 %v5915, %v5795
        %v5948 = vadd.f32 %v5916, %v5800
        %v5949 = vadd.f32 %v5917, %v5805
        %v5950 = vadd.f32 %v5918, %v5810
        %v5951 = vadd.f32 %v5919, %v5815
        %v5952 = vadd.f32 %v5920, %v5820
        %v5953 = vadd.f32 %v5921, %v5825
        %v5954 = vadd.f32 %v5922, %v5830
        %v5955 = vadd.f32 %v5923, %v5835
        %v5956 = vadd.f32 %v5924, %v5840
        %v5957 = vadd.f32 %v5925, %v5845
        %v5958 = vadd.f32 %v5926, %v5850
        %v5959 = vadd.f32 %v5927, %v5855
        %v5960 = vadd.f32 %v5928, %v5860
        %v5961 = vadd.f32 %v5929, %v5865
        %v5962 = vadd.f32 %v5930, %v5870
        %v5963 = vadd.f32 %v5931, %v5875
        %v5964 = vadd.f32 %v5932, %v5880
        %v5965 = vadd.f32 %v5933, %v5885
        %v5966 = vadd.f32 %v5934, %v5890
        %v5967 = vadd.f32 %v5935, %v5895
        %v5968 = vadd.f32 %v5936, %v5900
        %v5969 = vadd.f32 %v5937, %v5905
        %v5970 = vadd.f32 %v5938, 0.0
        %v5971 = vadd.f32 %v5939, 0.0
        %v5972 = vld [vmem:[%s12] sm:$0x1]
        %v5973 = vlaneseq
        %v5974 = vshrl.u32 %v5973, 7
        %v5975 = vsub.s32 0, %v5974
        %v5976 = vrot.slane %v5972, %v5975
        %v5977 = vmul.f32 %v5940, %v5976
        %v5978 = vmul.f32 %v5941, %v5976
        %v5979 = vmul.f32 %v5942, %v5976
        %v5980 = vmul.f32 %v5943, %v5976
        %v5981 = vmul.f32 %v5944, %v5976
        %v5982 = vmul.f32 %v5945, %v5976
        %v5983 = vmul.f32 %v5946, %v5976
        %v5984 = vmul.f32 %v5947, %v5976
        %v5985 = vmul.f32 %v5948, %v5976
        %v5986 = vmul.f32 %v5949, %v5976
        %v5987 = vmul.f32 %v5950, %v5976
        %v5988 = vmul.f32 %v5951, %v5976
        %v5989 = vmul.f32 %v5952, %v5976
        %v5990 = vmul.f32 %v5953, %v5976
        %v5991 = vmul.f32 %v5954, %v5976
        %v5992 = vmul.f32 %v5955, %v5976
        %v5993 = vmul.f32 %v5956, %v5976
        %v5994 = vmul.f32 %v5957, %v5976
        %v5995 = vmul.f32 %v5958, %v5976
        %v5996 = vmul.f32 %v5959, %v5976
        %v5997 = vmul.f32 %v5960, %v5976
        %v5998 = vmul.f32 %v5961, %v5976
        %v5999 = vmul.f32 %v5962, %v5976
        %v6000 = vmul.f32 %v5963, %v5976
        %v6001 = vmul.f32 %v5964, %v5976
        %v6002 = vmul.f32 %v5965, %v5976
        %v6003 = vmul.f32 %v5966, %v5976
        %v6004 = vmul.f32 %v5967, %v5976
        %v6005 = vmul.f32 %v5968, %v5976
        %v6006 = vmul.f32 %v5969, %v5976
        %v6007 = vmul.f32 %v5970, %v5976
        %v6008 = vmul.f32 %v5971, %v5976
        %v6009 = vld [vmem:[%s12 + $0x1] sm:$0x1]
        %v6010 = vlaneseq
        %v6011 = vshrl.u32 %v6010, 7
        %v6012 = vsub.s32 0, %v6011
        %v6013 = vrot.slane %v6009, %v6012
        %v6014 = vadd.f32 %v5977, %v6013
        %v6015 = vadd.f32 %v5978, %v6013
        %v6016 = vadd.f32 %v5979, %v6013
        %v6017 = vadd.f32 %v5980, %v6013
        %v6018 = vadd.f32 %v5981, %v6013
        %v6019 = vadd.f32 %v5982, %v6013
        %v6020 = vadd.f32 %v5983, %v6013
        %v6021 = vadd.f32 %v5984, %v6013
        %v6022 = vadd.f32 %v5985, %v6013
        %v6023 = vadd.f32 %v5986, %v6013
        %v6024 = vadd.f32 %v5987, %v6013
        %v6025 = vadd.f32 %v5988, %v6013
        %v6026 = vadd.f32 %v5989, %v6013
        %v6027 = vadd.f32 %v5990, %v6013
        %v6028 = vadd.f32 %v5991, %v6013
        %v6029 = vadd.f32 %v5992, %v6013
        %v6030 = vadd.f32 %v5993, %v6013
        %v6031 = vadd.f32 %v5994, %v6013
        %v6032 = vadd.f32 %v5995, %v6013
        %v6033 = vadd.f32 %v5996, %v6013
        %v6034 = vadd.f32 %v5997, %v6013
        %v6035 = vadd.f32 %v5998, %v6013
        %v6036 = vadd.f32 %v5999, %v6013
        %v6037 = vadd.f32 %v6000, %v6013
        %v6038 = vadd.f32 %v6001, %v6013
        %v6039 = vadd.f32 %v6002, %v6013
        %v6040 = vadd.f32 %v6003, %v6013
        %v6041 = vadd.f32 %v6004, %v6013
        %v6042 = vadd.f32 %v6005, %v6013
        %v6043 = vadd.f32 %v6006, %v6013
        %v6044 = vadd.f32 %v6007, %v6013
        %v6045 = vadd.f32 %v6008, %v6013
        %v6046 = vmax.f32 %v6014, 0.0
        %v6047 = vmax.f32 %v6015, 0.0
        %v6048 = vmax.f32 %v6016, 0.0
        %v6049 = vmax.f32 %v6017, 0.0
        %v6050 = vmax.f32 %v6018, 0.0
        %v6051 = vmax.f32 %v6019, 0.0
        %v6052 = vmax.f32 %v6020, 0.0
        %v6053 = vmax.f32 %v6021, 0.0
        %v6054 = vmax.f32 %v6022, 0.0
        %v6055 = vmax.f32 %v6023, 0.0
        %v6056 = vmax.f32 %v6024, 0.0
        %v6057 = vmax.f32 %v6025, 0.0
        %v6058 = vmax.f32 %v6026, 0.0
        %v6059 = vmax.f32 %v6027, 0.0
        %v6060 = vmax.f32 %v6028, 0.0
        %v6061 = vmax.f32 %v6029, 0.0
        %v6062 = vmax.f32 %v6030, 0.0
        %v6063 = vmax.f32 %v6031, 0.0
        %v6064 = vmax.f32 %v6032, 0.0
        %v6065 = vmax.f32 %v6033, 0.0
        %v6066 = vmax.f32 %v6034, 0.0
        %v6067 = vmax.f32 %v6035, 0.0
        %v6068 = vmax.f32 %v6036, 0.0
        %v6069 = vmax.f32 %v6037, 0.0
        %v6070 = vmax.f32 %v6038, 0.0
        %v6071 = vmax.f32 %v6039, 0.0
        %v6072 = vmax.f32 %v6040, 0.0
        %v6073 = vmax.f32 %v6041, 0.0
        %v6074 = vmax.f32 %v6042, 0.0
        %v6075 = vmax.f32 %v6043, 0.0
        %v6076 = vmax.f32 %v6044, 0.0
        %v6077 = vmax.f32 %v6045, 0.0
        %v6078 = vld [vmem:[%s13] sm:$0xff]
        %v6080 = vsel %vm966, %v6046, 0
        %v6083 = vsel %vm966, %v6047, 0
        %v6086 = vsel %vm966, %v6048, 0
        %v6089 = vsel %vm966, %v6049, 0
        %v6092 = vsel %vm966, %v6050, 0
        %v6095 = vsel %vm966, %v6051, 0
        %v6098 = vsel %vm966, %v6052, 0
        %v6101 = vsel %vm966, %v6053, 0
        %v6104 = vsel %vm966, %v6054, 0
        %v6107 = vsel %vm966, %v6055, 0
        %v6110 = vsel %vm966, %v6056, 0
        %v6113 = vsel %vm966, %v6057, 0
        %v6116 = vsel %vm966, %v6058, 0
        %v6119 = vsel %vm966, %v6059, 0
        %v6122 = vsel %vm966, %v6060, 0
        %v6125 = vsel %vm966, %v6061, 0
        %v6128 = vsel %vm966, %v6062, 0
        %v6131 = vsel %vm966, %v6063, 0
        %v6134 = vsel %vm966, %v6064, 0
        %v6137 = vsel %vm966, %v6065, 0
        %v6140 = vsel %vm966, %v6066, 0
        %v6143 = vsel %vm966, %v6067, 0
        %v6146 = vsel %vm966, %v6068, 0
        %v6149 = vsel %vm966, %v6069, 0
        %v6152 = vsel %vm966, %v6070, 0
        %v6155 = vsel %vm966, %v6071, 0
        %v6158 = vsel %vm966, %v6072, 0
        %v6161 = vsel %vm966, %v6073, 0
        %v6164 = vsel %vm966, %v6074, 0
        %v6167 = vsel %vm966, %v6075, 0
        %v6170 = vsel %vm966, %v6076, 0
        %v6173 = vsel %vm966, %v6077, 0
        %6175 = vmatprep.subr.mxu0 0.0
        %6176 = vmatpush1.msra.mxu0 0.0
        %6177 = vmatprep.subr.mxu0 0.0
        %6178 = vmatpush1.msra.mxu0 0.0
        %6179 = vmatprep.subr.mxu0 0.0
        %6180 = vmatpush1.msra.mxu0 0.0
        %6181 = vmatprep.subr.mxu0 0.0
        %6182 = vmatpush1.msra.mxu0 0.0
        %6183 = vmatprep.subr.mxu0 0.0
        %6184 = vmatpush1.msra.mxu0 0.0
        %6185 = vmatprep.subr.mxu0 0.0
        %6186 = vmatpush1.msra.mxu0 0.0
        %6187 = vmatprep.subr.mxu0 0.0
        %6188 = vmatpush1.msra.mxu0 0.0
        %6189 = vmatprep.subr.mxu0 0.0
        %6190 = vmatpush1.msra.mxu0 0.0
        %6191 = vmatprep.subr.mxu0 0.0
        %6192 = vmatpush1.msra.mxu0 0.0
        %6193 = vmatprep.subr.mxu0 0.0
        %6194 = vmatpush1.msra.mxu0 0.0
        %6195 = vmatprep.subr.mxu0 0.0
        %6196 = vmatpush1.msra.mxu0 0.0
        %6197 = vmatprep.subr.mxu0 0.0
        %6198 = vmatpush1.msra.mxu0 0.0
        %6199 = vmatprep.subr.mxu0 0.0
        %6200 = vmatpush1.msra.mxu0 0.0
        %6201 = vmatprep.subr.mxu0 0.0
        %6202 = vmatpush1.msra.mxu0 0.0
        %6203 = vmatprep.subr.mxu0 0.0
        %6204 = vmatpush1.msra.mxu0 0.0
        %6205 = vmatprep.subr.mxu0 0.0
        %6206 = vmatpush1.msra.mxu0 %v6078
        %6207 = vmatprep.subr.mxu0 0.0
        %6208 = vmatpush2.msra.mxu0 0.0
        %6209 = vmatprep.subr.mxu0 0.0
        %6210 = vmatpush2.msra.mxu0 0.0
        %6211 = vmatprep.subr.mxu0 0.0
        %6212 = vmatpush2.msra.mxu0 0.0
        %6213 = vmatprep.subr.mxu0 0.0
        %6214 = vmatpush2.msra.mxu0 0.0
        %6215 = vmatprep.subr.mxu0 0.0
        %6216 = vmatpush2.msra.mxu0 0.0
        %6217 = vmatprep.subr.mxu0 0.0
        %6218 = vmatpush2.msra.mxu0 0.0
        %6219 = vmatprep.subr.mxu0 0.0
        %6220 = vmatpush2.msra.mxu0 0.0
        %6221 = vmatprep.subr.mxu0 0.0
        %6222 = vmatpush2.msra.mxu0 0.0
        %6223 = vmatprep.subr.mxu0 0.0
        %6224 = vmatpush2.msra.mxu0 0.0
        %6225 = vmatprep.subr.mxu0 0.0
        %6226 = vmatpush2.msra.mxu0 0.0
        %6227 = vmatprep.subr.mxu0 0.0
        %6228 = vmatpush2.msra.mxu0 0.0
        %6229 = vmatprep.subr.mxu0 0.0
        %6230 = vmatpush2.msra.mxu0 0.0
        %6231 = vmatprep.subr.mxu0 0.0
        %6232 = vmatpush2.msra.mxu0 0.0
        %6233 = vmatprep.subr.mxu0 0.0
        %6234 = vmatpush2.msra.mxu0 0.0
        %6235 = vmatprep.subr.mxu0 0.0
        %6236 = vmatpush2.msra.mxu0 0.0
        %6237 = vmatprep.subr.mxu0 0.0
        %6238 = vmatpush2.msra.mxu0 0.0
        %6239 = vmatprep.mubr.f32.mxu0 0.0
        %6240 = vmatmul.mubr.f32.gmra.mxu0 %v6080
        %v6241 = vpop.f32.mrf.mxu0
        %v6242 = vadd.f32 0.0, %v6241
        %v6243 = vpop.f32.mrf.mxu0
        %6244 = vmatprep.mubr.f32.mxu0 0.0
        %6245 = vmatmul.mubr.f32.gmra.mxu0 %v6083
        %v6246 = vpop.f32.mrf.mxu0
        %v6247 = vadd.f32 0.0, %v6246
        %v6248 = vpop.f32.mrf.mxu0
        %6249 = vmatprep.mubr.f32.mxu0 0.0
        %6250 = vmatmul.mubr.f32.gmra.mxu0 %v6086
        %v6251 = vpop.f32.mrf.mxu0
        %v6252 = vadd.f32 0.0, %v6251
        %v6253 = vpop.f32.mrf.mxu0
        %6254 = vmatprep.mubr.f32.mxu0 0.0
        %6255 = vmatmul.mubr.f32.gmra.mxu0 %v6089
        %v6256 = vpop.f32.mrf.mxu0
        %v6257 = vadd.f32 0.0, %v6256
        %v6258 = vpop.f32.mrf.mxu0
        %6259 = vmatprep.mubr.f32.mxu0 0.0
        %6260 = vmatmul.mubr.f32.gmra.mxu0 %v6092
        %v6261 = vpop.f32.mrf.mxu0
        %v6262 = vadd.f32 0.0, %v6261
        %v6263 = vpop.f32.mrf.mxu0
        %6264 = vmatprep.mubr.f32.mxu0 0.0
        %6265 = vmatmul.mubr.f32.gmra.mxu0 %v6095
        %v6266 = vpop.f32.mrf.mxu0
        %v6267 = vadd.f32 0.0, %v6266
        %v6268 = vpop.f32.mrf.mxu0
        %6269 = vmatprep.mubr.f32.mxu0 0.0
        %6270 = vmatmul.mubr.f32.gmra.mxu0 %v6098
        %v6271 = vpop.f32.mrf.mxu0
        %v6272 = vadd.f32 0.0, %v6271
        %v6273 = vpop.f32.mrf.mxu0
        %6274 = vmatprep.mubr.f32.mxu0 0.0
        %6275 = vmatmul.mubr.f32.gmra.mxu0 %v6101
        %v6276 = vpop.f32.mrf.mxu0
        %v6277 = vadd.f32 0.0, %v6276
        %v6278 = vpop.f32.mrf.mxu0
        %6279 = vmatprep.mubr.f32.mxu0 0.0
        %6280 = vmatmul.mubr.f32.gmra.mxu0 %v6104
        %v6281 = vpop.f32.mrf.mxu0
        %v6282 = vadd.f32 0.0, %v6281
        %v6283 = vpop.f32.mrf.mxu0
        %6284 = vmatprep.mubr.f32.mxu0 0.0
        %6285 = vmatmul.mubr.f32.gmra.mxu0 %v6107
        %v6286 = vpop.f32.mrf.mxu0
        %v6287 = vadd.f32 0.0, %v6286
        %v6288 = vpop.f32.mrf.mxu0
        %6289 = vmatprep.mubr.f32.mxu0 0.0
        %6290 = vmatmul.mubr.f32.gmra.mxu0 %v6110
        %v6291 = vpop.f32.mrf.mxu0
        %v6292 = vadd.f32 0.0, %v6291
        %v6293 = vpop.f32.mrf.mxu0
        %6294 = vmatprep.mubr.f32.mxu0 0.0
        %6295 = vmatmul.mubr.f32.gmra.mxu0 %v6113
        %v6296 = vpop.f32.mrf.mxu0
        %v6297 = vadd.f32 0.0, %v6296
        %v6298 = vpop.f32.mrf.mxu0
        %6299 = vmatprep.mubr.f32.mxu0 0.0
        %6300 = vmatmul.mubr.f32.gmra.mxu0 %v6116
        %v6301 = vpop.f32.mrf.mxu0
        %v6302 = vadd.f32 0.0, %v6301
        %v6303 = vpop.f32.mrf.mxu0
        %6304 = vmatprep.mubr.f32.mxu0 0.0
        %6305 = vmatmul.mubr.f32.gmra.mxu0 %v6119
        %v6306 = vpop.f32.mrf.mxu0
        %v6307 = vadd.f32 0.0, %v6306
        %v6308 = vpop.f32.mrf.mxu0
        %6309 = vmatprep.mubr.f32.mxu0 0.0
        %6310 = vmatmul.mubr.f32.gmra.mxu0 %v6122
        %v6311 = vpop.f32.mrf.mxu0
        %v6312 = vadd.f32 0.0, %v6311
        %v6313 = vpop.f32.mrf.mxu0
        %6314 = vmatprep.mubr.f32.mxu0 0.0
        %6315 = vmatmul.mubr.f32.gmra.mxu0 %v6125
        %v6316 = vpop.f32.mrf.mxu0
        %v6317 = vadd.f32 0.0, %v6316
        %v6318 = vpop.f32.mrf.mxu0
        %6319 = vmatprep.mubr.f32.mxu0 0.0
        %6320 = vmatmul.mubr.f32.gmra.mxu0 %v6128
        %v6321 = vpop.f32.mrf.mxu0
        %v6322 = vadd.f32 0.0, %v6321
        %v6323 = vpop.f32.mrf.mxu0
        %6324 = vmatprep.mubr.f32.mxu0 0.0
        %6325 = vmatmul.mubr.f32.gmra.mxu0 %v6131
        %v6326 = vpop.f32.mrf.mxu0
        %v6327 = vadd.f32 0.0, %v6326
        %v6328 = vpop.f32.mrf.mxu0
        %6329 = vmatprep.mubr.f32.mxu0 0.0
        %6330 = vmatmul.mubr.f32.gmra.mxu0 %v6134
        %v6331 = vpop.f32.mrf.mxu0
        %v6332 = vadd.f32 0.0, %v6331
        %v6333 = vpop.f32.mrf.mxu0
        %6334 = vmatprep.mubr.f32.mxu0 0.0
        %6335 = vmatmul.mubr.f32.gmra.mxu0 %v6137
        %v6336 = vpop.f32.mrf.mxu0
        %v6337 = vadd.f32 0.0, %v6336
        %v6338 = vpop.f32.mrf.mxu0
        %6339 = vmatprep.mubr.f32.mxu0 0.0
        %6340 = vmatmul.mubr.f32.gmra.mxu0 %v6140
        %v6341 = vpop.f32.mrf.mxu0
        %v6342 = vadd.f32 0.0, %v6341
        %v6343 = vpop.f32.mrf.mxu0
        %6344 = vmatprep.mubr.f32.mxu0 0.0
        %6345 = vmatmul.mubr.f32.gmra.mxu0 %v6143
        %v6346 = vpop.f32.mrf.mxu0
        %v6347 = vadd.f32 0.0, %v6346
        %v6348 = vpop.f32.mrf.mxu0
        %6349 = vmatprep.mubr.f32.mxu0 0.0
        %6350 = vmatmul.mubr.f32.gmra.mxu0 %v6146
        %v6351 = vpop.f32.mrf.mxu0
        %v6352 = vadd.f32 0.0, %v6351
        %v6353 = vpop.f32.mrf.mxu0
        %6354 = vmatprep.mubr.f32.mxu0 0.0
        %6355 = vmatmul.mubr.f32.gmra.mxu0 %v6149
        %v6356 = vpop.f32.mrf.mxu0
        %v6357 = vadd.f32 0.0, %v6356
        %v6358 = vpop.f32.mrf.mxu0
        %6359 = vmatprep.mubr.f32.mxu0 0.0
        %6360 = vmatmul.mubr.f32.gmra.mxu0 %v6152
        %v6361 = vpop.f32.mrf.mxu0
        %v6362 = vadd.f32 0.0, %v6361
        %v6363 = vpop.f32.mrf.mxu0
        %6364 = vmatprep.mubr.f32.mxu0 0.0
        %6365 = vmatmul.mubr.f32.gmra.mxu0 %v6155
        %v6366 = vpop.f32.mrf.mxu0
        %v6367 = vadd.f32 0.0, %v6366
        %v6368 = vpop.f32.mrf.mxu0
        %6369 = vmatprep.mubr.f32.mxu0 0.0
        %6370 = vmatmul.mubr.f32.gmra.mxu0 %v6158
        %v6371 = vpop.f32.mrf.mxu0
        %v6372 = vadd.f32 0.0, %v6371
        %v6373 = vpop.f32.mrf.mxu0
        %6374 = vmatprep.mubr.f32.mxu0 0.0
        %6375 = vmatmul.mubr.f32.gmra.mxu0 %v6161
        %v6376 = vpop.f32.mrf.mxu0
        %v6377 = vadd.f32 0.0, %v6376
        %v6378 = vpop.f32.mrf.mxu0
        %6379 = vmatprep.mubr.f32.mxu0 0.0
        %6380 = vmatmul.mubr.f32.gmra.mxu0 %v6164
        %v6381 = vpop.f32.mrf.mxu0
        %v6382 = vadd.f32 0.0, %v6381
        %v6383 = vpop.f32.mrf.mxu0
        %6384 = vmatprep.mubr.f32.mxu0 0.0
        %6385 = vmatmul.mubr.f32.gmra.mxu0 %v6167
        %v6386 = vpop.f32.mrf.mxu0
        %v6387 = vadd.f32 0.0, %v6386
        %v6388 = vpop.f32.mrf.mxu0
        %6389 = vmatprep.mubr.f32.mxu0 0.0
        %6390 = vmatmul.mubr.f32.gmra.mxu0 %v6170
        %v6391 = vpop.f32.mrf.mxu0
        %v6392 = vadd.f32 0.0, %v6391
        %v6393 = vpop.f32.mrf.mxu0
        %6394 = vmatprep.mubr.f32.mxu0 0.0
        %6395 = vmatmul.mubr.f32.gmra.mxu0 %v6173
        %v6396 = vpop.f32.mrf.mxu0
        %v6397 = vadd.f32 0.0, %v6396
        %v6398 = vpop.f32.mrf.mxu0
        %6399 = vdwg.mxu0
        %s6400 = scalar_lea.vmem %s13, 8
        %v6401 = vld [vmem:[%s6400] sm:$0xff]
        %6402 = vmatprep.subr.mxu0 0.0
        %6403 = vmatpush1.msra.mxu0 0.0
        %6404 = vmatprep.subr.mxu0 0.0
        %6405 = vmatpush1.msra.mxu0 0.0
        %6406 = vmatprep.subr.mxu0 0.0
        %6407 = vmatpush1.msra.mxu0 0.0
        %6408 = vmatprep.subr.mxu0 0.0
        %6409 = vmatpush1.msra.mxu0 0.0
        %6410 = vmatprep.subr.mxu0 0.0
        %6411 = vmatpush1.msra.mxu0 0.0
        %6412 = vmatprep.subr.mxu0 0.0
        %6413 = vmatpush1.msra.mxu0 0.0
        %6414 = vmatprep.subr.mxu0 0.0
        %6415 = vmatpush1.msra.mxu0 0.0
        %6416 = vmatprep.subr.mxu0 0.0
        %6417 = vmatpush1.msra.mxu0 0.0
        %6418 = vmatprep.subr.mxu0 0.0
        %6419 = vmatpush1.msra.mxu0 0.0
        %6420 = vmatprep.subr.mxu0 0.0
        %6421 = vmatpush1.msra.mxu0 0.0
        %6422 = vmatprep.subr.mxu0 0.0
        %6423 = vmatpush1.msra.mxu0 0.0
        %6424 = vmatprep.subr.mxu0 0.0
        %6425 = vmatpush1.msra.mxu0 0.0
        %6426 = vmatprep.subr.mxu0 0.0
        %6427 = vmatpush1.msra.mxu0 0.0
        %6428 = vmatprep.subr.mxu0 0.0
        %6429 = vmatpush1.msra.mxu0 0.0
        %6430 = vmatprep.subr.mxu0 0.0
        %6431 = vmatpush1.msra.mxu0 0.0
        %6432 = vmatprep.subr.mxu0 0.0
        %6433 = vmatpush1.msra.mxu0 %v6401
        %6434 = vmatprep.subr.mxu0 0.0
        %6435 = vmatpush2.msra.mxu0 0.0
        %6436 = vmatprep.subr.mxu0 0.0
        %6437 = vmatpush2.msra.mxu0 0.0
        %6438 = vmatprep.subr.mxu0 0.0
        %6439 = vmatpush2.msra.mxu0 0.0
        %6440 = vmatprep.subr.mxu0 0.0
        %6441 = vmatpush2.msra.mxu0 0.0
        %6442 = vmatprep.subr.mxu0 0.0
        %6443 = vmatpush2.msra.mxu0 0.0
        %6444 = vmatprep.subr.mxu0 0.0
        %6445 = vmatpush2.msra.mxu0 0.0
        %6446 = vmatprep.subr.mxu0 0.0
        %6447 = vmatpush2.msra.mxu0 0.0
        %6448 = vmatprep.subr.mxu0 0.0
        %6449 = vmatpush2.msra.mxu0 0.0
        %6450 = vmatprep.subr.mxu0 0.0
        %6451 = vmatpush2.msra.mxu0 0.0
        %6452 = vmatprep.subr.mxu0 0.0
        %6453 = vmatpush2.msra.mxu0 0.0
        %6454 = vmatprep.subr.mxu0 0.0
        %6455 = vmatpush2.msra.mxu0 0.0
        %6456 = vmatprep.subr.mxu0 0.0
        %6457 = vmatpush2.msra.mxu0 0.0
        %6458 = vmatprep.subr.mxu0 0.0
        %6459 = vmatpush2.msra.mxu0 0.0
        %6460 = vmatprep.subr.mxu0 0.0
        %6461 = vmatpush2.msra.mxu0 0.0
        %6462 = vmatprep.subr.mxu0 0.0
        %6463 = vmatpush2.msra.mxu0 0.0
        %6464 = vmatprep.subr.mxu0 0.0
        %6465 = vmatpush2.msra.mxu0 0.0
        %6466 = vmatprep.mubr.f32.mxu0 0.0
        %6467 = vmatmul.mubr.f32.gmra.mxu0 %v6080
        %v6468 = vpop.f32.mrf.mxu0
        %v6469 = vadd.f32 0.0, %v6468
        %v6470 = vpop.f32.mrf.mxu0
        %6471 = vmatprep.mubr.f32.mxu0 0.0
        %6472 = vmatmul.mubr.f32.gmra.mxu0 %v6083
        %v6473 = vpop.f32.mrf.mxu0
        %v6474 = vadd.f32 0.0, %v6473
        %v6475 = vpop.f32.mrf.mxu0
        %6476 = vmatprep.mubr.f32.mxu0 0.0
        %6477 = vmatmul.mubr.f32.gmra.mxu0 %v6086
        %v6478 = vpop.f32.mrf.mxu0
        %v6479 = vadd.f32 0.0, %v6478
        %v6480 = vpop.f32.mrf.mxu0
        %6481 = vmatprep.mubr.f32.mxu0 0.0
        %6482 = vmatmul.mubr.f32.gmra.mxu0 %v6089
        %v6483 = vpop.f32.mrf.mxu0
        %v6484 = vadd.f32 0.0, %v6483
        %v6485 = vpop.f32.mrf.mxu0
        %6486 = vmatprep.mubr.f32.mxu0 0.0
        %6487 = vmatmul.mubr.f32.gmra.mxu0 %v6092
        %v6488 = vpop.f32.mrf.mxu0
        %v6489 = vadd.f32 0.0, %v6488
        %v6490 = vpop.f32.mrf.mxu0
        %6491 = vmatprep.mubr.f32.mxu0 0.0
        %6492 = vmatmul.mubr.f32.gmra.mxu0 %v6095
        %v6493 = vpop.f32.mrf.mxu0
        %v6494 = vadd.f32 0.0, %v6493
        %v6495 = vpop.f32.mrf.mxu0
        %6496 = vmatprep.mubr.f32.mxu0 0.0
        %6497 = vmatmul.mubr.f32.gmra.mxu0 %v6098
        %v6498 = vpop.f32.mrf.mxu0
        %v6499 = vadd.f32 0.0, %v6498
        %v6500 = vpop.f32.mrf.mxu0
        %6501 = vmatprep.mubr.f32.mxu0 0.0
        %6502 = vmatmul.mubr.f32.gmra.mxu0 %v6101
        %v6503 = vpop.f32.mrf.mxu0
        %v6504 = vadd.f32 0.0, %v6503
        %v6505 = vpop.f32.mrf.mxu0
        %6506 = vmatprep.mubr.f32.mxu0 0.0
        %6507 = vmatmul.mubr.f32.gmra.mxu0 %v6104
        %v6508 = vpop.f32.mrf.mxu0
        %v6509 = vadd.f32 0.0, %v6508
        %v6510 = vpop.f32.mrf.mxu0
        %6511 = vmatprep.mubr.f32.mxu0 0.0
        %6512 = vmatmul.mubr.f32.gmra.mxu0 %v6107
        %v6513 = vpop.f32.mrf.mxu0
        %v6514 = vadd.f32 0.0, %v6513
        %v6515 = vpop.f32.mrf.mxu0
        %6516 = vmatprep.mubr.f32.mxu0 0.0
        %6517 = vmatmul.mubr.f32.gmra.mxu0 %v6110
        %v6518 = vpop.f32.mrf.mxu0
        %v6519 = vadd.f32 0.0, %v6518
        %v6520 = vpop.f32.mrf.mxu0
        %6521 = vmatprep.mubr.f32.mxu0 0.0
        %6522 = vmatmul.mubr.f32.gmra.mxu0 %v6113
        %v6523 = vpop.f32.mrf.mxu0
        %v6524 = vadd.f32 0.0, %v6523
        %v6525 = vpop.f32.mrf.mxu0
        %6526 = vmatprep.mubr.f32.mxu0 0.0
        %6527 = vmatmul.mubr.f32.gmra.mxu0 %v6116
        %v6528 = vpop.f32.mrf.mxu0
        %v6529 = vadd.f32 0.0, %v6528
        %v6530 = vpop.f32.mrf.mxu0
        %6531 = vmatprep.mubr.f32.mxu0 0.0
        %6532 = vmatmul.mubr.f32.gmra.mxu0 %v6119
        %v6533 = vpop.f32.mrf.mxu0
        %v6534 = vadd.f32 0.0, %v6533
        %v6535 = vpop.f32.mrf.mxu0
        %6536 = vmatprep.mubr.f32.mxu0 0.0
        %6537 = vmatmul.mubr.f32.gmra.mxu0 %v6122
        %v6538 = vpop.f32.mrf.mxu0
        %v6539 = vadd.f32 0.0, %v6538
        %v6540 = vpop.f32.mrf.mxu0
        %6541 = vmatprep.mubr.f32.mxu0 0.0
        %6542 = vmatmul.mubr.f32.gmra.mxu0 %v6125
        %v6543 = vpop.f32.mrf.mxu0
        %v6544 = vadd.f32 0.0, %v6543
        %v6545 = vpop.f32.mrf.mxu0
        %6546 = vmatprep.mubr.f32.mxu0 0.0
        %6547 = vmatmul.mubr.f32.gmra.mxu0 %v6128
        %v6548 = vpop.f32.mrf.mxu0
        %v6549 = vadd.f32 0.0, %v6548
        %v6550 = vpop.f32.mrf.mxu0
        %6551 = vmatprep.mubr.f32.mxu0 0.0
        %6552 = vmatmul.mubr.f32.gmra.mxu0 %v6131
        %v6553 = vpop.f32.mrf.mxu0
        %v6554 = vadd.f32 0.0, %v6553
        %v6555 = vpop.f32.mrf.mxu0
        %6556 = vmatprep.mubr.f32.mxu0 0.0
        %6557 = vmatmul.mubr.f32.gmra.mxu0 %v6134
        %v6558 = vpop.f32.mrf.mxu0
        %v6559 = vadd.f32 0.0, %v6558
        %v6560 = vpop.f32.mrf.mxu0
        %6561 = vmatprep.mubr.f32.mxu0 0.0
        %6562 = vmatmul.mubr.f32.gmra.mxu0 %v6137
        %v6563 = vpop.f32.mrf.mxu0
        %v6564 = vadd.f32 0.0, %v6563
        %v6565 = vpop.f32.mrf.mxu0
        %6566 = vmatprep.mubr.f32.mxu0 0.0
        %6567 = vmatmul.mubr.f32.gmra.mxu0 %v6140
        %v6568 = vpop.f32.mrf.mxu0
        %v6569 = vadd.f32 0.0, %v6568
        %v6570 = vpop.f32.mrf.mxu0
        %6571 = vmatprep.mubr.f32.mxu0 0.0
        %6572 = vmatmul.mubr.f32.gmra.mxu0 %v6143
        %v6573 = vpop.f32.mrf.mxu0
        %v6574 = vadd.f32 0.0, %v6573
        %v6575 = vpop.f32.mrf.mxu0
        %6576 = vmatprep.mubr.f32.mxu0 0.0
        %6577 = vmatmul.mubr.f32.gmra.mxu0 %v6146
        %v6578 = vpop.f32.mrf.mxu0
        %v6579 = vadd.f32 0.0, %v6578
        %v6580 = vpop.f32.mrf.mxu0
        %6581 = vmatprep.mubr.f32.mxu0 0.0
        %6582 = vmatmul.mubr.f32.gmra.mxu0 %v6149
        %v6583 = vpop.f32.mrf.mxu0
        %v6584 = vadd.f32 0.0, %v6583
        %v6585 = vpop.f32.mrf.mxu0
        %6586 = vmatprep.mubr.f32.mxu0 0.0
        %6587 = vmatmul.mubr.f32.gmra.mxu0 %v6152
        %v6588 = vpop.f32.mrf.mxu0
        %v6589 = vadd.f32 0.0, %v6588
        %v6590 = vpop.f32.mrf.mxu0
        %6591 = vmatprep.mubr.f32.mxu0 0.0
        %6592 = vmatmul.mubr.f32.gmra.mxu0 %v6155
        %v6593 = vpop.f32.mrf.mxu0
        %v6594 = vadd.f32 0.0, %v6593
        %v6595 = vpop.f32.mrf.mxu0
        %6596 = vmatprep.mubr.f32.mxu0 0.0
        %6597 = vmatmul.mubr.f32.gmra.mxu0 %v6158
        %v6598 = vpop.f32.mrf.mxu0
        %v6599 = vadd.f32 0.0, %v6598
        %v6600 = vpop.f32.mrf.mxu0
        %6601 = vmatprep.mubr.f32.mxu0 0.0
        %6602 = vmatmul.mubr.f32.gmra.mxu0 %v6161
        %v6603 = vpop.f32.mrf.mxu0
        %v6604 = vadd.f32 0.0, %v6603
        %v6605 = vpop.f32.mrf.mxu0
        %6606 = vmatprep.mubr.f32.mxu0 0.0
        %6607 = vmatmul.mubr.f32.gmra.mxu0 %v6164
        %v6608 = vpop.f32.mrf.mxu0
        %v6609 = vadd.f32 0.0, %v6608
        %v6610 = vpop.f32.mrf.mxu0
        %6611 = vmatprep.mubr.f32.mxu0 0.0
        %6612 = vmatmul.mubr.f32.gmra.mxu0 %v6167
        %v6613 = vpop.f32.mrf.mxu0
        %v6614 = vadd.f32 0.0, %v6613
        %v6615 = vpop.f32.mrf.mxu0
        %6616 = vmatprep.mubr.f32.mxu0 0.0
        %6617 = vmatmul.mubr.f32.gmra.mxu0 %v6170
        %v6618 = vpop.f32.mrf.mxu0
        %v6619 = vadd.f32 0.0, %v6618
        %v6620 = vpop.f32.mrf.mxu0
        %6621 = vmatprep.mubr.f32.mxu0 0.0
        %6622 = vmatmul.mubr.f32.gmra.mxu0 %v6173
        %v6623 = vpop.f32.mrf.mxu0
        %v6624 = vadd.f32 0.0, %v6623
        %v6625 = vpop.f32.mrf.mxu0
        %6626 = vdwg.mxu0
        %s6627 = scalar_lea.vmem %s13, 16
        %v6628 = vld [vmem:[%s6627] sm:$0xff]
        %6629 = vmatprep.subr.mxu0 0.0
        %6630 = vmatpush1.msra.mxu0 0.0
        %6631 = vmatprep.subr.mxu0 0.0
        %6632 = vmatpush1.msra.mxu0 0.0
        %6633 = vmatprep.subr.mxu0 0.0
        %6634 = vmatpush1.msra.mxu0 0.0
        %6635 = vmatprep.subr.mxu0 0.0
        %6636 = vmatpush1.msra.mxu0 0.0
        %6637 = vmatprep.subr.mxu0 0.0
        %6638 = vmatpush1.msra.mxu0 0.0
        %6639 = vmatprep.subr.mxu0 0.0
        %6640 = vmatpush1.msra.mxu0 0.0
        %6641 = vmatprep.subr.mxu0 0.0
        %6642 = vmatpush1.msra.mxu0 0.0
        %6643 = vmatprep.subr.mxu0 0.0
        %6644 = vmatpush1.msra.mxu0 0.0
        %6645 = vmatprep.subr.mxu0 0.0
        %6646 = vmatpush1.msra.mxu0 0.0
        %6647 = vmatprep.subr.mxu0 0.0
        %6648 = vmatpush1.msra.mxu0 0.0
        %6649 = vmatprep.subr.mxu0 0.0
        %6650 = vmatpush1.msra.mxu0 0.0
        %6651 = vmatprep.subr.mxu0 0.0
        %6652 = vmatpush1.msra.mxu0 0.0
        %6653 = vmatprep.subr.mxu0 0.0
        %6654 = vmatpush1.msra.mxu0 0.0
        %6655 = vmatprep.subr.mxu0 0.0
        %6656 = vmatpush1.msra.mxu0 0.0
        %6657 = vmatprep.subr.mxu0 0.0
        %6658 = vmatpush1.msra.mxu0 0.0
        %6659 = vmatprep.subr.mxu0 0.0
        %6660 = vmatpush1.msra.mxu0 %v6628
        %6661 = vmatprep.subr.mxu0 0.0
        %6662 = vmatpush2.msra.mxu0 0.0
        %6663 = vmatprep.subr.mxu0 0.0
        %6664 = vmatpush2.msra.mxu0 0.0
        %6665 = vmatprep.subr.mxu0 0.0
        %6666 = vmatpush2.msra.mxu0 0.0
        %6667 = vmatprep.subr.mxu0 0.0
        %6668 = vmatpush2.msra.mxu0 0.0
        %6669 = vmatprep.subr.mxu0 0.0
        %6670 = vmatpush2.msra.mxu0 0.0
        %6671 = vmatprep.subr.mxu0 0.0
        %6672 = vmatpush2.msra.mxu0 0.0
        %6673 = vmatprep.subr.mxu0 0.0
        %6674 = vmatpush2.msra.mxu0 0.0
        %6675 = vmatprep.subr.mxu0 0.0
        %6676 = vmatpush2.msra.mxu0 0.0
        %6677 = vmatprep.subr.mxu0 0.0
        %6678 = vmatpush2.msra.mxu0 0.0
        %6679 = vmatprep.subr.mxu0 0.0
        %6680 = vmatpush2.msra.mxu0 0.0
        %6681 = vmatprep.subr.mxu0 0.0
        %6682 = vmatpush2.msra.mxu0 0.0
        %6683 = vmatprep.subr.mxu0 0.0
        %6684 = vmatpush2.msra.mxu0 0.0
        %6685 = vmatprep.subr.mxu0 0.0
        %6686 = vmatpush2.msra.mxu0 0.0
        %6687 = vmatprep.subr.mxu0 0.0
        %6688 = vmatpush2.msra.mxu0 0.0
        %6689 = vmatprep.subr.mxu0 0.0
        %6690 = vmatpush2.msra.mxu0 0.0
        %6691 = vmatprep.subr.mxu0 0.0
        %6692 = vmatpush2.msra.mxu0 0.0
        %6693 = vmatprep.mubr.f32.mxu0 0.0
        %6694 = vmatmul.mubr.f32.gmra.mxu0 %v6080
        %v6695 = vpop.f32.mrf.mxu0
        %v6696 = vadd.f32 0.0, %v6695
        %v6697 = vpop.f32.mrf.mxu0
        %6698 = vmatprep.mubr.f32.mxu0 0.0
        %6699 = vmatmul.mubr.f32.gmra.mxu0 %v6083
        %v6700 = vpop.f32.mrf.mxu0
        %v6701 = vadd.f32 0.0, %v6700
        %v6702 = vpop.f32.mrf.mxu0
        %6703 = vmatprep.mubr.f32.mxu0 0.0
        %6704 = vmatmul.mubr.f32.gmra.mxu0 %v6086
        %v6705 = vpop.f32.mrf.mxu0
        %v6706 = vadd.f32 0.0, %v6705
        %v6707 = vpop.f32.mrf.mxu0
        %6708 = vmatprep.mubr.f32.mxu0 0.0
        %6709 = vmatmul.mubr.f32.gmra.mxu0 %v6089
        %v6710 = vpop.f32.mrf.mxu0
        %v6711 = vadd.f32 0.0, %v6710
        %v6712 = vpop.f32.mrf.mxu0
        %6713 = vmatprep.mubr.f32.mxu0 0.0
        %6714 = vmatmul.mubr.f32.gmra.mxu0 %v6092
        %v6715 = vpop.f32.mrf.mxu0
        %v6716 = vadd.f32 0.0, %v6715
        %v6717 = vpop.f32.mrf.mxu0
        %6718 = vmatprep.mubr.f32.mxu0 0.0
        %6719 = vmatmul.mubr.f32.gmra.mxu0 %v6095
        %v6720 = vpop.f32.mrf.mxu0
        %v6721 = vadd.f32 0.0, %v6720
        %v6722 = vpop.f32.mrf.mxu0
        %6723 = vmatprep.mubr.f32.mxu0 0.0
        %6724 = vmatmul.mubr.f32.gmra.mxu0 %v6098
        %v6725 = vpop.f32.mrf.mxu0
        %v6726 = vadd.f32 0.0, %v6725
        %v6727 = vpop.f32.mrf.mxu0
        %6728 = vmatprep.mubr.f32.mxu0 0.0
        %6729 = vmatmul.mubr.f32.gmra.mxu0 %v6101
        %v6730 = vpop.f32.mrf.mxu0
        %v6731 = vadd.f32 0.0, %v6730
        %v6732 = vpop.f32.mrf.mxu0
        %6733 = vmatprep.mubr.f32.mxu0 0.0
        %6734 = vmatmul.mubr.f32.gmra.mxu0 %v6104
        %v6735 = vpop.f32.mrf.mxu0
        %v6736 = vadd.f32 0.0, %v6735
        %v6737 = vpop.f32.mrf.mxu0
        %6738 = vmatprep.mubr.f32.mxu0 0.0
        %6739 = vmatmul.mubr.f32.gmra.mxu0 %v6107
        %v6740 = vpop.f32.mrf.mxu0
        %v6741 = vadd.f32 0.0, %v6740
        %v6742 = vpop.f32.mrf.mxu0
        %6743 = vmatprep.mubr.f32.mxu0 0.0
        %6744 = vmatmul.mubr.f32.gmra.mxu0 %v6110
        %v6745 = vpop.f32.mrf.mxu0
        %v6746 = vadd.f32 0.0, %v6745
        %v6747 = vpop.f32.mrf.mxu0
        %6748 = vmatprep.mubr.f32.mxu0 0.0
        %6749 = vmatmul.mubr.f32.gmra.mxu0 %v6113
        %v6750 = vpop.f32.mrf.mxu0
        %v6751 = vadd.f32 0.0, %v6750
        %v6752 = vpop.f32.mrf.mxu0
        %6753 = vmatprep.mubr.f32.mxu0 0.0
        %6754 = vmatmul.mubr.f32.gmra.mxu0 %v6116
        %v6755 = vpop.f32.mrf.mxu0
        %v6756 = vadd.f32 0.0, %v6755
        %v6757 = vpop.f32.mrf.mxu0
        %6758 = vmatprep.mubr.f32.mxu0 0.0
        %6759 = vmatmul.mubr.f32.gmra.mxu0 %v6119
        %v6760 = vpop.f32.mrf.mxu0
        %v6761 = vadd.f32 0.0, %v6760
        %v6762 = vpop.f32.mrf.mxu0
        %6763 = vmatprep.mubr.f32.mxu0 0.0
        %6764 = vmatmul.mubr.f32.gmra.mxu0 %v6122
        %v6765 = vpop.f32.mrf.mxu0
        %v6766 = vadd.f32 0.0, %v6765
        %v6767 = vpop.f32.mrf.mxu0
        %6768 = vmatprep.mubr.f32.mxu0 0.0
        %6769 = vmatmul.mubr.f32.gmra.mxu0 %v6125
        %v6770 = vpop.f32.mrf.mxu0
        %v6771 = vadd.f32 0.0, %v6770
        %v6772 = vpop.f32.mrf.mxu0
        %6773 = vmatprep.mubr.f32.mxu0 0.0
        %6774 = vmatmul.mubr.f32.gmra.mxu0 %v6128
        %v6775 = vpop.f32.mrf.mxu0
        %v6776 = vadd.f32 0.0, %v6775
        %v6777 = vpop.f32.mrf.mxu0
        %6778 = vmatprep.mubr.f32.mxu0 0.0
        %6779 = vmatmul.mubr.f32.gmra.mxu0 %v6131
        %v6780 = vpop.f32.mrf.mxu0
        %v6781 = vadd.f32 0.0, %v6780
        %v6782 = vpop.f32.mrf.mxu0
        %6783 = vmatprep.mubr.f32.mxu0 0.0
        %6784 = vmatmul.mubr.f32.gmra.mxu0 %v6134
        %v6785 = vpop.f32.mrf.mxu0
        %v6786 = vadd.f32 0.0, %v6785
        %v6787 = vpop.f32.mrf.mxu0
        %6788 = vmatprep.mubr.f32.mxu0 0.0
        %6789 = vmatmul.mubr.f32.gmra.mxu0 %v6137
        %v6790 = vpop.f32.mrf.mxu0
        %v6791 = vadd.f32 0.0, %v6790
        %v6792 = vpop.f32.mrf.mxu0
        %6793 = vmatprep.mubr.f32.mxu0 0.0
        %6794 = vmatmul.mubr.f32.gmra.mxu0 %v6140
        %v6795 = vpop.f32.mrf.mxu0
        %v6796 = vadd.f32 0.0, %v6795
        %v6797 = vpop.f32.mrf.mxu0
        %6798 = vmatprep.mubr.f32.mxu0 0.0
        %6799 = vmatmul.mubr.f32.gmra.mxu0 %v6143
        %v6800 = vpop.f32.mrf.mxu0
        %v6801 = vadd.f32 0.0, %v6800
        %v6802 = vpop.f32.mrf.mxu0
        %6803 = vmatprep.mubr.f32.mxu0 0.0
        %6804 = vmatmul.mubr.f32.gmra.mxu0 %v6146
        %v6805 = vpop.f32.mrf.mxu0
        %v6806 = vadd.f32 0.0, %v6805
        %v6807 = vpop.f32.mrf.mxu0
        %6808 = vmatprep.mubr.f32.mxu0 0.0
        %6809 = vmatmul.mubr.f32.gmra.mxu0 %v6149
        %v6810 = vpop.f32.mrf.mxu0
        %v6811 = vadd.f32 0.0, %v6810
        %v6812 = vpop.f32.mrf.mxu0
        %6813 = vmatprep.mubr.f32.mxu0 0.0
        %6814 = vmatmul.mubr.f32.gmra.mxu0 %v6152
        %v6815 = vpop.f32.mrf.mxu0
        %v6816 = vadd.f32 0.0, %v6815
        %v6817 = vpop.f32.mrf.mxu0
        %6818 = vmatprep.mubr.f32.mxu0 0.0
        %6819 = vmatmul.mubr.f32.gmra.mxu0 %v6155
        %v6820 = vpop.f32.mrf.mxu0
        %v6821 = vadd.f32 0.0, %v6820
        %v6822 = vpop.f32.mrf.mxu0
        %6823 = vmatprep.mubr.f32.mxu0 0.0
        %6824 = vmatmul.mubr.f32.gmra.mxu0 %v6158
        %v6825 = vpop.f32.mrf.mxu0
        %v6826 = vadd.f32 0.0, %v6825
        %v6827 = vpop.f32.mrf.mxu0
        %6828 = vmatprep.mubr.f32.mxu0 0.0
        %6829 = vmatmul.mubr.f32.gmra.mxu0 %v6161
        %v6830 = vpop.f32.mrf.mxu0
        %v6831 = vadd.f32 0.0, %v6830
        %v6832 = vpop.f32.mrf.mxu0
        %6833 = vmatprep.mubr.f32.mxu0 0.0
        %6834 = vmatmul.mubr.f32.gmra.mxu0 %v6164
        %v6835 = vpop.f32.mrf.mxu0
        %v6836 = vadd.f32 0.0, %v6835
        %v6837 = vpop.f32.mrf.mxu0
        %6838 = vmatprep.mubr.f32.mxu0 0.0
        %6839 = vmatmul.mubr.f32.gmra.mxu0 %v6167
        %v6840 = vpop.f32.mrf.mxu0
        %v6841 = vadd.f32 0.0, %v6840
        %v6842 = vpop.f32.mrf.mxu0
        %6843 = vmatprep.mubr.f32.mxu0 0.0
        %6844 = vmatmul.mubr.f32.gmra.mxu0 %v6170
        %v6845 = vpop.f32.mrf.mxu0
        %v6846 = vadd.f32 0.0, %v6845
        %v6847 = vpop.f32.mrf.mxu0
        %6848 = vmatprep.mubr.f32.mxu0 0.0
        %6849 = vmatmul.mubr.f32.gmra.mxu0 %v6173
        %v6850 = vpop.f32.mrf.mxu0
        %v6851 = vadd.f32 0.0, %v6850
        %v6852 = vpop.f32.mrf.mxu0
        %6853 = vdwg.mxu0
        %v6886 = vrot.slane %v6242, 7
        %v6887 = vrot.slane %v6247, 7
        %v6888 = vsel %vm611, %v6886, %v6887
        %v6889 = vrot.slane %v6252, 7
        %v6890 = vrot.slane %v6257, 7
        %v6891 = vsel %vm611, %v6889, %v6890
        %v6892 = vrot.slane %v6262, 7
        %v6893 = vrot.slane %v6267, 7
        %v6894 = vsel %vm611, %v6892, %v6893
        %v6895 = vrot.slane %v6272, 7
        %v6896 = vrot.slane %v6277, 7
        %v6897 = vsel %vm611, %v6895, %v6896
        %v6898 = vrot.slane %v6282, 7
        %v6899 = vrot.slane %v6287, 7
        %v6900 = vsel %vm611, %v6898, %v6899
        %v6901 = vrot.slane %v6292, 7
        %v6902 = vrot.slane %v6297, 7
        %v6903 = vsel %vm611, %v6901, %v6902
        %v6904 = vrot.slane %v6302, 7
        %v6905 = vrot.slane %v6307, 7
        %v6906 = vsel %vm611, %v6904, %v6905
        %v6907 = vrot.slane %v6312, 7
        %v6908 = vrot.slane %v6317, 7
        %v6909 = vsel %vm611, %v6907, %v6908
        %v6910 = vrot.slane %v6322, 7
        %v6911 = vrot.slane %v6327, 7
        %v6912 = vsel %vm611, %v6910, %v6911
        %v6913 = vrot.slane %v6332, 7
        %v6914 = vrot.slane %v6337, 7
        %v6915 = vsel %vm611, %v6913, %v6914
        %v6916 = vrot.slane %v6342, 7
        %v6917 = vrot.slane %v6347, 7
        %v6918 = vsel %vm611, %v6916, %v6917
        %v6919 = vrot.slane %v6352, 7
        %v6920 = vrot.slane %v6357, 7
        %v6921 = vsel %vm611, %v6919, %v6920
        %v6922 = vrot.slane %v6362, 7
        %v6923 = vrot.slane %v6367, 7
        %v6924 = vsel %vm611, %v6922, %v6923
        %v6925 = vrot.slane %v6372, 7
        %v6926 = vrot.slane %v6377, 7
        %v6927 = vsel %vm611, %v6925, %v6926
        %v6928 = vrot.slane %v6382, 7
        %v6929 = vrot.slane %v6387, 7
        %v6930 = vsel %vm611, %v6928, %v6929
        %v6931 = vrot.slane %v6392, 7
        %v6932 = vrot.slane %v6397, 7
        %v6933 = vsel %vm611, %v6931, %v6932
        %v6966 = vsel %vm611, 0.0, %v6886
        %v6967 = vsel %vm611, 0.0, %v6889
        %v6968 = vsel %vm611, 0.0, %v6892
        %v6969 = vsel %vm611, 0.0, %v6895
        %v6970 = vsel %vm611, 0.0, %v6898
        %v6971 = vsel %vm611, 0.0, %v6901
        %v6972 = vsel %vm611, 0.0, %v6904
        %v6973 = vsel %vm611, 0.0, %v6907
        %v6974 = vsel %vm611, 0.0, %v6910
        %v6975 = vsel %vm611, 0.0, %v6913
        %v6976 = vsel %vm611, 0.0, %v6916
        %v6977 = vsel %vm611, 0.0, %v6919
        %v6978 = vsel %vm611, 0.0, %v6922
        %v6979 = vsel %vm611, 0.0, %v6925
        %v6980 = vsel %vm611, 0.0, %v6928
        %v6981 = vsel %vm611, 0.0, %v6931
        %v6982 = vadd.f32 %v6469, %v6966
        %v6983 = vadd.f32 %v6474, %v6888
        %v6984 = vadd.f32 %v6479, %v6967
        %v6985 = vadd.f32 %v6484, %v6891
        %v6986 = vadd.f32 %v6489, %v6968
        %v6987 = vadd.f32 %v6494, %v6894
        %v6988 = vadd.f32 %v6499, %v6969
        %v6989 = vadd.f32 %v6504, %v6897
        %v6990 = vadd.f32 %v6509, %v6970
        %v6991 = vadd.f32 %v6514, %v6900
        %v6992 = vadd.f32 %v6519, %v6971
        %v6993 = vadd.f32 %v6524, %v6903
        %v6994 = vadd.f32 %v6529, %v6972
        %v6995 = vadd.f32 %v6534, %v6906
        %v6996 = vadd.f32 %v6539, %v6973
        %v6997 = vadd.f32 %v6544, %v6909
        %v6998 = vadd.f32 %v6549, %v6974
        %v6999 = vadd.f32 %v6554, %v6912
        %v7000 = vadd.f32 %v6559, %v6975
        %v7001 = vadd.f32 %v6564, %v6915
        %v7002 = vadd.f32 %v6569, %v6976
        %v7003 = vadd.f32 %v6574, %v6918
        %v7004 = vadd.f32 %v6579, %v6977
        %v7005 = vadd.f32 %v6584, %v6921
        %v7006 = vadd.f32 %v6589, %v6978
        %v7007 = vadd.f32 %v6594, %v6924
        %v7008 = vadd.f32 %v6599, %v6979
        %v7009 = vadd.f32 %v6604, %v6927
        %v7010 = vadd.f32 %v6609, %v6980
        %v7011 = vadd.f32 %v6614, %v6930
        %v7012 = vadd.f32 %v6619, %v6981
        %v7013 = vadd.f32 %v6624, %v6933
        %v7046 = vrot.slane %v6696, 1
        %v7047 = vrot.slane %v6701, 1
        %v7048 = vsel %vm740, %v7046, %v7047
        %v7049 = vrot.slane %v6706, 1
        %v7050 = vrot.slane %v6711, 1
        %v7051 = vsel %vm740, %v7049, %v7050
        %v7052 = vrot.slane %v6716, 1
        %v7053 = vrot.slane %v6721, 1
        %v7054 = vsel %vm740, %v7052, %v7053
        %v7055 = vrot.slane %v6726, 1
        %v7056 = vrot.slane %v6731, 1
        %v7057 = vsel %vm740, %v7055, %v7056
        %v7058 = vrot.slane %v6736, 1
        %v7059 = vrot.slane %v6741, 1
        %v7060 = vsel %vm740, %v7058, %v7059
        %v7061 = vrot.slane %v6746, 1
        %v7062 = vrot.slane %v6751, 1
        %v7063 = vsel %vm740, %v7061, %v7062
        %v7064 = vrot.slane %v6756, 1
        %v7065 = vrot.slane %v6761, 1
        %v7066 = vsel %vm740, %v7064, %v7065
        %v7067 = vrot.slane %v6766, 1
        %v7068 = vrot.slane %v6771, 1
        %v7069 = vsel %vm740, %v7067, %v7068
        %v7070 = vrot.slane %v6776, 1
        %v7071 = vrot.slane %v6781, 1
        %v7072 = vsel %vm740, %v7070, %v7071
        %v7073 = vrot.slane %v6786, 1
        %v7074 = vrot.slane %v6791, 1
        %v7075 = vsel %vm740, %v7073, %v7074
        %v7076 = vrot.slane %v6796, 1
        %v7077 = vrot.slane %v6801, 1
        %v7078 = vsel %vm740, %v7076, %v7077
        %v7079 = vrot.slane %v6806, 1
        %v7080 = vrot.slane %v6811, 1
        %v7081 = vsel %vm740, %v7079, %v7080
        %v7082 = vrot.slane %v6816, 1
        %v7083 = vrot.slane %v6821, 1
        %v7084 = vsel %vm740, %v7082, %v7083
        %v7085 = vrot.slane %v6826, 1
        %v7086 = vrot.slane %v6831, 1
        %v7087 = vsel %vm740, %v7085, %v7086
        %v7088 = vrot.slane %v6836, 1
        %v7089 = vrot.slane %v6841, 1
        %v7090 = vsel %vm740, %v7088, %v7089
        %v7091 = vrot.slane %v6846, 1
        %v7092 = vrot.slane %v6851, 1
        %v7093 = vsel %vm740, %v7091, %v7092
        %v7126 = vsel %vm740, %v7047, 0.0
        %v7127 = vsel %vm740, %v7050, 0.0
        %v7128 = vsel %vm740, %v7053, 0.0
        %v7129 = vsel %vm740, %v7056, 0.0
        %v7130 = vsel %vm740, %v7059, 0.0
        %v7131 = vsel %vm740, %v7062, 0.0
        %v7132 = vsel %vm740, %v7065, 0.0
        %v7133 = vsel %vm740, %v7068, 0.0
        %v7134 = vsel %vm740, %v7071, 0.0
        %v7135 = vsel %vm740, %v7074, 0.0
        %v7136 = vsel %vm740, %v7077, 0.0
        %v7137 = vsel %vm740, %v7080, 0.0
        %v7138 = vsel %vm740, %v7083, 0.0
        %v7139 = vsel %vm740, %v7086, 0.0
        %v7140 = vsel %vm740, %v7089, 0.0
        %v7141 = vsel %vm740, %v7092, 0.0
        %v7142 = vadd.f32 %v6982, %v7048
        %v7143 = vadd.f32 %v6983, %v7126
        %v7144 = vadd.f32 %v6984, %v7051
        %v7145 = vadd.f32 %v6985, %v7127
        %v7146 = vadd.f32 %v6986, %v7054
        %v7147 = vadd.f32 %v6987, %v7128
        %v7148 = vadd.f32 %v6988, %v7057
        %v7149 = vadd.f32 %v6989, %v7129
        %v7150 = vadd.f32 %v6990, %v7060
        %v7151 = vadd.f32 %v6991, %v7130
        %v7152 = vadd.f32 %v6992, %v7063
        %v7153 = vadd.f32 %v6993, %v7131
        %v7154 = vadd.f32 %v6994, %v7066
        %v7155 = vadd.f32 %v6995, %v7132
        %v7156 = vadd.f32 %v6996, %v7069
        %v7157 = vadd.f32 %v6997, %v7133
        %v7158 = vadd.f32 %v6998, %v7072
        %v7159 = vadd.f32 %v6999, %v7134
        %v7160 = vadd.f32 %v7000, %v7075
        %v7161 = vadd.f32 %v7001, %v7135
        %v7162 = vadd.f32 %v7002, %v7078
        %v7163 = vadd.f32 %v7003, %v7136
        %v7164 = vadd.f32 %v7004, %v7081
        %v7165 = vadd.f32 %v7005, %v7137
        %v7166 = vadd.f32 %v7006, %v7084
        %v7167 = vadd.f32 %v7007, %v7138
        %v7168 = vadd.f32 %v7008, %v7087
        %v7169 = vadd.f32 %v7009, %v7139
        %v7170 = vadd.f32 %v7010, %v7090
        %v7171 = vadd.f32 %v7011, %v7140
        %v7172 = vadd.f32 %v7012, %v7093
        %v7173 = vadd.f32 %v7013, %v7141
        %v7174 = vld [vmem:[%s14] sm:$0x1]
        %v7175 = vlaneseq
        %v7176 = vshrl.u32 %v7175, 7
        %v7177 = vsub.s32 0, %v7176
        %v7178 = vrot.slane %v7174, %v7177
        %v7179 = vmul.f32 %v7142, %v7178
        %v7180 = vmul.f32 %v7143, %v7178
        %v7181 = vmul.f32 %v7144, %v7178
        %v7182 = vmul.f32 %v7145, %v7178
        %v7183 = vmul.f32 %v7146, %v7178
        %v7184 = vmul.f32 %v7147, %v7178
        %v7185 = vmul.f32 %v7148, %v7178
        %v7186 = vmul.f32 %v7149, %v7178
        %v7187 = vmul.f32 %v7150, %v7178
        %v7188 = vmul.f32 %v7151, %v7178
        %v7189 = vmul.f32 %v7152, %v7178
        %v7190 = vmul.f32 %v7153, %v7178
        %v7191 = vmul.f32 %v7154, %v7178
        %v7192 = vmul.f32 %v7155, %v7178
        %v7193 = vmul.f32 %v7156, %v7178
        %v7194 = vmul.f32 %v7157, %v7178
        %v7195 = vmul.f32 %v7158, %v7178
        %v7196 = vmul.f32 %v7159, %v7178
        %v7197 = vmul.f32 %v7160, %v7178
        %v7198 = vmul.f32 %v7161, %v7178
        %v7199 = vmul.f32 %v7162, %v7178
        %v7200 = vmul.f32 %v7163, %v7178
        %v7201 = vmul.f32 %v7164, %v7178
        %v7202 = vmul.f32 %v7165, %v7178
        %v7203 = vmul.f32 %v7166, %v7178
        %v7204 = vmul.f32 %v7167, %v7178
        %v7205 = vmul.f32 %v7168, %v7178
        %v7206 = vmul.f32 %v7169, %v7178
        %v7207 = vmul.f32 %v7170, %v7178
        %v7208 = vmul.f32 %v7171, %v7178
        %v7209 = vmul.f32 %v7172, %v7178
        %v7210 = vmul.f32 %v7173, %v7178
        %v7211 = vld [vmem:[%s14 + $0x1] sm:$0x1]
        %v7212 = vlaneseq
        %v7213 = vshrl.u32 %v7212, 7
        %v7214 = vsub.s32 0, %v7213
        %v7215 = vrot.slane %v7211, %v7214
        %v7216 = vadd.f32 %v7179, %v7215
        %v7217 = vadd.f32 %v7180, %v7215
        %v7218 = vadd.f32 %v7181, %v7215
        %v7219 = vadd.f32 %v7182, %v7215
        %v7220 = vadd.f32 %v7183, %v7215
        %v7221 = vadd.f32 %v7184, %v7215
        %v7222 = vadd.f32 %v7185, %v7215
        %v7223 = vadd.f32 %v7186, %v7215
        %v7224 = vadd.f32 %v7187, %v7215
        %v7225 = vadd.f32 %v7188, %v7215
        %v7226 = vadd.f32 %v7189, %v7215
        %v7227 = vadd.f32 %v7190, %v7215
        %v7228 = vadd.f32 %v7191, %v7215
        %v7229 = vadd.f32 %v7192, %v7215
        %v7230 = vadd.f32 %v7193, %v7215
        %v7231 = vadd.f32 %v7194, %v7215
        %v7232 = vadd.f32 %v7195, %v7215
        %v7233 = vadd.f32 %v7196, %v7215
        %v7234 = vadd.f32 %v7197, %v7215
        %v7235 = vadd.f32 %v7198, %v7215
        %v7236 = vadd.f32 %v7199, %v7215
        %v7237 = vadd.f32 %v7200, %v7215
        %v7238 = vadd.f32 %v7201, %v7215
        %v7239 = vadd.f32 %v7202, %v7215
        %v7240 = vadd.f32 %v7203, %v7215
        %v7241 = vadd.f32 %v7204, %v7215
        %v7242 = vadd.f32 %v7205, %v7215
        %v7243 = vadd.f32 %v7206, %v7215
        %v7244 = vadd.f32 %v7207, %v7215
        %v7245 = vadd.f32 %v7208, %v7215
        %v7246 = vadd.f32 %v7209, %v7215
        %v7247 = vadd.f32 %v7210, %v7215
        %v7248 = vmax.f32 %v7216, 0.0
        %v7249 = vmax.f32 %v7217, 0.0
        %v7250 = vmax.f32 %v7218, 0.0
        %v7251 = vmax.f32 %v7219, 0.0
        %v7252 = vmax.f32 %v7220, 0.0
        %v7253 = vmax.f32 %v7221, 0.0
        %v7254 = vmax.f32 %v7222, 0.0
        %v7255 = vmax.f32 %v7223, 0.0
        %v7256 = vmax.f32 %v7224, 0.0
        %v7257 = vmax.f32 %v7225, 0.0
        %v7258 = vmax.f32 %v7226, 0.0
        %v7259 = vmax.f32 %v7227, 0.0
        %v7260 = vmax.f32 %v7228, 0.0
        %v7261 = vmax.f32 %v7229, 0.0
        %v7262 = vmax.f32 %v7230, 0.0
        %v7263 = vmax.f32 %v7231, 0.0
        %v7264 = vmax.f32 %v7232, 0.0
        %v7265 = vmax.f32 %v7233, 0.0
        %v7266 = vmax.f32 %v7234, 0.0
        %v7267 = vmax.f32 %v7235, 0.0
        %v7268 = vmax.f32 %v7236, 0.0
        %v7269 = vmax.f32 %v7237, 0.0
        %v7270 = vmax.f32 %v7238, 0.0
        %v7271 = vmax.f32 %v7239, 0.0
        %v7272 = vmax.f32 %v7240, 0.0
        %v7273 = vmax.f32 %v7241, 0.0
        %v7274 = vmax.f32 %v7242, 0.0
        %v7275 = vmax.f32 %v7243, 0.0
        %v7276 = vmax.f32 %v7244, 0.0
        %v7277 = vmax.f32 %v7245, 0.0
        %v7278 = vmax.f32 %v7246, 0.0
        %v7279 = vmax.f32 %v7247, 0.0
        %v7280 = vld [vmem:[%s15] sm:$0xff]
        %7281 = vmatprep.subr.mxu0 0.0
        %7282 = vmatpush1.msra.mxu0 0.0
        %7283 = vmatprep.subr.mxu0 0.0
        %7284 = vmatpush1.msra.mxu0 0.0
        %7285 = vmatprep.subr.mxu0 0.0
        %7286 = vmatpush1.msra.mxu0 0.0
        %7287 = vmatprep.subr.mxu0 0.0
        %7288 = vmatpush1.msra.mxu0 0.0
        %7289 = vmatprep.subr.mxu0 0.0
        %7290 = vmatpush1.msra.mxu0 0.0
        %7291 = vmatprep.subr.mxu0 0.0
        %7292 = vmatpush1.msra.mxu0 0.0
        %7293 = vmatprep.subr.mxu0 0.0
        %7294 = vmatpush1.msra.mxu0 0.0
        %7295 = vmatprep.subr.mxu0 0.0
        %7296 = vmatpush1.msra.mxu0 0.0
        %7297 = vmatprep.subr.mxu0 0.0
        %7298 = vmatpush1.msra.mxu0 0.0
        %7299 = vmatprep.subr.mxu0 0.0
        %7300 = vmatpush1.msra.mxu0 0.0
        %7301 = vmatprep.subr.mxu0 0.0
        %7302 = vmatpush1.msra.mxu0 0.0
        %7303 = vmatprep.subr.mxu0 0.0
        %7304 = vmatpush1.msra.mxu0 0.0
        %7305 = vmatprep.subr.mxu0 0.0
        %7306 = vmatpush1.msra.mxu0 0.0
        %7307 = vmatprep.subr.mxu0 0.0
        %7308 = vmatpush1.msra.mxu0 0.0
        %7309 = vmatprep.subr.mxu0 0.0
        %7310 = vmatpush1.msra.mxu0 0.0
        %7311 = vmatprep.subr.mxu0 0.0
        %7312 = vmatpush1.msra.mxu0 %v7280
        %7313 = vmatprep.subr.mxu0 0.0
        %7314 = vmatpush2.msra.mxu0 0.0
        %7315 = vmatprep.subr.mxu0 0.0
        %7316 = vmatpush2.msra.mxu0 0.0
        %7317 = vmatprep.subr.mxu0 0.0
        %7318 = vmatpush2.msra.mxu0 0.0
        %7319 = vmatprep.subr.mxu0 0.0
        %7320 = vmatpush2.msra.mxu0 0.0
        %7321 = vmatprep.subr.mxu0 0.0
        %7322 = vmatpush2.msra.mxu0 0.0
        %7323 = vmatprep.subr.mxu0 0.0
        %7324 = vmatpush2.msra.mxu0 0.0
        %7325 = vmatprep.subr.mxu0 0.0
        %7326 = vmatpush2.msra.mxu0 0.0
        %7327 = vmatprep.subr.mxu0 0.0
        %7328 = vmatpush2.msra.mxu0 0.0
        %7329 = vmatprep.subr.mxu0 0.0
        %7330 = vmatpush2.msra.mxu0 0.0
        %7331 = vmatprep.subr.mxu0 0.0
        %7332 = vmatpush2.msra.mxu0 0.0
        %7333 = vmatprep.subr.mxu0 0.0
        %7334 = vmatpush2.msra.mxu0 0.0
        %7335 = vmatprep.subr.mxu0 0.0
        %7336 = vmatpush2.msra.mxu0 0.0
        %7337 = vmatprep.subr.mxu0 0.0
        %7338 = vmatpush2.msra.mxu0 0.0
        %7339 = vmatprep.subr.mxu0 0.0
        %7340 = vmatpush2.msra.mxu0 0.0
        %7341 = vmatprep.subr.mxu0 0.0
        %7342 = vmatpush2.msra.mxu0 0.0
        %7343 = vmatprep.subr.mxu0 0.0
        %7344 = vmatpush2.msra.mxu0 0.0
        %7345 = vmatprep.mubr.f32.mxu0 0.0
        %7346 = vmatmul.mubr.f32.gmra.mxu0 %v6080
        %v7347 = vpop.f32.mrf.mxu0
        %v7348 = vadd.f32 0.0, %v7347
        %v7349 = vpop.f32.mrf.mxu0
        %7350 = vmatprep.mubr.f32.mxu0 0.0
        %7351 = vmatmul.mubr.f32.gmra.mxu0 %v6083
        %v7352 = vpop.f32.mrf.mxu0
        %v7353 = vadd.f32 0.0, %v7352
        %v7354 = vpop.f32.mrf.mxu0
        %7355 = vmatprep.mubr.f32.mxu0 0.0
        %7356 = vmatmul.mubr.f32.gmra.mxu0 %v6086
        %v7357 = vpop.f32.mrf.mxu0
        %v7358 = vadd.f32 0.0, %v7357
        %v7359 = vpop.f32.mrf.mxu0
        %7360 = vmatprep.mubr.f32.mxu0 0.0
        %7361 = vmatmul.mubr.f32.gmra.mxu0 %v6089
        %v7362 = vpop.f32.mrf.mxu0
        %v7363 = vadd.f32 0.0, %v7362
        %v7364 = vpop.f32.mrf.mxu0
        %7365 = vmatprep.mubr.f32.mxu0 0.0
        %7366 = vmatmul.mubr.f32.gmra.mxu0 %v6092
        %v7367 = vpop.f32.mrf.mxu0
        %v7368 = vadd.f32 0.0, %v7367
        %v7369 = vpop.f32.mrf.mxu0
        %7370 = vmatprep.mubr.f32.mxu0 0.0
        %7371 = vmatmul.mubr.f32.gmra.mxu0 %v6095
        %v7372 = vpop.f32.mrf.mxu0
        %v7373 = vadd.f32 0.0, %v7372
        %v7374 = vpop.f32.mrf.mxu0
        %7375 = vmatprep.mubr.f32.mxu0 0.0
        %7376 = vmatmul.mubr.f32.gmra.mxu0 %v6098
        %v7377 = vpop.f32.mrf.mxu0
        %v7378 = vadd.f32 0.0, %v7377
        %v7379 = vpop.f32.mrf.mxu0
        %7380 = vmatprep.mubr.f32.mxu0 0.0
        %7381 = vmatmul.mubr.f32.gmra.mxu0 %v6101
        %v7382 = vpop.f32.mrf.mxu0
        %v7383 = vadd.f32 0.0, %v7382
        %v7384 = vpop.f32.mrf.mxu0
        %7385 = vmatprep.mubr.f32.mxu0 0.0
        %7386 = vmatmul.mubr.f32.gmra.mxu0 %v6104
        %v7387 = vpop.f32.mrf.mxu0
        %v7388 = vadd.f32 0.0, %v7387
        %v7389 = vpop.f32.mrf.mxu0
        %7390 = vmatprep.mubr.f32.mxu0 0.0
        %7391 = vmatmul.mubr.f32.gmra.mxu0 %v6107
        %v7392 = vpop.f32.mrf.mxu0
        %v7393 = vadd.f32 0.0, %v7392
        %v7394 = vpop.f32.mrf.mxu0
        %7395 = vmatprep.mubr.f32.mxu0 0.0
        %7396 = vmatmul.mubr.f32.gmra.mxu0 %v6110
        %v7397 = vpop.f32.mrf.mxu0
        %v7398 = vadd.f32 0.0, %v7397
        %v7399 = vpop.f32.mrf.mxu0
        %7400 = vmatprep.mubr.f32.mxu0 0.0
        %7401 = vmatmul.mubr.f32.gmra.mxu0 %v6113
        %v7402 = vpop.f32.mrf.mxu0
        %v7403 = vadd.f32 0.0, %v7402
        %v7404 = vpop.f32.mrf.mxu0
        %7405 = vmatprep.mubr.f32.mxu0 0.0
        %7406 = vmatmul.mubr.f32.gmra.mxu0 %v6116
        %v7407 = vpop.f32.mrf.mxu0
        %v7408 = vadd.f32 0.0, %v7407
        %v7409 = vpop.f32.mrf.mxu0
        %7410 = vmatprep.mubr.f32.mxu0 0.0
        %7411 = vmatmul.mubr.f32.gmra.mxu0 %v6119
        %v7412 = vpop.f32.mrf.mxu0
        %v7413 = vadd.f32 0.0, %v7412
        %v7414 = vpop.f32.mrf.mxu0
        %7415 = vmatprep.mubr.f32.mxu0 0.0
        %7416 = vmatmul.mubr.f32.gmra.mxu0 %v6122
        %v7417 = vpop.f32.mrf.mxu0
        %v7418 = vadd.f32 0.0, %v7417
        %v7419 = vpop.f32.mrf.mxu0
        %7420 = vmatprep.mubr.f32.mxu0 0.0
        %7421 = vmatmul.mubr.f32.gmra.mxu0 %v6125
        %v7422 = vpop.f32.mrf.mxu0
        %v7423 = vadd.f32 0.0, %v7422
        %v7424 = vpop.f32.mrf.mxu0
        %7425 = vmatprep.mubr.f32.mxu0 0.0
        %7426 = vmatmul.mubr.f32.gmra.mxu0 %v6128
        %v7427 = vpop.f32.mrf.mxu0
        %v7428 = vadd.f32 0.0, %v7427
        %v7429 = vpop.f32.mrf.mxu0
        %7430 = vmatprep.mubr.f32.mxu0 0.0
        %7431 = vmatmul.mubr.f32.gmra.mxu0 %v6131
        %v7432 = vpop.f32.mrf.mxu0
        %v7433 = vadd.f32 0.0, %v7432
        %v7434 = vpop.f32.mrf.mxu0
        %7435 = vmatprep.mubr.f32.mxu0 0.0
        %7436 = vmatmul.mubr.f32.gmra.mxu0 %v6134
        %v7437 = vpop.f32.mrf.mxu0
        %v7438 = vadd.f32 0.0, %v7437
        %v7439 = vpop.f32.mrf.mxu0
        %7440 = vmatprep.mubr.f32.mxu0 0.0
        %7441 = vmatmul.mubr.f32.gmra.mxu0 %v6137
        %v7442 = vpop.f32.mrf.mxu0
        %v7443 = vadd.f32 0.0, %v7442
        %v7444 = vpop.f32.mrf.mxu0
        %7445 = vmatprep.mubr.f32.mxu0 0.0
        %7446 = vmatmul.mubr.f32.gmra.mxu0 %v6140
        %v7447 = vpop.f32.mrf.mxu0
        %v7448 = vadd.f32 0.0, %v7447
        %v7449 = vpop.f32.mrf.mxu0
        %7450 = vmatprep.mubr.f32.mxu0 0.0
        %7451 = vmatmul.mubr.f32.gmra.mxu0 %v6143
        %v7452 = vpop.f32.mrf.mxu0
        %v7453 = vadd.f32 0.0, %v7452
        %v7454 = vpop.f32.mrf.mxu0
        %7455 = vmatprep.mubr.f32.mxu0 0.0
        %7456 = vmatmul.mubr.f32.gmra.mxu0 %v6146
        %v7457 = vpop.f32.mrf.mxu0
        %v7458 = vadd.f32 0.0, %v7457
        %v7459 = vpop.f32.mrf.mxu0
        %7460 = vmatprep.mubr.f32.mxu0 0.0
        %7461 = vmatmul.mubr.f32.gmra.mxu0 %v6149
        %v7462 = vpop.f32.mrf.mxu0
        %v7463 = vadd.f32 0.0, %v7462
        %v7464 = vpop.f32.mrf.mxu0
        %7465 = vmatprep.mubr.f32.mxu0 0.0
        %7466 = vmatmul.mubr.f32.gmra.mxu0 %v6152
        %v7467 = vpop.f32.mrf.mxu0
        %v7468 = vadd.f32 0.0, %v7467
        %v7469 = vpop.f32.mrf.mxu0
        %7470 = vmatprep.mubr.f32.mxu0 0.0
        %7471 = vmatmul.mubr.f32.gmra.mxu0 %v6155
        %v7472 = vpop.f32.mrf.mxu0
        %v7473 = vadd.f32 0.0, %v7472
        %v7474 = vpop.f32.mrf.mxu0
        %7475 = vmatprep.mubr.f32.mxu0 0.0
        %7476 = vmatmul.mubr.f32.gmra.mxu0 %v6158
        %v7477 = vpop.f32.mrf.mxu0
        %v7478 = vadd.f32 0.0, %v7477
        %v7479 = vpop.f32.mrf.mxu0
        %7480 = vmatprep.mubr.f32.mxu0 0.0
        %7481 = vmatmul.mubr.f32.gmra.mxu0 %v6161
        %v7482 = vpop.f32.mrf.mxu0
        %v7483 = vadd.f32 0.0, %v7482
        %v7484 = vpop.f32.mrf.mxu0
        %7485 = vmatprep.mubr.f32.mxu0 0.0
        %7486 = vmatmul.mubr.f32.gmra.mxu0 %v6164
        %v7487 = vpop.f32.mrf.mxu0
        %v7488 = vadd.f32 0.0, %v7487
        %v7489 = vpop.f32.mrf.mxu0
        %7490 = vmatprep.mubr.f32.mxu0 0.0
        %7491 = vmatmul.mubr.f32.gmra.mxu0 %v6167
        %v7492 = vpop.f32.mrf.mxu0
        %v7493 = vadd.f32 0.0, %v7492
        %v7494 = vpop.f32.mrf.mxu0
        %7495 = vmatprep.mubr.f32.mxu0 0.0
        %7496 = vmatmul.mubr.f32.gmra.mxu0 %v6170
        %v7497 = vpop.f32.mrf.mxu0
        %v7498 = vpop.f32.mrf.mxu0
        %7499 = vmatprep.mubr.f32.mxu0 0.0
        %7500 = vmatmul.mubr.f32.gmra.mxu0 %v6173
        %v7501 = vpop.f32.mrf.mxu0
        %v7502 = vpop.f32.mrf.mxu0
        %7503 = vdwg.mxu0
        %s7504 = scalar_lea.vmem %s15, 8
        %v7505 = vld [vmem:[%s7504] sm:$0xff]
        %7506 = vmatprep.subr.mxu0 0.0
        %7507 = vmatpush1.msra.mxu0 0.0
        %7508 = vmatprep.subr.mxu0 0.0
        %7509 = vmatpush1.msra.mxu0 0.0
        %7510 = vmatprep.subr.mxu0 0.0
        %7511 = vmatpush1.msra.mxu0 0.0
        %7512 = vmatprep.subr.mxu0 0.0
        %7513 = vmatpush1.msra.mxu0 0.0
        %7514 = vmatprep.subr.mxu0 0.0
        %7515 = vmatpush1.msra.mxu0 0.0
        %7516 = vmatprep.subr.mxu0 0.0
        %7517 = vmatpush1.msra.mxu0 0.0
        %7518 = vmatprep.subr.mxu0 0.0
        %7519 = vmatpush1.msra.mxu0 0.0
        %7520 = vmatprep.subr.mxu0 0.0
        %7521 = vmatpush1.msra.mxu0 0.0
        %7522 = vmatprep.subr.mxu0 0.0
        %7523 = vmatpush1.msra.mxu0 0.0
        %7524 = vmatprep.subr.mxu0 0.0
        %7525 = vmatpush1.msra.mxu0 0.0
        %7526 = vmatprep.subr.mxu0 0.0
        %7527 = vmatpush1.msra.mxu0 0.0
        %7528 = vmatprep.subr.mxu0 0.0
        %7529 = vmatpush1.msra.mxu0 0.0
        %7530 = vmatprep.subr.mxu0 0.0
        %7531 = vmatpush1.msra.mxu0 0.0
        %7532 = vmatprep.subr.mxu0 0.0
        %7533 = vmatpush1.msra.mxu0 0.0
        %7534 = vmatprep.subr.mxu0 0.0
        %7535 = vmatpush1.msra.mxu0 0.0
        %7536 = vmatprep.subr.mxu0 0.0
        %7537 = vmatpush1.msra.mxu0 %v7505
        %7538 = vmatprep.subr.mxu0 0.0
        %7539 = vmatpush2.msra.mxu0 0.0
        %7540 = vmatprep.subr.mxu0 0.0
        %7541 = vmatpush2.msra.mxu0 0.0
        %7542 = vmatprep.subr.mxu0 0.0
        %7543 = vmatpush2.msra.mxu0 0.0
        %7544 = vmatprep.subr.mxu0 0.0
        %7545 = vmatpush2.msra.mxu0 0.0
        %7546 = vmatprep.subr.mxu0 0.0
        %7547 = vmatpush2.msra.mxu0 0.0
        %7548 = vmatprep.subr.mxu0 0.0
        %7549 = vmatpush2.msra.mxu0 0.0
        %7550 = vmatprep.subr.mxu0 0.0
        %7551 = vmatpush2.msra.mxu0 0.0
        %7552 = vmatprep.subr.mxu0 0.0
        %7553 = vmatpush2.msra.mxu0 0.0
        %7554 = vmatprep.subr.mxu0 0.0
        %7555 = vmatpush2.msra.mxu0 0.0
        %7556 = vmatprep.subr.mxu0 0.0
        %7557 = vmatpush2.msra.mxu0 0.0
        %7558 = vmatprep.subr.mxu0 0.0
        %7559 = vmatpush2.msra.mxu0 0.0
        %7560 = vmatprep.subr.mxu0 0.0
        %7561 = vmatpush2.msra.mxu0 0.0
        %7562 = vmatprep.subr.mxu0 0.0
        %7563 = vmatpush2.msra.mxu0 0.0
        %7564 = vmatprep.subr.mxu0 0.0
        %7565 = vmatpush2.msra.mxu0 0.0
        %7566 = vmatprep.subr.mxu0 0.0
        %7567 = vmatpush2.msra.mxu0 0.0
        %7568 = vmatprep.subr.mxu0 0.0
        %7569 = vmatpush2.msra.mxu0 0.0
        %7570 = vmatprep.mubr.f32.mxu0 0.0
        %7571 = vmatmul.mubr.f32.gmra.mxu0 %v6080
        %v7572 = vpop.f32.mrf.mxu0
        %v7573 = vadd.f32 0.0, %v7572
        %v7574 = vpop.f32.mrf.mxu0
        %7575 = vmatprep.mubr.f32.mxu0 0.0
        %7576 = vmatmul.mubr.f32.gmra.mxu0 %v6083
        %v7577 = vpop.f32.mrf.mxu0
        %v7578 = vadd.f32 0.0, %v7577
        %v7579 = vpop.f32.mrf.mxu0
        %7580 = vmatprep.mubr.f32.mxu0 0.0
        %7581 = vmatmul.mubr.f32.gmra.mxu0 %v6086
        %v7582 = vpop.f32.mrf.mxu0
        %v7583 = vadd.f32 0.0, %v7582
        %v7584 = vpop.f32.mrf.mxu0
        %7585 = vmatprep.mubr.f32.mxu0 0.0
        %7586 = vmatmul.mubr.f32.gmra.mxu0 %v6089
        %v7587 = vpop.f32.mrf.mxu0
        %v7588 = vadd.f32 0.0, %v7587
        %v7589 = vpop.f32.mrf.mxu0
        %7590 = vmatprep.mubr.f32.mxu0 0.0
        %7591 = vmatmul.mubr.f32.gmra.mxu0 %v6092
        %v7592 = vpop.f32.mrf.mxu0
        %v7593 = vadd.f32 0.0, %v7592
        %v7594 = vpop.f32.mrf.mxu0
        %7595 = vmatprep.mubr.f32.mxu0 0.0
        %7596 = vmatmul.mubr.f32.gmra.mxu0 %v6095
        %v7597 = vpop.f32.mrf.mxu0
        %v7598 = vadd.f32 0.0, %v7597
        %v7599 = vpop.f32.mrf.mxu0
        %7600 = vmatprep.mubr.f32.mxu0 0.0
        %7601 = vmatmul.mubr.f32.gmra.mxu0 %v6098
        %v7602 = vpop.f32.mrf.mxu0
        %v7603 = vadd.f32 0.0, %v7602
        %v7604 = vpop.f32.mrf.mxu0
        %7605 = vmatprep.mubr.f32.mxu0 0.0
        %7606 = vmatmul.mubr.f32.gmra.mxu0 %v6101
        %v7607 = vpop.f32.mrf.mxu0
        %v7608 = vadd.f32 0.0, %v7607
        %v7609 = vpop.f32.mrf.mxu0
        %7610 = vmatprep.mubr.f32.mxu0 0.0
        %7611 = vmatmul.mubr.f32.gmra.mxu0 %v6104
        %v7612 = vpop.f32.mrf.mxu0
        %v7613 = vadd.f32 0.0, %v7612
        %v7614 = vpop.f32.mrf.mxu0
        %7615 = vmatprep.mubr.f32.mxu0 0.0
        %7616 = vmatmul.mubr.f32.gmra.mxu0 %v6107
        %v7617 = vpop.f32.mrf.mxu0
        %v7618 = vadd.f32 0.0, %v7617
        %v7619 = vpop.f32.mrf.mxu0
        %7620 = vmatprep.mubr.f32.mxu0 0.0
        %7621 = vmatmul.mubr.f32.gmra.mxu0 %v6110
        %v7622 = vpop.f32.mrf.mxu0
        %v7623 = vadd.f32 0.0, %v7622
        %v7624 = vpop.f32.mrf.mxu0
        %7625 = vmatprep.mubr.f32.mxu0 0.0
        %7626 = vmatmul.mubr.f32.gmra.mxu0 %v6113
        %v7627 = vpop.f32.mrf.mxu0
        %v7628 = vadd.f32 0.0, %v7627
        %v7629 = vpop.f32.mrf.mxu0
        %7630 = vmatprep.mubr.f32.mxu0 0.0
        %7631 = vmatmul.mubr.f32.gmra.mxu0 %v6116
        %v7632 = vpop.f32.mrf.mxu0
        %v7633 = vadd.f32 0.0, %v7632
        %v7634 = vpop.f32.mrf.mxu0
        %7635 = vmatprep.mubr.f32.mxu0 0.0
        %7636 = vmatmul.mubr.f32.gmra.mxu0 %v6119
        %v7637 = vpop.f32.mrf.mxu0
        %v7638 = vadd.f32 0.0, %v7637
        %v7639 = vpop.f32.mrf.mxu0
        %7640 = vmatprep.mubr.f32.mxu0 0.0
        %7641 = vmatmul.mubr.f32.gmra.mxu0 %v6122
        %v7642 = vpop.f32.mrf.mxu0
        %v7643 = vadd.f32 0.0, %v7642
        %v7644 = vpop.f32.mrf.mxu0
        %7645 = vmatprep.mubr.f32.mxu0 0.0
        %7646 = vmatmul.mubr.f32.gmra.mxu0 %v6125
        %v7647 = vpop.f32.mrf.mxu0
        %v7648 = vadd.f32 0.0, %v7647
        %v7649 = vpop.f32.mrf.mxu0
        %7650 = vmatprep.mubr.f32.mxu0 0.0
        %7651 = vmatmul.mubr.f32.gmra.mxu0 %v6128
        %v7652 = vpop.f32.mrf.mxu0
        %v7653 = vadd.f32 0.0, %v7652
        %v7654 = vpop.f32.mrf.mxu0
        %7655 = vmatprep.mubr.f32.mxu0 0.0
        %7656 = vmatmul.mubr.f32.gmra.mxu0 %v6131
        %v7657 = vpop.f32.mrf.mxu0
        %v7658 = vadd.f32 0.0, %v7657
        %v7659 = vpop.f32.mrf.mxu0
        %7660 = vmatprep.mubr.f32.mxu0 0.0
        %7661 = vmatmul.mubr.f32.gmra.mxu0 %v6134
        %v7662 = vpop.f32.mrf.mxu0
        %v7663 = vadd.f32 0.0, %v7662
        %v7664 = vpop.f32.mrf.mxu0
        %7665 = vmatprep.mubr.f32.mxu0 0.0
        %7666 = vmatmul.mubr.f32.gmra.mxu0 %v6137
        %v7667 = vpop.f32.mrf.mxu0
        %v7668 = vadd.f32 0.0, %v7667
        %v7669 = vpop.f32.mrf.mxu0
        %7670 = vmatprep.mubr.f32.mxu0 0.0
        %7671 = vmatmul.mubr.f32.gmra.mxu0 %v6140
        %v7672 = vpop.f32.mrf.mxu0
        %v7673 = vadd.f32 0.0, %v7672
        %v7674 = vpop.f32.mrf.mxu0
        %7675 = vmatprep.mubr.f32.mxu0 0.0
        %7676 = vmatmul.mubr.f32.gmra.mxu0 %v6143
        %v7677 = vpop.f32.mrf.mxu0
        %v7678 = vadd.f32 0.0, %v7677
        %v7679 = vpop.f32.mrf.mxu0
        %7680 = vmatprep.mubr.f32.mxu0 0.0
        %7681 = vmatmul.mubr.f32.gmra.mxu0 %v6146
        %v7682 = vpop.f32.mrf.mxu0
        %v7683 = vadd.f32 0.0, %v7682
        %v7684 = vpop.f32.mrf.mxu0
        %7685 = vmatprep.mubr.f32.mxu0 0.0
        %7686 = vmatmul.mubr.f32.gmra.mxu0 %v6149
        %v7687 = vpop.f32.mrf.mxu0
        %v7688 = vadd.f32 0.0, %v7687
        %v7689 = vpop.f32.mrf.mxu0
        %7690 = vmatprep.mubr.f32.mxu0 0.0
        %7691 = vmatmul.mubr.f32.gmra.mxu0 %v6152
        %v7692 = vpop.f32.mrf.mxu0
        %v7693 = vadd.f32 0.0, %v7692
        %v7694 = vpop.f32.mrf.mxu0
        %7695 = vmatprep.mubr.f32.mxu0 0.0
        %7696 = vmatmul.mubr.f32.gmra.mxu0 %v6155
        %v7697 = vpop.f32.mrf.mxu0
        %v7698 = vadd.f32 0.0, %v7697
        %v7699 = vpop.f32.mrf.mxu0
        %7700 = vmatprep.mubr.f32.mxu0 0.0
        %7701 = vmatmul.mubr.f32.gmra.mxu0 %v6158
        %v7702 = vpop.f32.mrf.mxu0
        %v7703 = vadd.f32 0.0, %v7702
        %v7704 = vpop.f32.mrf.mxu0
        %7705 = vmatprep.mubr.f32.mxu0 0.0
        %7706 = vmatmul.mubr.f32.gmra.mxu0 %v6161
        %v7707 = vpop.f32.mrf.mxu0
        %v7708 = vadd.f32 0.0, %v7707
        %v7709 = vpop.f32.mrf.mxu0
        %7710 = vmatprep.mubr.f32.mxu0 0.0
        %7711 = vmatmul.mubr.f32.gmra.mxu0 %v6164
        %v7712 = vpop.f32.mrf.mxu0
        %v7713 = vadd.f32 0.0, %v7712
        %v7714 = vpop.f32.mrf.mxu0
        %7715 = vmatprep.mubr.f32.mxu0 0.0
        %7716 = vmatmul.mubr.f32.gmra.mxu0 %v6167
        %v7717 = vpop.f32.mrf.mxu0
        %v7718 = vadd.f32 0.0, %v7717
        %v7719 = vpop.f32.mrf.mxu0
        %7720 = vmatprep.mubr.f32.mxu0 0.0
        %7721 = vmatmul.mubr.f32.gmra.mxu0 %v6170
        %v7722 = vpop.f32.mrf.mxu0
        %v7723 = vadd.f32 0.0, %v7722
        %v7724 = vpop.f32.mrf.mxu0
        %7725 = vmatprep.mubr.f32.mxu0 0.0
        %7726 = vmatmul.mubr.f32.gmra.mxu0 %v6173
        %v7727 = vpop.f32.mrf.mxu0
        %v7728 = vadd.f32 0.0, %v7727
        %v7729 = vpop.f32.mrf.mxu0
        %7730 = vdwg.mxu0
        %s7731 = scalar_lea.vmem %s15, 16
        %v7732 = vld [vmem:[%s7731] sm:$0xff]
        %7733 = vmatprep.subr.mxu0 0.0
        %7734 = vmatpush1.msra.mxu0 0.0
        %7735 = vmatprep.subr.mxu0 0.0
        %7736 = vmatpush1.msra.mxu0 0.0
        %7737 = vmatprep.subr.mxu0 0.0
        %7738 = vmatpush1.msra.mxu0 0.0
        %7739 = vmatprep.subr.mxu0 0.0
        %7740 = vmatpush1.msra.mxu0 0.0
        %7741 = vmatprep.subr.mxu0 0.0
        %7742 = vmatpush1.msra.mxu0 0.0
        %7743 = vmatprep.subr.mxu0 0.0
        %7744 = vmatpush1.msra.mxu0 0.0
        %7745 = vmatprep.subr.mxu0 0.0
        %7746 = vmatpush1.msra.mxu0 0.0
        %7747 = vmatprep.subr.mxu0 0.0
        %7748 = vmatpush1.msra.mxu0 0.0
        %7749 = vmatprep.subr.mxu0 0.0
        %7750 = vmatpush1.msra.mxu0 0.0
        %7751 = vmatprep.subr.mxu0 0.0
        %7752 = vmatpush1.msra.mxu0 0.0
        %7753 = vmatprep.subr.mxu0 0.0
        %7754 = vmatpush1.msra.mxu0 0.0
        %7755 = vmatprep.subr.mxu0 0.0
        %7756 = vmatpush1.msra.mxu0 0.0
        %7757 = vmatprep.subr.mxu0 0.0
        %7758 = vmatpush1.msra.mxu0 0.0
        %7759 = vmatprep.subr.mxu0 0.0
        %7760 = vmatpush1.msra.mxu0 0.0
        %7761 = vmatprep.subr.mxu0 0.0
        %7762 = vmatpush1.msra.mxu0 0.0
        %7763 = vmatprep.subr.mxu0 0.0
        %7764 = vmatpush1.msra.mxu0 %v7732
        %7765 = vmatprep.subr.mxu0 0.0
        %7766 = vmatpush2.msra.mxu0 0.0
        %7767 = vmatprep.subr.mxu0 0.0
        %7768 = vmatpush2.msra.mxu0 0.0
        %7769 = vmatprep.subr.mxu0 0.0
        %7770 = vmatpush2.msra.mxu0 0.0
        %7771 = vmatprep.subr.mxu0 0.0
        %7772 = vmatpush2.msra.mxu0 0.0
        %7773 = vmatprep.subr.mxu0 0.0
        %7774 = vmatpush2.msra.mxu0 0.0
        %7775 = vmatprep.subr.mxu0 0.0
        %7776 = vmatpush2.msra.mxu0 0.0
        %7777 = vmatprep.subr.mxu0 0.0
        %7778 = vmatpush2.msra.mxu0 0.0
        %7779 = vmatprep.subr.mxu0 0.0
        %7780 = vmatpush2.msra.mxu0 0.0
        %7781 = vmatprep.subr.mxu0 0.0
        %7782 = vmatpush2.msra.mxu0 0.0
        %7783 = vmatprep.subr.mxu0 0.0
        %7784 = vmatpush2.msra.mxu0 0.0
        %7785 = vmatprep.subr.mxu0 0.0
        %7786 = vmatpush2.msra.mxu0 0.0
        %7787 = vmatprep.subr.mxu0 0.0
        %7788 = vmatpush2.msra.mxu0 0.0
        %7789 = vmatprep.subr.mxu0 0.0
        %7790 = vmatpush2.msra.mxu0 0.0
        %7791 = vmatprep.subr.mxu0 0.0
        %7792 = vmatpush2.msra.mxu0 0.0
        %7793 = vmatprep.subr.mxu0 0.0
        %7794 = vmatpush2.msra.mxu0 0.0
        %7795 = vmatprep.subr.mxu0 0.0
        %7796 = vmatpush2.msra.mxu0 0.0
        %7797 = vmatprep.mubr.f32.mxu0 0.0
        %7798 = vmatmul.mubr.f32.gmra.mxu0 %v6080
        %v7799 = vpop.f32.mrf.mxu0
        %v7800 = vpop.f32.mrf.mxu0
        %7801 = vmatprep.mubr.f32.mxu0 0.0
        %7802 = vmatmul.mubr.f32.gmra.mxu0 %v6083
        %v7803 = vpop.f32.mrf.mxu0
        %v7804 = vpop.f32.mrf.mxu0
        %7805 = vmatprep.mubr.f32.mxu0 0.0
        %7806 = vmatmul.mubr.f32.gmra.mxu0 %v6086
        %v7807 = vpop.f32.mrf.mxu0
        %v7808 = vadd.f32 0.0, %v7807
        %v7809 = vpop.f32.mrf.mxu0
        %7810 = vmatprep.mubr.f32.mxu0 0.0
        %7811 = vmatmul.mubr.f32.gmra.mxu0 %v6089
        %v7812 = vpop.f32.mrf.mxu0
        %v7813 = vadd.f32 0.0, %v7812
        %v7814 = vpop.f32.mrf.mxu0
        %7815 = vmatprep.mubr.f32.mxu0 0.0
        %7816 = vmatmul.mubr.f32.gmra.mxu0 %v6092
        %v7817 = vpop.f32.mrf.mxu0
        %v7818 = vadd.f32 0.0, %v7817
        %v7819 = vpop.f32.mrf.mxu0
        %7820 = vmatprep.mubr.f32.mxu0 0.0
        %7821 = vmatmul.mubr.f32.gmra.mxu0 %v6095
        %v7822 = vpop.f32.mrf.mxu0
        %v7823 = vadd.f32 0.0, %v7822
        %v7824 = vpop.f32.mrf.mxu0
        %7825 = vmatprep.mubr.f32.mxu0 0.0
        %7826 = vmatmul.mubr.f32.gmra.mxu0 %v6098
        %v7827 = vpop.f32.mrf.mxu0
        %v7828 = vadd.f32 0.0, %v7827
        %v7829 = vpop.f32.mrf.mxu0
        %7830 = vmatprep.mubr.f32.mxu0 0.0
        %7831 = vmatmul.mubr.f32.gmra.mxu0 %v6101
        %v7832 = vpop.f32.mrf.mxu0
        %v7833 = vadd.f32 0.0, %v7832
        %v7834 = vpop.f32.mrf.mxu0
        %7835 = vmatprep.mubr.f32.mxu0 0.0
        %7836 = vmatmul.mubr.f32.gmra.mxu0 %v6104
        %v7837 = vpop.f32.mrf.mxu0
        %v7838 = vadd.f32 0.0, %v7837
        %v7839 = vpop.f32.mrf.mxu0
        %7840 = vmatprep.mubr.f32.mxu0 0.0
        %7841 = vmatmul.mubr.f32.gmra.mxu0 %v6107
        %v7842 = vpop.f32.mrf.mxu0
        %v7843 = vadd.f32 0.0, %v7842
        %v7844 = vpop.f32.mrf.mxu0
        %7845 = vmatprep.mubr.f32.mxu0 0.0
        %7846 = vmatmul.mubr.f32.gmra.mxu0 %v6110
        %v7847 = vpop.f32.mrf.mxu0
        %v7848 = vadd.f32 0.0, %v7847
        %v7849 = vpop.f32.mrf.mxu0
        %7850 = vmatprep.mubr.f32.mxu0 0.0
        %7851 = vmatmul.mubr.f32.gmra.mxu0 %v6113
        %v7852 = vpop.f32.mrf.mxu0
        %v7853 = vadd.f32 0.0, %v7852
        %v7854 = vpop.f32.mrf.mxu0
        %7855 = vmatprep.mubr.f32.mxu0 0.0
        %7856 = vmatmul.mubr.f32.gmra.mxu0 %v6116
        %v7857 = vpop.f32.mrf.mxu0
        %v7858 = vadd.f32 0.0, %v7857
        %v7859 = vpop.f32.mrf.mxu0
        %7860 = vmatprep.mubr.f32.mxu0 0.0
        %7861 = vmatmul.mubr.f32.gmra.mxu0 %v6119
        %v7862 = vpop.f32.mrf.mxu0
        %v7863 = vadd.f32 0.0, %v7862
        %v7864 = vpop.f32.mrf.mxu0
        %7865 = vmatprep.mubr.f32.mxu0 0.0
        %7866 = vmatmul.mubr.f32.gmra.mxu0 %v6122
        %v7867 = vpop.f32.mrf.mxu0
        %v7868 = vadd.f32 0.0, %v7867
        %v7869 = vpop.f32.mrf.mxu0
        %7870 = vmatprep.mubr.f32.mxu0 0.0
        %7871 = vmatmul.mubr.f32.gmra.mxu0 %v6125
        %v7872 = vpop.f32.mrf.mxu0
        %v7873 = vadd.f32 0.0, %v7872
        %v7874 = vpop.f32.mrf.mxu0
        %7875 = vmatprep.mubr.f32.mxu0 0.0
        %7876 = vmatmul.mubr.f32.gmra.mxu0 %v6128
        %v7877 = vpop.f32.mrf.mxu0
        %v7878 = vadd.f32 0.0, %v7877
        %v7879 = vpop.f32.mrf.mxu0
        %7880 = vmatprep.mubr.f32.mxu0 0.0
        %7881 = vmatmul.mubr.f32.gmra.mxu0 %v6131
        %v7882 = vpop.f32.mrf.mxu0
        %v7883 = vadd.f32 0.0, %v7882
        %v7884 = vpop.f32.mrf.mxu0
        %7885 = vmatprep.mubr.f32.mxu0 0.0
        %7886 = vmatmul.mubr.f32.gmra.mxu0 %v6134
        %v7887 = vpop.f32.mrf.mxu0
        %v7888 = vadd.f32 0.0, %v7887
        %v7889 = vpop.f32.mrf.mxu0
        %7890 = vmatprep.mubr.f32.mxu0 0.0
        %7891 = vmatmul.mubr.f32.gmra.mxu0 %v6137
        %v7892 = vpop.f32.mrf.mxu0
        %v7893 = vadd.f32 0.0, %v7892
        %v7894 = vpop.f32.mrf.mxu0
        %7895 = vmatprep.mubr.f32.mxu0 0.0
        %7896 = vmatmul.mubr.f32.gmra.mxu0 %v6140
        %v7897 = vpop.f32.mrf.mxu0
        %v7898 = vadd.f32 0.0, %v7897
        %v7899 = vpop.f32.mrf.mxu0
        %7900 = vmatprep.mubr.f32.mxu0 0.0
        %7901 = vmatmul.mubr.f32.gmra.mxu0 %v6143
        %v7902 = vpop.f32.mrf.mxu0
        %v7903 = vadd.f32 0.0, %v7902
        %v7904 = vpop.f32.mrf.mxu0
        %7905 = vmatprep.mubr.f32.mxu0 0.0
        %7906 = vmatmul.mubr.f32.gmra.mxu0 %v6146
        %v7907 = vpop.f32.mrf.mxu0
        %v7908 = vadd.f32 0.0, %v7907
        %v7909 = vpop.f32.mrf.mxu0
        %7910 = vmatprep.mubr.f32.mxu0 0.0
        %7911 = vmatmul.mubr.f32.gmra.mxu0 %v6149
        %v7912 = vpop.f32.mrf.mxu0
        %v7913 = vadd.f32 0.0, %v7912
        %v7914 = vpop.f32.mrf.mxu0
        %7915 = vmatprep.mubr.f32.mxu0 0.0
        %7916 = vmatmul.mubr.f32.gmra.mxu0 %v6152
        %v7917 = vpop.f32.mrf.mxu0
        %v7918 = vadd.f32 0.0, %v7917
        %v7919 = vpop.f32.mrf.mxu0
        %7920 = vmatprep.mubr.f32.mxu0 0.0
        %7921 = vmatmul.mubr.f32.gmra.mxu0 %v6155
        %v7922 = vpop.f32.mrf.mxu0
        %v7923 = vadd.f32 0.0, %v7922
        %v7924 = vpop.f32.mrf.mxu0
        %7925 = vmatprep.mubr.f32.mxu0 0.0
        %7926 = vmatmul.mubr.f32.gmra.mxu0 %v6158
        %v7927 = vpop.f32.mrf.mxu0
        %v7928 = vadd.f32 0.0, %v7927
        %v7929 = vpop.f32.mrf.mxu0
        %7930 = vmatprep.mubr.f32.mxu0 0.0
        %7931 = vmatmul.mubr.f32.gmra.mxu0 %v6161
        %v7932 = vpop.f32.mrf.mxu0
        %v7933 = vadd.f32 0.0, %v7932
        %v7934 = vpop.f32.mrf.mxu0
        %7935 = vmatprep.mubr.f32.mxu0 0.0
        %7936 = vmatmul.mubr.f32.gmra.mxu0 %v6164
        %v7937 = vpop.f32.mrf.mxu0
        %v7938 = vadd.f32 0.0, %v7937
        %v7939 = vpop.f32.mrf.mxu0
        %7940 = vmatprep.mubr.f32.mxu0 0.0
        %7941 = vmatmul.mubr.f32.gmra.mxu0 %v6167
        %v7942 = vpop.f32.mrf.mxu0
        %v7943 = vadd.f32 0.0, %v7942
        %v7944 = vpop.f32.mrf.mxu0
        %7945 = vmatprep.mubr.f32.mxu0 0.0
        %7946 = vmatmul.mubr.f32.gmra.mxu0 %v6170
        %v7947 = vpop.f32.mrf.mxu0
        %v7948 = vadd.f32 0.0, %v7947
        %v7949 = vpop.f32.mrf.mxu0
        %7950 = vmatprep.mubr.f32.mxu0 0.0
        %7951 = vmatmul.mubr.f32.gmra.mxu0 %v6173
        %v7952 = vpop.f32.mrf.mxu0
        %v7953 = vadd.f32 0.0, %v7952
        %v7954 = vpop.f32.mrf.mxu0
        %7955 = vdwg.mxu0
        %v7956 = vadd.f32 %v7573, 0.0
        %v7957 = vadd.f32 %v7578, 0.0
        %v7958 = vadd.f32 %v7583, %v7348
        %v7959 = vadd.f32 %v7588, %v7353
        %v7960 = vadd.f32 %v7593, %v7358
        %v7961 = vadd.f32 %v7598, %v7363
        %v7962 = vadd.f32 %v7603, %v7368
        %v7963 = vadd.f32 %v7608, %v7373
        %v7964 = vadd.f32 %v7613, %v7378
        %v7965 = vadd.f32 %v7618, %v7383
        %v7966 = vadd.f32 %v7623, %v7388
        %v7967 = vadd.f32 %v7628, %v7393
        %v7968 = vadd.f32 %v7633, %v7398
        %v7969 = vadd.f32 %v7638, %v7403
        %v7970 = vadd.f32 %v7643, %v7408
        %v7971 = vadd.f32 %v7648, %v7413
        %v7972 = vadd.f32 %v7653, %v7418
        %v7973 = vadd.f32 %v7658, %v7423
        %v7974 = vadd.f32 %v7663, %v7428
        %v7975 = vadd.f32 %v7668, %v7433
        %v7976 = vadd.f32 %v7673, %v7438
        %v7977 = vadd.f32 %v7678, %v7443
        %v7978 = vadd.f32 %v7683, %v7448
        %v7979 = vadd.f32 %v7688, %v7453
        %v7980 = vadd.f32 %v7693, %v7458
        %v7981 = vadd.f32 %v7698, %v7463
        %v7982 = vadd.f32 %v7703, %v7468
        %v7983 = vadd.f32 %v7708, %v7473
        %v7984 = vadd.f32 %v7713, %v7478
        %v7985 = vadd.f32 %v7718, %v7483
        %v7986 = vadd.f32 %v7723, %v7488
        %v7987 = vadd.f32 %v7728, %v7493
        %v7988 = vadd.f32 %v7956, %v7808
        %v7989 = vadd.f32 %v7957, %v7813
        %v7990 = vadd.f32 %v7958, %v7818
        %v7991 = vadd.f32 %v7959, %v7823
        %v7992 = vadd.f32 %v7960, %v7828
        %v7993 = vadd.f32 %v7961, %v7833
        %v7994 = vadd.f32 %v7962, %v7838
        %v7995 = vadd.f32 %v7963, %v7843
        %v7996 = vadd.f32 %v7964, %v7848
        %v7997 = vadd.f32 %v7965, %v7853
        %v7998 = vadd.f32 %v7966, %v7858
        %v7999 = vadd.f32 %v7967, %v7863
        %v8000 = vadd.f32 %v7968, %v7868
        %v8001 = vadd.f32 %v7969, %v7873
        %v8002 = vadd.f32 %v7970, %v7878
        %v8003 = vadd.f32 %v7971, %v7883
        %v8004 = vadd.f32 %v7972, %v7888
        %v8005 = vadd.f32 %v7973, %v7893
        %v8006 = vadd.f32 %v7974, %v7898
        %v8007 = vadd.f32 %v7975, %v7903
        %v8008 = vadd.f32 %v7976, %v7908
        %v8009 = vadd.f32 %v7977, %v7913
        %v8010 = vadd.f32 %v7978, %v7918
        %v8011 = vadd.f32 %v7979, %v7923
        %v8012 = vadd.f32 %v7980, %v7928
        %v8013 = vadd.f32 %v7981, %v7933
        %v8014 = vadd.f32 %v7982, %v7938
        %v8015 = vadd.f32 %v7983, %v7943
        %v8016 = vadd.f32 %v7984, %v7948
        %v8017 = vadd.f32 %v7985, %v7953
        %v8018 = vadd.f32 %v7986, 0.0
        %v8019 = vadd.f32 %v7987, 0.0
        %v8020 = vld [vmem:[%s16] sm:$0x1]
        %v8021 = vlaneseq
        %v8022 = vshrl.u32 %v8021, 7
        %v8023 = vsub.s32 0, %v8022
        %v8024 = vrot.slane %v8020, %v8023
        %v8025 = vmul.f32 %v7988, %v8024
        %v8026 = vmul.f32 %v7989, %v8024
        %v8027 = vmul.f32 %v7990, %v8024
        %v8028 = vmul.f32 %v7991, %v8024
        %v8029 = vmul.f32 %v7992, %v8024
        %v8030 = vmul.f32 %v7993, %v8024
        %v8031 = vmul.f32 %v7994, %v8024
        %v8032 = vmul.f32 %v7995, %v8024
        %v8033 = vmul.f32 %v7996, %v8024
        %v8034 = vmul.f32 %v7997, %v8024
        %v8035 = vmul.f32 %v7998, %v8024
        %v8036 = vmul.f32 %v7999, %v8024
        %v8037 = vmul.f32 %v8000, %v8024
        %v8038 = vmul.f32 %v8001, %v8024
        %v8039 = vmul.f32 %v8002, %v8024
        %v8040 = vmul.f32 %v8003, %v8024
        %v8041 = vmul.f32 %v8004, %v8024
        %v8042 = vmul.f32 %v8005, %v8024
        %v8043 = vmul.f32 %v8006, %v8024
        %v8044 = vmul.f32 %v8007, %v8024
        %v8045 = vmul.f32 %v8008, %v8024
        %v8046 = vmul.f32 %v8009, %v8024
        %v8047 = vmul.f32 %v8010, %v8024
        %v8048 = vmul.f32 %v8011, %v8024
        %v8049 = vmul.f32 %v8012, %v8024
        %v8050 = vmul.f32 %v8013, %v8024
        %v8051 = vmul.f32 %v8014, %v8024
        %v8052 = vmul.f32 %v8015, %v8024
        %v8053 = vmul.f32 %v8016, %v8024
        %v8054 = vmul.f32 %v8017, %v8024
        %v8055 = vmul.f32 %v8018, %v8024
        %v8056 = vmul.f32 %v8019, %v8024
        %v8057 = vld [vmem:[%s16 + $0x1] sm:$0x1]
        %v8058 = vlaneseq
        %v8059 = vshrl.u32 %v8058, 7
        %v8060 = vsub.s32 0, %v8059
        %v8061 = vrot.slane %v8057, %v8060
        %v8062 = vadd.f32 %v8025, %v8061
        %v8063 = vadd.f32 %v8026, %v8061
        %v8064 = vadd.f32 %v8027, %v8061
        %v8065 = vadd.f32 %v8028, %v8061
        %v8066 = vadd.f32 %v8029, %v8061
        %v8067 = vadd.f32 %v8030, %v8061
        %v8068 = vadd.f32 %v8031, %v8061
        %v8069 = vadd.f32 %v8032, %v8061
        %v8070 = vadd.f32 %v8033, %v8061
        %v8071 = vadd.f32 %v8034, %v8061
        %v8072 = vadd.f32 %v8035, %v8061
        %v8073 = vadd.f32 %v8036, %v8061
        %v8074 = vadd.f32 %v8037, %v8061
        %v8075 = vadd.f32 %v8038, %v8061
        %v8076 = vadd.f32 %v8039, %v8061
        %v8077 = vadd.f32 %v8040, %v8061
        %v8078 = vadd.f32 %v8041, %v8061
        %v8079 = vadd.f32 %v8042, %v8061
        %v8080 = vadd.f32 %v8043, %v8061
        %v8081 = vadd.f32 %v8044, %v8061
        %v8082 = vadd.f32 %v8045, %v8061
        %v8083 = vadd.f32 %v8046, %v8061
        %v8084 = vadd.f32 %v8047, %v8061
        %v8085 = vadd.f32 %v8048, %v8061
        %v8086 = vadd.f32 %v8049, %v8061
        %v8087 = vadd.f32 %v8050, %v8061
        %v8088 = vadd.f32 %v8051, %v8061
        %v8089 = vadd.f32 %v8052, %v8061
        %v8090 = vadd.f32 %v8053, %v8061
        %v8091 = vadd.f32 %v8054, %v8061
        %v8092 = vadd.f32 %v8055, %v8061
        %v8093 = vadd.f32 %v8056, %v8061
        %v8094 = vmax.f32 %v8062, 0.0
        %v8095 = vmax.f32 %v8063, 0.0
        %v8096 = vmax.f32 %v8064, 0.0
        %v8097 = vmax.f32 %v8065, 0.0
        %v8098 = vmax.f32 %v8066, 0.0
        %v8099 = vmax.f32 %v8067, 0.0
        %v8100 = vmax.f32 %v8068, 0.0
        %v8101 = vmax.f32 %v8069, 0.0
        %v8102 = vmax.f32 %v8070, 0.0
        %v8103 = vmax.f32 %v8071, 0.0
        %v8104 = vmax.f32 %v8072, 0.0
        %v8105 = vmax.f32 %v8073, 0.0
        %v8106 = vmax.f32 %v8074, 0.0
        %v8107 = vmax.f32 %v8075, 0.0
        %v8108 = vmax.f32 %v8076, 0.0
        %v8109 = vmax.f32 %v8077, 0.0
        %v8110 = vmax.f32 %v8078, 0.0
        %v8111 = vmax.f32 %v8079, 0.0
        %v8112 = vmax.f32 %v8080, 0.0
        %v8113 = vmax.f32 %v8081, 0.0
        %v8114 = vmax.f32 %v8082, 0.0
        %v8115 = vmax.f32 %v8083, 0.0
        %v8116 = vmax.f32 %v8084, 0.0
        %v8117 = vmax.f32 %v8085, 0.0
        %v8118 = vmax.f32 %v8086, 0.0
        %v8119 = vmax.f32 %v8087, 0.0
        %v8120 = vmax.f32 %v8088, 0.0
        %v8121 = vmax.f32 %v8089, 0.0
        %v8122 = vmax.f32 %v8090, 0.0
        %v8123 = vmax.f32 %v8091, 0.0
        %v8124 = vmax.f32 %v8092, 0.0
        %v8125 = vmax.f32 %v8093, 0.0
        %8126 = vrot.lane.b32.xlu0 %v1758, 4
        %v8127 = vpop.permute.xlu0 %8126
        %8128 = vrot.lane.b32.xlu0 %v1759, 4
        %v8129 = vpop.permute.xlu0 %8128
        %8130 = vrot.lane.b32.xlu0 %v1760, 4
        %v8131 = vpop.permute.xlu0 %8130
        %8132 = vrot.lane.b32.xlu0 %v1761, 4
        %v8133 = vpop.permute.xlu0 %8132
        %8134 = vrot.lane.b32.xlu0 %v1762, 4
        %v8135 = vpop.permute.xlu0 %8134
        %8136 = vrot.lane.b32.xlu0 %v1763, 4
        %v8137 = vpop.permute.xlu0 %8136
        %8138 = vrot.lane.b32.xlu0 %v1764, 4
        %v8139 = vpop.permute.xlu0 %8138
        %8140 = vrot.lane.b32.xlu0 %v1765, 4
        %v8141 = vpop.permute.xlu0 %8140
        %8142 = vrot.lane.b32.xlu0 %v1766, 4
        %v8143 = vpop.permute.xlu0 %8142
        %8144 = vrot.lane.b32.xlu0 %v1767, 4
        %v8145 = vpop.permute.xlu0 %8144
        %8146 = vrot.lane.b32.xlu0 %v1768, 4
        %v8147 = vpop.permute.xlu0 %8146
        %8148 = vrot.lane.b32.xlu0 %v1769, 4
        %v8149 = vpop.permute.xlu0 %8148
        %8150 = vrot.lane.b32.xlu0 %v1770, 4
        %v8151 = vpop.permute.xlu0 %8150
        %8152 = vrot.lane.b32.xlu0 %v1771, 4
        %v8153 = vpop.permute.xlu0 %8152
        %8154 = vrot.lane.b32.xlu0 %v1772, 4
        %v8155 = vpop.permute.xlu0 %8154
        %8156 = vrot.lane.b32.xlu0 %v1773, 4
        %v8157 = vpop.permute.xlu0 %8156
        %8158 = vrot.lane.b32.xlu0 %v1774, 4
        %v8159 = vpop.permute.xlu0 %8158
        %8160 = vrot.lane.b32.xlu0 %v1775, 4
        %v8161 = vpop.permute.xlu0 %8160
        %8162 = vrot.lane.b32.xlu0 %v1776, 4
        %v8163 = vpop.permute.xlu0 %8162
        %8164 = vrot.lane.b32.xlu0 %v1777, 4
        %v8165 = vpop.permute.xlu0 %8164
        %8166 = vrot.lane.b32.xlu0 %v1778, 4
        %v8167 = vpop.permute.xlu0 %8166
        %8168 = vrot.lane.b32.xlu0 %v1779, 4
        %v8169 = vpop.permute.xlu0 %8168
        %8170 = vrot.lane.b32.xlu0 %v1780, 4
        %v8171 = vpop.permute.xlu0 %8170
        %8172 = vrot.lane.b32.xlu0 %v1781, 4
        %v8173 = vpop.permute.xlu0 %8172
        %8174 = vrot.lane.b32.xlu0 %v1782, 4
        %v8175 = vpop.permute.xlu0 %8174
        %8176 = vrot.lane.b32.xlu0 %v1783, 4
        %v8177 = vpop.permute.xlu0 %8176
        %8178 = vrot.lane.b32.xlu0 %v1784, 4
        %v8179 = vpop.permute.xlu0 %8178
        %8180 = vrot.lane.b32.xlu0 %v1785, 4
        %v8181 = vpop.permute.xlu0 %8180
        %8182 = vrot.lane.b32.xlu0 %v1786, 4
        %v8183 = vpop.permute.xlu0 %8182
        %8184 = vrot.lane.b32.xlu0 %v1787, 4
        %v8185 = vpop.permute.xlu0 %8184
        %8186 = vrot.lane.b32.xlu0 %v1788, 4
        %v8187 = vpop.permute.xlu0 %8186
        %8188 = vrot.lane.b32.xlu0 %v1789, 4
        %v8189 = vpop.permute.xlu0 %8188
        %8254 = vrot.lane.b32.xlu0 %v3024, 8
        %v8255 = vpop.permute.xlu0 %8254
        %8256 = vrot.lane.b32.xlu0 %v3025, 8
        %v8257 = vpop.permute.xlu0 %8256
        %8258 = vrot.lane.b32.xlu0 %v3026, 8
        %v8259 = vpop.permute.xlu0 %8258
        %8260 = vrot.lane.b32.xlu0 %v3027, 8
        %v8261 = vpop.permute.xlu0 %8260
        %8262 = vrot.lane.b32.xlu0 %v3028, 8
        %v8263 = vpop.permute.xlu0 %8262
        %8264 = vrot.lane.b32.xlu0 %v3029, 8
        %v8265 = vpop.permute.xlu0 %8264
        %8266 = vrot.lane.b32.xlu0 %v3030, 8
        %v8267 = vpop.permute.xlu0 %8266
        %8268 = vrot.lane.b32.xlu0 %v3031, 8
        %v8269 = vpop.permute.xlu0 %8268
        %8270 = vrot.lane.b32.xlu0 %v3032, 8
        %v8271 = vpop.permute.xlu0 %8270
        %8272 = vrot.lane.b32.xlu0 %v3033, 8
        %v8273 = vpop.permute.xlu0 %8272
        %8274 = vrot.lane.b32.xlu0 %v3034, 8
        %v8275 = vpop.permute.xlu0 %8274
        %8276 = vrot.lane.b32.xlu0 %v3035, 8
        %v8277 = vpop.permute.xlu0 %8276
        %8278 = vrot.lane.b32.xlu0 %v3036, 8
        %v8279 = vpop.permute.xlu0 %8278
        %8280 = vrot.lane.b32.xlu0 %v3037, 8
        %v8281 = vpop.permute.xlu0 %8280
        %8282 = vrot.lane.b32.xlu0 %v3038, 8
        %v8283 = vpop.permute.xlu0 %8282
        %8284 = vrot.lane.b32.xlu0 %v3039, 8
        %v8285 = vpop.permute.xlu0 %8284
        %8286 = vrot.lane.b32.xlu0 %v3040, 8
        %v8287 = vpop.permute.xlu0 %8286
        %8288 = vrot.lane.b32.xlu0 %v3041, 8
        %v8289 = vpop.permute.xlu0 %8288
        %8290 = vrot.lane.b32.xlu0 %v3042, 8
        %v8291 = vpop.permute.xlu0 %8290
        %8292 = vrot.lane.b32.xlu0 %v3043, 8
        %v8293 = vpop.permute.xlu0 %8292
        %8294 = vrot.lane.b32.xlu0 %v3044, 8
        %v8295 = vpop.permute.xlu0 %8294
        %8296 = vrot.lane.b32.xlu0 %v3045, 8
        %v8297 = vpop.permute.xlu0 %8296
        %8298 = vrot.lane.b32.xlu0 %v3046, 8
        %v8299 = vpop.permute.xlu0 %8298
        %8300 = vrot.lane.b32.xlu0 %v3047, 8
        %v8301 = vpop.permute.xlu0 %8300
        %8302 = vrot.lane.b32.xlu0 %v3048, 8
        %v8303 = vpop.permute.xlu0 %8302
        %8304 = vrot.lane.b32.xlu0 %v3049, 8
        %v8305 = vpop.permute.xlu0 %8304
        %8306 = vrot.lane.b32.xlu0 %v3050, 8
        %v8307 = vpop.permute.xlu0 %8306
        %8308 = vrot.lane.b32.xlu0 %v3051, 8
        %v8309 = vpop.permute.xlu0 %8308
        %8310 = vrot.lane.b32.xlu0 %v3052, 8
        %v8311 = vpop.permute.xlu0 %8310
        %8312 = vrot.lane.b32.xlu0 %v3053, 8
        %v8313 = vpop.permute.xlu0 %8312
        %8314 = vrot.lane.b32.xlu0 %v3054, 8
        %v8315 = vpop.permute.xlu0 %8314
        %8316 = vrot.lane.b32.xlu0 %v3055, 8
        %v8317 = vpop.permute.xlu0 %8316
        %8382 = vrot.lane.b32.xlu0 %v3870, 12
        %v8383 = vpop.permute.xlu0 %8382
        %8384 = vrot.lane.b32.xlu0 %v3871, 12
        %v8385 = vpop.permute.xlu0 %8384
        %8386 = vrot.lane.b32.xlu0 %v3872, 12
        %v8387 = vpop.permute.xlu0 %8386
        %8388 = vrot.lane.b32.xlu0 %v3873, 12
        %v8389 = vpop.permute.xlu0 %8388
        %8390 = vrot.lane.b32.xlu0 %v3874, 12
        %v8391 = vpop.permute.xlu0 %8390
        %8392 = vrot.lane.b32.xlu0 %v3875, 12
        %v8393 = vpop.permute.xlu0 %8392
        %8394 = vrot.lane.b32.xlu0 %v3876, 12
        %v8395 = vpop.permute.xlu0 %8394
        %8396 = vrot.lane.b32.xlu0 %v3877, 12
        %v8397 = vpop.permute.xlu0 %8396
        %8398 = vrot.lane.b32.xlu0 %v3878, 12
        %v8399 = vpop.permute.xlu0 %8398
        %8400 = vrot.lane.b32.xlu0 %v3879, 12
        %v8401 = vpop.permute.xlu0 %8400
        %8402 = vrot.lane.b32.xlu0 %v3880, 12
        %v8403 = vpop.permute.xlu0 %8402
        %8404 = vrot.lane.b32.xlu0 %v3881, 12
        %v8405 = vpop.permute.xlu0 %8404
        %8406 = vrot.lane.b32.xlu0 %v3882, 12
        %v8407 = vpop.permute.xlu0 %8406
        %8408 = vrot.lane.b32.xlu0 %v3883, 12
        %v8409 = vpop.permute.xlu0 %8408
        %8410 = vrot.lane.b32.xlu0 %v3884, 12
        %v8411 = vpop.permute.xlu0 %8410
        %8412 = vrot.lane.b32.xlu0 %v3885, 12
        %v8413 = vpop.permute.xlu0 %8412
        %8414 = vrot.lane.b32.xlu0 %v3886, 12
        %v8415 = vpop.permute.xlu0 %8414
        %8416 = vrot.lane.b32.xlu0 %v3887, 12
        %v8417 = vpop.permute.xlu0 %8416
        %8418 = vrot.lane.b32.xlu0 %v3888, 12
        %v8419 = vpop.permute.xlu0 %8418
        %8420 = vrot.lane.b32.xlu0 %v3889, 12
        %v8421 = vpop.permute.xlu0 %8420
        %8422 = vrot.lane.b32.xlu0 %v3890, 12
        %v8423 = vpop.permute.xlu0 %8422
        %8424 = vrot.lane.b32.xlu0 %v3891, 12
        %v8425 = vpop.permute.xlu0 %8424
        %8426 = vrot.lane.b32.xlu0 %v3892, 12
        %v8427 = vpop.permute.xlu0 %8426
        %8428 = vrot.lane.b32.xlu0 %v3893, 12
        %v8429 = vpop.permute.xlu0 %8428
        %8430 = vrot.lane.b32.xlu0 %v3894, 12
        %v8431 = vpop.permute.xlu0 %8430
        %8432 = vrot.lane.b32.xlu0 %v3895, 12
        %v8433 = vpop.permute.xlu0 %8432
        %8434 = vrot.lane.b32.xlu0 %v3896, 12
        %v8435 = vpop.permute.xlu0 %8434
        %8436 = vrot.lane.b32.xlu0 %v3897, 12
        %v8437 = vpop.permute.xlu0 %8436
        %8438 = vrot.lane.b32.xlu0 %v3898, 12
        %v8439 = vpop.permute.xlu0 %8438
        %8440 = vrot.lane.b32.xlu0 %v3899, 12
        %v8441 = vpop.permute.xlu0 %8440
        %8442 = vrot.lane.b32.xlu0 %v3900, 12
        %v8443 = vpop.permute.xlu0 %8442
        %8444 = vrot.lane.b32.xlu0 %v3901, 12
        %v8445 = vpop.permute.xlu0 %8444
        %8510 = vrot.lane.b32.xlu0 %v7248, 16
        %v8511 = vpop.permute.xlu0 %8510
        %8512 = vrot.lane.b32.xlu0 %v7249, 16
        %v8513 = vpop.permute.xlu0 %8512
        %8514 = vrot.lane.b32.xlu0 %v7250, 16
        %v8515 = vpop.permute.xlu0 %8514
        %8516 = vrot.lane.b32.xlu0 %v7251, 16
        %v8517 = vpop.permute.xlu0 %8516
        %8518 = vrot.lane.b32.xlu0 %v7252, 16
        %v8519 = vpop.permute.xlu0 %8518
        %8520 = vrot.lane.b32.xlu0 %v7253, 16
        %v8521 = vpop.permute.xlu0 %8520
        %8522 = vrot.lane.b32.xlu0 %v7254, 16
        %v8523 = vpop.permute.xlu0 %8522
        %8524 = vrot.lane.b32.xlu0 %v7255, 16
        %v8525 = vpop.permute.xlu0 %8524
        %8526 = vrot.lane.b32.xlu0 %v7256, 16
        %v8527 = vpop.permute.xlu0 %8526
        %8528 = vrot.lane.b32.xlu0 %v7257, 16
        %v8529 = vpop.permute.xlu0 %8528
        %8530 = vrot.lane.b32.xlu0 %v7258, 16
        %v8531 = vpop.permute.xlu0 %8530
        %8532 = vrot.lane.b32.xlu0 %v7259, 16
        %v8533 = vpop.permute.xlu0 %8532
        %8534 = vrot.lane.b32.xlu0 %v7260, 16
        %v8535 = vpop.permute.xlu0 %8534
        %8536 = vrot.lane.b32.xlu0 %v7261, 16
        %v8537 = vpop.permute.xlu0 %8536
        %8538 = vrot.lane.b32.xlu0 %v7262, 16
        %v8539 = vpop.permute.xlu0 %8538
        %8540 = vrot.lane.b32.xlu0 %v7263, 16
        %v8541 = vpop.permute.xlu0 %8540
        %8542 = vrot.lane.b32.xlu0 %v7264, 16
        %v8543 = vpop.permute.xlu0 %8542
        %8544 = vrot.lane.b32.xlu0 %v7265, 16
        %v8545 = vpop.permute.xlu0 %8544
        %8546 = vrot.lane.b32.xlu0 %v7266, 16
        %v8547 = vpop.permute.xlu0 %8546
        %8548 = vrot.lane.b32.xlu0 %v7267, 16
        %v8549 = vpop.permute.xlu0 %8548
        %8550 = vrot.lane.b32.xlu0 %v7268, 16
        %v8551 = vpop.permute.xlu0 %8550
        %8552 = vrot.lane.b32.xlu0 %v7269, 16
        %v8553 = vpop.permute.xlu0 %8552
        %8554 = vrot.lane.b32.xlu0 %v7270, 16
        %v8555 = vpop.permute.xlu0 %8554
        %8556 = vrot.lane.b32.xlu0 %v7271, 16
        %v8557 = vpop.permute.xlu0 %8556
        %8558 = vrot.lane.b32.xlu0 %v7272, 16
        %v8559 = vpop.permute.xlu0 %8558
        %8560 = vrot.lane.b32.xlu0 %v7273, 16
        %v8561 = vpop.permute.xlu0 %8560
        %8562 = vrot.lane.b32.xlu0 %v7274, 16
        %v8563 = vpop.permute.xlu0 %8562
        %8564 = vrot.lane.b32.xlu0 %v7275, 16
        %v8565 = vpop.permute.xlu0 %8564
        %8566 = vrot.lane.b32.xlu0 %v7276, 16
        %v8567 = vpop.permute.xlu0 %8566
        %8568 = vrot.lane.b32.xlu0 %v7277, 16
        %v8569 = vpop.permute.xlu0 %8568
        %8570 = vrot.lane.b32.xlu0 %v7278, 16
        %v8571 = vpop.permute.xlu0 %8570
        %8572 = vrot.lane.b32.xlu0 %v7279, 16
        %v8573 = vpop.permute.xlu0 %8572
        %8638 = vrot.lane.b32.xlu0 %v8094, 20
        %v8639 = vpop.permute.xlu0 %8638
        %8640 = vrot.lane.b32.xlu0 %v8095, 20
        %v8641 = vpop.permute.xlu0 %8640
        %8642 = vrot.lane.b32.xlu0 %v8096, 20
        %v8643 = vpop.permute.xlu0 %8642
        %8644 = vrot.lane.b32.xlu0 %v8097, 20
        %v8645 = vpop.permute.xlu0 %8644
        %8646 = vrot.lane.b32.xlu0 %v8098, 20
        %v8647 = vpop.permute.xlu0 %8646
        %8648 = vrot.lane.b32.xlu0 %v8099, 20
        %v8649 = vpop.permute.xlu0 %8648
        %8650 = vrot.lane.b32.xlu0 %v8100, 20
        %v8651 = vpop.permute.xlu0 %8650
        %8652 = vrot.lane.b32.xlu0 %v8101, 20
        %v8653 = vpop.permute.xlu0 %8652
        %8654 = vrot.lane.b32.xlu0 %v8102, 20
        %v8655 = vpop.permute.xlu0 %8654
        %8656 = vrot.lane.b32.xlu0 %v8103, 20
        %v8657 = vpop.permute.xlu0 %8656
        %8658 = vrot.lane.b32.xlu0 %v8104, 20
        %v8659 = vpop.permute.xlu0 %8658
        %8660 = vrot.lane.b32.xlu0 %v8105, 20
        %v8661 = vpop.permute.xlu0 %8660
        %8662 = vrot.lane.b32.xlu0 %v8106, 20
        %v8663 = vpop.permute.xlu0 %8662
        %8664 = vrot.lane.b32.xlu0 %v8107, 20
        %v8665 = vpop.permute.xlu0 %8664
        %8666 = vrot.lane.b32.xlu0 %v8108, 20
        %v8667 = vpop.permute.xlu0 %8666
        %8668 = vrot.lane.b32.xlu0 %v8109, 20
        %v8669 = vpop.permute.xlu0 %8668
        %8670 = vrot.lane.b32.xlu0 %v8110, 20
        %v8671 = vpop.permute.xlu0 %8670
        %8672 = vrot.lane.b32.xlu0 %v8111, 20
        %v8673 = vpop.permute.xlu0 %8672
        %8674 = vrot.lane.b32.xlu0 %v8112, 20
        %v8675 = vpop.permute.xlu0 %8674
        %8676 = vrot.lane.b32.xlu0 %v8113, 20
        %v8677 = vpop.permute.xlu0 %8676
        %8678 = vrot.lane.b32.xlu0 %v8114, 20
        %v8679 = vpop.permute.xlu0 %8678
        %8680 = vrot.lane.b32.xlu0 %v8115, 20
        %v8681 = vpop.permute.xlu0 %8680
        %8682 = vrot.lane.b32.xlu0 %v8116, 20
        %v8683 = vpop.permute.xlu0 %8682
        %8684 = vrot.lane.b32.xlu0 %v8117, 20
        %v8685 = vpop.permute.xlu0 %8684
        %8686 = vrot.lane.b32.xlu0 %v8118, 20
        %v8687 = vpop.permute.xlu0 %8686
        %8688 = vrot.lane.b32.xlu0 %v8119, 20
        %v8689 = vpop.permute.xlu0 %8688
        %8690 = vrot.lane.b32.xlu0 %v8120, 20
        %v8691 = vpop.permute.xlu0 %8690
        %8692 = vrot.lane.b32.xlu0 %v8121, 20
        %v8693 = vpop.permute.xlu0 %8692
        %8694 = vrot.lane.b32.xlu0 %v8122, 20
        %v8695 = vpop.permute.xlu0 %8694
        %8696 = vrot.lane.b32.xlu0 %v8123, 20
        %v8697 = vpop.permute.xlu0 %8696
        %8698 = vrot.lane.b32.xlu0 %v8124, 20
        %v8699 = vpop.permute.xlu0 %8698
        %8700 = vrot.lane.b32.xlu0 %v8125, 20
        %v8701 = vpop.permute.xlu0 %8700
        %vm8734 = vcmask 31744
        %v8735 = vsel %vm8734, %v1362, %v8127
        %v8736 = vsel %vm8734, %v1363, %v8129
        %v8737 = vsel %vm8734, %v1364, %v8131
        %v8738 = vsel %vm8734, %v1365, %v8133
        %v8739 = vsel %vm8734, %v1366, %v8135
        %v8740 = vsel %vm8734, %v1367, %v8137
        %v8741 = vsel %vm8734, %v1368, %v8139
        %v8742 = vsel %vm8734, %v1369, %v8141
        %v8743 = vsel %vm8734, %v1370, %v8143
        %v8744 = vsel %vm8734, %v1371, %v8145
        %v8745 = vsel %vm8734, %v1372, %v8147
        %v8746 = vsel %vm8734, %v1373, %v8149
        %v8747 = vsel %vm8734, %v1374, %v8151
        %v8748 = vsel %vm8734, %v1375, %v8153
        %v8749 = vsel %vm8734, %v1376, %v8155
        %v8750 = vsel %vm8734, %v1377, %v8157
        %v8751 = vsel %vm8734, %v1378, %v8159
        %v8752 = vsel %vm8734, %v1379, %v8161
        %v8753 = vsel %vm8734, %v1380, %v8163
        %v8754 = vsel %vm8734, %v1381, %v8165
        %v8755 = vsel %vm8734, %v1382, %v8167
        %v8756 = vsel %vm8734, %v1383, %v8169
        %v8757 = vsel %vm8734, %v1384, %v8171
        %v8758 = vsel %vm8734, %v1385, %v8173
        %v8759 = vsel %vm8734, %v1386, %v8175
        %v8760 = vsel %vm8734, %v1387, %v8177
        %v8761 = vsel %vm8734, %v1388, %v8179
        %v8762 = vsel %vm8734, %v1389, %v8181
        %v8763 = vsel %vm8734, %v1390, %v8183
        %v8764 = vsel %vm8734, %v1391, %v8185
        %v8765 = vsel %vm8734, %v1392, %v8187
        %v8766 = vsel %vm8734, %v1393, %v8189
        %v8767 = vsel %vm966, %v8735, %v8255
        %v8768 = vsel %vm966, %v8736, %v8257
        %v8769 = vsel %vm966, %v8737, %v8259
        %v8770 = vsel %vm966, %v8738, %v8261
        %v8771 = vsel %vm966, %v8739, %v8263
        %v8772 = vsel %vm966, %v8740, %v8265
        %v8773 = vsel %vm966, %v8741, %v8267
        %v8774 = vsel %vm966, %v8742, %v8269
        %v8775 = vsel %vm966, %v8743, %v8271
        %v8776 = vsel %vm966, %v8744, %v8273
        %v8777 = vsel %vm966, %v8745, %v8275
        %v8778 = vsel %vm966, %v8746, %v8277
        %v8779 = vsel %vm966, %v8747, %v8279
        %v8780 = vsel %vm966, %v8748, %v8281
        %v8781 = vsel %vm966, %v8749, %v8283
        %v8782 = vsel %vm966, %v8750, %v8285
        %v8783 = vsel %vm966, %v8751, %v8287
        %v8784 = vsel %vm966, %v8752, %v8289
        %v8785 = vsel %vm966, %v8753, %v8291
        %v8786 = vsel %vm966, %v8754, %v8293
        %v8787 = vsel %vm966, %v8755, %v8295
        %v8788 = vsel %vm966, %v8756, %v8297
        %v8789 = vsel %vm966, %v8757, %v8299
        %v8790 = vsel %vm966, %v8758, %v8301
        %v8791 = vsel %vm966, %v8759, %v8303
        %v8792 = vsel %vm966, %v8760, %v8305
        %v8793 = vsel %vm966, %v8761, %v8307
        %v8794 = vsel %vm966, %v8762, %v8309
        %v8795 = vsel %vm966, %v8763, %v8311
        %v8796 = vsel %vm966, %v8764, %v8313
        %v8797 = vsel %vm966, %v8765, %v8315
        %v8798 = vsel %vm966, %v8766, %v8317
        %vm8799 = vcmask 97280
        %v8800 = vsel %vm8799, %v8767, %v8383
        %v8801 = vsel %vm8799, %v8768, %v8385
        %v8802 = vsel %vm8799, %v8769, %v8387
        %v8803 = vsel %vm8799, %v8770, %v8389
        %v8804 = vsel %vm8799, %v8771, %v8391
        %v8805 = vsel %vm8799, %v8772, %v8393
        %v8806 = vsel %vm8799, %v8773, %v8395
        %v8807 = vsel %vm8799, %v8774, %v8397
        %v8808 = vsel %vm8799, %v8775, %v8399
        %v8809 = vsel %vm8799, %v8776, %v8401
        %v8810 = vsel %vm8799, %v8777, %v8403
        %v8811 = vsel %vm8799, %v8778, %v8405
        %v8812 = vsel %vm8799, %v8779, %v8407
        %v8813 = vsel %vm8799, %v8780, %v8409
        %v8814 = vsel %vm8799, %v8781, %v8411
        %v8815 = vsel %vm8799, %v8782, %v8413
        %v8816 = vsel %vm8799, %v8783, %v8415
        %v8817 = vsel %vm8799, %v8784, %v8417
        %v8818 = vsel %vm8799, %v8785, %v8419
        %v8819 = vsel %vm8799, %v8786, %v8421
        %v8820 = vsel %vm8799, %v8787, %v8423
        %v8821 = vsel %vm8799, %v8788, %v8425
        %v8822 = vsel %vm8799, %v8789, %v8427
        %v8823 = vsel %vm8799, %v8790, %v8429
        %v8824 = vsel %vm8799, %v8791, %v8431
        %v8825 = vsel %vm8799, %v8792, %v8433
        %v8826 = vsel %vm8799, %v8793, %v8435
        %v8827 = vsel %vm8799, %v8794, %v8437
        %v8828 = vsel %vm8799, %v8795, %v8439
        %v8829 = vsel %vm8799, %v8796, %v8441
        %v8830 = vsel %vm8799, %v8797, %v8443
        %v8831 = vsel %vm8799, %v8798, %v8445
        %vm8832 = vcmask 130048
        %v8833 = vsel %vm8832, %v8800, %v8511
        %v8834 = vsel %vm8832, %v8801, %v8513
        %v8835 = vsel %vm8832, %v8802, %v8515
        %v8836 = vsel %vm8832, %v8803, %v8517
        %v8837 = vsel %vm8832, %v8804, %v8519
        %v8838 = vsel %vm8832, %v8805, %v8521
        %v8839 = vsel %vm8832, %v8806, %v8523
        %v8840 = vsel %vm8832, %v8807, %v8525
        %v8841 = vsel %vm8832, %v8808, %v8527
        %v8842 = vsel %vm8832, %v8809, %v8529
        %v8843 = vsel %vm8832, %v8810, %v8531
        %v8844 = vsel %vm8832, %v8811, %v8533
        %v8845 = vsel %vm8832, %v8812, %v8535
        %v8846 = vsel %vm8832, %v8813, %v8537
        %v8847 = vsel %vm8832, %v8814, %v8539
        %v8848 = vsel %vm8832, %v8815, %v8541
        %v8849 = vsel %vm8832, %v8816, %v8543
        %v8850 = vsel %vm8832, %v8817, %v8545
        %v8851 = vsel %vm8832, %v8818, %v8547
        %v8852 = vsel %vm8832, %v8819, %v8549
        %v8853 = vsel %vm8832, %v8820, %v8551
        %v8854 = vsel %vm8832, %v8821, %v8553
        %v8855 = vsel %vm8832, %v8822, %v8555
        %v8856 = vsel %vm8832, %v8823, %v8557
        %v8857 = vsel %vm8832, %v8824, %v8559
        %v8858 = vsel %vm8832, %v8825, %v8561
        %v8859 = vsel %vm8832, %v8826, %v8563
        %v8860 = vsel %vm8832, %v8827, %v8565
        %v8861 = vsel %vm8832, %v8828, %v8567
        %v8862 = vsel %vm8832, %v8829, %v8569
        %v8863 = vsel %vm8832, %v8830, %v8571
        %v8864 = vsel %vm8832, %v8831, %v8573
        %vm8865 = vcmask 162816
        %v8866 = vsel %vm8865, %v8833, %v8639
        %v8867 = vsel %vm8865, %v8834, %v8641
        %v8868 = vsel %vm8865, %v8835, %v8643
        %v8869 = vsel %vm8865, %v8836, %v8645
        %v8870 = vsel %vm8865, %v8837, %v8647
        %v8871 = vsel %vm8865, %v8838, %v8649
        %v8872 = vsel %vm8865, %v8839, %v8651
        %v8873 = vsel %vm8865, %v8840, %v8653
        %v8874 = vsel %vm8865, %v8841, %v8655
        %v8875 = vsel %vm8865, %v8842, %v8657
        %v8876 = vsel %vm8865, %v8843, %v8659
        %v8877 = vsel %vm8865, %v8844, %v8661
        %v8878 = vsel %vm8865, %v8845, %v8663
        %v8879 = vsel %vm8865, %v8846, %v8665
        %v8880 = vsel %vm8865, %v8847, %v8667
        %v8881 = vsel %vm8865, %v8848, %v8669
        %v8882 = vsel %vm8865, %v8849, %v8671
        %v8883 = vsel %vm8865, %v8850, %v8673
        %v8884 = vsel %vm8865, %v8851, %v8675
        %v8885 = vsel %vm8865, %v8852, %v8677
        %v8886 = vsel %vm8865, %v8853, %v8679
        %v8887 = vsel %vm8865, %v8854, %v8681
        %v8888 = vsel %vm8865, %v8855, %v8683
        %v8889 = vsel %vm8865, %v8856, %v8685
        %v8890 = vsel %vm8865, %v8857, %v8687
        %v8891 = vsel %vm8865, %v8858, %v8689
        %v8892 = vsel %vm8865, %v8859, %v8691
        %v8893 = vsel %vm8865, %v8860, %v8693
        %v8894 = vsel %vm8865, %v8861, %v8695
        %v8895 = vsel %vm8865, %v8862, %v8697
        %v8896 = vsel %vm8865, %v8863, %v8699
        %v8897 = vsel %vm8865, %v8864, %v8701
        %vm8898 = vcmask 195584
        %8899 = vst.msk [vmem:[%s541] sm:$0xff] %vm8898, %v8866
        %8900 = vst.msk [vmem:[%s541 + $0x8] sm:$0xff] %vm8898, %v8867
        %8901 = vst.msk [vmem:[%s541 + $0x10] sm:$0xff] %vm8898, %v8868
        %8902 = vst.msk [vmem:[%s541 + $0x18] sm:$0xff] %vm8898, %v8869
        %8903 = vst.msk [vmem:[%s541 + $0x20] sm:$0xff] %vm8898, %v8870
        %8904 = vst.msk [vmem:[%s541 + $0x28] sm:$0xff] %vm8898, %v8871
        %8905 = vst.msk [vmem:[%s541 + $0x30] sm:$0xff] %vm8898, %v8872
        %8906 = vst.msk [vmem:[%s541 + $0x38] sm:$0xff] %vm8898, %v8873
        %8907 = vst.msk [vmem:[%s541 + $0x40] sm:$0xff] %vm8898, %v8874
        %8908 = vst.msk [vmem:[%s541 + $0x48] sm:$0xff] %vm8898, %v8875
        %8909 = vst.msk [vmem:[%s541 + $0x50] sm:$0xff] %vm8898, %v8876
        %8910 = vst.msk [vmem:[%s541 + $0x58] sm:$0xff] %vm8898, %v8877
        %8911 = vst.msk [vmem:[%s541 + $0x60] sm:$0xff] %vm8898, %v8878
        %8912 = vst.msk [vmem:[%s541 + $0x68] sm:$0xff] %vm8898, %v8879
        %8913 = vst.msk [vmem:[%s541 + $0x70] sm:$0xff] %vm8898, %v8880
        %8914 = vst.msk [vmem:[%s541 + $0x78] sm:$0xff] %vm8898, %v8881
        %8915 = vst.msk [vmem:[%s541 + $0x80] sm:$0xff] %vm8898, %v8882
        %8916 = vst.msk [vmem:[%s541 + $0x88] sm:$0xff] %vm8898, %v8883
        %8917 = vst.msk [vmem:[%s541 + $0x90] sm:$0xff] %vm8898, %v8884
        %8918 = vst.msk [vmem:[%s541 + $0x98] sm:$0xff] %vm8898, %v8885
        %8919 = vst.msk [vmem:[%s541 + $0xa0] sm:$0xff] %vm8898, %v8886
        %8920 = vst.msk [vmem:[%s541 + $0xa8] sm:$0xff] %vm8898, %v8887
        %8921 = vst.msk [vmem:[%s541 + $0xb0] sm:$0xff] %vm8898, %v8888
        %8922 = vst.msk [vmem:[%s541 + $0xb8] sm:$0xff] %vm8898, %v8889
        %8923 = vst.msk [vmem:[%s541 + $0xc0] sm:$0xff] %vm8898, %v8890
        %8924 = vst.msk [vmem:[%s541 + $0xc8] sm:$0xff] %vm8898, %v8891
        %8925 = vst.msk [vmem:[%s541 + $0xd0] sm:$0xff] %vm8898, %v8892
        %8926 = vst.msk [vmem:[%s541 + $0xd8] sm:$0xff] %vm8898, %v8893
        %8927 = vst.msk [vmem:[%s541 + $0xe0] sm:$0xff] %vm8898, %v8894
        %8928 = vst.msk [vmem:[%s541 + $0xe8] sm:$0xff] %vm8898, %v8895
        %8929 = vst.msk [vmem:[%s541 + $0xf0] sm:$0xff] %vm8898, %v8896
        %8930 = vst.msk [vmem:[%s541 + $0xf8] sm:$0xff] %vm8898, %v8897
        %s8931 = sand.u32 %s401, 1
        %s8932 = scalar_lea.sflag [#allocation3], %s8931
        %s8933 = sand.u32 %s401, 1
        %s8934 = smul.addr %s8933, 256
        %s8935 = scalar_lea.vmem [#allocation2], %s8934
        // Predicated region
        $region89: #{inception_c_forward.1} parent=87 // pred_check
          %p8936 = pneg %p411
        $region90: #{inception_c_forward.1} parent=87 // pred_check_branch
          %8938 = sbr.rel (%p8936) target = $region92
        $region91: #{inception_c_forward.1} parent=87 // pred_region
          %s8940 = ssub.s32 4096, 4096
          %8941 = vsyncadd %s8932, %s8940
          %s8942 = smul.addr %s31, 32
          %s8943 = smul.addr %s8942, 128
          %s8944 = scalar_lea.hbm %s17, %s8943
          %s8945 = sshll.u32 %s8935, 4
          %s8946 = int_to_ptr.vmem [resolvable:$true] %s8945
          %8951 = dma.vmem_to_hbm [thread:$0]  %s8946, 4096, %s8944, %s8932, 128, 128, 8
        $region92: #{inception_c_forward.1} parent=87 // pred_fallthru
          _
      $region88: #{inception_c_forward.1} parent=5 // pred_fallthru
        _
      %p8952 = scmp.le.s32.totalorder 2, %s26
      // Predicated region
      $region93: #{inception_c_forward.1} parent=5 // pred_check
        %p8953 = pneg %p8952
      $region94: #{inception_c_forward.1} parent=5 // pred_check_branch
        %8955 = sbr.rel (%p8953) target = $region96
      $region95: #{inception_c_forward.1} parent=5 // pred_region
        %s8956 = ssub.s32 %s26, 2
        // Predicated region
        $region97: #{inception_c_forward.1} parent=95 // pred_check
          %p8957 = pneg %p417
        $region98: #{inception_c_forward.1} parent=95 // pred_check_branch
          %8959 = sbr.rel (%p8957) target = $region100
        $region99: #{inception_c_forward.1} parent=95 // pred_region
          %s8960 = sand.u32 %s402, 1
          %s8961 = scalar_lea.sflag [#allocation3], %s8960
          %s8962 = sand.u32 %s402, 1
          %s8963 = smul.addr %s8962, 256
          %s8964 = scalar_lea.vmem [#allocation2], %s8963
          %8965 = dma.done %s8961, 4096
        $region100: #{inception_c_forward.1} parent=95 // pred_fallthru
          _
      $region96: #{inception_c_forward.1} parent=5 // pred_fallthru
        _
    $region6: #{inception_c_forward.1} parent=1 // loop_footer
      %s30 = sadd.s32 1, %s26
    $region7: #{inception_c_forward.1} parent=1 // loop_footer_branch
      %25 = sbr.rel target = $region3
    $region8: #{inception_c_forward.1} parent=1 // loop_exit
      _
    %8966 = vsyncpa [#allocation3], 1
    %s8967 = scalar_lea.sflag [#allocation3], 1
    %8968 = vsyncpa %s8967, 1

</llo_original>
